<compile_context>
chip_gen: v7x
topology: tpu7x:2x2x1
jax: 0.10.0
libtpu: 0.0.40
codegen_flags: <defaults>
</compile_context>

<pallas_src>
import functools
import math

import jax
import jax.numpy as jnp
from jax.experimental import pallas as pl
from jax.experimental.pallas import tpu as pltpu


def hop_biased_layer_kernel(x_ref, wqkv_ref, wo_ref, w1_ref, w2_ref,
                            bias_ref, vec_ref, o_ref,
                            *, num_heads, d_head, tile_n, n_edges,
                            d_model, d_ff, offs):
    rows = tile_n * n_edges
    f32 = jnp.float32

    def vec(name, width):
        o = offs[name]                              # static, lane-aligned offset
        return vec_ref[:, o:o + width]

    x2 = x_ref[...].astype(f32)                     # (rows, D)

    # Fused QKV projection: one MXU matmul over all rows.
    # 1/sqrt(d_head) is already folded into the Q columns of wqkv / bqkv.
    qkv = jnp.dot(x2, wqkv_ref[...],
                  preferred_element_type=f32) + vec("bqkv", 3 * d_model)

    # Gather head-major operands: (H, tile_n, E, d_head) flattened to one
    # (H*tile_n) batch axis so attention is two batched dot_generals total.
    def heads(col0):
        return jnp.stack(
            [qkv[:, col0 + h * d_head: col0 + (h + 1) * d_head]
                 .reshape(tile_n, n_edges, d_head)
             for h in range(num_heads)],
            axis=0).reshape(num_heads * tile_n, n_edges, d_head)

    qb = heads(0)
    kb = heads(d_model)
    vb = heads(2 * d_model)

    # scores: (H*tile_n, E, E), batch over leading axis, contract d_head.
    s = jax.lax.dot_general(qb, kb, (((2,), (2,)), ((0,), (0,))),
                            preferred_element_type=f32)
    # single hop-bias add (gamma_h * mask_h precomputed), broadcast over slabs.
    s = s.reshape(num_heads, tile_n, n_edges, n_edges) + bias_ref[...][:, None]
    s = s - jnp.max(s, axis=-1, keepdims=True)
    p = jnp.exp(s)
    # exact reciprocal kept (approx=True would risk the 1e-4 check).
    p = p * (1.0 / jnp.sum(p, axis=-1, keepdims=True))
    p = p.reshape(num_heads * tile_n, n_edges, n_edges)

    # context: (H*tile_n, E, d_head), contract over keys.
    ctx = jax.lax.dot_general(p, vb, (((2,), (1,)), ((0,), (0,))),
                              preferred_element_type=f32)
    ctx = ctx.reshape(num_heads, tile_n, n_edges, d_head)
    # merge heads back to (rows, D) with one lane concatenate (no scratch,
    # no masked slice-writes, no VMEM round trip).
    ctx2 = jnp.concatenate([ctx[h] for h in range(num_heads)],
                           axis=-1).reshape(rows, d_model)

    attn_out = jnp.dot(ctx2, wo_ref[...],
                       preferred_element_type=f32) + vec("bo", d_model)

    def layernorm(z, g, b):
        mu = jnp.mean(z, axis=-1, keepdims=True)
        var = jnp.mean((z - mu) ** 2, axis=-1, keepdims=True)
        return (z - mu) * jax.lax.rsqrt(var + 1e-5) * g + b

    # dropout1 / dropout2 are identity at inference time.
    y1 = layernorm(x2 + attn_out, vec("ln1g", d_model), vec("ln1b", d_model))
    h1 = jnp.maximum(
        jnp.dot(y1, w1_ref[...], preferred_element_type=f32) + vec("b1", d_ff),
        0.0)
    ff = jnp.dot(h1, w2_ref[...], preferred_element_type=f32) + vec("b2", d_model)
    y2 = layernorm(y1 + ff, vec("ln2g", d_model), vec("ln2b", d_model))

    o_ref[...] = y2.astype(o_ref.dtype)


def prepare_params(params, *, num_heads):
    """One-time constant transform: fuse QKV + fold scale, bake hop bias, and
    pack the tiny row-vectors into one lane-aligned buffer (one DMA)."""
    d_model = params["wq"].shape[0]
    d_head = d_model // num_heads
    scale = 1.0 / math.sqrt(d_head)

    wqkv = jnp.concatenate([params["wq"] * scale, params["wk"], params["wv"]],
                           axis=1)
    bqkv = jnp.concatenate([params["bq"] * scale, params["bk"], params["bv"]],
                           axis=1)
    bias = params["gamma"][0, :, None, None] * params["mask"]      # (H, E, E)

    segs = [("bqkv", bqkv), ("bo", params["bo"]), ("b1", params["b1"]),
            ("b2", params["b2"]), ("ln1g", params["ln1g"]),
            ("ln1b", params["ln1b"]), ("ln2g", params["ln2g"]),
            ("ln2b", params["ln2b"])]
    offs, parts, cur = {}, [], 0
    for name, v in segs:
        v = v.reshape(1, -1).astype(jnp.float32)
        w = v.shape[1]
        pad = (-w) % 128                      # lane-aligned segment starts
        offs[name] = cur
        if pad:
            v = jnp.concatenate([v, jnp.zeros((1, pad), jnp.float32)], axis=1)
        parts.append(v)
        cur += w + pad
    vec = jnp.concatenate(parts, axis=1)

    prep = {"wqkv": wqkv, "wo": params["wo"], "w1": params["w1"],
            "w2": params["w2"], "bias": bias, "vec": vec}
    return prep, offs


def _step_vmem_bytes(tile_n, n_edges, d_model, d_ff, num_heads):
    """Rough per-grid-step f32 VMEM footprint (tiles, weights, intermediates)."""
    rows = tile_n * n_edges
    io = 2 * 2 * rows * d_model                                  # in/out tiles (x2 buf)
    weights = 2 * (d_model * (3 * d_model + d_model + d_ff)
                   + d_ff * d_model
                   + num_heads * n_edges * n_edges
                   + 8 * 128)
    interm = rows * (8 * d_model + d_ff) \
             + 3 * tile_n * num_heads * n_edges * n_edges        # scores/probs
    return 4 * (io + weights + interm)


def _choose_tile_n(n, n_edges, d_model, d_ff, num_heads,
                   rows_target=512, vmem_budget=24 << 20):
    """Slabs per grid step.  No forced multi-step split: one big step whenever
    it fits (grid is a serial loop on 1-TC chips); padding avoided when a
    divisor of N works."""
    target = max(1, rows_target // max(1, n_edges))
    while target > 1 and _step_vmem_bytes(target, n_edges, d_model, d_ff,
                                          num_heads) > vmem_budget:
        target //= 2
    if n <= target:
        return n, n                         # single grid step, no padding
    # Multi-step: prefer a tile that divides N (no padding copy) and keeps the
    # block's sublane dim (tile*E) a multiple of 8.
    best = 0
    for d in range(target, 0, -1):
        if n % d == 0 and (d * n_edges) % 8 == 0:
            best = d
            break
    if best and best * n_edges >= 64:
        return best, n
    tile = max(1, target)
    while (tile * n_edges) % 8 != 0:
        tile += 1
    n_total = ((n + tile - 1) // tile) * tile
    return tile, n_total


def hop_biased_self_attention_layer(x, prep, offs, *, num_heads):
    """x: (B, T, E, d_model) float32 -> (B, T, E, d_model) float32."""
    B, T, E, D = x.shape
    N = B * T
    d_head = D // num_heads
    d_ff = prep["w1"].shape[1]

    tile_n, n_total = _choose_tile_n(N, E, D, d_ff, num_heads)
    rows_blk = tile_n * E

    x2d = x.reshape(N * E, D)
    if n_total > N:
        x2d = jnp.concatenate(
            [x2d, jnp.zeros(((n_total - N) * E, D), x2d.dtype)], axis=0)
    grid = (n_total // tile_n,)

    param_order = ["wqkv", "wo", "w1", "w2", "bias", "vec"]
    param_vals = [prep[k] for k in param_order]

    def const_spec(arr):
        nd = arr.ndim
        # Constant index_map -> parameter stays resident across the grid.
        return pl.BlockSpec(arr.shape, lambda n, _nd=nd: (0,) * _nd)

    in_specs = [pl.BlockSpec((rows_blk, D), lambda n: (n, 0))] + \
               [const_spec(p) for p in param_vals]
    out_spec = pl.BlockSpec((rows_blk, D), lambda n: (n, 0))

    kernel = functools.partial(
        hop_biased_layer_kernel, num_heads=num_heads, d_head=d_head,
        tile_n=tile_n, n_edges=E, d_model=D, d_ff=d_ff, offs=offs)

    vmem_est = _step_vmem_bytes(tile_n, E, D, d_ff, num_heads)
    extra = {}
    if vmem_est > (32 << 20):                       # raise only when needed
        extra["vmem_limit_bytes"] = int(min(48 << 20, vmem_est * 3 // 2))

    out2d = pl.pallas_call(
        kernel,
        out_shape=jax.ShapeDtypeStruct((n_total * E, D), jnp.float32),
        grid_spec=pltpu.PrefetchScalarGridSpec(
            num_scalar_prefetch=0,
            grid=grid,
            in_specs=in_specs,
            out_specs=out_spec,
        ),
        compiler_params=pltpu.CompilerParams(
            dimension_semantics=("parallel",), **extra),
    )(x2d, *param_vals)

    return out2d[: N * E].reshape(B, T, E, D)


def reference_forward(x, params, *, num_heads):
    """Pure-JAX reference mirroring the PyTorch forward (eval mode)."""
    B, T, E, D = x.shape
    d_head = D // num_heads
    xf = x.reshape(B * T, E, D)

    q = xf @ params["wq"] + params["bq"]
    k = xf @ params["wk"] + params["bk"]
    v = xf @ params["wv"] + params["bv"]

    def split(z):
        return z.reshape(B * T, E, num_heads, d_head).transpose(0, 2, 1, 3)

    qh, kh, vh = split(q), split(k), split(v)
    scores = jnp.einsum("nhqd,nhkd->nhqk", qh, kh) / math.sqrt(d_head)
    bias = params["gamma"][0, :, None, None] * params["mask"]      # (H, E, E)
    scores = scores + bias[None]
    attn = jax.nn.softmax(scores, axis=-1)
    ctx = jnp.einsum("nhqk,nhkd->nhqd", attn, vh)
    ctx = ctx.transpose(0, 2, 1, 3).reshape(B * T, E, D)
    attn_out = ctx @ params["wo"] + params["bo"]

    def ln(z, g, b):
        mu = jnp.mean(z, axis=-1, keepdims=True)
        var = jnp.mean((z - mu) ** 2, axis=-1, keepdims=True)
        return (z - mu) / jnp.sqrt(var + 1e-5) * g + b

    y1 = ln(xf + attn_out, params["ln1g"], params["ln1b"])
    ff = jnp.maximum(y1 @ params["w1"] + params["b1"], 0.0) @ params["w2"] \
         + params["b2"]
    y2 = ln(y1 + ff, params["ln2g"], params["ln2b"])
    return y2.reshape(B, T, E, D)


if __name__ == "__main__":
    B, T, E = 2, 4, 16
    D = 32                      # model_dim
    FF = 64                     # feed_forward_dim
    H = 4                       # num_heads = max_hop + 1

    key = jax.random.PRNGKey(0)
    keys = jax.random.split(key, 16)

    # synthetic shortest-path-distance matrix between E edges (integer hops)
    edge_spd = jax.random.randint(keys[0], (E, E), 0, H + 2)
    hop_masks = [jnp.zeros((E, E), jnp.float32)] + \
                [(edge_spd == i).astype(jnp.float32) for i in range(1, H)]
    mask_stack = jnp.stack(hop_masks, axis=0)                     # (H, E, E)

    def w(k, shape, scale=0.1):
        return jax.random.normal(k, shape, jnp.float32) * scale

    params = {
        "wq": w(keys[1], (D, D)), "bq": w(keys[2], (1, D)),
        "wk": w(keys[3], (D, D)), "bk": w(keys[4], (1, D)),
        "wv": w(keys[5], (D, D)), "bv": w(keys[6], (1, D)),
        "wo": w(keys[7], (D, D)), "bo": w(keys[8], (1, D)),
        "gamma": jnp.ones((1, H), jnp.float32),                   # hop_gamma init = ones
        "mask": mask_stack,
        "w1": w(keys[9], (D, FF)), "b1": w(keys[10], (1, FF)),
        "w2": w(keys[11], (FF, D)), "b2": w(keys[12], (1, D)),
        "ln1g": jnp.ones((1, D), jnp.float32), "ln1b": jnp.zeros((1, D), jnp.float32),
        "ln2g": jnp.ones((1, D), jnp.float32), "ln2b": jnp.zeros((1, D), jnp.float32),
    }

    x = jax.random.normal(keys[13], (B, T, E, D), jnp.float32)

    prep, offs = prepare_params(params, num_heads=H)   # one-time constant transform
    out = hop_biased_self_attention_layer(x, prep, offs, num_heads=H)
    out = jax.block_until_ready(out)

    ref = reference_forward(x, params, num_heads=H)
    assert out.shape == (B, T, E, D)
    assert jnp.allclose(out, ref, rtol=1e-4, atol=1e-4), \
        f"max abs err = {jnp.max(jnp.abs(out - ref))}"

    print("KERNEL_OK")
</pallas_src>

<mosaic_0001>
module attributes {stable_mosaic.version = 11 : i64} {
  func.func @hop_biased_layer_kernel(%arg0: i32, %arg1: memref<128x32xf32, #tpu.memory_space<vmem>>, %arg2: memref<32x96xf32, #tpu.memory_space<vmem>>, %arg3: memref<32x32xf32, #tpu.memory_space<vmem>>, %arg4: memref<32x64xf32, #tpu.memory_space<vmem>>, %arg5: memref<64x32xf32, #tpu.memory_space<vmem>>, %arg6: memref<4x16x16xf32, #tpu.memory_space<vmem>>, %arg7: memref<1x1024xf32, #tpu.memory_space<vmem>>, %arg8: memref<128x32xf32, #tpu.memory_space<vmem>>) attributes {dimension_semantics = [#tpu.dimension_semantics<parallel>], iteration_bounds = array<i64: 1>, scalar_prefetch = 0 : i64, scratch_operands = 0 : i64, tpu.core_type = #tpu.core_type<tc>, window_params = [{transform_indices = @transform_0, window_bounds = array<i64: 128, 32>}, {pipeline_mode = #tpu.pipeline_mode<synchronous>, transform_indices = @transform_1, window_bounds = array<i64: 32, 96>}, {pipeline_mode = #tpu.pipeline_mode<synchronous>, transform_indices = @transform_2, window_bounds = array<i64: 32, 32>}, {pipeline_mode = #tpu.pipeline_mode<synchronous>, transform_indices = @transform_3, window_bounds = array<i64: 32, 64>}, {pipeline_mode = #tpu.pipeline_mode<synchronous>, transform_indices = @transform_4, window_bounds = array<i64: 64, 32>}, {pipeline_mode = #tpu.pipeline_mode<synchronous>, transform_indices = @transform_5, window_bounds = array<i64: 4, 16, 16>}, {pipeline_mode = #tpu.pipeline_mode<synchronous>, transform_indices = @transform_6, window_bounds = array<i64: 1, 1024>}, {transform_indices = @transform_7, window_bounds = array<i64: 128, 32>}]} {
    %c0 = arith.constant 0 : index
    %c0_0 = arith.constant 0 : index
    %0 = vector.load %arg1[%c0, %c0_0] : memref<128x32xf32, #tpu.memory_space<vmem>>, vector<128x32xf32>
    %c0_1 = arith.constant 0 : index
    %c0_2 = arith.constant 0 : index
    %1 = vector.load %arg2[%c0_1, %c0_2] : memref<32x96xf32, #tpu.memory_space<vmem>>, vector<32x96xf32>
    %cst = arith.constant dense<0.000000e+00> : vector<128x96xf32>
    %2 = tpu.matmul %0, %1, %cst {dimension_numbers = #tpu.dot_dimension_numbers<[1], [0], [0], [1], [0, 0, 1, 1], [], []>} : vector<128x32xf32>, vector<32x96xf32>, vector<128x96xf32> -> vector<128x96xf32>
    %c0_3 = arith.constant 0 : index
    %c0_4 = arith.constant 0 : index
    %3 = vector.load %arg7[%c0_3, %c0_4] : memref<1x1024xf32, #tpu.memory_space<vmem>>, vector<1x96xf32>
    %4 = vector.broadcast %3 : vector<1x96xf32> to vector<128x96xf32>
    %5 = arith.addf %2, %4 : vector<128x96xf32>
    %6 = vector.extract_strided_slice %5 {offsets = [0, 0], sizes = [128, 8], strides = [1, 1]} : vector<128x96xf32> to vector<128x8xf32>
    %7 = vector.shape_cast %6 : vector<128x8xf32> to vector<8x16x8xf32>
    %8 = vector.extract_strided_slice %5 {offsets = [0, 8], sizes = [128, 8], strides = [1, 1]} : vector<128x96xf32> to vector<128x8xf32>
    %9 = vector.shape_cast %8 : vector<128x8xf32> to vector<8x16x8xf32>
    %10 = vector.extract_strided_slice %5 {offsets = [0, 16], sizes = [128, 8], strides = [1, 1]} : vector<128x96xf32> to vector<128x8xf32>
    %11 = vector.shape_cast %10 : vector<128x8xf32> to vector<8x16x8xf32>
    %12 = vector.extract_strided_slice %5 {offsets = [0, 24], sizes = [128, 8], strides = [1, 1]} : vector<128x96xf32> to vector<128x8xf32>
    %13 = vector.shape_cast %12 : vector<128x8xf32> to vector<8x16x8xf32>
    %14 = vector.shape_cast %7 : vector<8x16x8xf32> to vector<1x8x16x8xf32>
    %15 = vector.shape_cast %9 : vector<8x16x8xf32> to vector<1x8x16x8xf32>
    %16 = vector.shape_cast %11 : vector<8x16x8xf32> to vector<1x8x16x8xf32>
    %17 = vector.shape_cast %13 : vector<8x16x8xf32> to vector<1x8x16x8xf32>
    %18 = tpu.concatenate %14, %15, %16, %17 in 0 : vector<1x8x16x8xf32>, vector<1x8x16x8xf32>, vector<1x8x16x8xf32>, vector<1x8x16x8xf32> -> vector<4x8x16x8xf32>
    %19 = vector.shape_cast %18 : vector<4x8x16x8xf32> to vector<32x16x8xf32>
    %20 = vector.extract_strided_slice %5 {offsets = [0, 32], sizes = [128, 8], strides = [1, 1]} : vector<128x96xf32> to vector<128x8xf32>
    %21 = vector.shape_cast %20 : vector<128x8xf32> to vector<8x16x8xf32>
    %22 = vector.extract_strided_slice %5 {offsets = [0, 40], sizes = [128, 8], strides = [1, 1]} : vector<128x96xf32> to vector<128x8xf32>
    %23 = vector.shape_cast %22 : vector<128x8xf32> to vector<8x16x8xf32>
    %24 = vector.extract_strided_slice %5 {offsets = [0, 48], sizes = [128, 8], strides = [1, 1]} : vector<128x96xf32> to vector<128x8xf32>
    %25 = vector.shape_cast %24 : vector<128x8xf32> to vector<8x16x8xf32>
    %26 = vector.extract_strided_slice %5 {offsets = [0, 56], sizes = [128, 8], strides = [1, 1]} : vector<128x96xf32> to vector<128x8xf32>
    %27 = vector.shape_cast %26 : vector<128x8xf32> to vector<8x16x8xf32>
    %28 = vector.shape_cast %21 : vector<8x16x8xf32> to vector<1x8x16x8xf32>
    %29 = vector.shape_cast %23 : vector<8x16x8xf32> to vector<1x8x16x8xf32>
    %30 = vector.shape_cast %25 : vector<8x16x8xf32> to vector<1x8x16x8xf32>
    %31 = vector.shape_cast %27 : vector<8x16x8xf32> to vector<1x8x16x8xf32>
    %32 = tpu.concatenate %28, %29, %30, %31 in 0 : vector<1x8x16x8xf32>, vector<1x8x16x8xf32>, vector<1x8x16x8xf32>, vector<1x8x16x8xf32> -> vector<4x8x16x8xf32>
    %33 = vector.shape_cast %32 : vector<4x8x16x8xf32> to vector<32x16x8xf32>
    %34 = vector.extract_strided_slice %5 {offsets = [0, 64], sizes = [128, 8], strides = [1, 1]} : vector<128x96xf32> to vector<128x8xf32>
    %35 = vector.shape_cast %34 : vector<128x8xf32> to vector<8x16x8xf32>
    %36 = vector.extract_strided_slice %5 {offsets = [0, 72], sizes = [128, 8], strides = [1, 1]} : vector<128x96xf32> to vector<128x8xf32>
    %37 = vector.shape_cast %36 : vector<128x8xf32> to vector<8x16x8xf32>
    %38 = vector.extract_strided_slice %5 {offsets = [0, 80], sizes = [128, 8], strides = [1, 1]} : vector<128x96xf32> to vector<128x8xf32>
    %39 = vector.shape_cast %38 : vector<128x8xf32> to vector<8x16x8xf32>
    %40 = vector.extract_strided_slice %5 {offsets = [0, 88], sizes = [128, 8], strides = [1, 1]} : vector<128x96xf32> to vector<128x8xf32>
    %41 = vector.shape_cast %40 : vector<128x8xf32> to vector<8x16x8xf32>
    %42 = vector.shape_cast %35 : vector<8x16x8xf32> to vector<1x8x16x8xf32>
    %43 = vector.shape_cast %37 : vector<8x16x8xf32> to vector<1x8x16x8xf32>
    %44 = vector.shape_cast %39 : vector<8x16x8xf32> to vector<1x8x16x8xf32>
    %45 = vector.shape_cast %41 : vector<8x16x8xf32> to vector<1x8x16x8xf32>
    %46 = tpu.concatenate %42, %43, %44, %45 in 0 : vector<1x8x16x8xf32>, vector<1x8x16x8xf32>, vector<1x8x16x8xf32>, vector<1x8x16x8xf32> -> vector<4x8x16x8xf32>
    %47 = vector.shape_cast %46 : vector<4x8x16x8xf32> to vector<32x16x8xf32>
    %cst_5 = arith.constant dense<0.000000e+00> : vector<32x16x16xf32>
    %48 = tpu.matmul %19, %33, %cst_5 {dimension_numbers = #tpu.dot_dimension_numbers<[2], [2], [1], [1], [0, 0, 0, 1, 1, 1], [0], [0]>} : vector<32x16x8xf32>, vector<32x16x8xf32>, vector<32x16x16xf32> -> vector<32x16x16xf32>
    %49 = vector.shape_cast %48 : vector<32x16x16xf32> to vector<4x8x16x16xf32>
    %c0_6 = arith.constant 0 : index
    %c0_7 = arith.constant 0 : index
    %c0_8 = arith.constant 0 : index
    %50 = vector.load %arg6[%c0_6, %c0_7, %c0_8] : memref<4x16x16xf32, #tpu.memory_space<vmem>>, vector<4x16x16xf32>
    %51 = vector.shape_cast %50 : vector<4x16x16xf32> to vector<4x1x16x16xf32>
    %52 = vector.broadcast %51 : vector<4x1x16x16xf32> to vector<4x8x16x16xf32>
    %53 = arith.addf %49, %52 : vector<4x8x16x16xf32>
    %cst_9 = arith.constant dense<0xFF800000> : vector<4x8x16xf32>
    %54 = vector.multi_reduction <maximumf>, %53, %cst_9 [3] : vector<4x8x16x16xf32> to vector<4x8x16xf32>
    %55 = vector.shape_cast %54 : vector<4x8x16xf32> to vector<4x8x16x1xf32>
    %56 = vector.broadcast %55 : vector<4x8x16x1xf32> to vector<4x8x16x16xf32>
    %57 = arith.subf %53, %56 : vector<4x8x16x16xf32>
    %58 = math.exp %57 : vector<4x8x16x16xf32>
    %cst_10 = arith.constant dense<0.000000e+00> : vector<4x8x16xf32>
    %59 = vector.multi_reduction <add>, %58, %cst_10 [3] : vector<4x8x16x16xf32> to vector<4x8x16xf32>
    %60 = vector.shape_cast %59 : vector<4x8x16xf32> to vector<4x8x16x1xf32>
    %cst_11 = arith.constant 1.000000e+00 : f32
    %61 = vector.broadcast %cst_11 : f32 to vector<4x8x16x1xf32>
    %62 = arith.divf %61, %60 : vector<4x8x16x1xf32>
    %63 = vector.broadcast %62 : vector<4x8x16x1xf32> to vector<4x8x16x16xf32>
    %64 = arith.mulf %58, %63 : vector<4x8x16x16xf32>
    %65 = vector.shape_cast %64 : vector<4x8x16x16xf32> to vector<32x16x16xf32>
    %cst_12 = arith.constant dense<0.000000e+00> : vector<32x16x8xf32>
    %66 = tpu.matmul %65, %47, %cst_12 {dimension_numbers = #tpu.dot_dimension_numbers<[2], [1], [1], [2], [0, 0, 0, 1, 1, 2], [0], [0]>} : vector<32x16x16xf32>, vector<32x16x8xf32>, vector<32x16x8xf32> -> vector<32x16x8xf32>
    %67 = vector.shape_cast %66 : vector<32x16x8xf32> to vector<4x8x16x8xf32>
    %68 = vector.extract_strided_slice %67 {offsets = [0, 0, 0, 0], sizes = [1, 8, 16, 8], strides = [1, 1, 1, 1]} : vector<4x8x16x8xf32> to vector<1x8x16x8xf32>
    %69 = vector.shape_cast %68 : vector<1x8x16x8xf32> to vector<8x16x8xf32>
    %70 = vector.extract_strided_slice %67 {offsets = [1, 0, 0, 0], sizes = [1, 8, 16, 8], strides = [1, 1, 1, 1]} : vector<4x8x16x8xf32> to vector<1x8x16x8xf32>
    %71 = vector.shape_cast %70 : vector<1x8x16x8xf32> to vector<8x16x8xf32>
    %72 = vector.extract_strided_slice %67 {offsets = [2, 0, 0, 0], sizes = [1, 8, 16, 8], strides = [1, 1, 1, 1]} : vector<4x8x16x8xf32> to vector<1x8x16x8xf32>
    %73 = vector.shape_cast %72 : vector<1x8x16x8xf32> to vector<8x16x8xf32>
    %74 = vector.extract_strided_slice %67 {offsets = [3, 0, 0, 0], sizes = [1, 8, 16, 8], strides = [1, 1, 1, 1]} : vector<4x8x16x8xf32> to vector<1x8x16x8xf32>
    %75 = vector.shape_cast %74 : vector<1x8x16x8xf32> to vector<8x16x8xf32>
    %76 = tpu.concatenate %69, %71, %73, %75 in 2 : vector<8x16x8xf32>, vector<8x16x8xf32>, vector<8x16x8xf32>, vector<8x16x8xf32> -> vector<8x16x32xf32>
    %77 = vector.shape_cast %76 : vector<8x16x32xf32> to vector<128x32xf32>
    %c0_13 = arith.constant 0 : index
    %c0_14 = arith.constant 0 : index
    %78 = vector.load %arg3[%c0_13, %c0_14] : memref<32x32xf32, #tpu.memory_space<vmem>>, vector<32x32xf32>
    %cst_15 = arith.constant dense<0.000000e+00> : vector<128x32xf32>
    %79 = tpu.matmul %77, %78, %cst_15 {dimension_numbers = #tpu.dot_dimension_numbers<[1], [0], [0], [1], [0, 0, 1, 1], [], []>} : vector<128x32xf32>, vector<32x32xf32>, vector<128x32xf32> -> vector<128x32xf32>
    %c0_16 = arith.constant 0 : index
    %c128 = arith.constant 128 : index
    %80 = vector.load %arg7[%c0_16, %c128] : memref<1x1024xf32, #tpu.memory_space<vmem>>, vector<1x32xf32>
    %81 = vector.broadcast %80 : vector<1x32xf32> to vector<128x32xf32>
    %82 = arith.addf %79, %81 : vector<128x32xf32>
    %83 = arith.addf %0, %82 : vector<128x32xf32>
    %c0_17 = arith.constant 0 : index
    %c512 = arith.constant 512 : index
    %84 = vector.load %arg7[%c0_17, %c512] : memref<1x1024xf32, #tpu.memory_space<vmem>>, vector<1x32xf32>
    %c0_18 = arith.constant 0 : index
    %c640 = arith.constant 640 : index
    %85 = vector.load %arg7[%c0_18, %c640] : memref<1x1024xf32, #tpu.memory_space<vmem>>, vector<1x32xf32>
    %cst_19 = arith.constant dense<0.000000e+00> : vector<128xf32>
    %86 = vector.multi_reduction <add>, %83, %cst_19 [1] : vector<128x32xf32> to vector<128xf32>
    %87 = vector.shape_cast %86 : vector<128xf32> to vector<128x1xf32>
    %cst_20 = arith.constant 3.200000e+01 : f32
    %88 = vector.broadcast %cst_20 : f32 to vector<128x1xf32>
    %89 = arith.divf %87, %88 : vector<128x1xf32>
    %90 = vector.broadcast %89 : vector<128x1xf32> to vector<128x32xf32>
    %91 = arith.subf %83, %90 : vector<128x32xf32>
    %92 = arith.mulf %91, %91 : vector<128x32xf32>
    %cst_21 = arith.constant dense<0.000000e+00> : vector<128xf32>
    %93 = vector.multi_reduction <add>, %92, %cst_21 [1] : vector<128x32xf32> to vector<128xf32>
    %94 = vector.shape_cast %93 : vector<128xf32> to vector<128x1xf32>
    %cst_22 = arith.constant 3.200000e+01 : f32
    %95 = vector.broadcast %cst_22 : f32 to vector<128x1xf32>
    %96 = arith.divf %94, %95 : vector<128x1xf32>
    %97 = vector.broadcast %89 : vector<128x1xf32> to vector<128x32xf32>
    %98 = arith.subf %83, %97 : vector<128x32xf32>
    %cst_23 = arith.constant 9.99999974E-6 : f32
    %99 = vector.broadcast %cst_23 : f32 to vector<128x1xf32>
    %100 = arith.addf %96, %99 : vector<128x1xf32>
    %101 = math.rsqrt %100 : vector<128x1xf32>
    %102 = vector.broadcast %101 : vector<128x1xf32> to vector<128x32xf32>
    %103 = arith.mulf %98, %102 : vector<128x32xf32>
    %104 = vector.broadcast %84 : vector<1x32xf32> to vector<128x32xf32>
    %105 = arith.mulf %103, %104 : vector<128x32xf32>
    %106 = vector.broadcast %85 : vector<1x32xf32> to vector<128x32xf32>
    %107 = arith.addf %105, %106 : vector<128x32xf32>
    %c0_24 = arith.constant 0 : index
    %c0_25 = arith.constant 0 : index
    %108 = vector.load %arg4[%c0_24, %c0_25] : memref<32x64xf32, #tpu.memory_space<vmem>>, vector<32x64xf32>
    %cst_26 = arith.constant dense<0.000000e+00> : vector<128x64xf32>
    %109 = tpu.matmul %107, %108, %cst_26 {dimension_numbers = #tpu.dot_dimension_numbers<[1], [0], [0], [1], [0, 0, 1, 1], [], []>} : vector<128x32xf32>, vector<32x64xf32>, vector<128x64xf32> -> vector<128x64xf32>
    %c0_27 = arith.constant 0 : index
    %c256 = arith.constant 256 : index
    %110 = vector.load %arg7[%c0_27, %c256] : memref<1x1024xf32, #tpu.memory_space<vmem>>, vector<1x64xf32>
    %111 = vector.broadcast %110 : vector<1x64xf32> to vector<128x64xf32>
    %112 = arith.addf %109, %111 : vector<128x64xf32>
    %cst_28 = arith.constant 0.000000e+00 : f32
    %113 = vector.broadcast %cst_28 : f32 to vector<128x64xf32>
    %114 = arith.maximumf %112, %113 : vector<128x64xf32>
    %c0_29 = arith.constant 0 : index
    %c0_30 = arith.constant 0 : index
    %115 = vector.load %arg5[%c0_29, %c0_30] : memref<64x32xf32, #tpu.memory_space<vmem>>, vector<64x32xf32>
    %cst_31 = arith.constant dense<0.000000e+00> : vector<128x32xf32>
    %116 = tpu.matmul %114, %115, %cst_31 {dimension_numbers = #tpu.dot_dimension_numbers<[1], [0], [0], [1], [0, 0, 1, 1], [], []>} : vector<128x64xf32>, vector<64x32xf32>, vector<128x32xf32> -> vector<128x32xf32>
    %c0_32 = arith.constant 0 : index
    %c384 = arith.constant 384 : index
    %117 = vector.load %arg7[%c0_32, %c384] : memref<1x1024xf32, #tpu.memory_space<vmem>>, vector<1x32xf32>
    %118 = vector.broadcast %117 : vector<1x32xf32> to vector<128x32xf32>
    %119 = arith.addf %116, %118 : vector<128x32xf32>
    %120 = arith.addf %107, %119 : vector<128x32xf32>
    %c0_33 = arith.constant 0 : index
    %c768 = arith.constant 768 : index
    %121 = vector.load %arg7[%c0_33, %c768] : memref<1x1024xf32, #tpu.memory_space<vmem>>, vector<1x32xf32>
    %c0_34 = arith.constant 0 : index
    %c896 = arith.constant 896 : index
    %122 = vector.load %arg7[%c0_34, %c896] : memref<1x1024xf32, #tpu.memory_space<vmem>>, vector<1x32xf32>
    %cst_35 = arith.constant dense<0.000000e+00> : vector<128xf32>
    %123 = vector.multi_reduction <add>, %120, %cst_35 [1] : vector<128x32xf32> to vector<128xf32>
    %124 = vector.shape_cast %123 : vector<128xf32> to vector<128x1xf32>
    %cst_36 = arith.constant 3.200000e+01 : f32
    %125 = vector.broadcast %cst_36 : f32 to vector<128x1xf32>
    %126 = arith.divf %124, %125 : vector<128x1xf32>
    %127 = vector.broadcast %126 : vector<128x1xf32> to vector<128x32xf32>
    %128 = arith.subf %120, %127 : vector<128x32xf32>
    %129 = arith.mulf %128, %128 : vector<128x32xf32>
    %cst_37 = arith.constant dense<0.000000e+00> : vector<128xf32>
    %130 = vector.multi_reduction <add>, %129, %cst_37 [1] : vector<128x32xf32> to vector<128xf32>
    %131 = vector.shape_cast %130 : vector<128xf32> to vector<128x1xf32>
    %cst_38 = arith.constant 3.200000e+01 : f32
    %132 = vector.broadcast %cst_38 : f32 to vector<128x1xf32>
    %133 = arith.divf %131, %132 : vector<128x1xf32>
    %134 = vector.broadcast %126 : vector<128x1xf32> to vector<128x32xf32>
    %135 = arith.subf %120, %134 : vector<128x32xf32>
    %cst_39 = arith.constant 9.99999974E-6 : f32
    %136 = vector.broadcast %cst_39 : f32 to vector<128x1xf32>
    %137 = arith.addf %133, %136 : vector<128x1xf32>
    %138 = math.rsqrt %137 : vector<128x1xf32>
    %139 = vector.broadcast %138 : vector<128x1xf32> to vector<128x32xf32>
    %140 = arith.mulf %135, %139 : vector<128x32xf32>
    %141 = vector.broadcast %121 : vector<1x32xf32> to vector<128x32xf32>
    %142 = arith.mulf %140, %141 : vector<128x32xf32>
    %143 = vector.broadcast %122 : vector<1x32xf32> to vector<128x32xf32>
    %144 = arith.addf %142, %143 : vector<128x32xf32>
    %c0_40 = arith.constant 0 : index
    %c0_41 = arith.constant 0 : index
    %145 = vector.load %arg8[%c0_40, %c0_41] : memref<128x32xf32, #tpu.memory_space<vmem>>, vector<128x32xf32>
    tpu.vector_store %arg8[%c0_40, %c0_41], %144 {strides = array<i32>} : memref<128x32xf32, #tpu.memory_space<vmem>>, vector<128x32xf32>,
    return
  }
  func.func @transform_0(%arg0: i32) -> (i32, i32) {
    %c0_i32 = arith.constant 0 : i32
    %c0_i32_0 = arith.constant 0 : i32
    return %arg0, %c0_i32 : i32, i32
  }
  func.func @transform_1(%arg0: i32) -> (i32, i32) {
    %c0_i32 = arith.constant 0 : i32
    %c0_i32_0 = arith.constant 0 : i32
    %c0_i32_1 = arith.constant 0 : i32
    return %c0_i32, %c0_i32_0 : i32, i32
  }
  func.func @transform_2(%arg0: i32) -> (i32, i32) {
    %c0_i32 = arith.constant 0 : i32
    %c0_i32_0 = arith.constant 0 : i32
    %c0_i32_1 = arith.constant 0 : i32
    return %c0_i32, %c0_i32_0 : i32, i32
  }
  func.func @transform_3(%arg0: i32) -> (i32, i32) {
    %c0_i32 = arith.constant 0 : i32
    %c0_i32_0 = arith.constant 0 : i32
    %c0_i32_1 = arith.constant 0 : i32
    return %c0_i32, %c0_i32_0 : i32, i32
  }
  func.func @transform_4(%arg0: i32) -> (i32, i32) {
    %c0_i32 = arith.constant 0 : i32
    %c0_i32_0 = arith.constant 0 : i32
    %c0_i32_1 = arith.constant 0 : i32
    return %c0_i32, %c0_i32_0 : i32, i32
  }
  func.func @transform_5(%arg0: i32) -> (i32, i32, i32) {
    %c0_i32 = arith.constant 0 : i32
    %c0_i32_0 = arith.constant 0 : i32
    %c0_i32_1 = arith.constant 0 : i32
    %c0_i32_2 = arith.constant 0 : i32
    return %c0_i32, %c0_i32_0, %c0_i32_1 : i32, i32, i32
  }
  func.func @transform_6(%arg0: i32) -> (i32, i32) {
    %c0_i32 = arith.constant 0 : i32
    %c0_i32_0 = arith.constant 0 : i32
    %c0_i32_1 = arith.constant 0 : i32
    return %c0_i32, %c0_i32_0 : i32, i32
  }
  func.func @transform_7(%arg0: i32) -> (i32, i32) {
    %c0_i32 = arith.constant 0 : i32
    %c0_i32_0 = arith.constant 0 : i32
    return %arg0, %c0_i32 : i32, i32
  }
}

</mosaic_0001>

<llo_original>
// kernel: tpu_custom_call.1
$region0: #{tpu_custom_call.1}
  #allocation0 [shape = 'u32[]', space=smem, size = 0x4, offset = 0x4, fixed_abs, tag = 'smem constant byte address 0x4 - core index']
  #allocation1 [shape = 'u32[144,128]{1,0:T(1,128)}', space=vmem, size = 0x12000, scoped, tag = 'internal scratch']
  %s0 = inlined_call_operand.vmem [shape: f32[128,32], index: 0, kind: input, shape index: {}]
  %s1 = inlined_call_operand.vmem [shape: f32[32,96], index: 1, kind: input, shape index: {}]
  %s2 = inlined_call_operand.vmem [shape: f32[32,32], index: 2, kind: input, shape index: {}]
  %s3 = inlined_call_operand.vmem [shape: f32[32,64], index: 3, kind: input, shape index: {}]
  %s4 = inlined_call_operand.vmem [shape: f32[64,32], index: 4, kind: input, shape index: {}]
  %s5 = inlined_call_operand.vmem [shape: f32[4,16,16], index: 5, kind: input, shape index: {}]
  %s6 = inlined_call_operand.vmem [shape: f32[1,1024], index: 6, kind: input, shape index: {}]
  %s7 = inlined_call_operand.vmem [shape: f32[128,32], index: 7, kind: output, shape index: {}]
  %s8 = sld [smem:[#allocation0]]
  $region38: #{tpu_custom_call.1} parent=0
    _
  %s10 = ssub.s32 1, %s8
  %s11 = scalar_select 0, %s10, %s8
  // Predicated region
  $region2: #{tpu_custom_call.1} parent=0 // pred_check
    _
  $region3: #{tpu_custom_call.1} parent=0 // pred_check_branch
    %13 = sbr.rel (0) target = $region5
  $region4: #{tpu_custom_call.1} parent=0 // pred_region
    _
  $region5: #{tpu_custom_call.1} parent=0 // pred_fallthru
    _
  // Predicated region
  $region6: #{tpu_custom_call.1} parent=0 // pred_check
    _
  $region7: #{tpu_custom_call.1} parent=0 // pred_check_branch
    %15 = sbr.rel (0) target = $region9
  $region8: #{tpu_custom_call.1} parent=0 // pred_region
    _
  $region9: #{tpu_custom_call.1} parent=0 // pred_fallthru
    _
  // Predicated region
  $region10: #{tpu_custom_call.1} parent=0 // pred_check
    _
  $region11: #{tpu_custom_call.1} parent=0 // pred_check_branch
    %17 = sbr.rel (0) target = $region13
  $region12: #{tpu_custom_call.1} parent=0 // pred_region
    _
  $region13: #{tpu_custom_call.1} parent=0 // pred_fallthru
    _
  // Predicated region
  $region14: #{tpu_custom_call.1} parent=0 // pred_check
    _
  $region15: #{tpu_custom_call.1} parent=0 // pred_check_branch
    %19 = sbr.rel (0) target = $region17
  $region16: #{tpu_custom_call.1} parent=0 // pred_region
    _
  $region17: #{tpu_custom_call.1} parent=0 // pred_fallthru
    _
  // Predicated region
  $region18: #{tpu_custom_call.1} parent=0 // pred_check
    _
  $region19: #{tpu_custom_call.1} parent=0 // pred_check_branch
    %21 = sbr.rel (0) target = $region21
  $region20: #{tpu_custom_call.1} parent=0 // pred_region
    _
  $region21: #{tpu_custom_call.1} parent=0 // pred_fallthru
    _
  // Predicated region
  $region22: #{tpu_custom_call.1} parent=0 // pred_check
    _
  $region23: #{tpu_custom_call.1} parent=0 // pred_check_branch
    %23 = sbr.rel (0) target = $region25
  $region24: #{tpu_custom_call.1} parent=0 // pred_region
    _
  $region25: #{tpu_custom_call.1} parent=0 // pred_fallthru
    _
  // Predicated region
  $region26: #{tpu_custom_call.1} parent=0 // pred_check
    _
  $region27: #{tpu_custom_call.1} parent=0 // pred_check_branch
    %25 = sbr.rel (0) target = $region29
  $region28: #{tpu_custom_call.1} parent=0 // pred_region
    _
  $region29: #{tpu_custom_call.1} parent=0 // pred_fallthru
    _
  %v26 = vld [vmem:[%s0] sm:$0xff]
  %v27 = vld [vmem:[%s0 + $0x8] sm:$0xff]
  %v28 = vld [vmem:[%s0 + $0x10] sm:$0xff]
  %v29 = vld [vmem:[%s0 + $0x18] sm:$0xff]
  %v30 = vld [vmem:[%s0 + $0x20] sm:$0xff]
  %v31 = vld [vmem:[%s0 + $0x28] sm:$0xff]
  %v32 = vld [vmem:[%s0 + $0x30] sm:$0xff]
  %v33 = vld [vmem:[%s0 + $0x38] sm:$0xff]
  %v34 = vld [vmem:[%s0 + $0x40] sm:$0xff]
  %v35 = vld [vmem:[%s0 + $0x48] sm:$0xff]
  %v36 = vld [vmem:[%s0 + $0x50] sm:$0xff]
  %v37 = vld [vmem:[%s0 + $0x58] sm:$0xff]
  %v38 = vld [vmem:[%s0 + $0x60] sm:$0xff]
  %v39 = vld [vmem:[%s0 + $0x68] sm:$0xff]
  %v40 = vld [vmem:[%s0 + $0x70] sm:$0xff]
  %v41 = vld [vmem:[%s0 + $0x78] sm:$0xff]
  %v42 = vld [vmem:[%s1] sm:$0xff]
  %v43 = vld [vmem:[%s1 + $0x8] sm:$0xff]
  %v44 = vld [vmem:[%s1 + $0x10] sm:$0xff]
  %v45 = vld [vmem:[%s1 + $0x18] sm:$0xff]
  %v46 = vld [vmem:[%s6] sm:$0x1]
  %v48 = vlaneseq
  %v49 = vshrl.u32 %v48, 7
  %v50 = vsub.s32 0, %v49
  %v51 = vrot.slane %v46, %v50
  %vm53 = vcmask 261120
  %v55 = vsel %vm53, %v26, 0
  %v58 = vsel %vm53, %v27, 0
  %v61 = vsel %vm53, %v28, 0
  %v64 = vsel %vm53, %v29, 0
  %v67 = vsel %vm53, %v30, 0
  %v70 = vsel %vm53, %v31, 0
  %v73 = vsel %vm53, %v32, 0
  %v76 = vsel %vm53, %v33, 0
  %v79 = vsel %vm53, %v34, 0
  %v82 = vsel %vm53, %v35, 0
  %v85 = vsel %vm53, %v36, 0
  %v88 = vsel %vm53, %v37, 0
  %v91 = vsel %vm53, %v38, 0
  %v94 = vsel %vm53, %v39, 0
  %v97 = vsel %vm53, %v40, 0
  %v100 = vsel %vm53, %v41, 0
  %102 = vmatprep.subr.mxu0 0.0
  %103 = vmatpush1.msra.mxu0 %v42
  %104 = vmatprep.subr.mxu0 0.0
  %105 = vmatpush1.msra.mxu0 %v43
  %106 = vmatprep.subr.mxu0 0.0
  %107 = vmatpush1.msra.mxu0 %v44
  %108 = vmatprep.subr.mxu0 0.0
  %109 = vmatpush1.msra.mxu0 %v45
  %110 = vmatprep.subr.mxu0 0.0
  %111 = vmatpush1.msra.mxu0 0.0
  %112 = vmatprep.subr.mxu0 0.0
  %113 = vmatpush1.msra.mxu0 0.0
  %114 = vmatprep.subr.mxu0 0.0
  %115 = vmatpush1.msra.mxu0 0.0
  %116 = vmatprep.subr.mxu0 0.0
  %117 = vmatpush1.msra.mxu0 0.0
  %118 = vmatprep.subr.mxu0 0.0
  %119 = vmatpush1.msra.mxu0 0.0
  %120 = vmatprep.subr.mxu0 0.0
  %121 = vmatpush1.msra.mxu0 0.0
  %122 = vmatprep.subr.mxu0 0.0
  %123 = vmatpush1.msra.mxu0 0.0
  %124 = vmatprep.subr.mxu0 0.0
  %125 = vmatpush1.msra.mxu0 0.0
  %126 = vmatprep.subr.mxu0 0.0
  %127 = vmatpush1.msra.mxu0 0.0
  %128 = vmatprep.subr.mxu0 0.0
  %129 = vmatpush1.msra.mxu0 0.0
  %130 = vmatprep.subr.mxu0 0.0
  %131 = vmatpush1.msra.mxu0 0.0
  %132 = vmatprep.subr.mxu0 0.0
  %133 = vmatpush1.msra.mxu0 0.0
  %134 = vmatprep.subr.mxu0 0.0
  %135 = vmatpush1.msra.mxu0 0.0
  %136 = vmatprep.subr.mxu0 0.0
  %137 = vmatpush1.msra.mxu0 0.0
  %138 = vmatprep.subr.mxu0 0.0
  %139 = vmatpush1.msra.mxu0 0.0
  %140 = vmatprep.subr.mxu0 0.0
  %141 = vmatpush1.msra.mxu0 0.0
  %142 = vmatprep.subr.mxu0 0.0
  %143 = vmatpush1.msra.mxu0 0.0
  %144 = vmatprep.subr.mxu0 0.0
  %145 = vmatpush1.msra.mxu0 0.0
  %146 = vmatprep.subr.mxu0 0.0
  %147 = vmatpush1.msra.mxu0 0.0
  %148 = vmatprep.subr.mxu0 0.0
  %149 = vmatpush1.msra.mxu0 0.0
  %150 = vmatprep.subr.mxu0 0.0
  %151 = vmatpush1.msra.mxu0 0.0
  %152 = vmatprep.subr.mxu0 0.0
  %153 = vmatpush1.msra.mxu0 0.0
  %154 = vmatprep.subr.mxu0 0.0
  %155 = vmatpush1.msra.mxu0 0.0
  %156 = vmatprep.subr.mxu0 0.0
  %157 = vmatpush1.msra.mxu0 0.0
  %158 = vmatprep.subr.mxu0 0.0
  %159 = vmatpush1.msra.mxu0 0.0
  %160 = vmatprep.subr.mxu0 0.0
  %161 = vmatpush1.msra.mxu0 0.0
  %162 = vmatprep.subr.mxu0 0.0
  %163 = vmatpush1.msra.mxu0 0.0
  %164 = vmatprep.subr.mxu0 0.0
  %165 = vmatpush1.msra.mxu0 0.0
  %166 = vmatprep.mubr.f32.mxu0 0.0
  %167 = vmatmul.mubr.f32.gmra.mrb[0].mxu0 %v55
  %v168 = vpop.f32.mrb[0].mxu0
  %v169 = vadd.f32 %v51, %v168
  %v170 = vpop.f32.mrb[0].mxu0
  %171 = vmatprep.mubr.f32.mxu0 0.0
  %172 = vmatmul.mubr.f32.gmra.mrb[0].mxu0 %v58
  %v173 = vpop.f32.mrb[0].mxu0
  %v174 = vadd.f32 %v51, %v173
  %v175 = vpop.f32.mrb[0].mxu0
  %176 = vmatprep.mubr.f32.mxu0 0.0
  %177 = vmatmul.mubr.f32.gmra.mrb[0].mxu0 %v61
  %v178 = vpop.f32.mrb[0].mxu0
  %v179 = vadd.f32 %v51, %v178
  %v180 = vpop.f32.mrb[0].mxu0
  %181 = vmatprep.mubr.f32.mxu0 0.0
  %182 = vmatmul.mubr.f32.gmra.mrb[0].mxu0 %v64
  %v183 = vpop.f32.mrb[0].mxu0
  %v184 = vadd.f32 %v51, %v183
  %v185 = vpop.f32.mrb[0].mxu0
  %186 = vmatprep.mubr.f32.mxu0 0.0
  %187 = vmatmul.mubr.f32.gmra.mrb[0].mxu0 %v67
  %v188 = vpop.f32.mrb[0].mxu0
  %v189 = vadd.f32 %v51, %v188
  %v190 = vpop.f32.mrb[0].mxu0
  %191 = vmatprep.mubr.f32.mxu0 0.0
  %192 = vmatmul.mubr.f32.gmra.mrb[0].mxu0 %v70
  %v193 = vpop.f32.mrb[0].mxu0
  %v194 = vadd.f32 %v51, %v193
  %v195 = vpop.f32.mrb[0].mxu0
  %196 = vmatprep.mubr.f32.mxu0 0.0
  %197 = vmatmul.mubr.f32.gmra.mrb[0].mxu0 %v73
  %v198 = vpop.f32.mrb[0].mxu0
  %v199 = vadd.f32 %v51, %v198
  %v200 = vpop.f32.mrb[0].mxu0
  %201 = vmatprep.mubr.f32.mxu0 0.0
  %202 = vmatmul.mubr.f32.gmra.mrb[0].mxu0 %v76
  %v203 = vpop.f32.mrb[0].mxu0
  %v204 = vadd.f32 %v51, %v203
  %v205 = vpop.f32.mrb[0].mxu0
  %206 = vmatprep.mubr.f32.mxu0 0.0
  %207 = vmatmul.mubr.f32.gmra.mrb[0].mxu0 %v79
  %v208 = vpop.f32.mrb[0].mxu0
  %v209 = vadd.f32 %v51, %v208
  %v210 = vpop.f32.mrb[0].mxu0
  %211 = vmatprep.mubr.f32.mxu0 0.0
  %212 = vmatmul.mubr.f32.gmra.mrb[0].mxu0 %v82
  %v213 = vpop.f32.mrb[0].mxu0
  %v214 = vadd.f32 %v51, %v213
  %v215 = vpop.f32.mrb[0].mxu0
  %216 = vmatprep.mubr.f32.mxu0 0.0
  %217 = vmatmul.mubr.f32.gmra.mrb[0].mxu0 %v85
  %v218 = vpop.f32.mrb[0].mxu0
  %v219 = vadd.f32 %v51, %v218
  %v220 = vpop.f32.mrb[0].mxu0
  %221 = vmatprep.mubr.f32.mxu0 0.0
  %222 = vmatmul.mubr.f32.gmra.mrb[0].mxu0 %v88
  %v223 = vpop.f32.mrb[0].mxu0
  %v224 = vadd.f32 %v51, %v223
  %v225 = vpop.f32.mrb[0].mxu0
  %226 = vmatprep.mubr.f32.mxu0 0.0
  %227 = vmatmul.mubr.f32.gmra.mrb[0].mxu0 %v91
  %v228 = vpop.f32.mrb[0].mxu0
  %v229 = vadd.f32 %v51, %v228
  %v230 = vpop.f32.mrb[0].mxu0
  %231 = vmatprep.mubr.f32.mxu0 0.0
  %232 = vmatmul.mubr.f32.gmra.mrb[0].mxu0 %v94
  %v233 = vpop.f32.mrb[0].mxu0
  %v234 = vadd.f32 %v51, %v233
  %v235 = vpop.f32.mrb[0].mxu0
  %236 = vmatprep.mubr.f32.mxu0 0.0
  %237 = vmatmul.mubr.f32.gmra.mrb[0].mxu0 %v97
  %v238 = vpop.f32.mrb[0].mxu0
  %v239 = vadd.f32 %v51, %v238
  %v240 = vpop.f32.mrb[0].mxu0
  %241 = vmatprep.mubr.f32.mxu0 0.0
  %242 = vmatmul.mubr.f32.gmra.mrb[0].mxu0 %v100
  %v243 = vpop.f32.mrb[0].mxu0
  %v244 = vadd.f32 %v51, %v243
  %v245 = vpop.f32.mrb[0].mxu0
  %246 = vdwg.mxu0
  %263 = vrot.lane.b32.xlu0 %v169, 120
  %v264 = vpop.permute.xlu0 %263
  %265 = vrot.lane.b32.xlu0 %v174, 120
  %v266 = vpop.permute.xlu0 %265
  %267 = vrot.lane.b32.xlu0 %v179, 120
  %v268 = vpop.permute.xlu0 %267
  %269 = vrot.lane.b32.xlu0 %v184, 120
  %v270 = vpop.permute.xlu0 %269
  %271 = vrot.lane.b32.xlu0 %v189, 120
  %v272 = vpop.permute.xlu0 %271
  %273 = vrot.lane.b32.xlu0 %v194, 120
  %v274 = vpop.permute.xlu0 %273
  %275 = vrot.lane.b32.xlu0 %v199, 120
  %v276 = vpop.permute.xlu0 %275
  %277 = vrot.lane.b32.xlu0 %v204, 120
  %v278 = vpop.permute.xlu0 %277
  %279 = vrot.lane.b32.xlu0 %v209, 120
  %v280 = vpop.permute.xlu0 %279
  %281 = vrot.lane.b32.xlu0 %v214, 120
  %v282 = vpop.permute.xlu0 %281
  %283 = vrot.lane.b32.xlu0 %v219, 120
  %v284 = vpop.permute.xlu0 %283
  %285 = vrot.lane.b32.xlu0 %v224, 120
  %v286 = vpop.permute.xlu0 %285
  %287 = vrot.lane.b32.xlu0 %v229, 120
  %v288 = vpop.permute.xlu0 %287
  %289 = vrot.lane.b32.xlu0 %v234, 120
  %v290 = vpop.permute.xlu0 %289
  %291 = vrot.lane.b32.xlu0 %v239, 120
  %v292 = vpop.permute.xlu0 %291
  %293 = vrot.lane.b32.xlu0 %v244, 120
  %v294 = vpop.permute.xlu0 %293
  %295 = vrot.lane.b32.xlu0 %v169, 112
  %v296 = vpop.permute.xlu0 %295
  %297 = vrot.lane.b32.xlu0 %v174, 112
  %v298 = vpop.permute.xlu0 %297
  %299 = vrot.lane.b32.xlu0 %v179, 112
  %v300 = vpop.permute.xlu0 %299
  %301 = vrot.lane.b32.xlu0 %v184, 112
  %v302 = vpop.permute.xlu0 %301
  %303 = vrot.lane.b32.xlu0 %v189, 112
  %v304 = vpop.permute.xlu0 %303
  %305 = vrot.lane.b32.xlu0 %v194, 112
  %v306 = vpop.permute.xlu0 %305
  %307 = vrot.lane.b32.xlu0 %v199, 112
  %v308 = vpop.permute.xlu0 %307
  %309 = vrot.lane.b32.xlu0 %v204, 112
  %v310 = vpop.permute.xlu0 %309
  %311 = vrot.lane.b32.xlu0 %v209, 112
  %v312 = vpop.permute.xlu0 %311
  %313 = vrot.lane.b32.xlu0 %v214, 112
  %v314 = vpop.permute.xlu0 %313
  %315 = vrot.lane.b32.xlu0 %v219, 112
  %v316 = vpop.permute.xlu0 %315
  %317 = vrot.lane.b32.xlu0 %v224, 112
  %v318 = vpop.permute.xlu0 %317
  %319 = vrot.lane.b32.xlu0 %v229, 112
  %v320 = vpop.permute.xlu0 %319
  %321 = vrot.lane.b32.xlu0 %v234, 112
  %v322 = vpop.permute.xlu0 %321
  %323 = vrot.lane.b32.xlu0 %v239, 112
  %v324 = vpop.permute.xlu0 %323
  %325 = vrot.lane.b32.xlu0 %v244, 112
  %v326 = vpop.permute.xlu0 %325
  %327 = vrot.lane.b32.xlu0 %v169, 104
  %v328 = vpop.permute.xlu0 %327
  %329 = vrot.lane.b32.xlu0 %v174, 104
  %v330 = vpop.permute.xlu0 %329
  %331 = vrot.lane.b32.xlu0 %v179, 104
  %v332 = vpop.permute.xlu0 %331
  %333 = vrot.lane.b32.xlu0 %v184, 104
  %v334 = vpop.permute.xlu0 %333
  %335 = vrot.lane.b32.xlu0 %v189, 104
  %v336 = vpop.permute.xlu0 %335
  %337 = vrot.lane.b32.xlu0 %v194, 104
  %v338 = vpop.permute.xlu0 %337
  %339 = vrot.lane.b32.xlu0 %v199, 104
  %v340 = vpop.permute.xlu0 %339
  %341 = vrot.lane.b32.xlu0 %v204, 104
  %v342 = vpop.permute.xlu0 %341
  %343 = vrot.lane.b32.xlu0 %v209, 104
  %v344 = vpop.permute.xlu0 %343
  %345 = vrot.lane.b32.xlu0 %v214, 104
  %v346 = vpop.permute.xlu0 %345
  %347 = vrot.lane.b32.xlu0 %v219, 104
  %v348 = vpop.permute.xlu0 %347
  %349 = vrot.lane.b32.xlu0 %v224, 104
  %v350 = vpop.permute.xlu0 %349
  %351 = vrot.lane.b32.xlu0 %v229, 104
  %v352 = vpop.permute.xlu0 %351
  %353 = vrot.lane.b32.xlu0 %v234, 104
  %v354 = vpop.permute.xlu0 %353
  %355 = vrot.lane.b32.xlu0 %v239, 104
  %v356 = vpop.permute.xlu0 %355
  %357 = vrot.lane.b32.xlu0 %v244, 104
  %v358 = vpop.permute.xlu0 %357
  %359 = vrot.lane.b32.xlu0 %v169, 96
  %v360 = vpop.permute.xlu0 %359
  %361 = vrot.lane.b32.xlu0 %v174, 96
  %v362 = vpop.permute.xlu0 %361
  %vm363 = vcmask 64512
  %v364 = vsel %vm363, %v169, 0
  %v366 = vsel %vm363, %v174, 0
  %v368 = vsel %vm363, %v360, 0
  %v370 = vsel %vm363, %v362, 0
  %372 = vmatprep.subr.mxu0 0.0
  %373 = vmatpush1.xpose.msra.mxu0 %v368
  %374 = vmatprep.subr.mxu0 0.0
  %375 = vmatpush1.xpose.msra.mxu0 %v370
  %376 = vmatprep.subr.mxu0 0.0
  %377 = vmatpush1.xpose.msra.mxu0 0.0
  %378 = vmatprep.subr.mxu0 0.0
  %379 = vmatpush1.xpose.msra.mxu0 0.0
  %380 = vmatprep.subr.mxu0 0.0
  %381 = vmatpush1.xpose.msra.mxu0 0.0
  %382 = vmatprep.subr.mxu0 0.0
  %383 = vmatpush1.xpose.msra.mxu0 0.0
  %384 = vmatprep.subr.mxu0 0.0
  %385 = vmatpush1.xpose.msra.mxu0 0.0
  %386 = vmatprep.subr.mxu0 0.0
  %387 = vmatpush1.xpose.msra.mxu0 0.0
  %388 = vmatprep.subr.mxu0 0.0
  %389 = vmatpush1.xpose.msra.mxu0 0.0
  %390 = vmatprep.subr.mxu0 0.0
  %391 = vmatpush1.xpose.msra.mxu0 0.0
  %392 = vmatprep.subr.mxu0 0.0
  %393 = vmatpush1.xpose.msra.mxu0 0.0
  %394 = vmatprep.subr.mxu0 0.0
  %395 = vmatpush1.xpose.msra.mxu0 0.0
  %396 = vmatprep.subr.mxu0 0.0
  %397 = vmatpush1.xpose.msra.mxu0 0.0
  %398 = vmatprep.subr.mxu0 0.0
  %399 = vmatpush1.xpose.msra.mxu0 0.0
  %400 = vmatprep.subr.mxu0 0.0
  %401 = vmatpush1.xpose.msra.mxu0 0.0
  %402 = vmatprep.subr.mxu0 0.0
  %403 = vmatpush1.xpose.msra.mxu0 0.0
  %404 = vmatprep.subr.mxu0 0.0
  %405 = vmatpush1.xpose.msra.mxu0 0.0
  %406 = vmatprep.subr.mxu0 0.0
  %407 = vmatpush1.xpose.msra.mxu0 0.0
  %408 = vmatprep.subr.mxu0 0.0
  %409 = vmatpush1.xpose.msra.mxu0 0.0
  %410 = vmatprep.subr.mxu0 0.0
  %411 = vmatpush1.xpose.msra.mxu0 0.0
  %412 = vmatprep.subr.mxu0 0.0
  %413 = vmatpush1.xpose.msra.mxu0 0.0
  %414 = vmatprep.subr.mxu0 0.0
  %415 = vmatpush1.xpose.msra.mxu0 0.0
  %416 = vmatprep.subr.mxu0 0.0
  %417 = vmatpush1.xpose.msra.mxu0 0.0
  %418 = vmatprep.subr.mxu0 0.0
  %419 = vmatpush1.xpose.msra.mxu0 0.0
  %420 = vmatprep.subr.mxu0 0.0
  %421 = vmatpush1.xpose.msra.mxu0 0.0
  %422 = vmatprep.subr.mxu0 0.0
  %423 = vmatpush1.xpose.msra.mxu0 0.0
  %424 = vmatprep.subr.mxu0 0.0
  %425 = vmatpush1.xpose.msra.mxu0 0.0
  %426 = vmatprep.subr.mxu0 0.0
  %427 = vmatpush1.xpose.msra.mxu0 0.0
  %428 = vmatprep.subr.mxu0 0.0
  %429 = vmatpush1.xpose.msra.mxu0 0.0
  %430 = vmatprep.subr.mxu0 0.0
  %431 = vmatpush1.xpose.msra.mxu0 0.0
  %432 = vmatprep.subr.mxu0 0.0
  %433 = vmatpush1.xpose.msra.mxu0 0.0
  %434 = vmatprep.subr.mxu0 0.0
  %435 = vmatpush1.xpose.msra.mxu0 0.0
  %436 = vmatprep.mubr.f32.mxu0 0.0
  %437 = vmatmul.mubr.f32.gmra.mrb[0].mxu0 %v364
  %v438 = vpop.f32.mrb[0].mxu0
  %v439 = vadd.f32 0.0, %v438
  %v440 = vpop.f32.mrb[0].mxu0
  %441 = vmatprep.mubr.f32.mxu0 0.0
  %442 = vmatmul.mubr.f32.gmra.mrb[0].mxu0 %v366
  %v443 = vpop.f32.mrb[0].mxu0
  %v444 = vadd.f32 0.0, %v443
  %v445 = vpop.f32.mrb[0].mxu0
  %446 = vdwg.mxu0
  %447 = vrot.lane.b32.xlu0 %v179, 96
  %v448 = vpop.permute.xlu0 %447
  %449 = vrot.lane.b32.xlu0 %v184, 96
  %v450 = vpop.permute.xlu0 %449
  %v451 = vsel %vm363, %v179, 0
  %v453 = vsel %vm363, %v184, 0
  %v455 = vsel %vm363, %v448, 0
  %v457 = vsel %vm363, %v450, 0
  %459 = vmatprep.subr.mxu0 0.0
  %460 = vmatpush1.xpose.msra.mxu0 %v455
  %461 = vmatprep.subr.mxu0 0.0
  %462 = vmatpush1.xpose.msra.mxu0 %v457
  %463 = vmatprep.subr.mxu0 0.0
  %464 = vmatpush1.xpose.msra.mxu0 0.0
  %465 = vmatprep.subr.mxu0 0.0
  %466 = vmatpush1.xpose.msra.mxu0 0.0
  %467 = vmatprep.subr.mxu0 0.0
  %468 = vmatpush1.xpose.msra.mxu0 0.0
  %469 = vmatprep.subr.mxu0 0.0
  %470 = vmatpush1.xpose.msra.mxu0 0.0
  %471 = vmatprep.subr.mxu0 0.0
  %472 = vmatpush1.xpose.msra.mxu0 0.0
  %473 = vmatprep.subr.mxu0 0.0
  %474 = vmatpush1.xpose.msra.mxu0 0.0
  %475 = vmatprep.subr.mxu0 0.0
  %476 = vmatpush1.xpose.msra.mxu0 0.0
  %477 = vmatprep.subr.mxu0 0.0
  %478 = vmatpush1.xpose.msra.mxu0 0.0
  %479 = vmatprep.subr.mxu0 0.0
  %480 = vmatpush1.xpose.msra.mxu0 0.0
  %481 = vmatprep.subr.mxu0 0.0
  %482 = vmatpush1.xpose.msra.mxu0 0.0
  %483 = vmatprep.subr.mxu0 0.0
  %484 = vmatpush1.xpose.msra.mxu0 0.0
  %485 = vmatprep.subr.mxu0 0.0
  %486 = vmatpush1.xpose.msra.mxu0 0.0
  %487 = vmatprep.subr.mxu0 0.0
  %488 = vmatpush1.xpose.msra.mxu0 0.0
  %489 = vmatprep.subr.mxu0 0.0
  %490 = vmatpush1.xpose.msra.mxu0 0.0
  %491 = vmatprep.subr.mxu0 0.0
  %492 = vmatpush1.xpose.msra.mxu0 0.0
  %493 = vmatprep.subr.mxu0 0.0
  %494 = vmatpush1.xpose.msra.mxu0 0.0
  %495 = vmatprep.subr.mxu0 0.0
  %496 = vmatpush1.xpose.msra.mxu0 0.0
  %497 = vmatprep.subr.mxu0 0.0
  %498 = vmatpush1.xpose.msra.mxu0 0.0
  %499 = vmatprep.subr.mxu0 0.0
  %500 = vmatpush1.xpose.msra.mxu0 0.0
  %501 = vmatprep.subr.mxu0 0.0
  %502 = vmatpush1.xpose.msra.mxu0 0.0
  %503 = vmatprep.subr.mxu0 0.0
  %504 = vmatpush1.xpose.msra.mxu0 0.0
  %505 = vmatprep.subr.mxu0 0.0
  %506 = vmatpush1.xpose.msra.mxu0 0.0
  %507 = vmatprep.subr.mxu0 0.0
  %508 = vmatpush1.xpose.msra.mxu0 0.0
  %509 = vmatprep.subr.mxu0 0.0
  %510 = vmatpush1.xpose.msra.mxu0 0.0
  %511 = vmatprep.subr.mxu0 0.0
  %512 = vmatpush1.xpose.msra.mxu0 0.0
  %513 = vmatprep.subr.mxu0 0.0
  %514 = vmatpush1.xpose.msra.mxu0 0.0
  %515 = vmatprep.subr.mxu0 0.0
  %516 = vmatpush1.xpose.msra.mxu0 0.0
  %517 = vmatprep.subr.mxu0 0.0
  %518 = vmatpush1.xpose.msra.mxu0 0.0
  %519 = vmatprep.subr.mxu0 0.0
  %520 = vmatpush1.xpose.msra.mxu0 0.0
  %521 = vmatprep.subr.mxu0 0.0
  %522 = vmatpush1.xpose.msra.mxu0 0.0
  %523 = vmatprep.mubr.f32.mxu0 0.0
  %524 = vmatmul.mubr.f32.gmra.mrb[0].mxu0 %v451
  %v525 = vpop.f32.mrb[0].mxu0
  %v526 = vadd.f32 0.0, %v525
  %v527 = vpop.f32.mrb[0].mxu0
  %528 = vmatprep.mubr.f32.mxu0 0.0
  %529 = vmatmul.mubr.f32.gmra.mrb[0].mxu0 %v453
  %v530 = vpop.f32.mrb[0].mxu0
  %v531 = vadd.f32 0.0, %v530
  %v532 = vpop.f32.mrb[0].mxu0
  %533 = vdwg.mxu0
  %534 = vrot.lane.b32.xlu0 %v189, 96
  %v535 = vpop.permute.xlu0 %534
  %536 = vrot.lane.b32.xlu0 %v194, 96
  %v537 = vpop.permute.xlu0 %536
  %v538 = vsel %vm363, %v189, 0
  %v540 = vsel %vm363, %v194, 0
  %v542 = vsel %vm363, %v535, 0
  %v544 = vsel %vm363, %v537, 0
  %546 = vmatprep.subr.mxu0 0.0
  %547 = vmatpush1.xpose.msra.mxu0 %v542
  %548 = vmatprep.subr.mxu0 0.0
  %549 = vmatpush1.xpose.msra.mxu0 %v544
  %550 = vmatprep.subr.mxu0 0.0
  %551 = vmatpush1.xpose.msra.mxu0 0.0
  %552 = vmatprep.subr.mxu0 0.0
  %553 = vmatpush1.xpose.msra.mxu0 0.0
  %554 = vmatprep.subr.mxu0 0.0
  %555 = vmatpush1.xpose.msra.mxu0 0.0
  %556 = vmatprep.subr.mxu0 0.0
  %557 = vmatpush1.xpose.msra.mxu0 0.0
  %558 = vmatprep.subr.mxu0 0.0
  %559 = vmatpush1.xpose.msra.mxu0 0.0
  %560 = vmatprep.subr.mxu0 0.0
  %561 = vmatpush1.xpose.msra.mxu0 0.0
  %562 = vmatprep.subr.mxu0 0.0
  %563 = vmatpush1.xpose.msra.mxu0 0.0
  %564 = vmatprep.subr.mxu0 0.0
  %565 = vmatpush1.xpose.msra.mxu0 0.0
  %566 = vmatprep.subr.mxu0 0.0
  %567 = vmatpush1.xpose.msra.mxu0 0.0
  %568 = vmatprep.subr.mxu0 0.0
  %569 = vmatpush1.xpose.msra.mxu0 0.0
  %570 = vmatprep.subr.mxu0 0.0
  %571 = vmatpush1.xpose.msra.mxu0 0.0
  %572 = vmatprep.subr.mxu0 0.0
  %573 = vmatpush1.xpose.msra.mxu0 0.0
  %574 = vmatprep.subr.mxu0 0.0
  %575 = vmatpush1.xpose.msra.mxu0 0.0
  %576 = vmatprep.subr.mxu0 0.0
  %577 = vmatpush1.xpose.msra.mxu0 0.0
  %578 = vmatprep.subr.mxu0 0.0
  %579 = vmatpush1.xpose.msra.mxu0 0.0
  %580 = vmatprep.subr.mxu0 0.0
  %581 = vmatpush1.xpose.msra.mxu0 0.0
  %582 = vmatprep.subr.mxu0 0.0
  %583 = vmatpush1.xpose.msra.mxu0 0.0
  %584 = vmatprep.subr.mxu0 0.0
  %585 = vmatpush1.xpose.msra.mxu0 0.0
  %586 = vmatprep.subr.mxu0 0.0
  %587 = vmatpush1.xpose.msra.mxu0 0.0
  %588 = vmatprep.subr.mxu0 0.0
  %589 = vmatpush1.xpose.msra.mxu0 0.0
  %590 = vmatprep.subr.mxu0 0.0
  %591 = vmatpush1.xpose.msra.mxu0 0.0
  %592 = vmatprep.subr.mxu0 0.0
  %593 = vmatpush1.xpose.msra.mxu0 0.0
  %594 = vmatprep.subr.mxu0 0.0
  %595 = vmatpush1.xpose.msra.mxu0 0.0
  %596 = vmatprep.subr.mxu0 0.0
  %597 = vmatpush1.xpose.msra.mxu0 0.0
  %598 = vmatprep.subr.mxu0 0.0
  %599 = vmatpush1.xpose.msra.mxu0 0.0
  %600 = vmatprep.subr.mxu0 0.0
  %601 = vmatpush1.xpose.msra.mxu0 0.0
  %602 = vmatprep.subr.mxu0 0.0
  %603 = vmatpush1.xpose.msra.mxu0 0.0
  %604 = vmatprep.subr.mxu0 0.0
  %605 = vmatpush1.xpose.msra.mxu0 0.0
  %606 = vmatprep.subr.mxu0 0.0
  %607 = vmatpush1.xpose.msra.mxu0 0.0
  %608 = vmatprep.subr.mxu0 0.0
  %609 = vmatpush1.xpose.msra.mxu0 0.0
  %610 = vmatprep.mubr.f32.mxu0 0.0
  %611 = vmatmul.mubr.f32.gmra.mrb[0].mxu0 %v538
  %v612 = vpop.f32.mrb[0].mxu0
  %v613 = vadd.f32 0.0, %v612
  %v614 = vpop.f32.mrb[0].mxu0
  %615 = vmatprep.mubr.f32.mxu0 0.0
  %616 = vmatmul.mubr.f32.gmra.mrb[0].mxu0 %v540
  %v617 = vpop.f32.mrb[0].mxu0
  %v618 = vadd.f32 0.0, %v617
  %v619 = vpop.f32.mrb[0].mxu0
  %620 = vdwg.mxu0
  %621 = vrot.lane.b32.xlu0 %v199, 96
  %v622 = vpop.permute.xlu0 %621
  %623 = vrot.lane.b32.xlu0 %v204, 96
  %v624 = vpop.permute.xlu0 %623
  %v625 = vsel %vm363, %v199, 0
  %v627 = vsel %vm363, %v204, 0
  %v629 = vsel %vm363, %v622, 0
  %v631 = vsel %vm363, %v624, 0
  %633 = vmatprep.subr.mxu0 0.0
  %634 = vmatpush1.xpose.msra.mxu0 %v629
  %635 = vmatprep.subr.mxu0 0.0
  %636 = vmatpush1.xpose.msra.mxu0 %v631
  %637 = vmatprep.subr.mxu0 0.0
  %638 = vmatpush1.xpose.msra.mxu0 0.0
  %639 = vmatprep.subr.mxu0 0.0
  %640 = vmatpush1.xpose.msra.mxu0 0.0
  %641 = vmatprep.subr.mxu0 0.0
  %642 = vmatpush1.xpose.msra.mxu0 0.0
  %643 = vmatprep.subr.mxu0 0.0
  %644 = vmatpush1.xpose.msra.mxu0 0.0
  %645 = vmatprep.subr.mxu0 0.0
  %646 = vmatpush1.xpose.msra.mxu0 0.0
  %647 = vmatprep.subr.mxu0 0.0
  %648 = vmatpush1.xpose.msra.mxu0 0.0
  %649 = vmatprep.subr.mxu0 0.0
  %650 = vmatpush1.xpose.msra.mxu0 0.0
  %651 = vmatprep.subr.mxu0 0.0
  %652 = vmatpush1.xpose.msra.mxu0 0.0
  %653 = vmatprep.subr.mxu0 0.0
  %654 = vmatpush1.xpose.msra.mxu0 0.0
  %655 = vmatprep.subr.mxu0 0.0
  %656 = vmatpush1.xpose.msra.mxu0 0.0
  %657 = vmatprep.subr.mxu0 0.0
  %658 = vmatpush1.xpose.msra.mxu0 0.0
  %659 = vmatprep.subr.mxu0 0.0
  %660 = vmatpush1.xpose.msra.mxu0 0.0
  %661 = vmatprep.subr.mxu0 0.0
  %662 = vmatpush1.xpose.msra.mxu0 0.0
  %663 = vmatprep.subr.mxu0 0.0
  %664 = vmatpush1.xpose.msra.mxu0 0.0
  %665 = vmatprep.subr.mxu0 0.0
  %666 = vmatpush1.xpose.msra.mxu0 0.0
  %667 = vmatprep.subr.mxu0 0.0
  %668 = vmatpush1.xpose.msra.mxu0 0.0
  %669 = vmatprep.subr.mxu0 0.0
  %670 = vmatpush1.xpose.msra.mxu0 0.0
  %671 = vmatprep.subr.mxu0 0.0
  %672 = vmatpush1.xpose.msra.mxu0 0.0
  %673 = vmatprep.subr.mxu0 0.0
  %674 = vmatpush1.xpose.msra.mxu0 0.0
  %675 = vmatprep.subr.mxu0 0.0
  %676 = vmatpush1.xpose.msra.mxu0 0.0
  %677 = vmatprep.subr.mxu0 0.0
  %678 = vmatpush1.xpose.msra.mxu0 0.0
  %679 = vmatprep.subr.mxu0 0.0
  %680 = vmatpush1.xpose.msra.mxu0 0.0
  %681 = vmatprep.subr.mxu0 0.0
  %682 = vmatpush1.xpose.msra.mxu0 0.0
  %683 = vmatprep.subr.mxu0 0.0
  %684 = vmatpush1.xpose.msra.mxu0 0.0
  %685 = vmatprep.subr.mxu0 0.0
  %686 = vmatpush1.xpose.msra.mxu0 0.0
  %687 = vmatprep.subr.mxu0 0.0
  %688 = vmatpush1.xpose.msra.mxu0 0.0
  %689 = vmatprep.subr.mxu0 0.0
  %690 = vmatpush1.xpose.msra.mxu0 0.0
  %691 = vmatprep.subr.mxu0 0.0
  %692 = vmatpush1.xpose.msra.mxu0 0.0
  %693 = vmatprep.subr.mxu0 0.0
  %694 = vmatpush1.xpose.msra.mxu0 0.0
  %695 = vmatprep.subr.mxu0 0.0
  %696 = vmatpush1.xpose.msra.mxu0 0.0
  %697 = vmatprep.mubr.f32.mxu0 0.0
  %698 = vmatmul.mubr.f32.gmra.mrb[0].mxu0 %v625
  %v699 = vpop.f32.mrb[0].mxu0
  %v700 = vadd.f32 0.0, %v699
  %v701 = vpop.f32.mrb[0].mxu0
  %702 = vmatprep.mubr.f32.mxu0 0.0
  %703 = vmatmul.mubr.f32.gmra.mrb[0].mxu0 %v627
  %v704 = vpop.f32.mrb[0].mxu0
  %v705 = vadd.f32 0.0, %v704
  %v706 = vpop.f32.mrb[0].mxu0
  %707 = vdwg.mxu0
  %708 = vrot.lane.b32.xlu0 %v209, 96
  %v709 = vpop.permute.xlu0 %708
  %710 = vrot.lane.b32.xlu0 %v214, 96
  %v711 = vpop.permute.xlu0 %710
  %v712 = vsel %vm363, %v209, 0
  %v714 = vsel %vm363, %v214, 0
  %v716 = vsel %vm363, %v709, 0
  %v718 = vsel %vm363, %v711, 0
  %720 = vmatprep.subr.mxu0 0.0
  %721 = vmatpush1.xpose.msra.mxu0 %v716
  %722 = vmatprep.subr.mxu0 0.0
  %723 = vmatpush1.xpose.msra.mxu0 %v718
  %724 = vmatprep.subr.mxu0 0.0
  %725 = vmatpush1.xpose.msra.mxu0 0.0
  %726 = vmatprep.subr.mxu0 0.0
  %727 = vmatpush1.xpose.msra.mxu0 0.0
  %728 = vmatprep.subr.mxu0 0.0
  %729 = vmatpush1.xpose.msra.mxu0 0.0
  %730 = vmatprep.subr.mxu0 0.0
  %731 = vmatpush1.xpose.msra.mxu0 0.0
  %732 = vmatprep.subr.mxu0 0.0
  %733 = vmatpush1.xpose.msra.mxu0 0.0
  %734 = vmatprep.subr.mxu0 0.0
  %735 = vmatpush1.xpose.msra.mxu0 0.0
  %736 = vmatprep.subr.mxu0 0.0
  %737 = vmatpush1.xpose.msra.mxu0 0.0
  %738 = vmatprep.subr.mxu0 0.0
  %739 = vmatpush1.xpose.msra.mxu0 0.0
  %740 = vmatprep.subr.mxu0 0.0
  %741 = vmatpush1.xpose.msra.mxu0 0.0
  %742 = vmatprep.subr.mxu0 0.0
  %743 = vmatpush1.xpose.msra.mxu0 0.0
  %744 = vmatprep.subr.mxu0 0.0
  %745 = vmatpush1.xpose.msra.mxu0 0.0
  %746 = vmatprep.subr.mxu0 0.0
  %747 = vmatpush1.xpose.msra.mxu0 0.0
  %748 = vmatprep.subr.mxu0 0.0
  %749 = vmatpush1.xpose.msra.mxu0 0.0
  %750 = vmatprep.subr.mxu0 0.0
  %751 = vmatpush1.xpose.msra.mxu0 0.0
  %752 = vmatprep.subr.mxu0 0.0
  %753 = vmatpush1.xpose.msra.mxu0 0.0
  %754 = vmatprep.subr.mxu0 0.0
  %755 = vmatpush1.xpose.msra.mxu0 0.0
  %756 = vmatprep.subr.mxu0 0.0
  %757 = vmatpush1.xpose.msra.mxu0 0.0
  %758 = vmatprep.subr.mxu0 0.0
  %759 = vmatpush1.xpose.msra.mxu0 0.0
  %760 = vmatprep.subr.mxu0 0.0
  %761 = vmatpush1.xpose.msra.mxu0 0.0
  %762 = vmatprep.subr.mxu0 0.0
  %763 = vmatpush1.xpose.msra.mxu0 0.0
  %764 = vmatprep.subr.mxu0 0.0
  %765 = vmatpush1.xpose.msra.mxu0 0.0
  %766 = vmatprep.subr.mxu0 0.0
  %767 = vmatpush1.xpose.msra.mxu0 0.0
  %768 = vmatprep.subr.mxu0 0.0
  %769 = vmatpush1.xpose.msra.mxu0 0.0
  %770 = vmatprep.subr.mxu0 0.0
  %771 = vmatpush1.xpose.msra.mxu0 0.0
  %772 = vmatprep.subr.mxu0 0.0
  %773 = vmatpush1.xpose.msra.mxu0 0.0
  %774 = vmatprep.subr.mxu0 0.0
  %775 = vmatpush1.xpose.msra.mxu0 0.0
  %776 = vmatprep.subr.mxu0 0.0
  %777 = vmatpush1.xpose.msra.mxu0 0.0
  %778 = vmatprep.subr.mxu0 0.0
  %779 = vmatpush1.xpose.msra.mxu0 0.0
  %780 = vmatprep.subr.mxu0 0.0
  %781 = vmatpush1.xpose.msra.mxu0 0.0
  %782 = vmatprep.subr.mxu0 0.0
  %783 = vmatpush1.xpose.msra.mxu0 0.0
  %784 = vmatprep.mubr.f32.mxu0 0.0
  %785 = vmatmul.mubr.f32.gmra.mrb[0].mxu0 %v712
  %v786 = vpop.f32.mrb[0].mxu0
  %v787 = vadd.f32 0.0, %v786
  %v788 = vpop.f32.mrb[0].mxu0
  %789 = vmatprep.mubr.f32.mxu0 0.0
  %790 = vmatmul.mubr.f32.gmra.mrb[0].mxu0 %v714
  %v791 = vpop.f32.mrb[0].mxu0
  %v792 = vadd.f32 0.0, %v791
  %v793 = vpop.f32.mrb[0].mxu0
  %794 = vdwg.mxu0
  %795 = vrot.lane.b32.xlu0 %v219, 96
  %v796 = vpop.permute.xlu0 %795
  %797 = vrot.lane.b32.xlu0 %v224, 96
  %v798 = vpop.permute.xlu0 %797
  %v799 = vsel %vm363, %v219, 0
  %v801 = vsel %vm363, %v224, 0
  %v803 = vsel %vm363, %v796, 0
  %v805 = vsel %vm363, %v798, 0
  %807 = vmatprep.subr.mxu0 0.0
  %808 = vmatpush1.xpose.msra.mxu0 %v803
  %809 = vmatprep.subr.mxu0 0.0
  %810 = vmatpush1.xpose.msra.mxu0 %v805
  %811 = vmatprep.subr.mxu0 0.0
  %812 = vmatpush1.xpose.msra.mxu0 0.0
  %813 = vmatprep.subr.mxu0 0.0
  %814 = vmatpush1.xpose.msra.mxu0 0.0
  %815 = vmatprep.subr.mxu0 0.0
  %816 = vmatpush1.xpose.msra.mxu0 0.0
  %817 = vmatprep.subr.mxu0 0.0
  %818 = vmatpush1.xpose.msra.mxu0 0.0
  %819 = vmatprep.subr.mxu0 0.0
  %820 = vmatpush1.xpose.msra.mxu0 0.0
  %821 = vmatprep.subr.mxu0 0.0
  %822 = vmatpush1.xpose.msra.mxu0 0.0
  %823 = vmatprep.subr.mxu0 0.0
  %824 = vmatpush1.xpose.msra.mxu0 0.0
  %825 = vmatprep.subr.mxu0 0.0
  %826 = vmatpush1.xpose.msra.mxu0 0.0
  %827 = vmatprep.subr.mxu0 0.0
  %828 = vmatpush1.xpose.msra.mxu0 0.0
  %829 = vmatprep.subr.mxu0 0.0
  %830 = vmatpush1.xpose.msra.mxu0 0.0
  %831 = vmatprep.subr.mxu0 0.0
  %832 = vmatpush1.xpose.msra.mxu0 0.0
  %833 = vmatprep.subr.mxu0 0.0
  %834 = vmatpush1.xpose.msra.mxu0 0.0
  %835 = vmatprep.subr.mxu0 0.0
  %836 = vmatpush1.xpose.msra.mxu0 0.0
  %837 = vmatprep.subr.mxu0 0.0
  %838 = vmatpush1.xpose.msra.mxu0 0.0
  %839 = vmatprep.subr.mxu0 0.0
  %840 = vmatpush1.xpose.msra.mxu0 0.0
  %841 = vmatprep.subr.mxu0 0.0
  %842 = vmatpush1.xpose.msra.mxu0 0.0
  %843 = vmatprep.subr.mxu0 0.0
  %844 = vmatpush1.xpose.msra.mxu0 0.0
  %845 = vmatprep.subr.mxu0 0.0
  %846 = vmatpush1.xpose.msra.mxu0 0.0
  %847 = vmatprep.subr.mxu0 0.0
  %848 = vmatpush1.xpose.msra.mxu0 0.0
  %849 = vmatprep.subr.mxu0 0.0
  %850 = vmatpush1.xpose.msra.mxu0 0.0
  %851 = vmatprep.subr.mxu0 0.0
  %852 = vmatpush1.xpose.msra.mxu0 0.0
  %853 = vmatprep.subr.mxu0 0.0
  %854 = vmatpush1.xpose.msra.mxu0 0.0
  %855 = vmatprep.subr.mxu0 0.0
  %856 = vmatpush1.xpose.msra.mxu0 0.0
  %857 = vmatprep.subr.mxu0 0.0
  %858 = vmatpush1.xpose.msra.mxu0 0.0
  %859 = vmatprep.subr.mxu0 0.0
  %860 = vmatpush1.xpose.msra.mxu0 0.0
  %861 = vmatprep.subr.mxu0 0.0
  %862 = vmatpush1.xpose.msra.mxu0 0.0
  %863 = vmatprep.subr.mxu0 0.0
  %864 = vmatpush1.xpose.msra.mxu0 0.0
  %865 = vmatprep.subr.mxu0 0.0
  %866 = vmatpush1.xpose.msra.mxu0 0.0
  %867 = vmatprep.subr.mxu0 0.0
  %868 = vmatpush1.xpose.msra.mxu0 0.0
  %869 = vmatprep.subr.mxu0 0.0
  %870 = vmatpush1.xpose.msra.mxu0 0.0
  %871 = vmatprep.mubr.f32.mxu0 0.0
  %872 = vmatmul.mubr.f32.gmra.mrb[0].mxu0 %v799
  %v873 = vpop.f32.mrb[0].mxu0
  %v874 = vadd.f32 0.0, %v873
  %v875 = vpop.f32.mrb[0].mxu0
  %876 = vmatprep.mubr.f32.mxu0 0.0
  %877 = vmatmul.mubr.f32.gmra.mrb[0].mxu0 %v801
  %v878 = vpop.f32.mrb[0].mxu0
  %v879 = vadd.f32 0.0, %v878
  %v880 = vpop.f32.mrb[0].mxu0
  %881 = vdwg.mxu0
  %882 = vrot.lane.b32.xlu0 %v229, 96
  %v883 = vpop.permute.xlu0 %882
  %884 = vrot.lane.b32.xlu0 %v234, 96
  %v885 = vpop.permute.xlu0 %884
  %v886 = vsel %vm363, %v229, 0
  %v888 = vsel %vm363, %v234, 0
  %v890 = vsel %vm363, %v883, 0
  %v892 = vsel %vm363, %v885, 0
  %894 = vmatprep.subr.mxu0 0.0
  %895 = vmatpush1.xpose.msra.mxu0 %v890
  %896 = vmatprep.subr.mxu0 0.0
  %897 = vmatpush1.xpose.msra.mxu0 %v892
  %898 = vmatprep.subr.mxu0 0.0
  %899 = vmatpush1.xpose.msra.mxu0 0.0
  %900 = vmatprep.subr.mxu0 0.0
  %901 = vmatpush1.xpose.msra.mxu0 0.0
  %902 = vmatprep.subr.mxu0 0.0
  %903 = vmatpush1.xpose.msra.mxu0 0.0
  %904 = vmatprep.subr.mxu0 0.0
  %905 = vmatpush1.xpose.msra.mxu0 0.0
  %906 = vmatprep.subr.mxu0 0.0
  %907 = vmatpush1.xpose.msra.mxu0 0.0
  %908 = vmatprep.subr.mxu0 0.0
  %909 = vmatpush1.xpose.msra.mxu0 0.0
  %910 = vmatprep.subr.mxu0 0.0
  %911 = vmatpush1.xpose.msra.mxu0 0.0
  %912 = vmatprep.subr.mxu0 0.0
  %913 = vmatpush1.xpose.msra.mxu0 0.0
  %914 = vmatprep.subr.mxu0 0.0
  %915 = vmatpush1.xpose.msra.mxu0 0.0
  %916 = vmatprep.subr.mxu0 0.0
  %917 = vmatpush1.xpose.msra.mxu0 0.0
  %918 = vmatprep.subr.mxu0 0.0
  %919 = vmatpush1.xpose.msra.mxu0 0.0
  %920 = vmatprep.subr.mxu0 0.0
  %921 = vmatpush1.xpose.msra.mxu0 0.0
  %922 = vmatprep.subr.mxu0 0.0
  %923 = vmatpush1.xpose.msra.mxu0 0.0
  %924 = vmatprep.subr.mxu0 0.0
  %925 = vmatpush1.xpose.msra.mxu0 0.0
  %926 = vmatprep.subr.mxu0 0.0
  %927 = vmatpush1.xpose.msra.mxu0 0.0
  %928 = vmatprep.subr.mxu0 0.0
  %929 = vmatpush1.xpose.msra.mxu0 0.0
  %930 = vmatprep.subr.mxu0 0.0
  %931 = vmatpush1.xpose.msra.mxu0 0.0
  %932 = vmatprep.subr.mxu0 0.0
  %933 = vmatpush1.xpose.msra.mxu0 0.0
  %934 = vmatprep.subr.mxu0 0.0
  %935 = vmatpush1.xpose.msra.mxu0 0.0
  %936 = vmatprep.subr.mxu0 0.0
  %937 = vmatpush1.xpose.msra.mxu0 0.0
  %938 = vmatprep.subr.mxu0 0.0
  %939 = vmatpush1.xpose.msra.mxu0 0.0
  %940 = vmatprep.subr.mxu0 0.0
  %941 = vmatpush1.xpose.msra.mxu0 0.0
  %942 = vmatprep.subr.mxu0 0.0
  %943 = vmatpush1.xpose.msra.mxu0 0.0
  %944 = vmatprep.subr.mxu0 0.0
  %945 = vmatpush1.xpose.msra.mxu0 0.0
  %946 = vmatprep.subr.mxu0 0.0
  %947 = vmatpush1.xpose.msra.mxu0 0.0
  %948 = vmatprep.subr.mxu0 0.0
  %949 = vmatpush1.xpose.msra.mxu0 0.0
  %950 = vmatprep.subr.mxu0 0.0
  %951 = vmatpush1.xpose.msra.mxu0 0.0
  %952 = vmatprep.subr.mxu0 0.0
  %953 = vmatpush1.xpose.msra.mxu0 0.0
  %954 = vmatprep.subr.mxu0 0.0
  %955 = vmatpush1.xpose.msra.mxu0 0.0
  %956 = vmatprep.subr.mxu0 0.0
  %957 = vmatpush1.xpose.msra.mxu0 0.0
  %958 = vmatprep.mubr.f32.mxu0 0.0
  %959 = vmatmul.mubr.f32.gmra.mrb[0].mxu0 %v886
  %v960 = vpop.f32.mrb[0].mxu0
  %v961 = vadd.f32 0.0, %v960
  %v962 = vpop.f32.mrb[0].mxu0
  %963 = vmatprep.mubr.f32.mxu0 0.0
  %964 = vmatmul.mubr.f32.gmra.mrb[0].mxu0 %v888
  %v965 = vpop.f32.mrb[0].mxu0
  %v966 = vadd.f32 0.0, %v965
  %v967 = vpop.f32.mrb[0].mxu0
  %968 = vdwg.mxu0
  %969 = vrot.lane.b32.xlu0 %v239, 96
  %v970 = vpop.permute.xlu0 %969
  %971 = vrot.lane.b32.xlu0 %v244, 96
  %v972 = vpop.permute.xlu0 %971
  %v973 = vsel %vm363, %v239, 0
  %v975 = vsel %vm363, %v244, 0
  %v977 = vsel %vm363, %v970, 0
  %v979 = vsel %vm363, %v972, 0
  %981 = vmatprep.subr.mxu0 0.0
  %982 = vmatpush1.xpose.msra.mxu0 %v977
  %983 = vmatprep.subr.mxu0 0.0
  %984 = vmatpush1.xpose.msra.mxu0 %v979
  %985 = vmatprep.subr.mxu0 0.0
  %986 = vmatpush1.xpose.msra.mxu0 0.0
  %987 = vmatprep.subr.mxu0 0.0
  %988 = vmatpush1.xpose.msra.mxu0 0.0
  %989 = vmatprep.subr.mxu0 0.0
  %990 = vmatpush1.xpose.msra.mxu0 0.0
  %991 = vmatprep.subr.mxu0 0.0
  %992 = vmatpush1.xpose.msra.mxu0 0.0
  %993 = vmatprep.subr.mxu0 0.0
  %994 = vmatpush1.xpose.msra.mxu0 0.0
  %995 = vmatprep.subr.mxu0 0.0
  %996 = vmatpush1.xpose.msra.mxu0 0.0
  %997 = vmatprep.subr.mxu0 0.0
  %998 = vmatpush1.xpose.msra.mxu0 0.0
  %999 = vmatprep.subr.mxu0 0.0
  %1000 = vmatpush1.xpose.msra.mxu0 0.0
  %1001 = vmatprep.subr.mxu0 0.0
  %1002 = vmatpush1.xpose.msra.mxu0 0.0
  %1003 = vmatprep.subr.mxu0 0.0
  %1004 = vmatpush1.xpose.msra.mxu0 0.0
  %1005 = vmatprep.subr.mxu0 0.0
  %1006 = vmatpush1.xpose.msra.mxu0 0.0
  %1007 = vmatprep.subr.mxu0 0.0
  %1008 = vmatpush1.xpose.msra.mxu0 0.0
  %1009 = vmatprep.subr.mxu0 0.0
  %1010 = vmatpush1.xpose.msra.mxu0 0.0
  %1011 = vmatprep.subr.mxu0 0.0
  %1012 = vmatpush1.xpose.msra.mxu0 0.0
  %1013 = vmatprep.subr.mxu0 0.0
  %1014 = vmatpush1.xpose.msra.mxu0 0.0
  %1015 = vmatprep.subr.mxu0 0.0
  %1016 = vmatpush1.xpose.msra.mxu0 0.0
  %1017 = vmatprep.subr.mxu0 0.0
  %1018 = vmatpush1.xpose.msra.mxu0 0.0
  %1019 = vmatprep.subr.mxu0 0.0
  %1020 = vmatpush1.xpose.msra.mxu0 0.0
  %1021 = vmatprep.subr.mxu0 0.0
  %1022 = vmatpush1.xpose.msra.mxu0 0.0
  %1023 = vmatprep.subr.mxu0 0.0
  %1024 = vmatpush1.xpose.msra.mxu0 0.0
  %1025 = vmatprep.subr.mxu0 0.0
  %1026 = vmatpush1.xpose.msra.mxu0 0.0
  %1027 = vmatprep.subr.mxu0 0.0
  %1028 = vmatpush1.xpose.msra.mxu0 0.0
  %1029 = vmatprep.subr.mxu0 0.0
  %1030 = vmatpush1.xpose.msra.mxu0 0.0
  %1031 = vmatprep.subr.mxu0 0.0
  %1032 = vmatpush1.xpose.msra.mxu0 0.0
  %1033 = vmatprep.subr.mxu0 0.0
  %1034 = vmatpush1.xpose.msra.mxu0 0.0
  %1035 = vmatprep.subr.mxu0 0.0
  %1036 = vmatpush1.xpose.msra.mxu0 0.0
  %1037 = vmatprep.subr.mxu0 0.0
  %1038 = vmatpush1.xpose.msra.mxu0 0.0
  %1039 = vmatprep.subr.mxu0 0.0
  %1040 = vmatpush1.xpose.msra.mxu0 0.0
  %1041 = vmatprep.subr.mxu0 0.0
  %1042 = vmatpush1.xpose.msra.mxu0 0.0
  %1043 = vmatprep.subr.mxu0 0.0
  %1044 = vmatpush1.xpose.msra.mxu0 0.0
  %1045 = vmatprep.mubr.f32.mxu0 0.0
  %1046 = vmatmul.mubr.f32.gmra.mrb[0].mxu0 %v973
  %v1047 = vpop.f32.mrb[0].mxu0
  %v1048 = vadd.f32 0.0, %v1047
  %v1049 = vpop.f32.mrb[0].mxu0
  %1050 = vmatprep.mubr.f32.mxu0 0.0
  %1051 = vmatmul.mubr.f32.gmra.mrb[0].mxu0 %v975
  %v1052 = vpop.f32.mrb[0].mxu0
  %v1053 = vadd.f32 0.0, %v1052
  %v1054 = vpop.f32.mrb[0].mxu0
  %1055 = vdwg.mxu0
  %1056 = vrot.lane.b32.xlu0 %v264, 96
  %v1057 = vpop.permute.xlu0 %1056
  %1058 = vrot.lane.b32.xlu0 %v266, 96
  %v1059 = vpop.permute.xlu0 %1058
  %v1060 = vsel %vm363, %v264, 0
  %v1062 = vsel %vm363, %v266, 0
  %v1064 = vsel %vm363, %v1057, 0
  %v1066 = vsel %vm363, %v1059, 0
  %1068 = vmatprep.subr.mxu0 0.0
  %1069 = vmatpush1.xpose.msra.mxu0 %v1064
  %1070 = vmatprep.subr.mxu0 0.0
  %1071 = vmatpush1.xpose.msra.mxu0 %v1066
  %1072 = vmatprep.subr.mxu0 0.0
  %1073 = vmatpush1.xpose.msra.mxu0 0.0
  %1074 = vmatprep.subr.mxu0 0.0
  %1075 = vmatpush1.xpose.msra.mxu0 0.0
  %1076 = vmatprep.subr.mxu0 0.0
  %1077 = vmatpush1.xpose.msra.mxu0 0.0
  %1078 = vmatprep.subr.mxu0 0.0
  %1079 = vmatpush1.xpose.msra.mxu0 0.0
  %1080 = vmatprep.subr.mxu0 0.0
  %1081 = vmatpush1.xpose.msra.mxu0 0.0
  %1082 = vmatprep.subr.mxu0 0.0
  %1083 = vmatpush1.xpose.msra.mxu0 0.0
  %1084 = vmatprep.subr.mxu0 0.0
  %1085 = vmatpush1.xpose.msra.mxu0 0.0
  %1086 = vmatprep.subr.mxu0 0.0
  %1087 = vmatpush1.xpose.msra.mxu0 0.0
  %1088 = vmatprep.subr.mxu0 0.0
  %1089 = vmatpush1.xpose.msra.mxu0 0.0
  %1090 = vmatprep.subr.mxu0 0.0
  %1091 = vmatpush1.xpose.msra.mxu0 0.0
  %1092 = vmatprep.subr.mxu0 0.0
  %1093 = vmatpush1.xpose.msra.mxu0 0.0
  %1094 = vmatprep.subr.mxu0 0.0
  %1095 = vmatpush1.xpose.msra.mxu0 0.0
  %1096 = vmatprep.subr.mxu0 0.0
  %1097 = vmatpush1.xpose.msra.mxu0 0.0
  %1098 = vmatprep.subr.mxu0 0.0
  %1099 = vmatpush1.xpose.msra.mxu0 0.0
  %1100 = vmatprep.subr.mxu0 0.0
  %1101 = vmatpush1.xpose.msra.mxu0 0.0
  %1102 = vmatprep.subr.mxu0 0.0
  %1103 = vmatpush1.xpose.msra.mxu0 0.0
  %1104 = vmatprep.subr.mxu0 0.0
  %1105 = vmatpush1.xpose.msra.mxu0 0.0
  %1106 = vmatprep.subr.mxu0 0.0
  %1107 = vmatpush1.xpose.msra.mxu0 0.0
  %1108 = vmatprep.subr.mxu0 0.0
  %1109 = vmatpush1.xpose.msra.mxu0 0.0
  %1110 = vmatprep.subr.mxu0 0.0
  %1111 = vmatpush1.xpose.msra.mxu0 0.0
  %1112 = vmatprep.subr.mxu0 0.0
  %1113 = vmatpush1.xpose.msra.mxu0 0.0
  %1114 = vmatprep.subr.mxu0 0.0
  %1115 = vmatpush1.xpose.msra.mxu0 0.0
  %1116 = vmatprep.subr.mxu0 0.0
  %1117 = vmatpush1.xpose.msra.mxu0 0.0
  %1118 = vmatprep.subr.mxu0 0.0
  %1119 = vmatpush1.xpose.msra.mxu0 0.0
  %1120 = vmatprep.subr.mxu0 0.0
  %1121 = vmatpush1.xpose.msra.mxu0 0.0
  %1122 = vmatprep.subr.mxu0 0.0
  %1123 = vmatpush1.xpose.msra.mxu0 0.0
  %1124 = vmatprep.subr.mxu0 0.0
  %1125 = vmatpush1.xpose.msra.mxu0 0.0
  %1126 = vmatprep.subr.mxu0 0.0
  %1127 = vmatpush1.xpose.msra.mxu0 0.0
  %1128 = vmatprep.subr.mxu0 0.0
  %1129 = vmatpush1.xpose.msra.mxu0 0.0
  %1130 = vmatprep.subr.mxu0 0.0
  %1131 = vmatpush1.xpose.msra.mxu0 0.0
  %1132 = vmatprep.mubr.f32.mxu0 0.0
  %1133 = vmatmul.mubr.f32.gmra.mrb[0].mxu0 %v1060
  %v1134 = vpop.f32.mrb[0].mxu0
  %v1135 = vadd.f32 0.0, %v1134
  %v1136 = vpop.f32.mrb[0].mxu0
  %1137 = vmatprep.mubr.f32.mxu0 0.0
  %1138 = vmatmul.mubr.f32.gmra.mrb[0].mxu0 %v1062
  %v1139 = vpop.f32.mrb[0].mxu0
  %v1140 = vadd.f32 0.0, %v1139
  %v1141 = vpop.f32.mrb[0].mxu0
  %1142 = vdwg.mxu0
  %1143 = vrot.lane.b32.xlu0 %v268, 96
  %v1144 = vpop.permute.xlu0 %1143
  %1145 = vrot.lane.b32.xlu0 %v270, 96
  %v1146 = vpop.permute.xlu0 %1145
  %v1147 = vsel %vm363, %v268, 0
  %v1149 = vsel %vm363, %v270, 0
  %v1151 = vsel %vm363, %v1144, 0
  %v1153 = vsel %vm363, %v1146, 0
  %1155 = vmatprep.subr.mxu0 0.0
  %1156 = vmatpush1.xpose.msra.mxu0 %v1151
  %1157 = vmatprep.subr.mxu0 0.0
  %1158 = vmatpush1.xpose.msra.mxu0 %v1153
  %1159 = vmatprep.subr.mxu0 0.0
  %1160 = vmatpush1.xpose.msra.mxu0 0.0
  %1161 = vmatprep.subr.mxu0 0.0
  %1162 = vmatpush1.xpose.msra.mxu0 0.0
  %1163 = vmatprep.subr.mxu0 0.0
  %1164 = vmatpush1.xpose.msra.mxu0 0.0
  %1165 = vmatprep.subr.mxu0 0.0
  %1166 = vmatpush1.xpose.msra.mxu0 0.0
  %1167 = vmatprep.subr.mxu0 0.0
  %1168 = vmatpush1.xpose.msra.mxu0 0.0
  %1169 = vmatprep.subr.mxu0 0.0
  %1170 = vmatpush1.xpose.msra.mxu0 0.0
  %1171 = vmatprep.subr.mxu0 0.0
  %1172 = vmatpush1.xpose.msra.mxu0 0.0
  %1173 = vmatprep.subr.mxu0 0.0
  %1174 = vmatpush1.xpose.msra.mxu0 0.0
  %1175 = vmatprep.subr.mxu0 0.0
  %1176 = vmatpush1.xpose.msra.mxu0 0.0
  %1177 = vmatprep.subr.mxu0 0.0
  %1178 = vmatpush1.xpose.msra.mxu0 0.0
  %1179 = vmatprep.subr.mxu0 0.0
  %1180 = vmatpush1.xpose.msra.mxu0 0.0
  %1181 = vmatprep.subr.mxu0 0.0
  %1182 = vmatpush1.xpose.msra.mxu0 0.0
  %1183 = vmatprep.subr.mxu0 0.0
  %1184 = vmatpush1.xpose.msra.mxu0 0.0
  %1185 = vmatprep.subr.mxu0 0.0
  %1186 = vmatpush1.xpose.msra.mxu0 0.0
  %1187 = vmatprep.subr.mxu0 0.0
  %1188 = vmatpush1.xpose.msra.mxu0 0.0
  %1189 = vmatprep.subr.mxu0 0.0
  %1190 = vmatpush1.xpose.msra.mxu0 0.0
  %1191 = vmatprep.subr.mxu0 0.0
  %1192 = vmatpush1.xpose.msra.mxu0 0.0
  %1193 = vmatprep.subr.mxu0 0.0
  %1194 = vmatpush1.xpose.msra.mxu0 0.0
  %1195 = vmatprep.subr.mxu0 0.0
  %1196 = vmatpush1.xpose.msra.mxu0 0.0
  %1197 = vmatprep.subr.mxu0 0.0
  %1198 = vmatpush1.xpose.msra.mxu0 0.0
  %1199 = vmatprep.subr.mxu0 0.0
  %1200 = vmatpush1.xpose.msra.mxu0 0.0
  %1201 = vmatprep.subr.mxu0 0.0
  %1202 = vmatpush1.xpose.msra.mxu0 0.0
  %1203 = vmatprep.subr.mxu0 0.0
  %1204 = vmatpush1.xpose.msra.mxu0 0.0
  %1205 = vmatprep.subr.mxu0 0.0
  %1206 = vmatpush1.xpose.msra.mxu0 0.0
  %1207 = vmatprep.subr.mxu0 0.0
  %1208 = vmatpush1.xpose.msra.mxu0 0.0
  %1209 = vmatprep.subr.mxu0 0.0
  %1210 = vmatpush1.xpose.msra.mxu0 0.0
  %1211 = vmatprep.subr.mxu0 0.0
  %1212 = vmatpush1.xpose.msra.mxu0 0.0
  %1213 = vmatprep.subr.mxu0 0.0
  %1214 = vmatpush1.xpose.msra.mxu0 0.0
  %1215 = vmatprep.subr.mxu0 0.0
  %1216 = vmatpush1.xpose.msra.mxu0 0.0
  %1217 = vmatprep.subr.mxu0 0.0
  %1218 = vmatpush1.xpose.msra.mxu0 0.0
  %1219 = vmatprep.mubr.f32.mxu0 0.0
  %1220 = vmatmul.mubr.f32.gmra.mrb[0].mxu0 %v1147
  %v1221 = vpop.f32.mrb[0].mxu0
  %v1222 = vadd.f32 0.0, %v1221
  %v1223 = vpop.f32.mrb[0].mxu0
  %1224 = vmatprep.mubr.f32.mxu0 0.0
  %1225 = vmatmul.mubr.f32.gmra.mrb[0].mxu0 %v1149
  %v1226 = vpop.f32.mrb[0].mxu0
  %v1227 = vadd.f32 0.0, %v1226
  %v1228 = vpop.f32.mrb[0].mxu0
  %1229 = vdwg.mxu0
  %1230 = vrot.lane.b32.xlu0 %v272, 96
  %v1231 = vpop.permute.xlu0 %1230
  %1232 = vrot.lane.b32.xlu0 %v274, 96
  %v1233 = vpop.permute.xlu0 %1232
  %v1234 = vsel %vm363, %v272, 0
  %v1236 = vsel %vm363, %v274, 0
  %v1238 = vsel %vm363, %v1231, 0
  %v1240 = vsel %vm363, %v1233, 0
  %1242 = vmatprep.subr.mxu0 0.0
  %1243 = vmatpush1.xpose.msra.mxu0 %v1238
  %1244 = vmatprep.subr.mxu0 0.0
  %1245 = vmatpush1.xpose.msra.mxu0 %v1240
  %1246 = vmatprep.subr.mxu0 0.0
  %1247 = vmatpush1.xpose.msra.mxu0 0.0
  %1248 = vmatprep.subr.mxu0 0.0
  %1249 = vmatpush1.xpose.msra.mxu0 0.0
  %1250 = vmatprep.subr.mxu0 0.0
  %1251 = vmatpush1.xpose.msra.mxu0 0.0
  %1252 = vmatprep.subr.mxu0 0.0
  %1253 = vmatpush1.xpose.msra.mxu0 0.0
  %1254 = vmatprep.subr.mxu0 0.0
  %1255 = vmatpush1.xpose.msra.mxu0 0.0
  %1256 = vmatprep.subr.mxu0 0.0
  %1257 = vmatpush1.xpose.msra.mxu0 0.0
  %1258 = vmatprep.subr.mxu0 0.0
  %1259 = vmatpush1.xpose.msra.mxu0 0.0
  %1260 = vmatprep.subr.mxu0 0.0
  %1261 = vmatpush1.xpose.msra.mxu0 0.0
  %1262 = vmatprep.subr.mxu0 0.0
  %1263 = vmatpush1.xpose.msra.mxu0 0.0
  %1264 = vmatprep.subr.mxu0 0.0
  %1265 = vmatpush1.xpose.msra.mxu0 0.0
  %1266 = vmatprep.subr.mxu0 0.0
  %1267 = vmatpush1.xpose.msra.mxu0 0.0
  %1268 = vmatprep.subr.mxu0 0.0
  %1269 = vmatpush1.xpose.msra.mxu0 0.0
  %1270 = vmatprep.subr.mxu0 0.0
  %1271 = vmatpush1.xpose.msra.mxu0 0.0
  %1272 = vmatprep.subr.mxu0 0.0
  %1273 = vmatpush1.xpose.msra.mxu0 0.0
  %1274 = vmatprep.subr.mxu0 0.0
  %1275 = vmatpush1.xpose.msra.mxu0 0.0
  %1276 = vmatprep.subr.mxu0 0.0
  %1277 = vmatpush1.xpose.msra.mxu0 0.0
  %1278 = vmatprep.subr.mxu0 0.0
  %1279 = vmatpush1.xpose.msra.mxu0 0.0
  %1280 = vmatprep.subr.mxu0 0.0
  %1281 = vmatpush1.xpose.msra.mxu0 0.0
  %1282 = vmatprep.subr.mxu0 0.0
  %1283 = vmatpush1.xpose.msra.mxu0 0.0
  %1284 = vmatprep.subr.mxu0 0.0
  %1285 = vmatpush1.xpose.msra.mxu0 0.0
  %1286 = vmatprep.subr.mxu0 0.0
  %1287 = vmatpush1.xpose.msra.mxu0 0.0
  %1288 = vmatprep.subr.mxu0 0.0
  %1289 = vmatpush1.xpose.msra.mxu0 0.0
  %1290 = vmatprep.subr.mxu0 0.0
  %1291 = vmatpush1.xpose.msra.mxu0 0.0
  %1292 = vmatprep.subr.mxu0 0.0
  %1293 = vmatpush1.xpose.msra.mxu0 0.0
  %1294 = vmatprep.subr.mxu0 0.0
  %1295 = vmatpush1.xpose.msra.mxu0 0.0
  %1296 = vmatprep.subr.mxu0 0.0
  %1297 = vmatpush1.xpose.msra.mxu0 0.0
  %1298 = vmatprep.subr.mxu0 0.0
  %1299 = vmatpush1.xpose.msra.mxu0 0.0
  %1300 = vmatprep.subr.mxu0 0.0
  %1301 = vmatpush1.xpose.msra.mxu0 0.0
  %1302 = vmatprep.subr.mxu0 0.0
  %1303 = vmatpush1.xpose.msra.mxu0 0.0
  %1304 = vmatprep.subr.mxu0 0.0
  %1305 = vmatpush1.xpose.msra.mxu0 0.0
  %1306 = vmatprep.mubr.f32.mxu0 0.0
  %1307 = vmatmul.mubr.f32.gmra.mrb[0].mxu0 %v1234
  %v1308 = vpop.f32.mrb[0].mxu0
  %v1309 = vadd.f32 0.0, %v1308
  %v1310 = vpop.f32.mrb[0].mxu0
  %1311 = vmatprep.mubr.f32.mxu0 0.0
  %1312 = vmatmul.mubr.f32.gmra.mrb[0].mxu0 %v1236
  %v1313 = vpop.f32.mrb[0].mxu0
  %v1314 = vadd.f32 0.0, %v1313
  %v1315 = vpop.f32.mrb[0].mxu0
  %1316 = vdwg.mxu0
  %1317 = vrot.lane.b32.xlu0 %v276, 96
  %v1318 = vpop.permute.xlu0 %1317
  %1319 = vrot.lane.b32.xlu0 %v278, 96
  %v1320 = vpop.permute.xlu0 %1319
  %v1321 = vsel %vm363, %v276, 0
  %v1323 = vsel %vm363, %v278, 0
  %v1325 = vsel %vm363, %v1318, 0
  %v1327 = vsel %vm363, %v1320, 0
  %1329 = vmatprep.subr.mxu0 0.0
  %1330 = vmatpush1.xpose.msra.mxu0 %v1325
  %1331 = vmatprep.subr.mxu0 0.0
  %1332 = vmatpush1.xpose.msra.mxu0 %v1327
  %1333 = vmatprep.subr.mxu0 0.0
  %1334 = vmatpush1.xpose.msra.mxu0 0.0
  %1335 = vmatprep.subr.mxu0 0.0
  %1336 = vmatpush1.xpose.msra.mxu0 0.0
  %1337 = vmatprep.subr.mxu0 0.0
  %1338 = vmatpush1.xpose.msra.mxu0 0.0
  %1339 = vmatprep.subr.mxu0 0.0
  %1340 = vmatpush1.xpose.msra.mxu0 0.0
  %1341 = vmatprep.subr.mxu0 0.0
  %1342 = vmatpush1.xpose.msra.mxu0 0.0
  %1343 = vmatprep.subr.mxu0 0.0
  %1344 = vmatpush1.xpose.msra.mxu0 0.0
  %1345 = vmatprep.subr.mxu0 0.0
  %1346 = vmatpush1.xpose.msra.mxu0 0.0
  %1347 = vmatprep.subr.mxu0 0.0
  %1348 = vmatpush1.xpose.msra.mxu0 0.0
  %1349 = vmatprep.subr.mxu0 0.0
  %1350 = vmatpush1.xpose.msra.mxu0 0.0
  %1351 = vmatprep.subr.mxu0 0.0
  %1352 = vmatpush1.xpose.msra.mxu0 0.0
  %1353 = vmatprep.subr.mxu0 0.0
  %1354 = vmatpush1.xpose.msra.mxu0 0.0
  %1355 = vmatprep.subr.mxu0 0.0
  %1356 = vmatpush1.xpose.msra.mxu0 0.0
  %1357 = vmatprep.subr.mxu0 0.0
  %1358 = vmatpush1.xpose.msra.mxu0 0.0
  %1359 = vmatprep.subr.mxu0 0.0
  %1360 = vmatpush1.xpose.msra.mxu0 0.0
  %1361 = vmatprep.subr.mxu0 0.0
  %1362 = vmatpush1.xpose.msra.mxu0 0.0
  %1363 = vmatprep.subr.mxu0 0.0
  %1364 = vmatpush1.xpose.msra.mxu0 0.0
  %1365 = vmatprep.subr.mxu0 0.0
  %1366 = vmatpush1.xpose.msra.mxu0 0.0
  %1367 = vmatprep.subr.mxu0 0.0
  %1368 = vmatpush1.xpose.msra.mxu0 0.0
  %1369 = vmatprep.subr.mxu0 0.0
  %1370 = vmatpush1.xpose.msra.mxu0 0.0
  %1371 = vmatprep.subr.mxu0 0.0
  %1372 = vmatpush1.xpose.msra.mxu0 0.0
  %1373 = vmatprep.subr.mxu0 0.0
  %1374 = vmatpush1.xpose.msra.mxu0 0.0
  %1375 = vmatprep.subr.mxu0 0.0
  %1376 = vmatpush1.xpose.msra.mxu0 0.0
  %1377 = vmatprep.subr.mxu0 0.0
  %1378 = vmatpush1.xpose.msra.mxu0 0.0
  %1379 = vmatprep.subr.mxu0 0.0
  %1380 = vmatpush1.xpose.msra.mxu0 0.0
  %1381 = vmatprep.subr.mxu0 0.0
  %1382 = vmatpush1.xpose.msra.mxu0 0.0
  %1383 = vmatprep.subr.mxu0 0.0
  %1384 = vmatpush1.xpose.msra.mxu0 0.0
  %1385 = vmatprep.subr.mxu0 0.0
  %1386 = vmatpush1.xpose.msra.mxu0 0.0
  %1387 = vmatprep.subr.mxu0 0.0
  %1388 = vmatpush1.xpose.msra.mxu0 0.0
  %1389 = vmatprep.subr.mxu0 0.0
  %1390 = vmatpush1.xpose.msra.mxu0 0.0
  %1391 = vmatprep.subr.mxu0 0.0
  %1392 = vmatpush1.xpose.msra.mxu0 0.0
  %1393 = vmatprep.mubr.f32.mxu0 0.0
  %1394 = vmatmul.mubr.f32.gmra.mrb[0].mxu0 %v1321
  %v1395 = vpop.f32.mrb[0].mxu0
  %v1396 = vadd.f32 0.0, %v1395
  %v1397 = vpop.f32.mrb[0].mxu0
  %1398 = vmatprep.mubr.f32.mxu0 0.0
  %1399 = vmatmul.mubr.f32.gmra.mrb[0].mxu0 %v1323
  %v1400 = vpop.f32.mrb[0].mxu0
  %v1401 = vadd.f32 0.0, %v1400
  %v1402 = vpop.f32.mrb[0].mxu0
  %1403 = vdwg.mxu0
  %1404 = vrot.lane.b32.xlu0 %v280, 96
  %v1405 = vpop.permute.xlu0 %1404
  %1406 = vrot.lane.b32.xlu0 %v282, 96
  %v1407 = vpop.permute.xlu0 %1406
  %v1408 = vsel %vm363, %v280, 0
  %v1410 = vsel %vm363, %v282, 0
  %v1412 = vsel %vm363, %v1405, 0
  %v1414 = vsel %vm363, %v1407, 0
  %1416 = vmatprep.subr.mxu0 0.0
  %1417 = vmatpush1.xpose.msra.mxu0 %v1412
  %1418 = vmatprep.subr.mxu0 0.0
  %1419 = vmatpush1.xpose.msra.mxu0 %v1414
  %1420 = vmatprep.subr.mxu0 0.0
  %1421 = vmatpush1.xpose.msra.mxu0 0.0
  %1422 = vmatprep.subr.mxu0 0.0
  %1423 = vmatpush1.xpose.msra.mxu0 0.0
  %1424 = vmatprep.subr.mxu0 0.0
  %1425 = vmatpush1.xpose.msra.mxu0 0.0
  %1426 = vmatprep.subr.mxu0 0.0
  %1427 = vmatpush1.xpose.msra.mxu0 0.0
  %1428 = vmatprep.subr.mxu0 0.0
  %1429 = vmatpush1.xpose.msra.mxu0 0.0
  %1430 = vmatprep.subr.mxu0 0.0
  %1431 = vmatpush1.xpose.msra.mxu0 0.0
  %1432 = vmatprep.subr.mxu0 0.0
  %1433 = vmatpush1.xpose.msra.mxu0 0.0
  %1434 = vmatprep.subr.mxu0 0.0
  %1435 = vmatpush1.xpose.msra.mxu0 0.0
  %1436 = vmatprep.subr.mxu0 0.0
  %1437 = vmatpush1.xpose.msra.mxu0 0.0
  %1438 = vmatprep.subr.mxu0 0.0
  %1439 = vmatpush1.xpose.msra.mxu0 0.0
  %1440 = vmatprep.subr.mxu0 0.0
  %1441 = vmatpush1.xpose.msra.mxu0 0.0
  %1442 = vmatprep.subr.mxu0 0.0
  %1443 = vmatpush1.xpose.msra.mxu0 0.0
  %1444 = vmatprep.subr.mxu0 0.0
  %1445 = vmatpush1.xpose.msra.mxu0 0.0
  %1446 = vmatprep.subr.mxu0 0.0
  %1447 = vmatpush1.xpose.msra.mxu0 0.0
  %1448 = vmatprep.subr.mxu0 0.0
  %1449 = vmatpush1.xpose.msra.mxu0 0.0
  %1450 = vmatprep.subr.mxu0 0.0
  %1451 = vmatpush1.xpose.msra.mxu0 0.0
  %1452 = vmatprep.subr.mxu0 0.0
  %1453 = vmatpush1.xpose.msra.mxu0 0.0
  %1454 = vmatprep.subr.mxu0 0.0
  %1455 = vmatpush1.xpose.msra.mxu0 0.0
  %1456 = vmatprep.subr.mxu0 0.0
  %1457 = vmatpush1.xpose.msra.mxu0 0.0
  %1458 = vmatprep.subr.mxu0 0.0
  %1459 = vmatpush1.xpose.msra.mxu0 0.0
  %1460 = vmatprep.subr.mxu0 0.0
  %1461 = vmatpush1.xpose.msra.mxu0 0.0
  %1462 = vmatprep.subr.mxu0 0.0
  %1463 = vmatpush1.xpose.msra.mxu0 0.0
  %1464 = vmatprep.subr.mxu0 0.0
  %1465 = vmatpush1.xpose.msra.mxu0 0.0
  %1466 = vmatprep.subr.mxu0 0.0
  %1467 = vmatpush1.xpose.msra.mxu0 0.0
  %1468 = vmatprep.subr.mxu0 0.0
  %1469 = vmatpush1.xpose.msra.mxu0 0.0
  %1470 = vmatprep.subr.mxu0 0.0
  %1471 = vmatpush1.xpose.msra.mxu0 0.0
  %1472 = vmatprep.subr.mxu0 0.0
  %1473 = vmatpush1.xpose.msra.mxu0 0.0
  %1474 = vmatprep.subr.mxu0 0.0
  %1475 = vmatpush1.xpose.msra.mxu0 0.0
  %1476 = vmatprep.subr.mxu0 0.0
  %1477 = vmatpush1.xpose.msra.mxu0 0.0
  %1478 = vmatprep.subr.mxu0 0.0
  %1479 = vmatpush1.xpose.msra.mxu0 0.0
  %1480 = vmatprep.mubr.f32.mxu0 0.0
  %1481 = vmatmul.mubr.f32.gmra.mrb[0].mxu0 %v1408
  %v1482 = vpop.f32.mrb[0].mxu0
  %v1483 = vadd.f32 0.0, %v1482
  %v1484 = vpop.f32.mrb[0].mxu0
  %1485 = vmatprep.mubr.f32.mxu0 0.0
  %1486 = vmatmul.mubr.f32.gmra.mrb[0].mxu0 %v1410
  %v1487 = vpop.f32.mrb[0].mxu0
  %v1488 = vadd.f32 0.0, %v1487
  %v1489 = vpop.f32.mrb[0].mxu0
  %1490 = vdwg.mxu0
  %1491 = vrot.lane.b32.xlu0 %v284, 96
  %v1492 = vpop.permute.xlu0 %1491
  %1493 = vrot.lane.b32.xlu0 %v286, 96
  %v1494 = vpop.permute.xlu0 %1493
  %v1495 = vsel %vm363, %v284, 0
  %v1497 = vsel %vm363, %v286, 0
  %v1499 = vsel %vm363, %v1492, 0
  %v1501 = vsel %vm363, %v1494, 0
  %1503 = vmatprep.subr.mxu0 0.0
  %1504 = vmatpush1.xpose.msra.mxu0 %v1499
  %1505 = vmatprep.subr.mxu0 0.0
  %1506 = vmatpush1.xpose.msra.mxu0 %v1501
  %1507 = vmatprep.subr.mxu0 0.0
  %1508 = vmatpush1.xpose.msra.mxu0 0.0
  %1509 = vmatprep.subr.mxu0 0.0
  %1510 = vmatpush1.xpose.msra.mxu0 0.0
  %1511 = vmatprep.subr.mxu0 0.0
  %1512 = vmatpush1.xpose.msra.mxu0 0.0
  %1513 = vmatprep.subr.mxu0 0.0
  %1514 = vmatpush1.xpose.msra.mxu0 0.0
  %1515 = vmatprep.subr.mxu0 0.0
  %1516 = vmatpush1.xpose.msra.mxu0 0.0
  %1517 = vmatprep.subr.mxu0 0.0
  %1518 = vmatpush1.xpose.msra.mxu0 0.0
  %1519 = vmatprep.subr.mxu0 0.0
  %1520 = vmatpush1.xpose.msra.mxu0 0.0
  %1521 = vmatprep.subr.mxu0 0.0
  %1522 = vmatpush1.xpose.msra.mxu0 0.0
  %1523 = vmatprep.subr.mxu0 0.0
  %1524 = vmatpush1.xpose.msra.mxu0 0.0
  %1525 = vmatprep.subr.mxu0 0.0
  %1526 = vmatpush1.xpose.msra.mxu0 0.0
  %1527 = vmatprep.subr.mxu0 0.0
  %1528 = vmatpush1.xpose.msra.mxu0 0.0
  %1529 = vmatprep.subr.mxu0 0.0
  %1530 = vmatpush1.xpose.msra.mxu0 0.0
  %1531 = vmatprep.subr.mxu0 0.0
  %1532 = vmatpush1.xpose.msra.mxu0 0.0
  %1533 = vmatprep.subr.mxu0 0.0
  %1534 = vmatpush1.xpose.msra.mxu0 0.0
  %1535 = vmatprep.subr.mxu0 0.0
  %1536 = vmatpush1.xpose.msra.mxu0 0.0
  %1537 = vmatprep.subr.mxu0 0.0
  %1538 = vmatpush1.xpose.msra.mxu0 0.0
  %1539 = vmatprep.subr.mxu0 0.0
  %1540 = vmatpush1.xpose.msra.mxu0 0.0
  %1541 = vmatprep.subr.mxu0 0.0
  %1542 = vmatpush1.xpose.msra.mxu0 0.0
  %1543 = vmatprep.subr.mxu0 0.0
  %1544 = vmatpush1.xpose.msra.mxu0 0.0
  %1545 = vmatprep.subr.mxu0 0.0
  %1546 = vmatpush1.xpose.msra.mxu0 0.0
  %1547 = vmatprep.subr.mxu0 0.0
  %1548 = vmatpush1.xpose.msra.mxu0 0.0
  %1549 = vmatprep.subr.mxu0 0.0
  %1550 = vmatpush1.xpose.msra.mxu0 0.0
  %1551 = vmatprep.subr.mxu0 0.0
  %1552 = vmatpush1.xpose.msra.mxu0 0.0
  %1553 = vmatprep.subr.mxu0 0.0
  %1554 = vmatpush1.xpose.msra.mxu0 0.0
  %1555 = vmatprep.subr.mxu0 0.0
  %1556 = vmatpush1.xpose.msra.mxu0 0.0
  %1557 = vmatprep.subr.mxu0 0.0
  %1558 = vmatpush1.xpose.msra.mxu0 0.0
  %1559 = vmatprep.subr.mxu0 0.0
  %1560 = vmatpush1.xpose.msra.mxu0 0.0
  %1561 = vmatprep.subr.mxu0 0.0
  %1562 = vmatpush1.xpose.msra.mxu0 0.0
  %1563 = vmatprep.subr.mxu0 0.0
  %1564 = vmatpush1.xpose.msra.mxu0 0.0
  %1565 = vmatprep.subr.mxu0 0.0
  %1566 = vmatpush1.xpose.msra.mxu0 0.0
  %1567 = vmatprep.mubr.f32.mxu0 0.0
  %1568 = vmatmul.mubr.f32.gmra.mrb[0].mxu0 %v1495
  %v1569 = vpop.f32.mrb[0].mxu0
  %v1570 = vadd.f32 0.0, %v1569
  %v1571 = vpop.f32.mrb[0].mxu0
  %1572 = vmatprep.mubr.f32.mxu0 0.0
  %1573 = vmatmul.mubr.f32.gmra.mrb[0].mxu0 %v1497
  %v1574 = vpop.f32.mrb[0].mxu0
  %v1575 = vadd.f32 0.0, %v1574
  %v1576 = vpop.f32.mrb[0].mxu0
  %1577 = vdwg.mxu0
  %1578 = vrot.lane.b32.xlu0 %v288, 96
  %v1579 = vpop.permute.xlu0 %1578
  %1580 = vrot.lane.b32.xlu0 %v290, 96
  %v1581 = vpop.permute.xlu0 %1580
  %v1582 = vsel %vm363, %v288, 0
  %v1584 = vsel %vm363, %v290, 0
  %v1586 = vsel %vm363, %v1579, 0
  %v1588 = vsel %vm363, %v1581, 0
  %1590 = vmatprep.subr.mxu0 0.0
  %1591 = vmatpush1.xpose.msra.mxu0 %v1586
  %1592 = vmatprep.subr.mxu0 0.0
  %1593 = vmatpush1.xpose.msra.mxu0 %v1588
  %1594 = vmatprep.subr.mxu0 0.0
  %1595 = vmatpush1.xpose.msra.mxu0 0.0
  %1596 = vmatprep.subr.mxu0 0.0
  %1597 = vmatpush1.xpose.msra.mxu0 0.0
  %1598 = vmatprep.subr.mxu0 0.0
  %1599 = vmatpush1.xpose.msra.mxu0 0.0
  %1600 = vmatprep.subr.mxu0 0.0
  %1601 = vmatpush1.xpose.msra.mxu0 0.0
  %1602 = vmatprep.subr.mxu0 0.0
  %1603 = vmatpush1.xpose.msra.mxu0 0.0
  %1604 = vmatprep.subr.mxu0 0.0
  %1605 = vmatpush1.xpose.msra.mxu0 0.0
  %1606 = vmatprep.subr.mxu0 0.0
  %1607 = vmatpush1.xpose.msra.mxu0 0.0
  %1608 = vmatprep.subr.mxu0 0.0
  %1609 = vmatpush1.xpose.msra.mxu0 0.0
  %1610 = vmatprep.subr.mxu0 0.0
  %1611 = vmatpush1.xpose.msra.mxu0 0.0
  %1612 = vmatprep.subr.mxu0 0.0
  %1613 = vmatpush1.xpose.msra.mxu0 0.0
  %1614 = vmatprep.subr.mxu0 0.0
  %1615 = vmatpush1.xpose.msra.mxu0 0.0
  %1616 = vmatprep.subr.mxu0 0.0
  %1617 = vmatpush1.xpose.msra.mxu0 0.0
  %1618 = vmatprep.subr.mxu0 0.0
  %1619 = vmatpush1.xpose.msra.mxu0 0.0
  %1620 = vmatprep.subr.mxu0 0.0
  %1621 = vmatpush1.xpose.msra.mxu0 0.0
  %1622 = vmatprep.subr.mxu0 0.0
  %1623 = vmatpush1.xpose.msra.mxu0 0.0
  %1624 = vmatprep.subr.mxu0 0.0
  %1625 = vmatpush1.xpose.msra.mxu0 0.0
  %1626 = vmatprep.subr.mxu0 0.0
  %1627 = vmatpush1.xpose.msra.mxu0 0.0
  %1628 = vmatprep.subr.mxu0 0.0
  %1629 = vmatpush1.xpose.msra.mxu0 0.0
  %1630 = vmatprep.subr.mxu0 0.0
  %1631 = vmatpush1.xpose.msra.mxu0 0.0
  %1632 = vmatprep.subr.mxu0 0.0
  %1633 = vmatpush1.xpose.msra.mxu0 0.0
  %1634 = vmatprep.subr.mxu0 0.0
  %1635 = vmatpush1.xpose.msra.mxu0 0.0
  %1636 = vmatprep.subr.mxu0 0.0
  %1637 = vmatpush1.xpose.msra.mxu0 0.0
  %1638 = vmatprep.subr.mxu0 0.0
  %1639 = vmatpush1.xpose.msra.mxu0 0.0
  %1640 = vmatprep.subr.mxu0 0.0
  %1641 = vmatpush1.xpose.msra.mxu0 0.0
  %1642 = vmatprep.subr.mxu0 0.0
  %1643 = vmatpush1.xpose.msra.mxu0 0.0
  %1644 = vmatprep.subr.mxu0 0.0
  %1645 = vmatpush1.xpose.msra.mxu0 0.0
  %1646 = vmatprep.subr.mxu0 0.0
  %1647 = vmatpush1.xpose.msra.mxu0 0.0
  %1648 = vmatprep.subr.mxu0 0.0
  %1649 = vmatpush1.xpose.msra.mxu0 0.0
  %1650 = vmatprep.subr.mxu0 0.0
  %1651 = vmatpush1.xpose.msra.mxu0 0.0
  %1652 = vmatprep.subr.mxu0 0.0
  %1653 = vmatpush1.xpose.msra.mxu0 0.0
  %1654 = vmatprep.mubr.f32.mxu0 0.0
  %1655 = vmatmul.mubr.f32.gmra.mrb[0].mxu0 %v1582
  %v1656 = vpop.f32.mrb[0].mxu0
  %v1657 = vadd.f32 0.0, %v1656
  %v1658 = vpop.f32.mrb[0].mxu0
  %1659 = vmatprep.mubr.f32.mxu0 0.0
  %1660 = vmatmul.mubr.f32.gmra.mrb[0].mxu0 %v1584
  %v1661 = vpop.f32.mrb[0].mxu0
  %v1662 = vadd.f32 0.0, %v1661
  %v1663 = vpop.f32.mrb[0].mxu0
  %1664 = vdwg.mxu0
  %1665 = vrot.lane.b32.xlu0 %v292, 96
  %v1666 = vpop.permute.xlu0 %1665
  %1667 = vrot.lane.b32.xlu0 %v294, 96
  %v1668 = vpop.permute.xlu0 %1667
  %v1669 = vsel %vm363, %v292, 0
  %v1671 = vsel %vm363, %v294, 0
  %v1673 = vsel %vm363, %v1666, 0
  %v1675 = vsel %vm363, %v1668, 0
  %1677 = vmatprep.subr.mxu0 0.0
  %1678 = vmatpush1.xpose.msra.mxu0 %v1673
  %1679 = vmatprep.subr.mxu0 0.0
  %1680 = vmatpush1.xpose.msra.mxu0 %v1675
  %1681 = vmatprep.subr.mxu0 0.0
  %1682 = vmatpush1.xpose.msra.mxu0 0.0
  %1683 = vmatprep.subr.mxu0 0.0
  %1684 = vmatpush1.xpose.msra.mxu0 0.0
  %1685 = vmatprep.subr.mxu0 0.0
  %1686 = vmatpush1.xpose.msra.mxu0 0.0
  %1687 = vmatprep.subr.mxu0 0.0
  %1688 = vmatpush1.xpose.msra.mxu0 0.0
  %1689 = vmatprep.subr.mxu0 0.0
  %1690 = vmatpush1.xpose.msra.mxu0 0.0
  %1691 = vmatprep.subr.mxu0 0.0
  %1692 = vmatpush1.xpose.msra.mxu0 0.0
  %1693 = vmatprep.subr.mxu0 0.0
  %1694 = vmatpush1.xpose.msra.mxu0 0.0
  %1695 = vmatprep.subr.mxu0 0.0
  %1696 = vmatpush1.xpose.msra.mxu0 0.0
  %1697 = vmatprep.subr.mxu0 0.0
  %1698 = vmatpush1.xpose.msra.mxu0 0.0
  %1699 = vmatprep.subr.mxu0 0.0
  %1700 = vmatpush1.xpose.msra.mxu0 0.0
  %1701 = vmatprep.subr.mxu0 0.0
  %1702 = vmatpush1.xpose.msra.mxu0 0.0
  %1703 = vmatprep.subr.mxu0 0.0
  %1704 = vmatpush1.xpose.msra.mxu0 0.0
  %1705 = vmatprep.subr.mxu0 0.0
  %1706 = vmatpush1.xpose.msra.mxu0 0.0
  %1707 = vmatprep.subr.mxu0 0.0
  %1708 = vmatpush1.xpose.msra.mxu0 0.0
  %1709 = vmatprep.subr.mxu0 0.0
  %1710 = vmatpush1.xpose.msra.mxu0 0.0
  %1711 = vmatprep.subr.mxu0 0.0
  %1712 = vmatpush1.xpose.msra.mxu0 0.0
  %1713 = vmatprep.subr.mxu0 0.0
  %1714 = vmatpush1.xpose.msra.mxu0 0.0
  %1715 = vmatprep.subr.mxu0 0.0
  %1716 = vmatpush1.xpose.msra.mxu0 0.0
  %1717 = vmatprep.subr.mxu0 0.0
  %1718 = vmatpush1.xpose.msra.mxu0 0.0
  %1719 = vmatprep.subr.mxu0 0.0
  %1720 = vmatpush1.xpose.msra.mxu0 0.0
  %1721 = vmatprep.subr.mxu0 0.0
  %1722 = vmatpush1.xpose.msra.mxu0 0.0
  %1723 = vmatprep.subr.mxu0 0.0
  %1724 = vmatpush1.xpose.msra.mxu0 0.0
  %1725 = vmatprep.subr.mxu0 0.0
  %1726 = vmatpush1.xpose.msra.mxu0 0.0
  %1727 = vmatprep.subr.mxu0 0.0
  %1728 = vmatpush1.xpose.msra.mxu0 0.0
  %1729 = vmatprep.subr.mxu0 0.0
  %1730 = vmatpush1.xpose.msra.mxu0 0.0
  %1731 = vmatprep.subr.mxu0 0.0
  %1732 = vmatpush1.xpose.msra.mxu0 0.0
  %1733 = vmatprep.subr.mxu0 0.0
  %1734 = vmatpush1.xpose.msra.mxu0 0.0
  %1735 = vmatprep.subr.mxu0 0.0
  %1736 = vmatpush1.xpose.msra.mxu0 0.0
  %1737 = vmatprep.subr.mxu0 0.0
  %1738 = vmatpush1.xpose.msra.mxu0 0.0
  %1739 = vmatprep.subr.mxu0 0.0
  %1740 = vmatpush1.xpose.msra.mxu0 0.0
  %1741 = vmatprep.mubr.f32.mxu0 0.0
  %1742 = vmatmul.mubr.f32.gmra.mrb[0].mxu0 %v1669
  %v1743 = vpop.f32.mrb[0].mxu0
  %v1744 = vadd.f32 0.0, %v1743
  %v1745 = vpop.f32.mrb[0].mxu0
  %1746 = vmatprep.mubr.f32.mxu0 0.0
  %1747 = vmatmul.mubr.f32.gmra.mrb[0].mxu0 %v1671
  %v1748 = vpop.f32.mrb[0].mxu0
  %v1749 = vadd.f32 0.0, %v1748
  %v1750 = vpop.f32.mrb[0].mxu0
  %1751 = vdwg.mxu0
  %1752 = vrot.lane.b32.xlu0 %v296, 96
  %v1753 = vpop.permute.xlu0 %1752
  %1754 = vrot.lane.b32.xlu0 %v298, 96
  %v1755 = vpop.permute.xlu0 %1754
  %v1756 = vsel %vm363, %v296, 0
  %v1758 = vsel %vm363, %v298, 0
  %v1760 = vsel %vm363, %v1753, 0
  %v1762 = vsel %vm363, %v1755, 0
  %1764 = vmatprep.subr.mxu0 0.0
  %1765 = vmatpush1.xpose.msra.mxu0 %v1760
  %1766 = vmatprep.subr.mxu0 0.0
  %1767 = vmatpush1.xpose.msra.mxu0 %v1762
  %1768 = vmatprep.subr.mxu0 0.0
  %1769 = vmatpush1.xpose.msra.mxu0 0.0
  %1770 = vmatprep.subr.mxu0 0.0
  %1771 = vmatpush1.xpose.msra.mxu0 0.0
  %1772 = vmatprep.subr.mxu0 0.0
  %1773 = vmatpush1.xpose.msra.mxu0 0.0
  %1774 = vmatprep.subr.mxu0 0.0
  %1775 = vmatpush1.xpose.msra.mxu0 0.0
  %1776 = vmatprep.subr.mxu0 0.0
  %1777 = vmatpush1.xpose.msra.mxu0 0.0
  %1778 = vmatprep.subr.mxu0 0.0
  %1779 = vmatpush1.xpose.msra.mxu0 0.0
  %1780 = vmatprep.subr.mxu0 0.0
  %1781 = vmatpush1.xpose.msra.mxu0 0.0
  %1782 = vmatprep.subr.mxu0 0.0
  %1783 = vmatpush1.xpose.msra.mxu0 0.0
  %1784 = vmatprep.subr.mxu0 0.0
  %1785 = vmatpush1.xpose.msra.mxu0 0.0
  %1786 = vmatprep.subr.mxu0 0.0
  %1787 = vmatpush1.xpose.msra.mxu0 0.0
  %1788 = vmatprep.subr.mxu0 0.0
  %1789 = vmatpush1.xpose.msra.mxu0 0.0
  %1790 = vmatprep.subr.mxu0 0.0
  %1791 = vmatpush1.xpose.msra.mxu0 0.0
  %1792 = vmatprep.subr.mxu0 0.0
  %1793 = vmatpush1.xpose.msra.mxu0 0.0
  %1794 = vmatprep.subr.mxu0 0.0
  %1795 = vmatpush1.xpose.msra.mxu0 0.0
  %1796 = vmatprep.subr.mxu0 0.0
  %1797 = vmatpush1.xpose.msra.mxu0 0.0
  %1798 = vmatprep.subr.mxu0 0.0
  %1799 = vmatpush1.xpose.msra.mxu0 0.0
  %1800 = vmatprep.subr.mxu0 0.0
  %1801 = vmatpush1.xpose.msra.mxu0 0.0
  %1802 = vmatprep.subr.mxu0 0.0
  %1803 = vmatpush1.xpose.msra.mxu0 0.0
  %1804 = vmatprep.subr.mxu0 0.0
  %1805 = vmatpush1.xpose.msra.mxu0 0.0
  %1806 = vmatprep.subr.mxu0 0.0
  %1807 = vmatpush1.xpose.msra.mxu0 0.0
  %1808 = vmatprep.subr.mxu0 0.0
  %1809 = vmatpush1.xpose.msra.mxu0 0.0
  %1810 = vmatprep.subr.mxu0 0.0
  %1811 = vmatpush1.xpose.msra.mxu0 0.0
  %1812 = vmatprep.subr.mxu0 0.0
  %1813 = vmatpush1.xpose.msra.mxu0 0.0
  %1814 = vmatprep.subr.mxu0 0.0
  %1815 = vmatpush1.xpose.msra.mxu0 0.0
  %1816 = vmatprep.subr.mxu0 0.0
  %1817 = vmatpush1.xpose.msra.mxu0 0.0
  %1818 = vmatprep.subr.mxu0 0.0
  %1819 = vmatpush1.xpose.msra.mxu0 0.0
  %1820 = vmatprep.subr.mxu0 0.0
  %1821 = vmatpush1.xpose.msra.mxu0 0.0
  %1822 = vmatprep.subr.mxu0 0.0
  %1823 = vmatpush1.xpose.msra.mxu0 0.0
  %1824 = vmatprep.subr.mxu0 0.0
  %1825 = vmatpush1.xpose.msra.mxu0 0.0
  %1826 = vmatprep.subr.mxu0 0.0
  %1827 = vmatpush1.xpose.msra.mxu0 0.0
  %1828 = vmatprep.mubr.f32.mxu0 0.0
  %1829 = vmatmul.mubr.f32.gmra.mrb[0].mxu0 %v1756
  %v1830 = vpop.f32.mrb[0].mxu0
  %v1831 = vadd.f32 0.0, %v1830
  %v1832 = vpop.f32.mrb[0].mxu0
  %1833 = vmatprep.mubr.f32.mxu0 0.0
  %1834 = vmatmul.mubr.f32.gmra.mrb[0].mxu0 %v1758
  %v1835 = vpop.f32.mrb[0].mxu0
  %v1836 = vadd.f32 0.0, %v1835
  %v1837 = vpop.f32.mrb[0].mxu0
  %1838 = vdwg.mxu0
  %1839 = vrot.lane.b32.xlu0 %v300, 96
  %v1840 = vpop.permute.xlu0 %1839
  %1841 = vrot.lane.b32.xlu0 %v302, 96
  %v1842 = vpop.permute.xlu0 %1841
  %v1843 = vsel %vm363, %v300, 0
  %v1845 = vsel %vm363, %v302, 0
  %v1847 = vsel %vm363, %v1840, 0
  %v1849 = vsel %vm363, %v1842, 0
  %1851 = vmatprep.subr.mxu0 0.0
  %1852 = vmatpush1.xpose.msra.mxu0 %v1847
  %1853 = vmatprep.subr.mxu0 0.0
  %1854 = vmatpush1.xpose.msra.mxu0 %v1849
  %1855 = vmatprep.subr.mxu0 0.0
  %1856 = vmatpush1.xpose.msra.mxu0 0.0
  %1857 = vmatprep.subr.mxu0 0.0
  %1858 = vmatpush1.xpose.msra.mxu0 0.0
  %1859 = vmatprep.subr.mxu0 0.0
  %1860 = vmatpush1.xpose.msra.mxu0 0.0
  %1861 = vmatprep.subr.mxu0 0.0
  %1862 = vmatpush1.xpose.msra.mxu0 0.0
  %1863 = vmatprep.subr.mxu0 0.0
  %1864 = vmatpush1.xpose.msra.mxu0 0.0
  %1865 = vmatprep.subr.mxu0 0.0
  %1866 = vmatpush1.xpose.msra.mxu0 0.0
  %1867 = vmatprep.subr.mxu0 0.0
  %1868 = vmatpush1.xpose.msra.mxu0 0.0
  %1869 = vmatprep.subr.mxu0 0.0
  %1870 = vmatpush1.xpose.msra.mxu0 0.0
  %1871 = vmatprep.subr.mxu0 0.0
  %1872 = vmatpush1.xpose.msra.mxu0 0.0
  %1873 = vmatprep.subr.mxu0 0.0
  %1874 = vmatpush1.xpose.msra.mxu0 0.0
  %1875 = vmatprep.subr.mxu0 0.0
  %1876 = vmatpush1.xpose.msra.mxu0 0.0
  %1877 = vmatprep.subr.mxu0 0.0
  %1878 = vmatpush1.xpose.msra.mxu0 0.0
  %1879 = vmatprep.subr.mxu0 0.0
  %1880 = vmatpush1.xpose.msra.mxu0 0.0
  %1881 = vmatprep.subr.mxu0 0.0
  %1882 = vmatpush1.xpose.msra.mxu0 0.0
  %1883 = vmatprep.subr.mxu0 0.0
  %1884 = vmatpush1.xpose.msra.mxu0 0.0
  %1885 = vmatprep.subr.mxu0 0.0
  %1886 = vmatpush1.xpose.msra.mxu0 0.0
  %1887 = vmatprep.subr.mxu0 0.0
  %1888 = vmatpush1.xpose.msra.mxu0 0.0
  %1889 = vmatprep.subr.mxu0 0.0
  %1890 = vmatpush1.xpose.msra.mxu0 0.0
  %1891 = vmatprep.subr.mxu0 0.0
  %1892 = vmatpush1.xpose.msra.mxu0 0.0
  %1893 = vmatprep.subr.mxu0 0.0
  %1894 = vmatpush1.xpose.msra.mxu0 0.0
  %1895 = vmatprep.subr.mxu0 0.0
  %1896 = vmatpush1.xpose.msra.mxu0 0.0
  %1897 = vmatprep.subr.mxu0 0.0
  %1898 = vmatpush1.xpose.msra.mxu0 0.0
  %1899 = vmatprep.subr.mxu0 0.0
  %1900 = vmatpush1.xpose.msra.mxu0 0.0
  %1901 = vmatprep.subr.mxu0 0.0
  %1902 = vmatpush1.xpose.msra.mxu0 0.0
  %1903 = vmatprep.subr.mxu0 0.0
  %1904 = vmatpush1.xpose.msra.mxu0 0.0
  %1905 = vmatprep.subr.mxu0 0.0
  %1906 = vmatpush1.xpose.msra.mxu0 0.0
  %1907 = vmatprep.subr.mxu0 0.0
  %1908 = vmatpush1.xpose.msra.mxu0 0.0
  %1909 = vmatprep.subr.mxu0 0.0
  %1910 = vmatpush1.xpose.msra.mxu0 0.0
  %1911 = vmatprep.subr.mxu0 0.0
  %1912 = vmatpush1.xpose.msra.mxu0 0.0
  %1913 = vmatprep.subr.mxu0 0.0
  %1914 = vmatpush1.xpose.msra.mxu0 0.0
  %1915 = vmatprep.mubr.f32.mxu0 0.0
  %1916 = vmatmul.mubr.f32.gmra.mrb[0].mxu0 %v1843
  %v1917 = vpop.f32.mrb[0].mxu0
  %v1918 = vadd.f32 0.0, %v1917
  %v1919 = vpop.f32.mrb[0].mxu0
  %1920 = vmatprep.mubr.f32.mxu0 0.0
  %1921 = vmatmul.mubr.f32.gmra.mrb[0].mxu0 %v1845
  %v1922 = vpop.f32.mrb[0].mxu0
  %v1923 = vadd.f32 0.0, %v1922
  %v1924 = vpop.f32.mrb[0].mxu0
  %1925 = vdwg.mxu0
  %1926 = vrot.lane.b32.xlu0 %v304, 96
  %v1927 = vpop.permute.xlu0 %1926
  %1928 = vrot.lane.b32.xlu0 %v306, 96
  %v1929 = vpop.permute.xlu0 %1928
  %v1930 = vsel %vm363, %v304, 0
  %v1932 = vsel %vm363, %v306, 0
  %v1934 = vsel %vm363, %v1927, 0
  %v1936 = vsel %vm363, %v1929, 0
  %1938 = vmatprep.subr.mxu0 0.0
  %1939 = vmatpush1.xpose.msra.mxu0 %v1934
  %1940 = vmatprep.subr.mxu0 0.0
  %1941 = vmatpush1.xpose.msra.mxu0 %v1936
  %1942 = vmatprep.subr.mxu0 0.0
  %1943 = vmatpush1.xpose.msra.mxu0 0.0
  %1944 = vmatprep.subr.mxu0 0.0
  %1945 = vmatpush1.xpose.msra.mxu0 0.0
  %1946 = vmatprep.subr.mxu0 0.0
  %1947 = vmatpush1.xpose.msra.mxu0 0.0
  %1948 = vmatprep.subr.mxu0 0.0
  %1949 = vmatpush1.xpose.msra.mxu0 0.0
  %1950 = vmatprep.subr.mxu0 0.0
  %1951 = vmatpush1.xpose.msra.mxu0 0.0
  %1952 = vmatprep.subr.mxu0 0.0
  %1953 = vmatpush1.xpose.msra.mxu0 0.0
  %1954 = vmatprep.subr.mxu0 0.0
  %1955 = vmatpush1.xpose.msra.mxu0 0.0
  %1956 = vmatprep.subr.mxu0 0.0
  %1957 = vmatpush1.xpose.msra.mxu0 0.0
  %1958 = vmatprep.subr.mxu0 0.0
  %1959 = vmatpush1.xpose.msra.mxu0 0.0
  %1960 = vmatprep.subr.mxu0 0.0
  %1961 = vmatpush1.xpose.msra.mxu0 0.0
  %1962 = vmatprep.subr.mxu0 0.0
  %1963 = vmatpush1.xpose.msra.mxu0 0.0
  %1964 = vmatprep.subr.mxu0 0.0
  %1965 = vmatpush1.xpose.msra.mxu0 0.0
  %1966 = vmatprep.subr.mxu0 0.0
  %1967 = vmatpush1.xpose.msra.mxu0 0.0
  %1968 = vmatprep.subr.mxu0 0.0
  %1969 = vmatpush1.xpose.msra.mxu0 0.0
  %1970 = vmatprep.subr.mxu0 0.0
  %1971 = vmatpush1.xpose.msra.mxu0 0.0
  %1972 = vmatprep.subr.mxu0 0.0
  %1973 = vmatpush1.xpose.msra.mxu0 0.0
  %1974 = vmatprep.subr.mxu0 0.0
  %1975 = vmatpush1.xpose.msra.mxu0 0.0
  %1976 = vmatprep.subr.mxu0 0.0
  %1977 = vmatpush1.xpose.msra.mxu0 0.0
  %1978 = vmatprep.subr.mxu0 0.0
  %1979 = vmatpush1.xpose.msra.mxu0 0.0
  %1980 = vmatprep.subr.mxu0 0.0
  %1981 = vmatpush1.xpose.msra.mxu0 0.0
  %1982 = vmatprep.subr.mxu0 0.0
  %1983 = vmatpush1.xpose.msra.mxu0 0.0
  %1984 = vmatprep.subr.mxu0 0.0
  %1985 = vmatpush1.xpose.msra.mxu0 0.0
  %1986 = vmatprep.subr.mxu0 0.0
  %1987 = vmatpush1.xpose.msra.mxu0 0.0
  %1988 = vmatprep.subr.mxu0 0.0
  %1989 = vmatpush1.xpose.msra.mxu0 0.0
  %1990 = vmatprep.subr.mxu0 0.0
  %1991 = vmatpush1.xpose.msra.mxu0 0.0
  %1992 = vmatprep.subr.mxu0 0.0
  %1993 = vmatpush1.xpose.msra.mxu0 0.0
  %1994 = vmatprep.subr.mxu0 0.0
  %1995 = vmatpush1.xpose.msra.mxu0 0.0
  %1996 = vmatprep.subr.mxu0 0.0
  %1997 = vmatpush1.xpose.msra.mxu0 0.0
  %1998 = vmatprep.subr.mxu0 0.0
  %1999 = vmatpush1.xpose.msra.mxu0 0.0
  %2000 = vmatprep.subr.mxu0 0.0
  %2001 = vmatpush1.xpose.msra.mxu0 0.0
  %2002 = vmatprep.mubr.f32.mxu0 0.0
  %2003 = vmatmul.mubr.f32.gmra.mrb[0].mxu0 %v1930
  %v2004 = vpop.f32.mrb[0].mxu0
  %v2005 = vadd.f32 0.0, %v2004
  %v2006 = vpop.f32.mrb[0].mxu0
  %2007 = vmatprep.mubr.f32.mxu0 0.0
  %2008 = vmatmul.mubr.f32.gmra.mrb[0].mxu0 %v1932
  %v2009 = vpop.f32.mrb[0].mxu0
  %v2010 = vadd.f32 0.0, %v2009
  %v2011 = vpop.f32.mrb[0].mxu0
  %2012 = vdwg.mxu0
  %2013 = vrot.lane.b32.xlu0 %v308, 96
  %v2014 = vpop.permute.xlu0 %2013
  %2015 = vrot.lane.b32.xlu0 %v310, 96
  %v2016 = vpop.permute.xlu0 %2015
  %v2017 = vsel %vm363, %v308, 0
  %v2019 = vsel %vm363, %v310, 0
  %v2021 = vsel %vm363, %v2014, 0
  %v2023 = vsel %vm363, %v2016, 0
  %2025 = vmatprep.subr.mxu0 0.0
  %2026 = vmatpush1.xpose.msra.mxu0 %v2021
  %2027 = vmatprep.subr.mxu0 0.0
  %2028 = vmatpush1.xpose.msra.mxu0 %v2023
  %2029 = vmatprep.subr.mxu0 0.0
  %2030 = vmatpush1.xpose.msra.mxu0 0.0
  %2031 = vmatprep.subr.mxu0 0.0
  %2032 = vmatpush1.xpose.msra.mxu0 0.0
  %2033 = vmatprep.subr.mxu0 0.0
  %2034 = vmatpush1.xpose.msra.mxu0 0.0
  %2035 = vmatprep.subr.mxu0 0.0
  %2036 = vmatpush1.xpose.msra.mxu0 0.0
  %2037 = vmatprep.subr.mxu0 0.0
  %2038 = vmatpush1.xpose.msra.mxu0 0.0
  %2039 = vmatprep.subr.mxu0 0.0
  %2040 = vmatpush1.xpose.msra.mxu0 0.0
  %2041 = vmatprep.subr.mxu0 0.0
  %2042 = vmatpush1.xpose.msra.mxu0 0.0
  %2043 = vmatprep.subr.mxu0 0.0
  %2044 = vmatpush1.xpose.msra.mxu0 0.0
  %2045 = vmatprep.subr.mxu0 0.0
  %2046 = vmatpush1.xpose.msra.mxu0 0.0
  %2047 = vmatprep.subr.mxu0 0.0
  %2048 = vmatpush1.xpose.msra.mxu0 0.0
  %2049 = vmatprep.subr.mxu0 0.0
  %2050 = vmatpush1.xpose.msra.mxu0 0.0
  %2051 = vmatprep.subr.mxu0 0.0
  %2052 = vmatpush1.xpose.msra.mxu0 0.0
  %2053 = vmatprep.subr.mxu0 0.0
  %2054 = vmatpush1.xpose.msra.mxu0 0.0
  %2055 = vmatprep.subr.mxu0 0.0
  %2056 = vmatpush1.xpose.msra.mxu0 0.0
  %2057 = vmatprep.subr.mxu0 0.0
  %2058 = vmatpush1.xpose.msra.mxu0 0.0
  %2059 = vmatprep.subr.mxu0 0.0
  %2060 = vmatpush1.xpose.msra.mxu0 0.0
  %2061 = vmatprep.subr.mxu0 0.0
  %2062 = vmatpush1.xpose.msra.mxu0 0.0
  %2063 = vmatprep.subr.mxu0 0.0
  %2064 = vmatpush1.xpose.msra.mxu0 0.0
  %2065 = vmatprep.subr.mxu0 0.0
  %2066 = vmatpush1.xpose.msra.mxu0 0.0
  %2067 = vmatprep.subr.mxu0 0.0
  %2068 = vmatpush1.xpose.msra.mxu0 0.0
  %2069 = vmatprep.subr.mxu0 0.0
  %2070 = vmatpush1.xpose.msra.mxu0 0.0
  %2071 = vmatprep.subr.mxu0 0.0
  %2072 = vmatpush1.xpose.msra.mxu0 0.0
  %2073 = vmatprep.subr.mxu0 0.0
  %2074 = vmatpush1.xpose.msra.mxu0 0.0
  %2075 = vmatprep.subr.mxu0 0.0
  %2076 = vmatpush1.xpose.msra.mxu0 0.0
  %2077 = vmatprep.subr.mxu0 0.0
  %2078 = vmatpush1.xpose.msra.mxu0 0.0
  %2079 = vmatprep.subr.mxu0 0.0
  %2080 = vmatpush1.xpose.msra.mxu0 0.0
  %2081 = vmatprep.subr.mxu0 0.0
  %2082 = vmatpush1.xpose.msra.mxu0 0.0
  %2083 = vmatprep.subr.mxu0 0.0
  %2084 = vmatpush1.xpose.msra.mxu0 0.0
  %2085 = vmatprep.subr.mxu0 0.0
  %2086 = vmatpush1.xpose.msra.mxu0 0.0
  %2087 = vmatprep.subr.mxu0 0.0
  %2088 = vmatpush1.xpose.msra.mxu0 0.0
  %2089 = vmatprep.mubr.f32.mxu0 0.0
  %2090 = vmatmul.mubr.f32.gmra.mrb[0].mxu0 %v2017
  %v2091 = vpop.f32.mrb[0].mxu0
  %v2092 = vadd.f32 0.0, %v2091
  %v2093 = vpop.f32.mrb[0].mxu0
  %2094 = vmatprep.mubr.f32.mxu0 0.0
  %2095 = vmatmul.mubr.f32.gmra.mrb[0].mxu0 %v2019
  %v2096 = vpop.f32.mrb[0].mxu0
  %v2097 = vadd.f32 0.0, %v2096
  %v2098 = vpop.f32.mrb[0].mxu0
  %2099 = vdwg.mxu0
  %2100 = vrot.lane.b32.xlu0 %v312, 96
  %v2101 = vpop.permute.xlu0 %2100
  %2102 = vrot.lane.b32.xlu0 %v314, 96
  %v2103 = vpop.permute.xlu0 %2102
  %v2104 = vsel %vm363, %v312, 0
  %v2106 = vsel %vm363, %v314, 0
  %v2108 = vsel %vm363, %v2101, 0
  %v2110 = vsel %vm363, %v2103, 0
  %2112 = vmatprep.subr.mxu0 0.0
  %2113 = vmatpush1.xpose.msra.mxu0 %v2108
  %2114 = vmatprep.subr.mxu0 0.0
  %2115 = vmatpush1.xpose.msra.mxu0 %v2110
  %2116 = vmatprep.subr.mxu0 0.0
  %2117 = vmatpush1.xpose.msra.mxu0 0.0
  %2118 = vmatprep.subr.mxu0 0.0
  %2119 = vmatpush1.xpose.msra.mxu0 0.0
  %2120 = vmatprep.subr.mxu0 0.0
  %2121 = vmatpush1.xpose.msra.mxu0 0.0
  %2122 = vmatprep.subr.mxu0 0.0
  %2123 = vmatpush1.xpose.msra.mxu0 0.0
  %2124 = vmatprep.subr.mxu0 0.0
  %2125 = vmatpush1.xpose.msra.mxu0 0.0
  %2126 = vmatprep.subr.mxu0 0.0
  %2127 = vmatpush1.xpose.msra.mxu0 0.0
  %2128 = vmatprep.subr.mxu0 0.0
  %2129 = vmatpush1.xpose.msra.mxu0 0.0
  %2130 = vmatprep.subr.mxu0 0.0
  %2131 = vmatpush1.xpose.msra.mxu0 0.0
  %2132 = vmatprep.subr.mxu0 0.0
  %2133 = vmatpush1.xpose.msra.mxu0 0.0
  %2134 = vmatprep.subr.mxu0 0.0
  %2135 = vmatpush1.xpose.msra.mxu0 0.0
  %2136 = vmatprep.subr.mxu0 0.0
  %2137 = vmatpush1.xpose.msra.mxu0 0.0
  %2138 = vmatprep.subr.mxu0 0.0
  %2139 = vmatpush1.xpose.msra.mxu0 0.0
  %2140 = vmatprep.subr.mxu0 0.0
  %2141 = vmatpush1.xpose.msra.mxu0 0.0
  %2142 = vmatprep.subr.mxu0 0.0
  %2143 = vmatpush1.xpose.msra.mxu0 0.0
  %2144 = vmatprep.subr.mxu0 0.0
  %2145 = vmatpush1.xpose.msra.mxu0 0.0
  %2146 = vmatprep.subr.mxu0 0.0
  %2147 = vmatpush1.xpose.msra.mxu0 0.0
  %2148 = vmatprep.subr.mxu0 0.0
  %2149 = vmatpush1.xpose.msra.mxu0 0.0
  %2150 = vmatprep.subr.mxu0 0.0
  %2151 = vmatpush1.xpose.msra.mxu0 0.0
  %2152 = vmatprep.subr.mxu0 0.0
  %2153 = vmatpush1.xpose.msra.mxu0 0.0
  %2154 = vmatprep.subr.mxu0 0.0
  %2155 = vmatpush1.xpose.msra.mxu0 0.0
  %2156 = vmatprep.subr.mxu0 0.0
  %2157 = vmatpush1.xpose.msra.mxu0 0.0
  %2158 = vmatprep.subr.mxu0 0.0
  %2159 = vmatpush1.xpose.msra.mxu0 0.0
  %2160 = vmatprep.subr.mxu0 0.0
  %2161 = vmatpush1.xpose.msra.mxu0 0.0
  %2162 = vmatprep.subr.mxu0 0.0
  %2163 = vmatpush1.xpose.msra.mxu0 0.0
  %2164 = vmatprep.subr.mxu0 0.0
  %2165 = vmatpush1.xpose.msra.mxu0 0.0
  %2166 = vmatprep.subr.mxu0 0.0
  %2167 = vmatpush1.xpose.msra.mxu0 0.0
  %2168 = vmatprep.subr.mxu0 0.0
  %2169 = vmatpush1.xpose.msra.mxu0 0.0
  %2170 = vmatprep.subr.mxu0 0.0
  %2171 = vmatpush1.xpose.msra.mxu0 0.0
  %2172 = vmatprep.subr.mxu0 0.0
  %2173 = vmatpush1.xpose.msra.mxu0 0.0
  %2174 = vmatprep.subr.mxu0 0.0
  %2175 = vmatpush1.xpose.msra.mxu0 0.0
  %2176 = vmatprep.mubr.f32.mxu0 0.0
  %2177 = vmatmul.mubr.f32.gmra.mrb[0].mxu0 %v2104
  %v2178 = vpop.f32.mrb[0].mxu0
  %v2179 = vadd.f32 0.0, %v2178
  %v2180 = vpop.f32.mrb[0].mxu0
  %2181 = vmatprep.mubr.f32.mxu0 0.0
  %2182 = vmatmul.mubr.f32.gmra.mrb[0].mxu0 %v2106
  %v2183 = vpop.f32.mrb[0].mxu0
  %v2184 = vadd.f32 0.0, %v2183
  %v2185 = vpop.f32.mrb[0].mxu0
  %2186 = vdwg.mxu0
  %2187 = vrot.lane.b32.xlu0 %v316, 96
  %v2188 = vpop.permute.xlu0 %2187
  %2189 = vrot.lane.b32.xlu0 %v318, 96
  %v2190 = vpop.permute.xlu0 %2189
  %v2191 = vsel %vm363, %v316, 0
  %v2193 = vsel %vm363, %v318, 0
  %v2195 = vsel %vm363, %v2188, 0
  %v2197 = vsel %vm363, %v2190, 0
  %2199 = vmatprep.subr.mxu0 0.0
  %2200 = vmatpush1.xpose.msra.mxu0 %v2195
  %2201 = vmatprep.subr.mxu0 0.0
  %2202 = vmatpush1.xpose.msra.mxu0 %v2197
  %2203 = vmatprep.subr.mxu0 0.0
  %2204 = vmatpush1.xpose.msra.mxu0 0.0
  %2205 = vmatprep.subr.mxu0 0.0
  %2206 = vmatpush1.xpose.msra.mxu0 0.0
  %2207 = vmatprep.subr.mxu0 0.0
  %2208 = vmatpush1.xpose.msra.mxu0 0.0
  %2209 = vmatprep.subr.mxu0 0.0
  %2210 = vmatpush1.xpose.msra.mxu0 0.0
  %2211 = vmatprep.subr.mxu0 0.0
  %2212 = vmatpush1.xpose.msra.mxu0 0.0
  %2213 = vmatprep.subr.mxu0 0.0
  %2214 = vmatpush1.xpose.msra.mxu0 0.0
  %2215 = vmatprep.subr.mxu0 0.0
  %2216 = vmatpush1.xpose.msra.mxu0 0.0
  %2217 = vmatprep.subr.mxu0 0.0
  %2218 = vmatpush1.xpose.msra.mxu0 0.0
  %2219 = vmatprep.subr.mxu0 0.0
  %2220 = vmatpush1.xpose.msra.mxu0 0.0
  %2221 = vmatprep.subr.mxu0 0.0
  %2222 = vmatpush1.xpose.msra.mxu0 0.0
  %2223 = vmatprep.subr.mxu0 0.0
  %2224 = vmatpush1.xpose.msra.mxu0 0.0
  %2225 = vmatprep.subr.mxu0 0.0
  %2226 = vmatpush1.xpose.msra.mxu0 0.0
  %2227 = vmatprep.subr.mxu0 0.0
  %2228 = vmatpush1.xpose.msra.mxu0 0.0
  %2229 = vmatprep.subr.mxu0 0.0
  %2230 = vmatpush1.xpose.msra.mxu0 0.0
  %2231 = vmatprep.subr.mxu0 0.0
  %2232 = vmatpush1.xpose.msra.mxu0 0.0
  %2233 = vmatprep.subr.mxu0 0.0
  %2234 = vmatpush1.xpose.msra.mxu0 0.0
  %2235 = vmatprep.subr.mxu0 0.0
  %2236 = vmatpush1.xpose.msra.mxu0 0.0
  %2237 = vmatprep.subr.mxu0 0.0
  %2238 = vmatpush1.xpose.msra.mxu0 0.0
  %2239 = vmatprep.subr.mxu0 0.0
  %2240 = vmatpush1.xpose.msra.mxu0 0.0
  %2241 = vmatprep.subr.mxu0 0.0
  %2242 = vmatpush1.xpose.msra.mxu0 0.0
  %2243 = vmatprep.subr.mxu0 0.0
  %2244 = vmatpush1.xpose.msra.mxu0 0.0
  %2245 = vmatprep.subr.mxu0 0.0
  %2246 = vmatpush1.xpose.msra.mxu0 0.0
  %2247 = vmatprep.subr.mxu0 0.0
  %2248 = vmatpush1.xpose.msra.mxu0 0.0
  %2249 = vmatprep.subr.mxu0 0.0
  %2250 = vmatpush1.xpose.msra.mxu0 0.0
  %2251 = vmatprep.subr.mxu0 0.0
  %2252 = vmatpush1.xpose.msra.mxu0 0.0
  %2253 = vmatprep.subr.mxu0 0.0
  %2254 = vmatpush1.xpose.msra.mxu0 0.0
  %2255 = vmatprep.subr.mxu0 0.0
  %2256 = vmatpush1.xpose.msra.mxu0 0.0
  %2257 = vmatprep.subr.mxu0 0.0
  %2258 = vmatpush1.xpose.msra.mxu0 0.0
  %2259 = vmatprep.subr.mxu0 0.0
  %2260 = vmatpush1.xpose.msra.mxu0 0.0
  %2261 = vmatprep.subr.mxu0 0.0
  %2262 = vmatpush1.xpose.msra.mxu0 0.0
  %2263 = vmatprep.mubr.f32.mxu0 0.0
  %2264 = vmatmul.mubr.f32.gmra.mrb[0].mxu0 %v2191
  %v2265 = vpop.f32.mrb[0].mxu0
  %v2266 = vadd.f32 0.0, %v2265
  %v2267 = vpop.f32.mrb[0].mxu0
  %2268 = vmatprep.mubr.f32.mxu0 0.0
  %2269 = vmatmul.mubr.f32.gmra.mrb[0].mxu0 %v2193
  %v2270 = vpop.f32.mrb[0].mxu0
  %v2271 = vadd.f32 0.0, %v2270
  %v2272 = vpop.f32.mrb[0].mxu0
  %2273 = vdwg.mxu0
  %2274 = vrot.lane.b32.xlu0 %v320, 96
  %v2275 = vpop.permute.xlu0 %2274
  %2276 = vrot.lane.b32.xlu0 %v322, 96
  %v2277 = vpop.permute.xlu0 %2276
  %v2278 = vsel %vm363, %v320, 0
  %v2280 = vsel %vm363, %v322, 0
  %v2282 = vsel %vm363, %v2275, 0
  %v2284 = vsel %vm363, %v2277, 0
  %2286 = vmatprep.subr.mxu0 0.0
  %2287 = vmatpush1.xpose.msra.mxu0 %v2282
  %2288 = vmatprep.subr.mxu0 0.0
  %2289 = vmatpush1.xpose.msra.mxu0 %v2284
  %2290 = vmatprep.subr.mxu0 0.0
  %2291 = vmatpush1.xpose.msra.mxu0 0.0
  %2292 = vmatprep.subr.mxu0 0.0
  %2293 = vmatpush1.xpose.msra.mxu0 0.0
  %2294 = vmatprep.subr.mxu0 0.0
  %2295 = vmatpush1.xpose.msra.mxu0 0.0
  %2296 = vmatprep.subr.mxu0 0.0
  %2297 = vmatpush1.xpose.msra.mxu0 0.0
  %2298 = vmatprep.subr.mxu0 0.0
  %2299 = vmatpush1.xpose.msra.mxu0 0.0
  %2300 = vmatprep.subr.mxu0 0.0
  %2301 = vmatpush1.xpose.msra.mxu0 0.0
  %2302 = vmatprep.subr.mxu0 0.0
  %2303 = vmatpush1.xpose.msra.mxu0 0.0
  %2304 = vmatprep.subr.mxu0 0.0
  %2305 = vmatpush1.xpose.msra.mxu0 0.0
  %2306 = vmatprep.subr.mxu0 0.0
  %2307 = vmatpush1.xpose.msra.mxu0 0.0
  %2308 = vmatprep.subr.mxu0 0.0
  %2309 = vmatpush1.xpose.msra.mxu0 0.0
  %2310 = vmatprep.subr.mxu0 0.0
  %2311 = vmatpush1.xpose.msra.mxu0 0.0
  %2312 = vmatprep.subr.mxu0 0.0
  %2313 = vmatpush1.xpose.msra.mxu0 0.0
  %2314 = vmatprep.subr.mxu0 0.0
  %2315 = vmatpush1.xpose.msra.mxu0 0.0
  %2316 = vmatprep.subr.mxu0 0.0
  %2317 = vmatpush1.xpose.msra.mxu0 0.0
  %2318 = vmatprep.subr.mxu0 0.0
  %2319 = vmatpush1.xpose.msra.mxu0 0.0
  %2320 = vmatprep.subr.mxu0 0.0
  %2321 = vmatpush1.xpose.msra.mxu0 0.0
  %2322 = vmatprep.subr.mxu0 0.0
  %2323 = vmatpush1.xpose.msra.mxu0 0.0
  %2324 = vmatprep.subr.mxu0 0.0
  %2325 = vmatpush1.xpose.msra.mxu0 0.0
  %2326 = vmatprep.subr.mxu0 0.0
  %2327 = vmatpush1.xpose.msra.mxu0 0.0
  %2328 = vmatprep.subr.mxu0 0.0
  %2329 = vmatpush1.xpose.msra.mxu0 0.0
  %2330 = vmatprep.subr.mxu0 0.0
  %2331 = vmatpush1.xpose.msra.mxu0 0.0
  %2332 = vmatprep.subr.mxu0 0.0
  %2333 = vmatpush1.xpose.msra.mxu0 0.0
  %2334 = vmatprep.subr.mxu0 0.0
  %2335 = vmatpush1.xpose.msra.mxu0 0.0
  %2336 = vmatprep.subr.mxu0 0.0
  %2337 = vmatpush1.xpose.msra.mxu0 0.0
  %2338 = vmatprep.subr.mxu0 0.0
  %2339 = vmatpush1.xpose.msra.mxu0 0.0
  %2340 = vmatprep.subr.mxu0 0.0
  %2341 = vmatpush1.xpose.msra.mxu0 0.0
  %2342 = vmatprep.subr.mxu0 0.0
  %2343 = vmatpush1.xpose.msra.mxu0 0.0
  %2344 = vmatprep.subr.mxu0 0.0
  %2345 = vmatpush1.xpose.msra.mxu0 0.0
  %2346 = vmatprep.subr.mxu0 0.0
  %2347 = vmatpush1.xpose.msra.mxu0 0.0
  %2348 = vmatprep.subr.mxu0 0.0
  %2349 = vmatpush1.xpose.msra.mxu0 0.0
  %2350 = vmatprep.mubr.f32.mxu0 0.0
  %2351 = vmatmul.mubr.f32.gmra.mrb[0].mxu0 %v2278
  %v2352 = vpop.f32.mrb[0].mxu0
  %v2353 = vadd.f32 0.0, %v2352
  %v2354 = vpop.f32.mrb[0].mxu0
  %2355 = vmatprep.mubr.f32.mxu0 0.0
  %2356 = vmatmul.mubr.f32.gmra.mrb[0].mxu0 %v2280
  %v2357 = vpop.f32.mrb[0].mxu0
  %v2358 = vadd.f32 0.0, %v2357
  %v2359 = vpop.f32.mrb[0].mxu0
  %2360 = vdwg.mxu0
  %2361 = vrot.lane.b32.xlu0 %v324, 96
  %v2362 = vpop.permute.xlu0 %2361
  %2363 = vrot.lane.b32.xlu0 %v326, 96
  %v2364 = vpop.permute.xlu0 %2363
  %v2365 = vsel %vm363, %v324, 0
  %v2367 = vsel %vm363, %v326, 0
  %v2369 = vsel %vm363, %v2362, 0
  %v2371 = vsel %vm363, %v2364, 0
  %2373 = vmatprep.subr.mxu0 0.0
  %2374 = vmatpush1.xpose.msra.mxu0 %v2369
  %2375 = vmatprep.subr.mxu0 0.0
  %2376 = vmatpush1.xpose.msra.mxu0 %v2371
  %2377 = vmatprep.subr.mxu0 0.0
  %2378 = vmatpush1.xpose.msra.mxu0 0.0
  %2379 = vmatprep.subr.mxu0 0.0
  %2380 = vmatpush1.xpose.msra.mxu0 0.0
  %2381 = vmatprep.subr.mxu0 0.0
  %2382 = vmatpush1.xpose.msra.mxu0 0.0
  %2383 = vmatprep.subr.mxu0 0.0
  %2384 = vmatpush1.xpose.msra.mxu0 0.0
  %2385 = vmatprep.subr.mxu0 0.0
  %2386 = vmatpush1.xpose.msra.mxu0 0.0
  %2387 = vmatprep.subr.mxu0 0.0
  %2388 = vmatpush1.xpose.msra.mxu0 0.0
  %2389 = vmatprep.subr.mxu0 0.0
  %2390 = vmatpush1.xpose.msra.mxu0 0.0
  %2391 = vmatprep.subr.mxu0 0.0
  %2392 = vmatpush1.xpose.msra.mxu0 0.0
  %2393 = vmatprep.subr.mxu0 0.0
  %2394 = vmatpush1.xpose.msra.mxu0 0.0
  %2395 = vmatprep.subr.mxu0 0.0
  %2396 = vmatpush1.xpose.msra.mxu0 0.0
  %2397 = vmatprep.subr.mxu0 0.0
  %2398 = vmatpush1.xpose.msra.mxu0 0.0
  %2399 = vmatprep.subr.mxu0 0.0
  %2400 = vmatpush1.xpose.msra.mxu0 0.0
  %2401 = vmatprep.subr.mxu0 0.0
  %2402 = vmatpush1.xpose.msra.mxu0 0.0
  %2403 = vmatprep.subr.mxu0 0.0
  %2404 = vmatpush1.xpose.msra.mxu0 0.0
  %2405 = vmatprep.subr.mxu0 0.0
  %2406 = vmatpush1.xpose.msra.mxu0 0.0
  %2407 = vmatprep.subr.mxu0 0.0
  %2408 = vmatpush1.xpose.msra.mxu0 0.0
  %2409 = vmatprep.subr.mxu0 0.0
  %2410 = vmatpush1.xpose.msra.mxu0 0.0
  %2411 = vmatprep.subr.mxu0 0.0
  %2412 = vmatpush1.xpose.msra.mxu0 0.0
  %2413 = vmatprep.subr.mxu0 0.0
  %2414 = vmatpush1.xpose.msra.mxu0 0.0
  %2415 = vmatprep.subr.mxu0 0.0
  %2416 = vmatpush1.xpose.msra.mxu0 0.0
  %2417 = vmatprep.subr.mxu0 0.0
  %2418 = vmatpush1.xpose.msra.mxu0 0.0
  %2419 = vmatprep.subr.mxu0 0.0
  %2420 = vmatpush1.xpose.msra.mxu0 0.0
  %2421 = vmatprep.subr.mxu0 0.0
  %2422 = vmatpush1.xpose.msra.mxu0 0.0
  %2423 = vmatprep.subr.mxu0 0.0
  %2424 = vmatpush1.xpose.msra.mxu0 0.0
  %2425 = vmatprep.subr.mxu0 0.0
  %2426 = vmatpush1.xpose.msra.mxu0 0.0
  %2427 = vmatprep.subr.mxu0 0.0
  %2428 = vmatpush1.xpose.msra.mxu0 0.0
  %2429 = vmatprep.subr.mxu0 0.0
  %2430 = vmatpush1.xpose.msra.mxu0 0.0
  %2431 = vmatprep.subr.mxu0 0.0
  %2432 = vmatpush1.xpose.msra.mxu0 0.0
  %2433 = vmatprep.subr.mxu0 0.0
  %2434 = vmatpush1.xpose.msra.mxu0 0.0
  %2435 = vmatprep.subr.mxu0 0.0
  %2436 = vmatpush1.xpose.msra.mxu0 0.0
  %2437 = vmatprep.mubr.f32.mxu0 0.0
  %2438 = vmatmul.mubr.f32.gmra.mrb[0].mxu0 %v2365
  %v2439 = vpop.f32.mrb[0].mxu0
  %v2440 = vadd.f32 0.0, %v2439
  %v2441 = vpop.f32.mrb[0].mxu0
  %2442 = vmatprep.mubr.f32.mxu0 0.0
  %2443 = vmatmul.mubr.f32.gmra.mrb[0].mxu0 %v2367
  %v2444 = vpop.f32.mrb[0].mxu0
  %v2445 = vadd.f32 0.0, %v2444
  %v2446 = vpop.f32.mrb[0].mxu0
  %2447 = vdwg.mxu0
  %2448 = vrot.lane.b32.xlu0 %v328, 96
  %v2449 = vpop.permute.xlu0 %2448
  %2450 = vrot.lane.b32.xlu0 %v330, 96
  %v2451 = vpop.permute.xlu0 %2450
  %v2452 = vsel %vm363, %v328, 0
  %v2454 = vsel %vm363, %v330, 0
  %v2456 = vsel %vm363, %v2449, 0
  %v2458 = vsel %vm363, %v2451, 0
  %2460 = vmatprep.subr.mxu0 0.0
  %2461 = vmatpush1.xpose.msra.mxu0 %v2456
  %2462 = vmatprep.subr.mxu0 0.0
  %2463 = vmatpush1.xpose.msra.mxu0 %v2458
  %2464 = vmatprep.subr.mxu0 0.0
  %2465 = vmatpush1.xpose.msra.mxu0 0.0
  %2466 = vmatprep.subr.mxu0 0.0
  %2467 = vmatpush1.xpose.msra.mxu0 0.0
  %2468 = vmatprep.subr.mxu0 0.0
  %2469 = vmatpush1.xpose.msra.mxu0 0.0
  %2470 = vmatprep.subr.mxu0 0.0
  %2471 = vmatpush1.xpose.msra.mxu0 0.0
  %2472 = vmatprep.subr.mxu0 0.0
  %2473 = vmatpush1.xpose.msra.mxu0 0.0
  %2474 = vmatprep.subr.mxu0 0.0
  %2475 = vmatpush1.xpose.msra.mxu0 0.0
  %2476 = vmatprep.subr.mxu0 0.0
  %2477 = vmatpush1.xpose.msra.mxu0 0.0
  %2478 = vmatprep.subr.mxu0 0.0
  %2479 = vmatpush1.xpose.msra.mxu0 0.0
  %2480 = vmatprep.subr.mxu0 0.0
  %2481 = vmatpush1.xpose.msra.mxu0 0.0
  %2482 = vmatprep.subr.mxu0 0.0
  %2483 = vmatpush1.xpose.msra.mxu0 0.0
  %2484 = vmatprep.subr.mxu0 0.0
  %2485 = vmatpush1.xpose.msra.mxu0 0.0
  %2486 = vmatprep.subr.mxu0 0.0
  %2487 = vmatpush1.xpose.msra.mxu0 0.0
  %2488 = vmatprep.subr.mxu0 0.0
  %2489 = vmatpush1.xpose.msra.mxu0 0.0
  %2490 = vmatprep.subr.mxu0 0.0
  %2491 = vmatpush1.xpose.msra.mxu0 0.0
  %2492 = vmatprep.subr.mxu0 0.0
  %2493 = vmatpush1.xpose.msra.mxu0 0.0
  %2494 = vmatprep.subr.mxu0 0.0
  %2495 = vmatpush1.xpose.msra.mxu0 0.0
  %2496 = vmatprep.subr.mxu0 0.0
  %2497 = vmatpush1.xpose.msra.mxu0 0.0
  %2498 = vmatprep.subr.mxu0 0.0
  %2499 = vmatpush1.xpose.msra.mxu0 0.0
  %2500 = vmatprep.subr.mxu0 0.0
  %2501 = vmatpush1.xpose.msra.mxu0 0.0
  %2502 = vmatprep.subr.mxu0 0.0
  %2503 = vmatpush1.xpose.msra.mxu0 0.0
  %2504 = vmatprep.subr.mxu0 0.0
  %2505 = vmatpush1.xpose.msra.mxu0 0.0
  %2506 = vmatprep.subr.mxu0 0.0
  %2507 = vmatpush1.xpose.msra.mxu0 0.0
  %2508 = vmatprep.subr.mxu0 0.0
  %2509 = vmatpush1.xpose.msra.mxu0 0.0
  %2510 = vmatprep.subr.mxu0 0.0
  %2511 = vmatpush1.xpose.msra.mxu0 0.0
  %2512 = vmatprep.subr.mxu0 0.0
  %2513 = vmatpush1.xpose.msra.mxu0 0.0
  %2514 = vmatprep.subr.mxu0 0.0
  %2515 = vmatpush1.xpose.msra.mxu0 0.0
  %2516 = vmatprep.subr.mxu0 0.0
  %2517 = vmatpush1.xpose.msra.mxu0 0.0
  %2518 = vmatprep.subr.mxu0 0.0
  %2519 = vmatpush1.xpose.msra.mxu0 0.0
  %2520 = vmatprep.subr.mxu0 0.0
  %2521 = vmatpush1.xpose.msra.mxu0 0.0
  %2522 = vmatprep.subr.mxu0 0.0
  %2523 = vmatpush1.xpose.msra.mxu0 0.0
  %2524 = vmatprep.mubr.f32.mxu0 0.0
  %2525 = vmatmul.mubr.f32.gmra.mrb[0].mxu0 %v2452
  %v2526 = vpop.f32.mrb[0].mxu0
  %v2527 = vadd.f32 0.0, %v2526
  %v2528 = vpop.f32.mrb[0].mxu0
  %2529 = vmatprep.mubr.f32.mxu0 0.0
  %2530 = vmatmul.mubr.f32.gmra.mrb[0].mxu0 %v2454
  %v2531 = vpop.f32.mrb[0].mxu0
  %v2532 = vadd.f32 0.0, %v2531
  %v2533 = vpop.f32.mrb[0].mxu0
  %2534 = vdwg.mxu0
  %2535 = vrot.lane.b32.xlu0 %v332, 96
  %v2536 = vpop.permute.xlu0 %2535
  %2537 = vrot.lane.b32.xlu0 %v334, 96
  %v2538 = vpop.permute.xlu0 %2537
  %v2539 = vsel %vm363, %v332, 0
  %v2541 = vsel %vm363, %v334, 0
  %v2543 = vsel %vm363, %v2536, 0
  %v2545 = vsel %vm363, %v2538, 0
  %2547 = vmatprep.subr.mxu0 0.0
  %2548 = vmatpush1.xpose.msra.mxu0 %v2543
  %2549 = vmatprep.subr.mxu0 0.0
  %2550 = vmatpush1.xpose.msra.mxu0 %v2545
  %2551 = vmatprep.subr.mxu0 0.0
  %2552 = vmatpush1.xpose.msra.mxu0 0.0
  %2553 = vmatprep.subr.mxu0 0.0
  %2554 = vmatpush1.xpose.msra.mxu0 0.0
  %2555 = vmatprep.subr.mxu0 0.0
  %2556 = vmatpush1.xpose.msra.mxu0 0.0
  %2557 = vmatprep.subr.mxu0 0.0
  %2558 = vmatpush1.xpose.msra.mxu0 0.0
  %2559 = vmatprep.subr.mxu0 0.0
  %2560 = vmatpush1.xpose.msra.mxu0 0.0
  %2561 = vmatprep.subr.mxu0 0.0
  %2562 = vmatpush1.xpose.msra.mxu0 0.0
  %2563 = vmatprep.subr.mxu0 0.0
  %2564 = vmatpush1.xpose.msra.mxu0 0.0
  %2565 = vmatprep.subr.mxu0 0.0
  %2566 = vmatpush1.xpose.msra.mxu0 0.0
  %2567 = vmatprep.subr.mxu0 0.0
  %2568 = vmatpush1.xpose.msra.mxu0 0.0
  %2569 = vmatprep.subr.mxu0 0.0
  %2570 = vmatpush1.xpose.msra.mxu0 0.0
  %2571 = vmatprep.subr.mxu0 0.0
  %2572 = vmatpush1.xpose.msra.mxu0 0.0
  %2573 = vmatprep.subr.mxu0 0.0
  %2574 = vmatpush1.xpose.msra.mxu0 0.0
  %2575 = vmatprep.subr.mxu0 0.0
  %2576 = vmatpush1.xpose.msra.mxu0 0.0
  %2577 = vmatprep.subr.mxu0 0.0
  %2578 = vmatpush1.xpose.msra.mxu0 0.0
  %2579 = vmatprep.subr.mxu0 0.0
  %2580 = vmatpush1.xpose.msra.mxu0 0.0
  %2581 = vmatprep.subr.mxu0 0.0
  %2582 = vmatpush1.xpose.msra.mxu0 0.0
  %2583 = vmatprep.subr.mxu0 0.0
  %2584 = vmatpush1.xpose.msra.mxu0 0.0
  %2585 = vmatprep.subr.mxu0 0.0
  %2586 = vmatpush1.xpose.msra.mxu0 0.0
  %2587 = vmatprep.subr.mxu0 0.0
  %2588 = vmatpush1.xpose.msra.mxu0 0.0
  %2589 = vmatprep.subr.mxu0 0.0
  %2590 = vmatpush1.xpose.msra.mxu0 0.0
  %2591 = vmatprep.subr.mxu0 0.0
  %2592 = vmatpush1.xpose.msra.mxu0 0.0
  %2593 = vmatprep.subr.mxu0 0.0
  %2594 = vmatpush1.xpose.msra.mxu0 0.0
  %2595 = vmatprep.subr.mxu0 0.0
  %2596 = vmatpush1.xpose.msra.mxu0 0.0
  %2597 = vmatprep.subr.mxu0 0.0
  %2598 = vmatpush1.xpose.msra.mxu0 0.0
  %2599 = vmatprep.subr.mxu0 0.0
  %2600 = vmatpush1.xpose.msra.mxu0 0.0
  %2601 = vmatprep.subr.mxu0 0.0
  %2602 = vmatpush1.xpose.msra.mxu0 0.0
  %2603 = vmatprep.subr.mxu0 0.0
  %2604 = vmatpush1.xpose.msra.mxu0 0.0
  %2605 = vmatprep.subr.mxu0 0.0
  %2606 = vmatpush1.xpose.msra.mxu0 0.0
  %2607 = vmatprep.subr.mxu0 0.0
  %2608 = vmatpush1.xpose.msra.mxu0 0.0
  %2609 = vmatprep.subr.mxu0 0.0
  %2610 = vmatpush1.xpose.msra.mxu0 0.0
  %2611 = vmatprep.mubr.f32.mxu0 0.0
  %2612 = vmatmul.mubr.f32.gmra.mrb[0].mxu0 %v2539
  %v2613 = vpop.f32.mrb[0].mxu0
  %v2614 = vadd.f32 0.0, %v2613
  %v2615 = vpop.f32.mrb[0].mxu0
  %2616 = vmatprep.mubr.f32.mxu0 0.0
  %2617 = vmatmul.mubr.f32.gmra.mrb[0].mxu0 %v2541
  %v2618 = vpop.f32.mrb[0].mxu0
  %v2619 = vadd.f32 0.0, %v2618
  %v2620 = vpop.f32.mrb[0].mxu0
  %2621 = vdwg.mxu0
  %2622 = vrot.lane.b32.xlu0 %v336, 96
  %v2623 = vpop.permute.xlu0 %2622
  %2624 = vrot.lane.b32.xlu0 %v338, 96
  %v2625 = vpop.permute.xlu0 %2624
  %v2626 = vsel %vm363, %v336, 0
  %v2628 = vsel %vm363, %v338, 0
  %v2630 = vsel %vm363, %v2623, 0
  %v2632 = vsel %vm363, %v2625, 0
  %2634 = vmatprep.subr.mxu0 0.0
  %2635 = vmatpush1.xpose.msra.mxu0 %v2630
  %2636 = vmatprep.subr.mxu0 0.0
  %2637 = vmatpush1.xpose.msra.mxu0 %v2632
  %2638 = vmatprep.subr.mxu0 0.0
  %2639 = vmatpush1.xpose.msra.mxu0 0.0
  %2640 = vmatprep.subr.mxu0 0.0
  %2641 = vmatpush1.xpose.msra.mxu0 0.0
  %2642 = vmatprep.subr.mxu0 0.0
  %2643 = vmatpush1.xpose.msra.mxu0 0.0
  %2644 = vmatprep.subr.mxu0 0.0
  %2645 = vmatpush1.xpose.msra.mxu0 0.0
  %2646 = vmatprep.subr.mxu0 0.0
  %2647 = vmatpush1.xpose.msra.mxu0 0.0
  %2648 = vmatprep.subr.mxu0 0.0
  %2649 = vmatpush1.xpose.msra.mxu0 0.0
  %2650 = vmatprep.subr.mxu0 0.0
  %2651 = vmatpush1.xpose.msra.mxu0 0.0
  %2652 = vmatprep.subr.mxu0 0.0
  %2653 = vmatpush1.xpose.msra.mxu0 0.0
  %2654 = vmatprep.subr.mxu0 0.0
  %2655 = vmatpush1.xpose.msra.mxu0 0.0
  %2656 = vmatprep.subr.mxu0 0.0
  %2657 = vmatpush1.xpose.msra.mxu0 0.0
  %2658 = vmatprep.subr.mxu0 0.0
  %2659 = vmatpush1.xpose.msra.mxu0 0.0
  %2660 = vmatprep.subr.mxu0 0.0
  %2661 = vmatpush1.xpose.msra.mxu0 0.0
  %2662 = vmatprep.subr.mxu0 0.0
  %2663 = vmatpush1.xpose.msra.mxu0 0.0
  %2664 = vmatprep.subr.mxu0 0.0
  %2665 = vmatpush1.xpose.msra.mxu0 0.0
  %2666 = vmatprep.subr.mxu0 0.0
  %2667 = vmatpush1.xpose.msra.mxu0 0.0
  %2668 = vmatprep.subr.mxu0 0.0
  %2669 = vmatpush1.xpose.msra.mxu0 0.0
  %2670 = vmatprep.subr.mxu0 0.0
  %2671 = vmatpush1.xpose.msra.mxu0 0.0
  %2672 = vmatprep.subr.mxu0 0.0
  %2673 = vmatpush1.xpose.msra.mxu0 0.0
  %2674 = vmatprep.subr.mxu0 0.0
  %2675 = vmatpush1.xpose.msra.mxu0 0.0
  %2676 = vmatprep.subr.mxu0 0.0
  %2677 = vmatpush1.xpose.msra.mxu0 0.0
  %2678 = vmatprep.subr.mxu0 0.0
  %2679 = vmatpush1.xpose.msra.mxu0 0.0
  %2680 = vmatprep.subr.mxu0 0.0
  %2681 = vmatpush1.xpose.msra.mxu0 0.0
  %2682 = vmatprep.subr.mxu0 0.0
  %2683 = vmatpush1.xpose.msra.mxu0 0.0
  %2684 = vmatprep.subr.mxu0 0.0
  %2685 = vmatpush1.xpose.msra.mxu0 0.0
  %2686 = vmatprep.subr.mxu0 0.0
  %2687 = vmatpush1.xpose.msra.mxu0 0.0
  %2688 = vmatprep.subr.mxu0 0.0
  %2689 = vmatpush1.xpose.msra.mxu0 0.0
  %2690 = vmatprep.subr.mxu0 0.0
  %2691 = vmatpush1.xpose.msra.mxu0 0.0
  %2692 = vmatprep.subr.mxu0 0.0
  %2693 = vmatpush1.xpose.msra.mxu0 0.0
  %2694 = vmatprep.subr.mxu0 0.0
  %2695 = vmatpush1.xpose.msra.mxu0 0.0
  %2696 = vmatprep.subr.mxu0 0.0
  %2697 = vmatpush1.xpose.msra.mxu0 0.0
  %2698 = vmatprep.mubr.f32.mxu0 0.0
  %2699 = vmatmul.mubr.f32.gmra.mrb[0].mxu0 %v2626
  %v2700 = vpop.f32.mrb[0].mxu0
  %v2701 = vadd.f32 0.0, %v2700
  %v2702 = vpop.f32.mrb[0].mxu0
  %2703 = vmatprep.mubr.f32.mxu0 0.0
  %2704 = vmatmul.mubr.f32.gmra.mrb[0].mxu0 %v2628
  %v2705 = vpop.f32.mrb[0].mxu0
  %v2706 = vadd.f32 0.0, %v2705
  %v2707 = vpop.f32.mrb[0].mxu0
  %2708 = vdwg.mxu0
  %2709 = vrot.lane.b32.xlu0 %v340, 96
  %v2710 = vpop.permute.xlu0 %2709
  %2711 = vrot.lane.b32.xlu0 %v342, 96
  %v2712 = vpop.permute.xlu0 %2711
  %v2713 = vsel %vm363, %v340, 0
  %v2715 = vsel %vm363, %v342, 0
  %v2717 = vsel %vm363, %v2710, 0
  %v2719 = vsel %vm363, %v2712, 0
  %2721 = vmatprep.subr.mxu0 0.0
  %2722 = vmatpush1.xpose.msra.mxu0 %v2717
  %2723 = vmatprep.subr.mxu0 0.0
  %2724 = vmatpush1.xpose.msra.mxu0 %v2719
  %2725 = vmatprep.subr.mxu0 0.0
  %2726 = vmatpush1.xpose.msra.mxu0 0.0
  %2727 = vmatprep.subr.mxu0 0.0
  %2728 = vmatpush1.xpose.msra.mxu0 0.0
  %2729 = vmatprep.subr.mxu0 0.0
  %2730 = vmatpush1.xpose.msra.mxu0 0.0
  %2731 = vmatprep.subr.mxu0 0.0
  %2732 = vmatpush1.xpose.msra.mxu0 0.0
  %2733 = vmatprep.subr.mxu0 0.0
  %2734 = vmatpush1.xpose.msra.mxu0 0.0
  %2735 = vmatprep.subr.mxu0 0.0
  %2736 = vmatpush1.xpose.msra.mxu0 0.0
  %2737 = vmatprep.subr.mxu0 0.0
  %2738 = vmatpush1.xpose.msra.mxu0 0.0
  %2739 = vmatprep.subr.mxu0 0.0
  %2740 = vmatpush1.xpose.msra.mxu0 0.0
  %2741 = vmatprep.subr.mxu0 0.0
  %2742 = vmatpush1.xpose.msra.mxu0 0.0
  %2743 = vmatprep.subr.mxu0 0.0
  %2744 = vmatpush1.xpose.msra.mxu0 0.0
  %2745 = vmatprep.subr.mxu0 0.0
  %2746 = vmatpush1.xpose.msra.mxu0 0.0
  %2747 = vmatprep.subr.mxu0 0.0
  %2748 = vmatpush1.xpose.msra.mxu0 0.0
  %2749 = vmatprep.subr.mxu0 0.0
  %2750 = vmatpush1.xpose.msra.mxu0 0.0
  %2751 = vmatprep.subr.mxu0 0.0
  %2752 = vmatpush1.xpose.msra.mxu0 0.0
  %2753 = vmatprep.subr.mxu0 0.0
  %2754 = vmatpush1.xpose.msra.mxu0 0.0
  %2755 = vmatprep.subr.mxu0 0.0
  %2756 = vmatpush1.xpose.msra.mxu0 0.0
  %2757 = vmatprep.subr.mxu0 0.0
  %2758 = vmatpush1.xpose.msra.mxu0 0.0
  %2759 = vmatprep.subr.mxu0 0.0
  %2760 = vmatpush1.xpose.msra.mxu0 0.0
  %2761 = vmatprep.subr.mxu0 0.0
  %2762 = vmatpush1.xpose.msra.mxu0 0.0
  %2763 = vmatprep.subr.mxu0 0.0
  %2764 = vmatpush1.xpose.msra.mxu0 0.0
  %2765 = vmatprep.subr.mxu0 0.0
  %2766 = vmatpush1.xpose.msra.mxu0 0.0
  %2767 = vmatprep.subr.mxu0 0.0
  %2768 = vmatpush1.xpose.msra.mxu0 0.0
  %2769 = vmatprep.subr.mxu0 0.0
  %2770 = vmatpush1.xpose.msra.mxu0 0.0
  %2771 = vmatprep.subr.mxu0 0.0
  %2772 = vmatpush1.xpose.msra.mxu0 0.0
  %2773 = vmatprep.subr.mxu0 0.0
  %2774 = vmatpush1.xpose.msra.mxu0 0.0
  %2775 = vmatprep.subr.mxu0 0.0
  %2776 = vmatpush1.xpose.msra.mxu0 0.0
  %2777 = vmatprep.subr.mxu0 0.0
  %2778 = vmatpush1.xpose.msra.mxu0 0.0
  %2779 = vmatprep.subr.mxu0 0.0
  %2780 = vmatpush1.xpose.msra.mxu0 0.0
  %2781 = vmatprep.subr.mxu0 0.0
  %2782 = vmatpush1.xpose.msra.mxu0 0.0
  %2783 = vmatprep.subr.mxu0 0.0
  %2784 = vmatpush1.xpose.msra.mxu0 0.0
  %2785 = vmatprep.mubr.f32.mxu0 0.0
  %2786 = vmatmul.mubr.f32.gmra.mrb[0].mxu0 %v2713
  %v2787 = vpop.f32.mrb[0].mxu0
  %v2788 = vadd.f32 0.0, %v2787
  %v2789 = vpop.f32.mrb[0].mxu0
  %2790 = vmatprep.mubr.f32.mxu0 0.0
  %2791 = vmatmul.mubr.f32.gmra.mrb[0].mxu0 %v2715
  %v2792 = vpop.f32.mrb[0].mxu0
  %v2793 = vadd.f32 0.0, %v2792
  %v2794 = vpop.f32.mrb[0].mxu0
  %2795 = vdwg.mxu0
  %2796 = vrot.lane.b32.xlu0 %v344, 96
  %v2797 = vpop.permute.xlu0 %2796
  %2798 = vrot.lane.b32.xlu0 %v346, 96
  %v2799 = vpop.permute.xlu0 %2798
  %v2800 = vsel %vm363, %v344, 0
  %v2802 = vsel %vm363, %v346, 0
  %v2804 = vsel %vm363, %v2797, 0
  %v2806 = vsel %vm363, %v2799, 0
  %2808 = vmatprep.subr.mxu0 0.0
  %2809 = vmatpush1.xpose.msra.mxu0 %v2804
  %2810 = vmatprep.subr.mxu0 0.0
  %2811 = vmatpush1.xpose.msra.mxu0 %v2806
  %2812 = vmatprep.subr.mxu0 0.0
  %2813 = vmatpush1.xpose.msra.mxu0 0.0
  %2814 = vmatprep.subr.mxu0 0.0
  %2815 = vmatpush1.xpose.msra.mxu0 0.0
  %2816 = vmatprep.subr.mxu0 0.0
  %2817 = vmatpush1.xpose.msra.mxu0 0.0
  %2818 = vmatprep.subr.mxu0 0.0
  %2819 = vmatpush1.xpose.msra.mxu0 0.0
  %2820 = vmatprep.subr.mxu0 0.0
  %2821 = vmatpush1.xpose.msra.mxu0 0.0
  %2822 = vmatprep.subr.mxu0 0.0
  %2823 = vmatpush1.xpose.msra.mxu0 0.0
  %2824 = vmatprep.subr.mxu0 0.0
  %2825 = vmatpush1.xpose.msra.mxu0 0.0
  %2826 = vmatprep.subr.mxu0 0.0
  %2827 = vmatpush1.xpose.msra.mxu0 0.0
  %2828 = vmatprep.subr.mxu0 0.0
  %2829 = vmatpush1.xpose.msra.mxu0 0.0
  %2830 = vmatprep.subr.mxu0 0.0
  %2831 = vmatpush1.xpose.msra.mxu0 0.0
  %2832 = vmatprep.subr.mxu0 0.0
  %2833 = vmatpush1.xpose.msra.mxu0 0.0
  %2834 = vmatprep.subr.mxu0 0.0
  %2835 = vmatpush1.xpose.msra.mxu0 0.0
  %2836 = vmatprep.subr.mxu0 0.0
  %2837 = vmatpush1.xpose.msra.mxu0 0.0
  %2838 = vmatprep.subr.mxu0 0.0
  %2839 = vmatpush1.xpose.msra.mxu0 0.0
  %2840 = vmatprep.subr.mxu0 0.0
  %2841 = vmatpush1.xpose.msra.mxu0 0.0
  %2842 = vmatprep.subr.mxu0 0.0
  %2843 = vmatpush1.xpose.msra.mxu0 0.0
  %2844 = vmatprep.subr.mxu0 0.0
  %2845 = vmatpush1.xpose.msra.mxu0 0.0
  %2846 = vmatprep.subr.mxu0 0.0
  %2847 = vmatpush1.xpose.msra.mxu0 0.0
  %2848 = vmatprep.subr.mxu0 0.0
  %2849 = vmatpush1.xpose.msra.mxu0 0.0
  %2850 = vmatprep.subr.mxu0 0.0
  %2851 = vmatpush1.xpose.msra.mxu0 0.0
  %2852 = vmatprep.subr.mxu0 0.0
  %2853 = vmatpush1.xpose.msra.mxu0 0.0
  %2854 = vmatprep.subr.mxu0 0.0
  %2855 = vmatpush1.xpose.msra.mxu0 0.0
  %2856 = vmatprep.subr.mxu0 0.0
  %2857 = vmatpush1.xpose.msra.mxu0 0.0
  %2858 = vmatprep.subr.mxu0 0.0
  %2859 = vmatpush1.xpose.msra.mxu0 0.0
  %2860 = vmatprep.subr.mxu0 0.0
  %2861 = vmatpush1.xpose.msra.mxu0 0.0
  %2862 = vmatprep.subr.mxu0 0.0
  %2863 = vmatpush1.xpose.msra.mxu0 0.0
  %2864 = vmatprep.subr.mxu0 0.0
  %2865 = vmatpush1.xpose.msra.mxu0 0.0
  %2866 = vmatprep.subr.mxu0 0.0
  %2867 = vmatpush1.xpose.msra.mxu0 0.0
  %2868 = vmatprep.subr.mxu0 0.0
  %2869 = vmatpush1.xpose.msra.mxu0 0.0
  %2870 = vmatprep.subr.mxu0 0.0
  %2871 = vmatpush1.xpose.msra.mxu0 0.0
  %2872 = vmatprep.mubr.f32.mxu0 0.0
  %2873 = vmatmul.mubr.f32.gmra.mrb[0].mxu0 %v2800
  %v2874 = vpop.f32.mrb[0].mxu0
  %v2875 = vadd.f32 0.0, %v2874
  %v2876 = vpop.f32.mrb[0].mxu0
  %2877 = vmatprep.mubr.f32.mxu0 0.0
  %2878 = vmatmul.mubr.f32.gmra.mrb[0].mxu0 %v2802
  %v2879 = vpop.f32.mrb[0].mxu0
  %v2880 = vadd.f32 0.0, %v2879
  %v2881 = vpop.f32.mrb[0].mxu0
  %2882 = vdwg.mxu0
  %2883 = vrot.lane.b32.xlu0 %v348, 96
  %v2884 = vpop.permute.xlu0 %2883
  %2885 = vrot.lane.b32.xlu0 %v350, 96
  %v2886 = vpop.permute.xlu0 %2885
  %v2887 = vsel %vm363, %v348, 0
  %v2889 = vsel %vm363, %v350, 0
  %v2891 = vsel %vm363, %v2884, 0
  %v2893 = vsel %vm363, %v2886, 0
  %2895 = vmatprep.subr.mxu0 0.0
  %2896 = vmatpush1.xpose.msra.mxu0 %v2891
  %2897 = vmatprep.subr.mxu0 0.0
  %2898 = vmatpush1.xpose.msra.mxu0 %v2893
  %2899 = vmatprep.subr.mxu0 0.0
  %2900 = vmatpush1.xpose.msra.mxu0 0.0
  %2901 = vmatprep.subr.mxu0 0.0
  %2902 = vmatpush1.xpose.msra.mxu0 0.0
  %2903 = vmatprep.subr.mxu0 0.0
  %2904 = vmatpush1.xpose.msra.mxu0 0.0
  %2905 = vmatprep.subr.mxu0 0.0
  %2906 = vmatpush1.xpose.msra.mxu0 0.0
  %2907 = vmatprep.subr.mxu0 0.0
  %2908 = vmatpush1.xpose.msra.mxu0 0.0
  %2909 = vmatprep.subr.mxu0 0.0
  %2910 = vmatpush1.xpose.msra.mxu0 0.0
  %2911 = vmatprep.subr.mxu0 0.0
  %2912 = vmatpush1.xpose.msra.mxu0 0.0
  %2913 = vmatprep.subr.mxu0 0.0
  %2914 = vmatpush1.xpose.msra.mxu0 0.0
  %2915 = vmatprep.subr.mxu0 0.0
  %2916 = vmatpush1.xpose.msra.mxu0 0.0
  %2917 = vmatprep.subr.mxu0 0.0
  %2918 = vmatpush1.xpose.msra.mxu0 0.0
  %2919 = vmatprep.subr.mxu0 0.0
  %2920 = vmatpush1.xpose.msra.mxu0 0.0
  %2921 = vmatprep.subr.mxu0 0.0
  %2922 = vmatpush1.xpose.msra.mxu0 0.0
  %2923 = vmatprep.subr.mxu0 0.0
  %2924 = vmatpush1.xpose.msra.mxu0 0.0
  %2925 = vmatprep.subr.mxu0 0.0
  %2926 = vmatpush1.xpose.msra.mxu0 0.0
  %2927 = vmatprep.subr.mxu0 0.0
  %2928 = vmatpush1.xpose.msra.mxu0 0.0
  %2929 = vmatprep.subr.mxu0 0.0
  %2930 = vmatpush1.xpose.msra.mxu0 0.0
  %2931 = vmatprep.subr.mxu0 0.0
  %2932 = vmatpush1.xpose.msra.mxu0 0.0
  %2933 = vmatprep.subr.mxu0 0.0
  %2934 = vmatpush1.xpose.msra.mxu0 0.0
  %2935 = vmatprep.subr.mxu0 0.0
  %2936 = vmatpush1.xpose.msra.mxu0 0.0
  %2937 = vmatprep.subr.mxu0 0.0
  %2938 = vmatpush1.xpose.msra.mxu0 0.0
  %2939 = vmatprep.subr.mxu0 0.0
  %2940 = vmatpush1.xpose.msra.mxu0 0.0
  %2941 = vmatprep.subr.mxu0 0.0
  %2942 = vmatpush1.xpose.msra.mxu0 0.0
  %2943 = vmatprep.subr.mxu0 0.0
  %2944 = vmatpush1.xpose.msra.mxu0 0.0
  %2945 = vmatprep.subr.mxu0 0.0
  %2946 = vmatpush1.xpose.msra.mxu0 0.0
  %2947 = vmatprep.subr.mxu0 0.0
  %2948 = vmatpush1.xpose.msra.mxu0 0.0
  %2949 = vmatprep.subr.mxu0 0.0
  %2950 = vmatpush1.xpose.msra.mxu0 0.0
  %2951 = vmatprep.subr.mxu0 0.0
  %2952 = vmatpush1.xpose.msra.mxu0 0.0
  %2953 = vmatprep.subr.mxu0 0.0
  %2954 = vmatpush1.xpose.msra.mxu0 0.0
  %2955 = vmatprep.subr.mxu0 0.0
  %2956 = vmatpush1.xpose.msra.mxu0 0.0
  %2957 = vmatprep.subr.mxu0 0.0
  %2958 = vmatpush1.xpose.msra.mxu0 0.0
  %2959 = vmatprep.mubr.f32.mxu0 0.0
  %2960 = vmatmul.mubr.f32.gmra.mrb[0].mxu0 %v2887
  %v2961 = vpop.f32.mrb[0].mxu0
  %v2962 = vadd.f32 0.0, %v2961
  %v2963 = vpop.f32.mrb[0].mxu0
  %2964 = vmatprep.mubr.f32.mxu0 0.0
  %2965 = vmatmul.mubr.f32.gmra.mrb[0].mxu0 %v2889
  %v2966 = vpop.f32.mrb[0].mxu0
  %v2967 = vadd.f32 0.0, %v2966
  %v2968 = vpop.f32.mrb[0].mxu0
  %2969 = vdwg.mxu0
  %2970 = vrot.lane.b32.xlu0 %v352, 96
  %v2971 = vpop.permute.xlu0 %2970
  %2972 = vrot.lane.b32.xlu0 %v354, 96
  %v2973 = vpop.permute.xlu0 %2972
  %v2974 = vsel %vm363, %v352, 0
  %v2976 = vsel %vm363, %v354, 0
  %v2978 = vsel %vm363, %v2971, 0
  %v2980 = vsel %vm363, %v2973, 0
  %2982 = vmatprep.subr.mxu0 0.0
  %2983 = vmatpush1.xpose.msra.mxu0 %v2978
  %2984 = vmatprep.subr.mxu0 0.0
  %2985 = vmatpush1.xpose.msra.mxu0 %v2980
  %2986 = vmatprep.subr.mxu0 0.0
  %2987 = vmatpush1.xpose.msra.mxu0 0.0
  %2988 = vmatprep.subr.mxu0 0.0
  %2989 = vmatpush1.xpose.msra.mxu0 0.0
  %2990 = vmatprep.subr.mxu0 0.0
  %2991 = vmatpush1.xpose.msra.mxu0 0.0
  %2992 = vmatprep.subr.mxu0 0.0
  %2993 = vmatpush1.xpose.msra.mxu0 0.0
  %2994 = vmatprep.subr.mxu0 0.0
  %2995 = vmatpush1.xpose.msra.mxu0 0.0
  %2996 = vmatprep.subr.mxu0 0.0
  %2997 = vmatpush1.xpose.msra.mxu0 0.0
  %2998 = vmatprep.subr.mxu0 0.0
  %2999 = vmatpush1.xpose.msra.mxu0 0.0
  %3000 = vmatprep.subr.mxu0 0.0
  %3001 = vmatpush1.xpose.msra.mxu0 0.0
  %3002 = vmatprep.subr.mxu0 0.0
  %3003 = vmatpush1.xpose.msra.mxu0 0.0
  %3004 = vmatprep.subr.mxu0 0.0
  %3005 = vmatpush1.xpose.msra.mxu0 0.0
  %3006 = vmatprep.subr.mxu0 0.0
  %3007 = vmatpush1.xpose.msra.mxu0 0.0
  %3008 = vmatprep.subr.mxu0 0.0
  %3009 = vmatpush1.xpose.msra.mxu0 0.0
  %3010 = vmatprep.subr.mxu0 0.0
  %3011 = vmatpush1.xpose.msra.mxu0 0.0
  %3012 = vmatprep.subr.mxu0 0.0
  %3013 = vmatpush1.xpose.msra.mxu0 0.0
  %3014 = vmatprep.subr.mxu0 0.0
  %3015 = vmatpush1.xpose.msra.mxu0 0.0
  %3016 = vmatprep.subr.mxu0 0.0
  %3017 = vmatpush1.xpose.msra.mxu0 0.0
  %3018 = vmatprep.subr.mxu0 0.0
  %3019 = vmatpush1.xpose.msra.mxu0 0.0
  %3020 = vmatprep.subr.mxu0 0.0
  %3021 = vmatpush1.xpose.msra.mxu0 0.0
  %3022 = vmatprep.subr.mxu0 0.0
  %3023 = vmatpush1.xpose.msra.mxu0 0.0
  %3024 = vmatprep.subr.mxu0 0.0
  %3025 = vmatpush1.xpose.msra.mxu0 0.0
  %3026 = vmatprep.subr.mxu0 0.0
  %3027 = vmatpush1.xpose.msra.mxu0 0.0
  %3028 = vmatprep.subr.mxu0 0.0
  %3029 = vmatpush1.xpose.msra.mxu0 0.0
  %3030 = vmatprep.subr.mxu0 0.0
  %3031 = vmatpush1.xpose.msra.mxu0 0.0
  %3032 = vmatprep.subr.mxu0 0.0
  %3033 = vmatpush1.xpose.msra.mxu0 0.0
  %3034 = vmatprep.subr.mxu0 0.0
  %3035 = vmatpush1.xpose.msra.mxu0 0.0
  %3036 = vmatprep.subr.mxu0 0.0
  %3037 = vmatpush1.xpose.msra.mxu0 0.0
  %3038 = vmatprep.subr.mxu0 0.0
  %3039 = vmatpush1.xpose.msra.mxu0 0.0
  %3040 = vmatprep.subr.mxu0 0.0
  %3041 = vmatpush1.xpose.msra.mxu0 0.0
  %3042 = vmatprep.subr.mxu0 0.0
  %3043 = vmatpush1.xpose.msra.mxu0 0.0
  %3044 = vmatprep.subr.mxu0 0.0
  %3045 = vmatpush1.xpose.msra.mxu0 0.0
  %3046 = vmatprep.mubr.f32.mxu0 0.0
  %3047 = vmatmul.mubr.f32.gmra.mrb[0].mxu0 %v2974
  %v3048 = vpop.f32.mrb[0].mxu0
  %v3049 = vadd.f32 0.0, %v3048
  %v3050 = vpop.f32.mrb[0].mxu0
  %3051 = vmatprep.mubr.f32.mxu0 0.0
  %3052 = vmatmul.mubr.f32.gmra.mrb[0].mxu0 %v2976
  %v3053 = vpop.f32.mrb[0].mxu0
  %v3054 = vadd.f32 0.0, %v3053
  %v3055 = vpop.f32.mrb[0].mxu0
  %3056 = vdwg.mxu0
  %3057 = vrot.lane.b32.xlu0 %v356, 96
  %v3058 = vpop.permute.xlu0 %3057
  %3059 = vrot.lane.b32.xlu0 %v358, 96
  %v3060 = vpop.permute.xlu0 %3059
  %v3061 = vsel %vm363, %v356, 0
  %v3063 = vsel %vm363, %v358, 0
  %v3065 = vsel %vm363, %v3058, 0
  %v3067 = vsel %vm363, %v3060, 0
  %3069 = vmatprep.subr.mxu0 0.0
  %3070 = vmatpush1.xpose.msra.mxu0 %v3065
  %3071 = vmatprep.subr.mxu0 0.0
  %3072 = vmatpush1.xpose.msra.mxu0 %v3067
  %3073 = vmatprep.subr.mxu0 0.0
  %3074 = vmatpush1.xpose.msra.mxu0 0.0
  %3075 = vmatprep.subr.mxu0 0.0
  %3076 = vmatpush1.xpose.msra.mxu0 0.0
  %3077 = vmatprep.subr.mxu0 0.0
  %3078 = vmatpush1.xpose.msra.mxu0 0.0
  %3079 = vmatprep.subr.mxu0 0.0
  %3080 = vmatpush1.xpose.msra.mxu0 0.0
  %3081 = vmatprep.subr.mxu0 0.0
  %3082 = vmatpush1.xpose.msra.mxu0 0.0
  %3083 = vmatprep.subr.mxu0 0.0
  %3084 = vmatpush1.xpose.msra.mxu0 0.0
  %3085 = vmatprep.subr.mxu0 0.0
  %3086 = vmatpush1.xpose.msra.mxu0 0.0
  %3087 = vmatprep.subr.mxu0 0.0
  %3088 = vmatpush1.xpose.msra.mxu0 0.0
  %3089 = vmatprep.subr.mxu0 0.0
  %3090 = vmatpush1.xpose.msra.mxu0 0.0
  %3091 = vmatprep.subr.mxu0 0.0
  %3092 = vmatpush1.xpose.msra.mxu0 0.0
  %3093 = vmatprep.subr.mxu0 0.0
  %3094 = vmatpush1.xpose.msra.mxu0 0.0
  %3095 = vmatprep.subr.mxu0 0.0
  %3096 = vmatpush1.xpose.msra.mxu0 0.0
  %3097 = vmatprep.subr.mxu0 0.0
  %3098 = vmatpush1.xpose.msra.mxu0 0.0
  %3099 = vmatprep.subr.mxu0 0.0
  %3100 = vmatpush1.xpose.msra.mxu0 0.0
  %3101 = vmatprep.subr.mxu0 0.0
  %3102 = vmatpush1.xpose.msra.mxu0 0.0
  %3103 = vmatprep.subr.mxu0 0.0
  %3104 = vmatpush1.xpose.msra.mxu0 0.0
  %3105 = vmatprep.subr.mxu0 0.0
  %3106 = vmatpush1.xpose.msra.mxu0 0.0
  %3107 = vmatprep.subr.mxu0 0.0
  %3108 = vmatpush1.xpose.msra.mxu0 0.0
  %3109 = vmatprep.subr.mxu0 0.0
  %3110 = vmatpush1.xpose.msra.mxu0 0.0
  %3111 = vmatprep.subr.mxu0 0.0
  %3112 = vmatpush1.xpose.msra.mxu0 0.0
  %3113 = vmatprep.subr.mxu0 0.0
  %3114 = vmatpush1.xpose.msra.mxu0 0.0
  %3115 = vmatprep.subr.mxu0 0.0
  %3116 = vmatpush1.xpose.msra.mxu0 0.0
  %3117 = vmatprep.subr.mxu0 0.0
  %3118 = vmatpush1.xpose.msra.mxu0 0.0
  %3119 = vmatprep.subr.mxu0 0.0
  %3120 = vmatpush1.xpose.msra.mxu0 0.0
  %3121 = vmatprep.subr.mxu0 0.0
  %3122 = vmatpush1.xpose.msra.mxu0 0.0
  %3123 = vmatprep.subr.mxu0 0.0
  %3124 = vmatpush1.xpose.msra.mxu0 0.0
  %3125 = vmatprep.subr.mxu0 0.0
  %3126 = vmatpush1.xpose.msra.mxu0 0.0
  %3127 = vmatprep.subr.mxu0 0.0
  %3128 = vmatpush1.xpose.msra.mxu0 0.0
  %3129 = vmatprep.subr.mxu0 0.0
  %3130 = vmatpush1.xpose.msra.mxu0 0.0
  %3131 = vmatprep.subr.mxu0 0.0
  %3132 = vmatpush1.xpose.msra.mxu0 0.0
  %3133 = vmatprep.mubr.f32.mxu0 0.0
  %3134 = vmatmul.mubr.f32.gmra.mrb[0].mxu0 %v3061
  %v3135 = vpop.f32.mrb[0].mxu0
  %v3136 = vadd.f32 0.0, %v3135
  %v3137 = vpop.f32.mrb[0].mxu0
  %3138 = vmatprep.mubr.f32.mxu0 0.0
  %3139 = vmatmul.mubr.f32.gmra.mrb[0].mxu0 %v3063
  %v3140 = vpop.f32.mrb[0].mxu0
  %v3141 = vadd.f32 0.0, %v3140
  %v3142 = vpop.f32.mrb[0].mxu0
  %3143 = vdwg.mxu0
  %v3144 = vld [vmem:[%s5] sm:$0xff]
  %v3145 = vld [vmem:[%s5 + $0x8] sm:$0xff]
  %v3146 = vld [vmem:[%s5 + $0x10] sm:$0xff]
  %v3147 = vld [vmem:[%s5 + $0x18] sm:$0xff]
  %v3148 = vld [vmem:[%s5 + $0x20] sm:$0xff]
  %v3149 = vld [vmem:[%s5 + $0x28] sm:$0xff]
  %v3150 = vld [vmem:[%s5 + $0x30] sm:$0xff]
  %v3151 = vld [vmem:[%s5 + $0x38] sm:$0xff]
  %v3152 = vadd.f32 %v439, %v3144
  %v3153 = vadd.f32 %v444, %v3145
  %v3154 = vadd.f32 %v526, %v3144
  %v3155 = vadd.f32 %v531, %v3145
  %v3156 = vadd.f32 %v613, %v3144
  %v3157 = vadd.f32 %v618, %v3145
  %v3158 = vadd.f32 %v700, %v3144
  %v3159 = vadd.f32 %v705, %v3145
  %v3160 = vadd.f32 %v787, %v3144
  %v3161 = vadd.f32 %v792, %v3145
  %v3162 = vadd.f32 %v874, %v3144
  %v3163 = vadd.f32 %v879, %v3145
  %v3164 = vadd.f32 %v961, %v3144
  %v3165 = vadd.f32 %v966, %v3145
  %v3166 = vadd.f32 %v1048, %v3144
  %v3167 = vadd.f32 %v1053, %v3145
  %v3168 = vadd.f32 %v1135, %v3146
  %v3169 = vadd.f32 %v1140, %v3147
  %v3170 = vadd.f32 %v1222, %v3146
  %v3171 = vadd.f32 %v1227, %v3147
  %v3172 = vadd.f32 %v1309, %v3146
  %v3173 = vadd.f32 %v1314, %v3147
  %v3174 = vadd.f32 %v1396, %v3146
  %v3175 = vadd.f32 %v1401, %v3147
  %v3176 = vadd.f32 %v1483, %v3146
  %v3177 = vadd.f32 %v1488, %v3147
  %v3178 = vadd.f32 %v1570, %v3146
  %v3179 = vadd.f32 %v1575, %v3147
  %v3180 = vadd.f32 %v1657, %v3146
  %v3181 = vadd.f32 %v1662, %v3147
  %v3182 = vadd.f32 %v1744, %v3146
  %v3183 = vadd.f32 %v1749, %v3147
  %v3184 = vadd.f32 %v1831, %v3148
  %v3185 = vadd.f32 %v1836, %v3149
  %v3186 = vadd.f32 %v1918, %v3148
  %v3187 = vadd.f32 %v1923, %v3149
  %v3188 = vadd.f32 %v2005, %v3148
  %v3189 = vadd.f32 %v2010, %v3149
  %v3190 = vadd.f32 %v2092, %v3148
  %v3191 = vadd.f32 %v2097, %v3149
  %v3192 = vadd.f32 %v2179, %v3148
  %v3193 = vadd.f32 %v2184, %v3149
  %v3194 = vadd.f32 %v2266, %v3148
  %v3195 = vadd.f32 %v2271, %v3149
  %v3196 = vadd.f32 %v2353, %v3148
  %v3197 = vadd.f32 %v2358, %v3149
  %v3198 = vadd.f32 %v2440, %v3148
  %v3199 = vadd.f32 %v2445, %v3149
  %v3200 = vadd.f32 %v2527, %v3150
  %v3201 = vadd.f32 %v2532, %v3151
  %v3202 = vadd.f32 %v2614, %v3150
  %v3203 = vadd.f32 %v2619, %v3151
  %v3204 = vadd.f32 %v2701, %v3150
  %v3205 = vadd.f32 %v2706, %v3151
  %v3206 = vadd.f32 %v2788, %v3150
  %v3207 = vadd.f32 %v2793, %v3151
  %v3208 = vadd.f32 %v2875, %v3150
  %v3209 = vadd.f32 %v2880, %v3151
  %v3210 = vadd.f32 %v2962, %v3150
  %v3211 = vadd.f32 %v2967, %v3151
  %v3212 = vadd.f32 %v3049, %v3150
  %v3213 = vadd.f32 %v3054, %v3151
  %v3214 = vadd.f32 %v3136, %v3150
  %v3215 = vadd.f32 %v3141, %v3151
  %vm3216 = vcmask 130048
  %v3217 = vsel %vm3216, %v3152, -inf
  %3218 = vmax.xlane.f32.xlu0 %v3217
  %v3219 = vpop.xlane.xlu0 %3218
  %v3220 = vsel %vm3216, %v3153, -inf
  %3221 = vmax.xlane.f32.xlu0 %v3220
  %v3222 = vpop.xlane.xlu0 %3221
  %v3223 = vsel %vm3216, %v3154, -inf
  %3224 = vmax.xlane.f32.xlu0 %v3223
  %v3225 = vpop.xlane.xlu0 %3224
  %v3226 = vsel %vm3216, %v3155, -inf
  %3227 = vmax.xlane.f32.xlu0 %v3226
  %v3228 = vpop.xlane.xlu0 %3227
  %v3229 = vsel %vm3216, %v3156, -inf
  %3230 = vmax.xlane.f32.xlu0 %v3229
  %v3231 = vpop.xlane.xlu0 %3230
  %v3232 = vsel %vm3216, %v3157, -inf
  %3233 = vmax.xlane.f32.xlu0 %v3232
  %v3234 = vpop.xlane.xlu0 %3233
  %v3235 = vsel %vm3216, %v3158, -inf
  %3236 = vmax.xlane.f32.xlu0 %v3235
  %v3237 = vpop.xlane.xlu0 %3236
  %v3238 = vsel %vm3216, %v3159, -inf
  %3239 = vmax.xlane.f32.xlu0 %v3238
  %v3240 = vpop.xlane.xlu0 %3239
  %v3241 = vsel %vm3216, %v3160, -inf
  %3242 = vmax.xlane.f32.xlu0 %v3241
  %v3243 = vpop.xlane.xlu0 %3242
  %v3244 = vsel %vm3216, %v3161, -inf
  %3245 = vmax.xlane.f32.xlu0 %v3244
  %v3246 = vpop.xlane.xlu0 %3245
  %v3247 = vsel %vm3216, %v3162, -inf
  %3248 = vmax.xlane.f32.xlu0 %v3247
  %v3249 = vpop.xlane.xlu0 %3248
  %v3250 = vsel %vm3216, %v3163, -inf
  %3251 = vmax.xlane.f32.xlu0 %v3250
  %v3252 = vpop.xlane.xlu0 %3251
  %v3253 = vsel %vm3216, %v3164, -inf
  %3254 = vmax.xlane.f32.xlu0 %v3253
  %v3255 = vpop.xlane.xlu0 %3254
  %v3256 = vsel %vm3216, %v3165, -inf
  %3257 = vmax.xlane.f32.xlu0 %v3256
  %v3258 = vpop.xlane.xlu0 %3257
  %v3259 = vsel %vm3216, %v3166, -inf
  %3260 = vmax.xlane.f32.xlu0 %v3259
  %v3261 = vpop.xlane.xlu0 %3260
  %v3262 = vsel %vm3216, %v3167, -inf
  %3263 = vmax.xlane.f32.xlu0 %v3262
  %v3264 = vpop.xlane.xlu0 %3263
  %v3265 = vsel %vm3216, %v3168, -inf
  %3266 = vmax.xlane.f32.xlu0 %v3265
  %v3267 = vpop.xlane.xlu0 %3266
  %v3268 = vsel %vm3216, %v3169, -inf
  %3269 = vmax.xlane.f32.xlu0 %v3268
  %v3270 = vpop.xlane.xlu0 %3269
  %v3271 = vsel %vm3216, %v3170, -inf
  %3272 = vmax.xlane.f32.xlu0 %v3271
  %v3273 = vpop.xlane.xlu0 %3272
  %v3274 = vsel %vm3216, %v3171, -inf
  %3275 = vmax.xlane.f32.xlu0 %v3274
  %v3276 = vpop.xlane.xlu0 %3275
  %v3277 = vsel %vm3216, %v3172, -inf
  %3278 = vmax.xlane.f32.xlu0 %v3277
  %v3279 = vpop.xlane.xlu0 %3278
  %v3280 = vsel %vm3216, %v3173, -inf
  %3281 = vmax.xlane.f32.xlu0 %v3280
  %v3282 = vpop.xlane.xlu0 %3281
  %v3283 = vsel %vm3216, %v3174, -inf
  %3284 = vmax.xlane.f32.xlu0 %v3283
  %v3285 = vpop.xlane.xlu0 %3284
  %v3286 = vsel %vm3216, %v3175, -inf
  %3287 = vmax.xlane.f32.xlu0 %v3286
  %v3288 = vpop.xlane.xlu0 %3287
  %v3289 = vsel %vm3216, %v3176, -inf
  %3290 = vmax.xlane.f32.xlu0 %v3289
  %v3291 = vpop.xlane.xlu0 %3290
  %v3292 = vsel %vm3216, %v3177, -inf
  %3293 = vmax.xlane.f32.xlu0 %v3292
  %v3294 = vpop.xlane.xlu0 %3293
  %v3295 = vsel %vm3216, %v3178, -inf
  %3296 = vmax.xlane.f32.xlu0 %v3295
  %v3297 = vpop.xlane.xlu0 %3296
  %v3298 = vsel %vm3216, %v3179, -inf
  %3299 = vmax.xlane.f32.xlu0 %v3298
  %v3300 = vpop.xlane.xlu0 %3299
  %v3301 = vsel %vm3216, %v3180, -inf
  %3302 = vmax.xlane.f32.xlu0 %v3301
  %v3303 = vpop.xlane.xlu0 %3302
  %v3304 = vsel %vm3216, %v3181, -inf
  %3305 = vmax.xlane.f32.xlu0 %v3304
  %v3306 = vpop.xlane.xlu0 %3305
  %v3307 = vsel %vm3216, %v3182, -inf
  %3308 = vmax.xlane.f32.xlu0 %v3307
  %v3309 = vpop.xlane.xlu0 %3308
  %v3310 = vsel %vm3216, %v3183, -inf
  %3311 = vmax.xlane.f32.xlu0 %v3310
  %v3312 = vpop.xlane.xlu0 %3311
  %v3313 = vsel %vm3216, %v3184, -inf
  %3314 = vmax.xlane.f32.xlu0 %v3313
  %v3315 = vpop.xlane.xlu0 %3314
  %v3316 = vsel %vm3216, %v3185, -inf
  %3317 = vmax.xlane.f32.xlu0 %v3316
  %v3318 = vpop.xlane.xlu0 %3317
  %v3319 = vsel %vm3216, %v3186, -inf
  %3320 = vmax.xlane.f32.xlu0 %v3319
  %v3321 = vpop.xlane.xlu0 %3320
  %v3322 = vsel %vm3216, %v3187, -inf
  %3323 = vmax.xlane.f32.xlu0 %v3322
  %v3324 = vpop.xlane.xlu0 %3323
  %v3325 = vsel %vm3216, %v3188, -inf
  %3326 = vmax.xlane.f32.xlu0 %v3325
  %v3327 = vpop.xlane.xlu0 %3326
  %v3328 = vsel %vm3216, %v3189, -inf
  %3329 = vmax.xlane.f32.xlu0 %v3328
  %v3330 = vpop.xlane.xlu0 %3329
  %v3331 = vsel %vm3216, %v3190, -inf
  %3332 = vmax.xlane.f32.xlu0 %v3331
  %v3333 = vpop.xlane.xlu0 %3332
  %v3334 = vsel %vm3216, %v3191, -inf
  %3335 = vmax.xlane.f32.xlu0 %v3334
  %v3336 = vpop.xlane.xlu0 %3335
  %v3337 = vsel %vm3216, %v3192, -inf
  %3338 = vmax.xlane.f32.xlu0 %v3337
  %v3339 = vpop.xlane.xlu0 %3338
  %v3340 = vsel %vm3216, %v3193, -inf
  %3341 = vmax.xlane.f32.xlu0 %v3340
  %v3342 = vpop.xlane.xlu0 %3341
  %v3343 = vsel %vm3216, %v3194, -inf
  %3344 = vmax.xlane.f32.xlu0 %v3343
  %v3345 = vpop.xlane.xlu0 %3344
  %v3346 = vsel %vm3216, %v3195, -inf
  %3347 = vmax.xlane.f32.xlu0 %v3346
  %v3348 = vpop.xlane.xlu0 %3347
  %v3349 = vsel %vm3216, %v3196, -inf
  %3350 = vmax.xlane.f32.xlu0 %v3349
  %v3351 = vpop.xlane.xlu0 %3350
  %v3352 = vsel %vm3216, %v3197, -inf
  %3353 = vmax.xlane.f32.xlu0 %v3352
  %v3354 = vpop.xlane.xlu0 %3353
  %v3355 = vsel %vm3216, %v3198, -inf
  %3356 = vmax.xlane.f32.xlu0 %v3355
  %v3357 = vpop.xlane.xlu0 %3356
  %v3358 = vsel %vm3216, %v3199, -inf
  %3359 = vmax.xlane.f32.xlu0 %v3358
  %v3360 = vpop.xlane.xlu0 %3359
  %v3361 = vsel %vm3216, %v3200, -inf
  %3362 = vmax.xlane.f32.xlu0 %v3361
  %v3363 = vpop.xlane.xlu0 %3362
  %v3364 = vsel %vm3216, %v3201, -inf
  %3365 = vmax.xlane.f32.xlu0 %v3364
  %v3366 = vpop.xlane.xlu0 %3365
  %v3367 = vsel %vm3216, %v3202, -inf
  %3368 = vmax.xlane.f32.xlu0 %v3367
  %v3369 = vpop.xlane.xlu0 %3368
  %v3370 = vsel %vm3216, %v3203, -inf
  %3371 = vmax.xlane.f32.xlu0 %v3370
  %v3372 = vpop.xlane.xlu0 %3371
  %v3373 = vsel %vm3216, %v3204, -inf
  %3374 = vmax.xlane.f32.xlu0 %v3373
  %v3375 = vpop.xlane.xlu0 %3374
  %v3376 = vsel %vm3216, %v3205, -inf
  %3377 = vmax.xlane.f32.xlu0 %v3376
  %v3378 = vpop.xlane.xlu0 %3377
  %v3379 = vsel %vm3216, %v3206, -inf
  %3380 = vmax.xlane.f32.xlu0 %v3379
  %v3381 = vpop.xlane.xlu0 %3380
  %v3382 = vsel %vm3216, %v3207, -inf
  %3383 = vmax.xlane.f32.xlu0 %v3382
  %v3384 = vpop.xlane.xlu0 %3383
  %v3385 = vsel %vm3216, %v3208, -inf
  %3386 = vmax.xlane.f32.xlu0 %v3385
  %v3387 = vpop.xlane.xlu0 %3386
  %v3388 = vsel %vm3216, %v3209, -inf
  %3389 = vmax.xlane.f32.xlu0 %v3388
  %v3390 = vpop.xlane.xlu0 %3389
  %v3391 = vsel %vm3216, %v3210, -inf
  %3392 = vmax.xlane.f32.xlu0 %v3391
  %v3393 = vpop.xlane.xlu0 %3392
  %v3394 = vsel %vm3216, %v3211, -inf
  %3395 = vmax.xlane.f32.xlu0 %v3394
  %v3396 = vpop.xlane.xlu0 %3395
  %v3397 = vsel %vm3216, %v3212, -inf
  %3398 = vmax.xlane.f32.xlu0 %v3397
  %v3399 = vpop.xlane.xlu0 %3398
  %v3400 = vsel %vm3216, %v3213, -inf
  %3401 = vmax.xlane.f32.xlu0 %v3400
  %v3402 = vpop.xlane.xlu0 %3401
  %v3403 = vsel %vm3216, %v3214, -inf
  %3404 = vmax.xlane.f32.xlu0 %v3403
  %v3405 = vpop.xlane.xlu0 %3404
  %v3406 = vsel %vm3216, %v3215, -inf
  %3407 = vmax.xlane.f32.xlu0 %v3406
  %v3408 = vpop.xlane.xlu0 %3407
  %v3409 = vsub.f32 %v3152, %v3219
  %v3410 = vsub.f32 %v3153, %v3222
  %v3411 = vsub.f32 %v3154, %v3225
  %v3412 = vsub.f32 %v3155, %v3228
  %v3413 = vsub.f32 %v3156, %v3231
  %v3414 = vsub.f32 %v3157, %v3234
  %v3415 = vsub.f32 %v3158, %v3237
  %v3416 = vsub.f32 %v3159, %v3240
  %v3417 = vsub.f32 %v3160, %v3243
  %v3418 = vsub.f32 %v3161, %v3246
  %v3419 = vsub.f32 %v3162, %v3249
  %v3420 = vsub.f32 %v3163, %v3252
  %v3421 = vsub.f32 %v3164, %v3255
  %v3422 = vsub.f32 %v3165, %v3258
  %v3423 = vsub.f32 %v3166, %v3261
  %v3424 = vsub.f32 %v3167, %v3264
  %v3425 = vsub.f32 %v3168, %v3267
  %v3426 = vsub.f32 %v3169, %v3270
  %v3427 = vsub.f32 %v3170, %v3273
  %v3428 = vsub.f32 %v3171, %v3276
  %v3429 = vsub.f32 %v3172, %v3279
  %v3430 = vsub.f32 %v3173, %v3282
  %v3431 = vsub.f32 %v3174, %v3285
  %v3432 = vsub.f32 %v3175, %v3288
  %v3433 = vsub.f32 %v3176, %v3291
  %v3434 = vsub.f32 %v3177, %v3294
  %v3435 = vsub.f32 %v3178, %v3297
  %v3436 = vsub.f32 %v3179, %v3300
  %v3437 = vsub.f32 %v3180, %v3303
  %v3438 = vsub.f32 %v3181, %v3306
  %v3439 = vsub.f32 %v3182, %v3309
  %v3440 = vsub.f32 %v3183, %v3312
  %v3441 = vsub.f32 %v3184, %v3315
  %v3442 = vsub.f32 %v3185, %v3318
  %v3443 = vsub.f32 %v3186, %v3321
  %v3444 = vsub.f32 %v3187, %v3324
  %v3445 = vsub.f32 %v3188, %v3327
  %v3446 = vsub.f32 %v3189, %v3330
  %v3447 = vsub.f32 %v3190, %v3333
  %v3448 = vsub.f32 %v3191, %v3336
  %v3449 = vsub.f32 %v3192, %v3339
  %v3450 = vsub.f32 %v3193, %v3342
  %v3451 = vsub.f32 %v3194, %v3345
  %v3452 = vsub.f32 %v3195, %v3348
  %v3453 = vsub.f32 %v3196, %v3351
  %v3454 = vsub.f32 %v3197, %v3354
  %v3455 = vsub.f32 %v3198, %v3357
  %v3456 = vsub.f32 %v3199, %v3360
  %v3457 = vsub.f32 %v3200, %v3363
  %v3458 = vsub.f32 %v3201, %v3366
  %v3459 = vsub.f32 %v3202, %v3369
  %v3460 = vsub.f32 %v3203, %v3372
  %v3461 = vsub.f32 %v3204, %v3375
  %v3462 = vsub.f32 %v3205, %v3378
  %v3463 = vsub.f32 %v3206, %v3381
  %v3464 = vsub.f32 %v3207, %v3384
  %v3465 = vsub.f32 %v3208, %v3387
  %v3466 = vsub.f32 %v3209, %v3390
  %v3467 = vsub.f32 %v3210, %v3393
  %v3468 = vsub.f32 %v3211, %v3396
  %v3469 = vsub.f32 %v3212, %v3399
  %v3470 = vsub.f32 %v3213, %v3402
  %v3471 = vsub.f32 %v3214, %v3405
  %v3472 = vsub.f32 %v3215, %v3408
  %v3473 = vmul.f32 %v3409, 1.442695
  %v3474 = vpow.pop %v3473
  %v3475 = vmul.f32 %v3410, 1.442695
  %v3476 = vpow.pop %v3475
  %v3477 = vmul.f32 %v3411, 1.442695
  %v3478 = vpow.pop %v3477
  %v3479 = vmul.f32 %v3412, 1.442695
  %v3480 = vpow.pop %v3479
  %v3481 = vmul.f32 %v3413, 1.442695
  %v3482 = vpow.pop %v3481
  %v3483 = vmul.f32 %v3414, 1.442695
  %v3484 = vpow.pop %v3483
  %v3485 = vmul.f32 %v3415, 1.442695
  %v3486 = vpow.pop %v3485
  %v3487 = vmul.f32 %v3416, 1.442695
  %v3488 = vpow.pop %v3487
  %v3489 = vmul.f32 %v3417, 1.442695
  %v3490 = vpow.pop %v3489
  %v3491 = vmul.f32 %v3418, 1.442695
  %v3492 = vpow.pop %v3491
  %v3493 = vmul.f32 %v3419, 1.442695
  %v3494 = vpow.pop %v3493
  %v3495 = vmul.f32 %v3420, 1.442695
  %v3496 = vpow.pop %v3495
  %v3497 = vmul.f32 %v3421, 1.442695
  %v3498 = vpow.pop %v3497
  %v3499 = vmul.f32 %v3422, 1.442695
  %v3500 = vpow.pop %v3499
  %v3501 = vmul.f32 %v3423, 1.442695
  %v3502 = vpow.pop %v3501
  %v3503 = vmul.f32 %v3424, 1.442695
  %v3504 = vpow.pop %v3503
  %v3505 = vmul.f32 %v3425, 1.442695
  %v3506 = vpow.pop %v3505
  %v3507 = vmul.f32 %v3426, 1.442695
  %v3508 = vpow.pop %v3507
  %v3509 = vmul.f32 %v3427, 1.442695
  %v3510 = vpow.pop %v3509
  %v3511 = vmul.f32 %v3428, 1.442695
  %v3512 = vpow.pop %v3511
  %v3513 = vmul.f32 %v3429, 1.442695
  %v3514 = vpow.pop %v3513
  %v3515 = vmul.f32 %v3430, 1.442695
  %v3516 = vpow.pop %v3515
  %v3517 = vmul.f32 %v3431, 1.442695
  %v3518 = vpow.pop %v3517
  %v3519 = vmul.f32 %v3432, 1.442695
  %v3520 = vpow.pop %v3519
  %v3521 = vmul.f32 %v3433, 1.442695
  %v3522 = vpow.pop %v3521
  %v3523 = vmul.f32 %v3434, 1.442695
  %v3524 = vpow.pop %v3523
  %v3525 = vmul.f32 %v3435, 1.442695
  %v3526 = vpow.pop %v3525
  %v3527 = vmul.f32 %v3436, 1.442695
  %v3528 = vpow.pop %v3527
  %v3529 = vmul.f32 %v3437, 1.442695
  %v3530 = vpow.pop %v3529
  %v3531 = vmul.f32 %v3438, 1.442695
  %v3532 = vpow.pop %v3531
  %v3533 = vmul.f32 %v3439, 1.442695
  %v3534 = vpow.pop %v3533
  %v3535 = vmul.f32 %v3440, 1.442695
  %v3536 = vpow.pop %v3535
  %v3537 = vmul.f32 %v3441, 1.442695
  %v3538 = vpow.pop %v3537
  %v3539 = vmul.f32 %v3442, 1.442695
  %v3540 = vpow.pop %v3539
  %v3541 = vmul.f32 %v3443, 1.442695
  %v3542 = vpow.pop %v3541
  %v3543 = vmul.f32 %v3444, 1.442695
  %v3544 = vpow.pop %v3543
  %v3545 = vmul.f32 %v3445, 1.442695
  %v3546 = vpow.pop %v3545
  %v3547 = vmul.f32 %v3446, 1.442695
  %v3548 = vpow.pop %v3547
  %v3549 = vmul.f32 %v3447, 1.442695
  %v3550 = vpow.pop %v3549
  %v3551 = vmul.f32 %v3448, 1.442695
  %v3552 = vpow.pop %v3551
  %v3553 = vmul.f32 %v3449, 1.442695
  %v3554 = vpow.pop %v3553
  %v3555 = vmul.f32 %v3450, 1.442695
  %v3556 = vpow.pop %v3555
  %v3557 = vmul.f32 %v3451, 1.442695
  %v3558 = vpow.pop %v3557
  %v3559 = vmul.f32 %v3452, 1.442695
  %v3560 = vpow.pop %v3559
  %v3561 = vmul.f32 %v3453, 1.442695
  %v3562 = vpow.pop %v3561
  %v3563 = vmul.f32 %v3454, 1.442695
  %v3564 = vpow.pop %v3563
  %v3565 = vmul.f32 %v3455, 1.442695
  %v3566 = vpow.pop %v3565
  %v3567 = vmul.f32 %v3456, 1.442695
  %v3568 = vpow.pop %v3567
  %v3569 = vmul.f32 %v3457, 1.442695
  %v3570 = vpow.pop %v3569
  %v3571 = vmul.f32 %v3458, 1.442695
  %v3572 = vpow.pop %v3571
  %v3573 = vmul.f32 %v3459, 1.442695
  %v3574 = vpow.pop %v3573
  %v3575 = vmul.f32 %v3460, 1.442695
  %v3576 = vpow.pop %v3575
  %v3577 = vmul.f32 %v3461, 1.442695
  %v3578 = vpow.pop %v3577
  %v3579 = vmul.f32 %v3462, 1.442695
  %v3580 = vpow.pop %v3579
  %v3581 = vmul.f32 %v3463, 1.442695
  %v3582 = vpow.pop %v3581
  %v3583 = vmul.f32 %v3464, 1.442695
  %v3584 = vpow.pop %v3583
  %v3585 = vmul.f32 %v3465, 1.442695
  %v3586 = vpow.pop %v3585
  %v3587 = vmul.f32 %v3466, 1.442695
  %v3588 = vpow.pop %v3587
  %v3589 = vmul.f32 %v3467, 1.442695
  %v3590 = vpow.pop %v3589
  %v3591 = vmul.f32 %v3468, 1.442695
  %v3592 = vpow.pop %v3591
  %v3593 = vmul.f32 %v3469, 1.442695
  %v3594 = vpow.pop %v3593
  %v3595 = vmul.f32 %v3470, 1.442695
  %v3596 = vpow.pop %v3595
  %v3597 = vmul.f32 %v3471, 1.442695
  %v3598 = vpow.pop %v3597
  %v3599 = vmul.f32 %v3472, 1.442695
  %v3600 = vpow.pop %v3599
  %v3601 = vsel %vm3216, %v3474, 0.0
  %3602 = vadd.xlane.f32.xlu0 %v3601
  %v3603 = vpop.xlane.xlu0 %3602
  %v3604 = vsel %vm3216, %v3476, 0.0
  %3605 = vadd.xlane.f32.xlu0 %v3604
  %v3606 = vpop.xlane.xlu0 %3605
  %v3607 = vsel %vm3216, %v3478, 0.0
  %3608 = vadd.xlane.f32.xlu0 %v3607
  %v3609 = vpop.xlane.xlu0 %3608
  %v3610 = vsel %vm3216, %v3480, 0.0
  %3611 = vadd.xlane.f32.xlu0 %v3610
  %v3612 = vpop.xlane.xlu0 %3611
  %v3613 = vsel %vm3216, %v3482, 0.0
  %3614 = vadd.xlane.f32.xlu0 %v3613
  %v3615 = vpop.xlane.xlu0 %3614
  %v3616 = vsel %vm3216, %v3484, 0.0
  %3617 = vadd.xlane.f32.xlu0 %v3616
  %v3618 = vpop.xlane.xlu0 %3617
  %v3619 = vsel %vm3216, %v3486, 0.0
  %3620 = vadd.xlane.f32.xlu0 %v3619
  %v3621 = vpop.xlane.xlu0 %3620
  %v3622 = vsel %vm3216, %v3488, 0.0
  %3623 = vadd.xlane.f32.xlu0 %v3622
  %v3624 = vpop.xlane.xlu0 %3623
  %v3625 = vsel %vm3216, %v3490, 0.0
  %3626 = vadd.xlane.f32.xlu0 %v3625
  %v3627 = vpop.xlane.xlu0 %3626
  %v3628 = vsel %vm3216, %v3492, 0.0
  %3629 = vadd.xlane.f32.xlu0 %v3628
  %v3630 = vpop.xlane.xlu0 %3629
  %v3631 = vsel %vm3216, %v3494, 0.0
  %3632 = vadd.xlane.f32.xlu0 %v3631
  %v3633 = vpop.xlane.xlu0 %3632
  %v3634 = vsel %vm3216, %v3496, 0.0
  %3635 = vadd.xlane.f32.xlu0 %v3634
  %v3636 = vpop.xlane.xlu0 %3635
  %v3637 = vsel %vm3216, %v3498, 0.0
  %3638 = vadd.xlane.f32.xlu0 %v3637
  %v3639 = vpop.xlane.xlu0 %3638
  %v3640 = vsel %vm3216, %v3500, 0.0
  %3641 = vadd.xlane.f32.xlu0 %v3640
  %v3642 = vpop.xlane.xlu0 %3641
  %v3643 = vsel %vm3216, %v3502, 0.0
  %3644 = vadd.xlane.f32.xlu0 %v3643
  %v3645 = vpop.xlane.xlu0 %3644
  %v3646 = vsel %vm3216, %v3504, 0.0
  %3647 = vadd.xlane.f32.xlu0 %v3646
  %v3648 = vpop.xlane.xlu0 %3647
  %v3649 = vsel %vm3216, %v3506, 0.0
  %3650 = vadd.xlane.f32.xlu0 %v3649
  %v3651 = vpop.xlane.xlu0 %3650
  %v3652 = vsel %vm3216, %v3508, 0.0
  %3653 = vadd.xlane.f32.xlu0 %v3652
  %v3654 = vpop.xlane.xlu0 %3653
  %v3655 = vsel %vm3216, %v3510, 0.0
  %3656 = vadd.xlane.f32.xlu0 %v3655
  %v3657 = vpop.xlane.xlu0 %3656
  %v3658 = vsel %vm3216, %v3512, 0.0
  %3659 = vadd.xlane.f32.xlu0 %v3658
  %v3660 = vpop.xlane.xlu0 %3659
  %v3661 = vsel %vm3216, %v3514, 0.0
  %3662 = vadd.xlane.f32.xlu0 %v3661
  %v3663 = vpop.xlane.xlu0 %3662
  %v3664 = vsel %vm3216, %v3516, 0.0
  %3665 = vadd.xlane.f32.xlu0 %v3664
  %v3666 = vpop.xlane.xlu0 %3665
  %v3667 = vsel %vm3216, %v3518, 0.0
  %3668 = vadd.xlane.f32.xlu0 %v3667
  %v3669 = vpop.xlane.xlu0 %3668
  %v3670 = vsel %vm3216, %v3520, 0.0
  %3671 = vadd.xlane.f32.xlu0 %v3670
  %v3672 = vpop.xlane.xlu0 %3671
  %v3673 = vsel %vm3216, %v3522, 0.0
  %3674 = vadd.xlane.f32.xlu0 %v3673
  %v3675 = vpop.xlane.xlu0 %3674
  %v3676 = vsel %vm3216, %v3524, 0.0
  %3677 = vadd.xlane.f32.xlu0 %v3676
  %v3678 = vpop.xlane.xlu0 %3677
  %v3679 = vsel %vm3216, %v3526, 0.0
  %3680 = vadd.xlane.f32.xlu0 %v3679
  %v3681 = vpop.xlane.xlu0 %3680
  %v3682 = vsel %vm3216, %v3528, 0.0
  %3683 = vadd.xlane.f32.xlu0 %v3682
  %v3684 = vpop.xlane.xlu0 %3683
  %v3685 = vsel %vm3216, %v3530, 0.0
  %3686 = vadd.xlane.f32.xlu0 %v3685
  %v3687 = vpop.xlane.xlu0 %3686
  %v3688 = vsel %vm3216, %v3532, 0.0
  %3689 = vadd.xlane.f32.xlu0 %v3688
  %v3690 = vpop.xlane.xlu0 %3689
  %v3691 = vsel %vm3216, %v3534, 0.0
  %3692 = vadd.xlane.f32.xlu0 %v3691
  %v3693 = vpop.xlane.xlu0 %3692
  %v3694 = vsel %vm3216, %v3536, 0.0
  %3695 = vadd.xlane.f32.xlu0 %v3694
  %v3696 = vpop.xlane.xlu0 %3695
  %v3697 = vsel %vm3216, %v3538, 0.0
  %3698 = vadd.xlane.f32.xlu0 %v3697
  %v3699 = vpop.xlane.xlu0 %3698
  %v3700 = vsel %vm3216, %v3540, 0.0
  %3701 = vadd.xlane.f32.xlu0 %v3700
  %v3702 = vpop.xlane.xlu0 %3701
  %v3703 = vsel %vm3216, %v3542, 0.0
  %3704 = vadd.xlane.f32.xlu0 %v3703
  %v3705 = vpop.xlane.xlu0 %3704
  %v3706 = vsel %vm3216, %v3544, 0.0
  %3707 = vadd.xlane.f32.xlu0 %v3706
  %v3708 = vpop.xlane.xlu0 %3707
  %v3709 = vsel %vm3216, %v3546, 0.0
  %3710 = vadd.xlane.f32.xlu0 %v3709
  %v3711 = vpop.xlane.xlu0 %3710
  %v3712 = vsel %vm3216, %v3548, 0.0
  %3713 = vadd.xlane.f32.xlu0 %v3712
  %v3714 = vpop.xlane.xlu0 %3713
  %v3715 = vsel %vm3216, %v3550, 0.0
  %3716 = vadd.xlane.f32.xlu0 %v3715
  %v3717 = vpop.xlane.xlu0 %3716
  %v3718 = vsel %vm3216, %v3552, 0.0
  %3719 = vadd.xlane.f32.xlu0 %v3718
  %v3720 = vpop.xlane.xlu0 %3719
  %v3721 = vsel %vm3216, %v3554, 0.0
  %3722 = vadd.xlane.f32.xlu0 %v3721
  %v3723 = vpop.xlane.xlu0 %3722
  %v3724 = vsel %vm3216, %v3556, 0.0
  %3725 = vadd.xlane.f32.xlu0 %v3724
  %v3726 = vpop.xlane.xlu0 %3725
  %v3727 = vsel %vm3216, %v3558, 0.0
  %3728 = vadd.xlane.f32.xlu0 %v3727
  %v3729 = vpop.xlane.xlu0 %3728
  %v3730 = vsel %vm3216, %v3560, 0.0
  %3731 = vadd.xlane.f32.xlu0 %v3730
  %v3732 = vpop.xlane.xlu0 %3731
  %v3733 = vsel %vm3216, %v3562, 0.0
  %3734 = vadd.xlane.f32.xlu0 %v3733
  %v3735 = vpop.xlane.xlu0 %3734
  %v3736 = vsel %vm3216, %v3564, 0.0
  %3737 = vadd.xlane.f32.xlu0 %v3736
  %v3738 = vpop.xlane.xlu0 %3737
  %v3739 = vsel %vm3216, %v3566, 0.0
  %3740 = vadd.xlane.f32.xlu0 %v3739
  %v3741 = vpop.xlane.xlu0 %3740
  %v3742 = vsel %vm3216, %v3568, 0.0
  %3743 = vadd.xlane.f32.xlu0 %v3742
  %v3744 = vpop.xlane.xlu0 %3743
  %v3745 = vsel %vm3216, %v3570, 0.0
  %3746 = vadd.xlane.f32.xlu0 %v3745
  %v3747 = vpop.xlane.xlu0 %3746
  %v3748 = vsel %vm3216, %v3572, 0.0
  %3749 = vadd.xlane.f32.xlu0 %v3748
  %v3750 = vpop.xlane.xlu0 %3749
  %v3751 = vsel %vm3216, %v3574, 0.0
  %3752 = vadd.xlane.f32.xlu0 %v3751
  %v3753 = vpop.xlane.xlu0 %3752
  %v3754 = vsel %vm3216, %v3576, 0.0
  %3755 = vadd.xlane.f32.xlu0 %v3754
  %v3756 = vpop.xlane.xlu0 %3755
  %v3757 = vsel %vm3216, %v3578, 0.0
  %3758 = vadd.xlane.f32.xlu0 %v3757
  %v3759 = vpop.xlane.xlu0 %3758
  %v3760 = vsel %vm3216, %v3580, 0.0
  %3761 = vadd.xlane.f32.xlu0 %v3760
  %v3762 = vpop.xlane.xlu0 %3761
  %v3763 = vsel %vm3216, %v3582, 0.0
  %3764 = vadd.xlane.f32.xlu0 %v3763
  %v3765 = vpop.xlane.xlu0 %3764
  %v3766 = vsel %vm3216, %v3584, 0.0
  %3767 = vadd.xlane.f32.xlu0 %v3766
  %v3768 = vpop.xlane.xlu0 %3767
  %v3769 = vsel %vm3216, %v3586, 0.0
  %3770 = vadd.xlane.f32.xlu0 %v3769
  %v3771 = vpop.xlane.xlu0 %3770
  %v3772 = vsel %vm3216, %v3588, 0.0
  %3773 = vadd.xlane.f32.xlu0 %v3772
  %v3774 = vpop.xlane.xlu0 %3773
  %v3775 = vsel %vm3216, %v3590, 0.0
  %3776 = vadd.xlane.f32.xlu0 %v3775
  %v3777 = vpop.xlane.xlu0 %3776
  %v3778 = vsel %vm3216, %v3592, 0.0
  %3779 = vadd.xlane.f32.xlu0 %v3778
  %v3780 = vpop.xlane.xlu0 %3779
  %v3781 = vsel %vm3216, %v3594, 0.0
  %3782 = vadd.xlane.f32.xlu0 %v3781
  %v3783 = vpop.xlane.xlu0 %3782
  %v3784 = vsel %vm3216, %v3596, 0.0
  %3785 = vadd.xlane.f32.xlu0 %v3784
  %v3786 = vpop.xlane.xlu0 %3785
  %v3787 = vsel %vm3216, %v3598, 0.0
  %3788 = vadd.xlane.f32.xlu0 %v3787
  %v3789 = vpop.xlane.xlu0 %3788
  %v3790 = vsel %vm3216, %v3600, 0.0
  %3791 = vadd.xlane.f32.xlu0 %v3790
  %v3792 = vpop.xlane.xlu0 %3791
  %v3793 = vrcp.pop %v3603
  %v3794 = vmul.f32 1.0, %v3793
  %v3795 = vrcp.pop %v3606
  %v3796 = vmul.f32 1.0, %v3795
  %v3797 = vrcp.pop %v3609
  %v3798 = vmul.f32 1.0, %v3797
  %v3799 = vrcp.pop %v3612
  %v3800 = vmul.f32 1.0, %v3799
  %v3801 = vrcp.pop %v3615
  %v3802 = vmul.f32 1.0, %v3801
  %v3803 = vrcp.pop %v3618
  %v3804 = vmul.f32 1.0, %v3803
  %v3805 = vrcp.pop %v3621
  %v3806 = vmul.f32 1.0, %v3805
  %v3807 = vrcp.pop %v3624
  %v3808 = vmul.f32 1.0, %v3807
  %v3809 = vrcp.pop %v3627
  %v3810 = vmul.f32 1.0, %v3809
  %v3811 = vrcp.pop %v3630
  %v3812 = vmul.f32 1.0, %v3811
  %v3813 = vrcp.pop %v3633
  %v3814 = vmul.f32 1.0, %v3813
  %v3815 = vrcp.pop %v3636
  %v3816 = vmul.f32 1.0, %v3815
  %v3817 = vrcp.pop %v3639
  %v3818 = vmul.f32 1.0, %v3817
  %v3819 = vrcp.pop %v3642
  %v3820 = vmul.f32 1.0, %v3819
  %v3821 = vrcp.pop %v3645
  %v3822 = vmul.f32 1.0, %v3821
  %v3823 = vrcp.pop %v3648
  %v3824 = vmul.f32 1.0, %v3823
  %v3825 = vrcp.pop %v3651
  %v3826 = vmul.f32 1.0, %v3825
  %v3827 = vrcp.pop %v3654
  %v3828 = vmul.f32 1.0, %v3827
  %v3829 = vrcp.pop %v3657
  %v3830 = vmul.f32 1.0, %v3829
  %v3831 = vrcp.pop %v3660
  %v3832 = vmul.f32 1.0, %v3831
  %v3833 = vrcp.pop %v3663
  %v3834 = vmul.f32 1.0, %v3833
  %v3835 = vrcp.pop %v3666
  %v3836 = vmul.f32 1.0, %v3835
  %v3837 = vrcp.pop %v3669
  %v3838 = vmul.f32 1.0, %v3837
  %v3839 = vrcp.pop %v3672
  %v3840 = vmul.f32 1.0, %v3839
  %v3841 = vrcp.pop %v3675
  %v3842 = vmul.f32 1.0, %v3841
  %v3843 = vrcp.pop %v3678
  %v3844 = vmul.f32 1.0, %v3843
  %v3845 = vrcp.pop %v3681
  %v3846 = vmul.f32 1.0, %v3845
  %v3847 = vrcp.pop %v3684
  %v3848 = vmul.f32 1.0, %v3847
  %v3849 = vrcp.pop %v3687
  %v3850 = vmul.f32 1.0, %v3849
  %v3851 = vrcp.pop %v3690
  %v3852 = vmul.f32 1.0, %v3851
  %v3853 = vrcp.pop %v3693
  %v3854 = vmul.f32 1.0, %v3853
  %v3855 = vrcp.pop %v3696
  %v3856 = vmul.f32 1.0, %v3855
  %v3857 = vrcp.pop %v3699
  %v3858 = vmul.f32 1.0, %v3857
  %v3859 = vrcp.pop %v3702
  %v3860 = vmul.f32 1.0, %v3859
  %v3861 = vrcp.pop %v3705
  %v3862 = vmul.f32 1.0, %v3861
  %v3863 = vrcp.pop %v3708
  %v3864 = vmul.f32 1.0, %v3863
  %v3865 = vrcp.pop %v3711
  %v3866 = vmul.f32 1.0, %v3865
  %v3867 = vrcp.pop %v3714
  %v3868 = vmul.f32 1.0, %v3867
  %v3869 = vrcp.pop %v3717
  %v3870 = vmul.f32 1.0, %v3869
  %v3871 = vrcp.pop %v3720
  %v3872 = vmul.f32 1.0, %v3871
  %v3873 = vrcp.pop %v3723
  %v3874 = vmul.f32 1.0, %v3873
  %v3875 = vrcp.pop %v3726
  %v3876 = vmul.f32 1.0, %v3875
  %v3877 = vrcp.pop %v3729
  %v3878 = vmul.f32 1.0, %v3877
  %v3879 = vrcp.pop %v3732
  %v3880 = vmul.f32 1.0, %v3879
  %v3881 = vrcp.pop %v3735
  %v3882 = vmul.f32 1.0, %v3881
  %v3883 = vrcp.pop %v3738
  %v3884 = vmul.f32 1.0, %v3883
  %v3885 = vrcp.pop %v3741
  %v3886 = vmul.f32 1.0, %v3885
  %v3887 = vrcp.pop %v3744
  %v3888 = vmul.f32 1.0, %v3887
  %v3889 = vrcp.pop %v3747
  %v3890 = vmul.f32 1.0, %v3889
  %v3891 = vrcp.pop %v3750
  %v3892 = vmul.f32 1.0, %v3891
  %v3893 = vrcp.pop %v3753
  %v3894 = vmul.f32 1.0, %v3893
  %v3895 = vrcp.pop %v3756
  %v3896 = vmul.f32 1.0, %v3895
  %v3897 = vrcp.pop %v3759
  %v3898 = vmul.f32 1.0, %v3897
  %v3899 = vrcp.pop %v3762
  %v3900 = vmul.f32 1.0, %v3899
  %v3901 = vrcp.pop %v3765
  %v3902 = vmul.f32 1.0, %v3901
  %v3903 = vrcp.pop %v3768
  %v3904 = vmul.f32 1.0, %v3903
  %v3905 = vrcp.pop %v3771
  %v3906 = vmul.f32 1.0, %v3905
  %v3907 = vrcp.pop %v3774
  %v3908 = vmul.f32 1.0, %v3907
  %v3909 = vrcp.pop %v3777
  %v3910 = vmul.f32 1.0, %v3909
  %v3911 = vrcp.pop %v3780
  %v3912 = vmul.f32 1.0, %v3911
  %v3913 = vrcp.pop %v3783
  %v3914 = vmul.f32 1.0, %v3913
  %v3915 = vrcp.pop %v3786
  %v3916 = vmul.f32 1.0, %v3915
  %v3917 = vrcp.pop %v3789
  %v3918 = vmul.f32 1.0, %v3917
  %v3919 = vrcp.pop %v3792
  %v3920 = vmul.f32 1.0, %v3919
  %v3921 = vmul.f32 %v3474, %v3794
  %v3922 = vmul.f32 %v3476, %v3796
  %v3923 = vmul.f32 %v3478, %v3798
  %v3924 = vmul.f32 %v3480, %v3800
  %v3925 = vmul.f32 %v3482, %v3802
  %v3926 = vmul.f32 %v3484, %v3804
  %v3927 = vmul.f32 %v3486, %v3806
  %v3928 = vmul.f32 %v3488, %v3808
  %v3929 = vmul.f32 %v3490, %v3810
  %v3930 = vmul.f32 %v3492, %v3812
  %v3931 = vmul.f32 %v3494, %v3814
  %v3932 = vmul.f32 %v3496, %v3816
  %v3933 = vmul.f32 %v3498, %v3818
  %v3934 = vmul.f32 %v3500, %v3820
  %v3935 = vmul.f32 %v3502, %v3822
  %v3936 = vmul.f32 %v3504, %v3824
  %v3937 = vmul.f32 %v3506, %v3826
  %v3938 = vmul.f32 %v3508, %v3828
  %v3939 = vmul.f32 %v3510, %v3830
  %v3940 = vmul.f32 %v3512, %v3832
  %v3941 = vmul.f32 %v3514, %v3834
  %v3942 = vmul.f32 %v3516, %v3836
  %v3943 = vmul.f32 %v3518, %v3838
  %v3944 = vmul.f32 %v3520, %v3840
  %v3945 = vmul.f32 %v3522, %v3842
  %v3946 = vmul.f32 %v3524, %v3844
  %v3947 = vmul.f32 %v3526, %v3846
  %v3948 = vmul.f32 %v3528, %v3848
  %v3949 = vmul.f32 %v3530, %v3850
  %v3950 = vmul.f32 %v3532, %v3852
  %v3951 = vmul.f32 %v3534, %v3854
  %v3952 = vmul.f32 %v3536, %v3856
  %v3953 = vmul.f32 %v3538, %v3858
  %v3954 = vmul.f32 %v3540, %v3860
  %v3955 = vmul.f32 %v3542, %v3862
  %v3956 = vmul.f32 %v3544, %v3864
  %v3957 = vmul.f32 %v3546, %v3866
  %v3958 = vmul.f32 %v3548, %v3868
  %v3959 = vmul.f32 %v3550, %v3870
  %v3960 = vmul.f32 %v3552, %v3872
  %v3961 = vmul.f32 %v3554, %v3874
  %v3962 = vmul.f32 %v3556, %v3876
  %v3963 = vmul.f32 %v3558, %v3878
  %v3964 = vmul.f32 %v3560, %v3880
  %v3965 = vmul.f32 %v3562, %v3882
  %v3966 = vmul.f32 %v3564, %v3884
  %v3967 = vmul.f32 %v3566, %v3886
  %v3968 = vmul.f32 %v3568, %v3888
  %v3969 = vmul.f32 %v3570, %v3890
  %v3970 = vmul.f32 %v3572, %v3892
  %v3971 = vmul.f32 %v3574, %v3894
  %v3972 = vmul.f32 %v3576, %v3896
  %v3973 = vmul.f32 %v3578, %v3898
  %v3974 = vmul.f32 %v3580, %v3900
  %v3975 = vmul.f32 %v3582, %v3902
  %v3976 = vmul.f32 %v3584, %v3904
  %v3977 = vmul.f32 %v3586, %v3906
  %v3978 = vmul.f32 %v3588, %v3908
  %v3979 = vmul.f32 %v3590, %v3910
  %v3980 = vmul.f32 %v3592, %v3912
  %v3981 = vmul.f32 %v3594, %v3914
  %v3982 = vmul.f32 %v3596, %v3916
  %v3983 = vmul.f32 %v3598, %v3918
  %v3984 = vmul.f32 %v3600, %v3920
  %3985 = vrot.lane.b32.xlu0 %v169, 64
  %v3986 = vpop.permute.xlu0 %3985
  %3987 = vrot.lane.b32.xlu0 %v174, 64
  %v3988 = vpop.permute.xlu0 %3987
  %v3992 = vsel %vm3216, %v3921, 0
  %v3995 = vsel %vm3216, %v3922, 0
  %3997 = vmatprep.subr.mxu0 0.0
  %3998 = vmatpush1.msra.mxu0 %v3986
  %3999 = vmatprep.subr.mxu0 0.0
  %4000 = vmatpush1.msra.mxu0 %v3988
  %4001 = vmatprep.subr.mxu0 0.0
  %4002 = vmatpush1.msra.mxu0 0.0
  %4003 = vmatprep.subr.mxu0 0.0
  %4004 = vmatpush1.msra.mxu0 0.0
  %4005 = vmatprep.subr.mxu0 0.0
  %4006 = vmatpush1.msra.mxu0 0.0
  %4007 = vmatprep.subr.mxu0 0.0
  %4008 = vmatpush1.msra.mxu0 0.0
  %4009 = vmatprep.subr.mxu0 0.0
  %4010 = vmatpush1.msra.mxu0 0.0
  %4011 = vmatprep.subr.mxu0 0.0
  %4012 = vmatpush1.msra.mxu0 0.0
  %4013 = vmatprep.subr.mxu0 0.0
  %4014 = vmatpush1.msra.mxu0 0.0
  %4015 = vmatprep.subr.mxu0 0.0
  %4016 = vmatpush1.msra.mxu0 0.0
  %4017 = vmatprep.subr.mxu0 0.0
  %4018 = vmatpush1.msra.mxu0 0.0
  %4019 = vmatprep.subr.mxu0 0.0
  %4020 = vmatpush1.msra.mxu0 0.0
  %4021 = vmatprep.subr.mxu0 0.0
  %4022 = vmatpush1.msra.mxu0 0.0
  %4023 = vmatprep.subr.mxu0 0.0
  %4024 = vmatpush1.msra.mxu0 0.0
  %4025 = vmatprep.subr.mxu0 0.0
  %4026 = vmatpush1.msra.mxu0 0.0
  %4027 = vmatprep.subr.mxu0 0.0
  %4028 = vmatpush1.msra.mxu0 0.0
  %4029 = vmatprep.subr.mxu0 0.0
  %4030 = vmatpush1.msra.mxu0 0.0
  %4031 = vmatprep.subr.mxu0 0.0
  %4032 = vmatpush1.msra.mxu0 0.0
  %4033 = vmatprep.subr.mxu0 0.0
  %4034 = vmatpush1.msra.mxu0 0.0
  %4035 = vmatprep.subr.mxu0 0.0
  %4036 = vmatpush1.msra.mxu0 0.0
  %4037 = vmatprep.subr.mxu0 0.0
  %4038 = vmatpush1.msra.mxu0 0.0
  %4039 = vmatprep.subr.mxu0 0.0
  %4040 = vmatpush1.msra.mxu0 0.0
  %4041 = vmatprep.subr.mxu0 0.0
  %4042 = vmatpush1.msra.mxu0 0.0
  %4043 = vmatprep.subr.mxu0 0.0
  %4044 = vmatpush1.msra.mxu0 0.0
  %4045 = vmatprep.subr.mxu0 0.0
  %4046 = vmatpush1.msra.mxu0 0.0
  %4047 = vmatprep.subr.mxu0 0.0
  %4048 = vmatpush1.msra.mxu0 0.0
  %4049 = vmatprep.subr.mxu0 0.0
  %4050 = vmatpush1.msra.mxu0 0.0
  %4051 = vmatprep.subr.mxu0 0.0
  %4052 = vmatpush1.msra.mxu0 0.0
  %4053 = vmatprep.subr.mxu0 0.0
  %4054 = vmatpush1.msra.mxu0 0.0
  %4055 = vmatprep.subr.mxu0 0.0
  %4056 = vmatpush1.msra.mxu0 0.0
  %4057 = vmatprep.subr.mxu0 0.0
  %4058 = vmatpush1.msra.mxu0 0.0
  %4059 = vmatprep.subr.mxu0 0.0
  %4060 = vmatpush1.msra.mxu0 0.0
  %4061 = vmatprep.mubr.f32.mxu0 0.0
  %4062 = vmatmul.mubr.f32.gmra.mrb[0].mxu0 %v3992
  %v4063 = vpop.f32.mrb[0].mxu0
  %v4064 = vadd.f32 0.0, %v4063
  %v4065 = vpop.f32.mrb[0].mxu0
  %4066 = vmatprep.mubr.f32.mxu0 0.0
  %4067 = vmatmul.mubr.f32.gmra.mrb[0].mxu0 %v3995
  %v4068 = vpop.f32.mrb[0].mxu0
  %v4069 = vadd.f32 0.0, %v4068
  %v4070 = vpop.f32.mrb[0].mxu0
  %4071 = vdwg.mxu0
  %4072 = vrot.lane.b32.xlu0 %v179, 64
  %v4073 = vpop.permute.xlu0 %4072
  %4074 = vrot.lane.b32.xlu0 %v184, 64
  %v4075 = vpop.permute.xlu0 %4074
  %v4079 = vsel %vm3216, %v3923, 0
  %v4082 = vsel %vm3216, %v3924, 0
  %4084 = vmatprep.subr.mxu0 0.0
  %4085 = vmatpush1.msra.mxu0 %v4073
  %4086 = vmatprep.subr.mxu0 0.0
  %4087 = vmatpush1.msra.mxu0 %v4075
  %4088 = vmatprep.subr.mxu0 0.0
  %4089 = vmatpush1.msra.mxu0 0.0
  %4090 = vmatprep.subr.mxu0 0.0
  %4091 = vmatpush1.msra.mxu0 0.0
  %4092 = vmatprep.subr.mxu0 0.0
  %4093 = vmatpush1.msra.mxu0 0.0
  %4094 = vmatprep.subr.mxu0 0.0
  %4095 = vmatpush1.msra.mxu0 0.0
  %4096 = vmatprep.subr.mxu0 0.0
  %4097 = vmatpush1.msra.mxu0 0.0
  %4098 = vmatprep.subr.mxu0 0.0
  %4099 = vmatpush1.msra.mxu0 0.0
  %4100 = vmatprep.subr.mxu0 0.0
  %4101 = vmatpush1.msra.mxu0 0.0
  %4102 = vmatprep.subr.mxu0 0.0
  %4103 = vmatpush1.msra.mxu0 0.0
  %4104 = vmatprep.subr.mxu0 0.0
  %4105 = vmatpush1.msra.mxu0 0.0
  %4106 = vmatprep.subr.mxu0 0.0
  %4107 = vmatpush1.msra.mxu0 0.0
  %4108 = vmatprep.subr.mxu0 0.0
  %4109 = vmatpush1.msra.mxu0 0.0
  %4110 = vmatprep.subr.mxu0 0.0
  %4111 = vmatpush1.msra.mxu0 0.0
  %4112 = vmatprep.subr.mxu0 0.0
  %4113 = vmatpush1.msra.mxu0 0.0
  %4114 = vmatprep.subr.mxu0 0.0
  %4115 = vmatpush1.msra.mxu0 0.0
  %4116 = vmatprep.subr.mxu0 0.0
  %4117 = vmatpush1.msra.mxu0 0.0
  %4118 = vmatprep.subr.mxu0 0.0
  %4119 = vmatpush1.msra.mxu0 0.0
  %4120 = vmatprep.subr.mxu0 0.0
  %4121 = vmatpush1.msra.mxu0 0.0
  %4122 = vmatprep.subr.mxu0 0.0
  %4123 = vmatpush1.msra.mxu0 0.0
  %4124 = vmatprep.subr.mxu0 0.0
  %4125 = vmatpush1.msra.mxu0 0.0
  %4126 = vmatprep.subr.mxu0 0.0
  %4127 = vmatpush1.msra.mxu0 0.0
  %4128 = vmatprep.subr.mxu0 0.0
  %4129 = vmatpush1.msra.mxu0 0.0
  %4130 = vmatprep.subr.mxu0 0.0
  %4131 = vmatpush1.msra.mxu0 0.0
  %4132 = vmatprep.subr.mxu0 0.0
  %4133 = vmatpush1.msra.mxu0 0.0
  %4134 = vmatprep.subr.mxu0 0.0
  %4135 = vmatpush1.msra.mxu0 0.0
  %4136 = vmatprep.subr.mxu0 0.0
  %4137 = vmatpush1.msra.mxu0 0.0
  %4138 = vmatprep.subr.mxu0 0.0
  %4139 = vmatpush1.msra.mxu0 0.0
  %4140 = vmatprep.subr.mxu0 0.0
  %4141 = vmatpush1.msra.mxu0 0.0
  %4142 = vmatprep.subr.mxu0 0.0
  %4143 = vmatpush1.msra.mxu0 0.0
  %4144 = vmatprep.subr.mxu0 0.0
  %4145 = vmatpush1.msra.mxu0 0.0
  %4146 = vmatprep.subr.mxu0 0.0
  %4147 = vmatpush1.msra.mxu0 0.0
  %4148 = vmatprep.mubr.f32.mxu0 0.0
  %4149 = vmatmul.mubr.f32.gmra.mrb[0].mxu0 %v4079
  %v4150 = vpop.f32.mrb[0].mxu0
  %v4151 = vadd.f32 0.0, %v4150
  %v4152 = vpop.f32.mrb[0].mxu0
  %4153 = vmatprep.mubr.f32.mxu0 0.0
  %4154 = vmatmul.mubr.f32.gmra.mrb[0].mxu0 %v4082
  %v4155 = vpop.f32.mrb[0].mxu0
  %v4156 = vadd.f32 0.0, %v4155
  %v4157 = vpop.f32.mrb[0].mxu0
  %4158 = vdwg.mxu0
  %4159 = vrot.lane.b32.xlu0 %v189, 64
  %v4160 = vpop.permute.xlu0 %4159
  %4161 = vrot.lane.b32.xlu0 %v194, 64
  %v4162 = vpop.permute.xlu0 %4161
  %v4166 = vsel %vm3216, %v3925, 0
  %v4169 = vsel %vm3216, %v3926, 0
  %4171 = vmatprep.subr.mxu0 0.0
  %4172 = vmatpush1.msra.mxu0 %v4160
  %4173 = vmatprep.subr.mxu0 0.0
  %4174 = vmatpush1.msra.mxu0 %v4162
  %4175 = vmatprep.subr.mxu0 0.0
  %4176 = vmatpush1.msra.mxu0 0.0
  %4177 = vmatprep.subr.mxu0 0.0
  %4178 = vmatpush1.msra.mxu0 0.0
  %4179 = vmatprep.subr.mxu0 0.0
  %4180 = vmatpush1.msra.mxu0 0.0
  %4181 = vmatprep.subr.mxu0 0.0
  %4182 = vmatpush1.msra.mxu0 0.0
  %4183 = vmatprep.subr.mxu0 0.0
  %4184 = vmatpush1.msra.mxu0 0.0
  %4185 = vmatprep.subr.mxu0 0.0
  %4186 = vmatpush1.msra.mxu0 0.0
  %4187 = vmatprep.subr.mxu0 0.0
  %4188 = vmatpush1.msra.mxu0 0.0
  %4189 = vmatprep.subr.mxu0 0.0
  %4190 = vmatpush1.msra.mxu0 0.0
  %4191 = vmatprep.subr.mxu0 0.0
  %4192 = vmatpush1.msra.mxu0 0.0
  %4193 = vmatprep.subr.mxu0 0.0
  %4194 = vmatpush1.msra.mxu0 0.0
  %4195 = vmatprep.subr.mxu0 0.0
  %4196 = vmatpush1.msra.mxu0 0.0
  %4197 = vmatprep.subr.mxu0 0.0
  %4198 = vmatpush1.msra.mxu0 0.0
  %4199 = vmatprep.subr.mxu0 0.0
  %4200 = vmatpush1.msra.mxu0 0.0
  %4201 = vmatprep.subr.mxu0 0.0
  %4202 = vmatpush1.msra.mxu0 0.0
  %4203 = vmatprep.subr.mxu0 0.0
  %4204 = vmatpush1.msra.mxu0 0.0
  %4205 = vmatprep.subr.mxu0 0.0
  %4206 = vmatpush1.msra.mxu0 0.0
  %4207 = vmatprep.subr.mxu0 0.0
  %4208 = vmatpush1.msra.mxu0 0.0
  %4209 = vmatprep.subr.mxu0 0.0
  %4210 = vmatpush1.msra.mxu0 0.0
  %4211 = vmatprep.subr.mxu0 0.0
  %4212 = vmatpush1.msra.mxu0 0.0
  %4213 = vmatprep.subr.mxu0 0.0
  %4214 = vmatpush1.msra.mxu0 0.0
  %4215 = vmatprep.subr.mxu0 0.0
  %4216 = vmatpush1.msra.mxu0 0.0
  %4217 = vmatprep.subr.mxu0 0.0
  %4218 = vmatpush1.msra.mxu0 0.0
  %4219 = vmatprep.subr.mxu0 0.0
  %4220 = vmatpush1.msra.mxu0 0.0
  %4221 = vmatprep.subr.mxu0 0.0
  %4222 = vmatpush1.msra.mxu0 0.0
  %4223 = vmatprep.subr.mxu0 0.0
  %4224 = vmatpush1.msra.mxu0 0.0
  %4225 = vmatprep.subr.mxu0 0.0
  %4226 = vmatpush1.msra.mxu0 0.0
  %4227 = vmatprep.subr.mxu0 0.0
  %4228 = vmatpush1.msra.mxu0 0.0
  %4229 = vmatprep.subr.mxu0 0.0
  %4230 = vmatpush1.msra.mxu0 0.0
  %4231 = vmatprep.subr.mxu0 0.0
  %4232 = vmatpush1.msra.mxu0 0.0
  %4233 = vmatprep.subr.mxu0 0.0
  %4234 = vmatpush1.msra.mxu0 0.0
  %4235 = vmatprep.mubr.f32.mxu0 0.0
  %4236 = vmatmul.mubr.f32.gmra.mrb[0].mxu0 %v4166
  %v4237 = vpop.f32.mrb[0].mxu0
  %v4238 = vadd.f32 0.0, %v4237
  %v4239 = vpop.f32.mrb[0].mxu0
  %4240 = vmatprep.mubr.f32.mxu0 0.0
  %4241 = vmatmul.mubr.f32.gmra.mrb[0].mxu0 %v4169
  %v4242 = vpop.f32.mrb[0].mxu0
  %v4243 = vadd.f32 0.0, %v4242
  %v4244 = vpop.f32.mrb[0].mxu0
  %4245 = vdwg.mxu0
  %4246 = vrot.lane.b32.xlu0 %v199, 64
  %v4247 = vpop.permute.xlu0 %4246
  %4248 = vrot.lane.b32.xlu0 %v204, 64
  %v4249 = vpop.permute.xlu0 %4248
  %v4253 = vsel %vm3216, %v3927, 0
  %v4256 = vsel %vm3216, %v3928, 0
  %4258 = vmatprep.subr.mxu0 0.0
  %4259 = vmatpush1.msra.mxu0 %v4247
  %4260 = vmatprep.subr.mxu0 0.0
  %4261 = vmatpush1.msra.mxu0 %v4249
  %4262 = vmatprep.subr.mxu0 0.0
  %4263 = vmatpush1.msra.mxu0 0.0
  %4264 = vmatprep.subr.mxu0 0.0
  %4265 = vmatpush1.msra.mxu0 0.0
  %4266 = vmatprep.subr.mxu0 0.0
  %4267 = vmatpush1.msra.mxu0 0.0
  %4268 = vmatprep.subr.mxu0 0.0
  %4269 = vmatpush1.msra.mxu0 0.0
  %4270 = vmatprep.subr.mxu0 0.0
  %4271 = vmatpush1.msra.mxu0 0.0
  %4272 = vmatprep.subr.mxu0 0.0
  %4273 = vmatpush1.msra.mxu0 0.0
  %4274 = vmatprep.subr.mxu0 0.0
  %4275 = vmatpush1.msra.mxu0 0.0
  %4276 = vmatprep.subr.mxu0 0.0
  %4277 = vmatpush1.msra.mxu0 0.0
  %4278 = vmatprep.subr.mxu0 0.0
  %4279 = vmatpush1.msra.mxu0 0.0
  %4280 = vmatprep.subr.mxu0 0.0
  %4281 = vmatpush1.msra.mxu0 0.0
  %4282 = vmatprep.subr.mxu0 0.0
  %4283 = vmatpush1.msra.mxu0 0.0
  %4284 = vmatprep.subr.mxu0 0.0
  %4285 = vmatpush1.msra.mxu0 0.0
  %4286 = vmatprep.subr.mxu0 0.0
  %4287 = vmatpush1.msra.mxu0 0.0
  %4288 = vmatprep.subr.mxu0 0.0
  %4289 = vmatpush1.msra.mxu0 0.0
  %4290 = vmatprep.subr.mxu0 0.0
  %4291 = vmatpush1.msra.mxu0 0.0
  %4292 = vmatprep.subr.mxu0 0.0
  %4293 = vmatpush1.msra.mxu0 0.0
  %4294 = vmatprep.subr.mxu0 0.0
  %4295 = vmatpush1.msra.mxu0 0.0
  %4296 = vmatprep.subr.mxu0 0.0
  %4297 = vmatpush1.msra.mxu0 0.0
  %4298 = vmatprep.subr.mxu0 0.0
  %4299 = vmatpush1.msra.mxu0 0.0
  %4300 = vmatprep.subr.mxu0 0.0
  %4301 = vmatpush1.msra.mxu0 0.0
  %4302 = vmatprep.subr.mxu0 0.0
  %4303 = vmatpush1.msra.mxu0 0.0
  %4304 = vmatprep.subr.mxu0 0.0
  %4305 = vmatpush1.msra.mxu0 0.0
  %4306 = vmatprep.subr.mxu0 0.0
  %4307 = vmatpush1.msra.mxu0 0.0
  %4308 = vmatprep.subr.mxu0 0.0
  %4309 = vmatpush1.msra.mxu0 0.0
  %4310 = vmatprep.subr.mxu0 0.0
  %4311 = vmatpush1.msra.mxu0 0.0
  %4312 = vmatprep.subr.mxu0 0.0
  %4313 = vmatpush1.msra.mxu0 0.0
  %4314 = vmatprep.subr.mxu0 0.0
  %4315 = vmatpush1.msra.mxu0 0.0
  %4316 = vmatprep.subr.mxu0 0.0
  %4317 = vmatpush1.msra.mxu0 0.0
  %4318 = vmatprep.subr.mxu0 0.0
  %4319 = vmatpush1.msra.mxu0 0.0
  %4320 = vmatprep.subr.mxu0 0.0
  %4321 = vmatpush1.msra.mxu0 0.0
  %4322 = vmatprep.mubr.f32.mxu0 0.0
  %4323 = vmatmul.mubr.f32.gmra.mrb[0].mxu0 %v4253
  %v4324 = vpop.f32.mrb[0].mxu0
  %v4325 = vadd.f32 0.0, %v4324
  %v4326 = vpop.f32.mrb[0].mxu0
  %4327 = vmatprep.mubr.f32.mxu0 0.0
  %4328 = vmatmul.mubr.f32.gmra.mrb[0].mxu0 %v4256
  %v4329 = vpop.f32.mrb[0].mxu0
  %v4330 = vadd.f32 0.0, %v4329
  %v4331 = vpop.f32.mrb[0].mxu0
  %4332 = vdwg.mxu0
  %4333 = vrot.lane.b32.xlu0 %v209, 64
  %v4334 = vpop.permute.xlu0 %4333
  %4335 = vrot.lane.b32.xlu0 %v214, 64
  %v4336 = vpop.permute.xlu0 %4335
  %v4340 = vsel %vm3216, %v3929, 0
  %v4343 = vsel %vm3216, %v3930, 0
  %4345 = vmatprep.subr.mxu0 0.0
  %4346 = vmatpush1.msra.mxu0 %v4334
  %4347 = vmatprep.subr.mxu0 0.0
  %4348 = vmatpush1.msra.mxu0 %v4336
  %4349 = vmatprep.subr.mxu0 0.0
  %4350 = vmatpush1.msra.mxu0 0.0
  %4351 = vmatprep.subr.mxu0 0.0
  %4352 = vmatpush1.msra.mxu0 0.0
  %4353 = vmatprep.subr.mxu0 0.0
  %4354 = vmatpush1.msra.mxu0 0.0
  %4355 = vmatprep.subr.mxu0 0.0
  %4356 = vmatpush1.msra.mxu0 0.0
  %4357 = vmatprep.subr.mxu0 0.0
  %4358 = vmatpush1.msra.mxu0 0.0
  %4359 = vmatprep.subr.mxu0 0.0
  %4360 = vmatpush1.msra.mxu0 0.0
  %4361 = vmatprep.subr.mxu0 0.0
  %4362 = vmatpush1.msra.mxu0 0.0
  %4363 = vmatprep.subr.mxu0 0.0
  %4364 = vmatpush1.msra.mxu0 0.0
  %4365 = vmatprep.subr.mxu0 0.0
  %4366 = vmatpush1.msra.mxu0 0.0
  %4367 = vmatprep.subr.mxu0 0.0
  %4368 = vmatpush1.msra.mxu0 0.0
  %4369 = vmatprep.subr.mxu0 0.0
  %4370 = vmatpush1.msra.mxu0 0.0
  %4371 = vmatprep.subr.mxu0 0.0
  %4372 = vmatpush1.msra.mxu0 0.0
  %4373 = vmatprep.subr.mxu0 0.0
  %4374 = vmatpush1.msra.mxu0 0.0
  %4375 = vmatprep.subr.mxu0 0.0
  %4376 = vmatpush1.msra.mxu0 0.0
  %4377 = vmatprep.subr.mxu0 0.0
  %4378 = vmatpush1.msra.mxu0 0.0
  %4379 = vmatprep.subr.mxu0 0.0
  %4380 = vmatpush1.msra.mxu0 0.0
  %4381 = vmatprep.subr.mxu0 0.0
  %4382 = vmatpush1.msra.mxu0 0.0
  %4383 = vmatprep.subr.mxu0 0.0
  %4384 = vmatpush1.msra.mxu0 0.0
  %4385 = vmatprep.subr.mxu0 0.0
  %4386 = vmatpush1.msra.mxu0 0.0
  %4387 = vmatprep.subr.mxu0 0.0
  %4388 = vmatpush1.msra.mxu0 0.0
  %4389 = vmatprep.subr.mxu0 0.0
  %4390 = vmatpush1.msra.mxu0 0.0
  %4391 = vmatprep.subr.mxu0 0.0
  %4392 = vmatpush1.msra.mxu0 0.0
  %4393 = vmatprep.subr.mxu0 0.0
  %4394 = vmatpush1.msra.mxu0 0.0
  %4395 = vmatprep.subr.mxu0 0.0
  %4396 = vmatpush1.msra.mxu0 0.0
  %4397 = vmatprep.subr.mxu0 0.0
  %4398 = vmatpush1.msra.mxu0 0.0
  %4399 = vmatprep.subr.mxu0 0.0
  %4400 = vmatpush1.msra.mxu0 0.0
  %4401 = vmatprep.subr.mxu0 0.0
  %4402 = vmatpush1.msra.mxu0 0.0
  %4403 = vmatprep.subr.mxu0 0.0
  %4404 = vmatpush1.msra.mxu0 0.0
  %4405 = vmatprep.subr.mxu0 0.0
  %4406 = vmatpush1.msra.mxu0 0.0
  %4407 = vmatprep.subr.mxu0 0.0
  %4408 = vmatpush1.msra.mxu0 0.0
  %4409 = vmatprep.mubr.f32.mxu0 0.0
  %4410 = vmatmul.mubr.f32.gmra.mrb[0].mxu0 %v4340
  %v4411 = vpop.f32.mrb[0].mxu0
  %v4412 = vadd.f32 0.0, %v4411
  %v4413 = vpop.f32.mrb[0].mxu0
  %4414 = vmatprep.mubr.f32.mxu0 0.0
  %4415 = vmatmul.mubr.f32.gmra.mrb[0].mxu0 %v4343
  %v4416 = vpop.f32.mrb[0].mxu0
  %v4417 = vadd.f32 0.0, %v4416
  %v4418 = vpop.f32.mrb[0].mxu0
  %4419 = vdwg.mxu0
  %4420 = vrot.lane.b32.xlu0 %v219, 64
  %v4421 = vpop.permute.xlu0 %4420
  %4422 = vrot.lane.b32.xlu0 %v224, 64
  %v4423 = vpop.permute.xlu0 %4422
  %v4427 = vsel %vm3216, %v3931, 0
  %v4430 = vsel %vm3216, %v3932, 0
  %4432 = vmatprep.subr.mxu0 0.0
  %4433 = vmatpush1.msra.mxu0 %v4421
  %4434 = vmatprep.subr.mxu0 0.0
  %4435 = vmatpush1.msra.mxu0 %v4423
  %4436 = vmatprep.subr.mxu0 0.0
  %4437 = vmatpush1.msra.mxu0 0.0
  %4438 = vmatprep.subr.mxu0 0.0
  %4439 = vmatpush1.msra.mxu0 0.0
  %4440 = vmatprep.subr.mxu0 0.0
  %4441 = vmatpush1.msra.mxu0 0.0
  %4442 = vmatprep.subr.mxu0 0.0
  %4443 = vmatpush1.msra.mxu0 0.0
  %4444 = vmatprep.subr.mxu0 0.0
  %4445 = vmatpush1.msra.mxu0 0.0
  %4446 = vmatprep.subr.mxu0 0.0
  %4447 = vmatpush1.msra.mxu0 0.0
  %4448 = vmatprep.subr.mxu0 0.0
  %4449 = vmatpush1.msra.mxu0 0.0
  %4450 = vmatprep.subr.mxu0 0.0
  %4451 = vmatpush1.msra.mxu0 0.0
  %4452 = vmatprep.subr.mxu0 0.0
  %4453 = vmatpush1.msra.mxu0 0.0
  %4454 = vmatprep.subr.mxu0 0.0
  %4455 = vmatpush1.msra.mxu0 0.0
  %4456 = vmatprep.subr.mxu0 0.0
  %4457 = vmatpush1.msra.mxu0 0.0
  %4458 = vmatprep.subr.mxu0 0.0
  %4459 = vmatpush1.msra.mxu0 0.0
  %4460 = vmatprep.subr.mxu0 0.0
  %4461 = vmatpush1.msra.mxu0 0.0
  %4462 = vmatprep.subr.mxu0 0.0
  %4463 = vmatpush1.msra.mxu0 0.0
  %4464 = vmatprep.subr.mxu0 0.0
  %4465 = vmatpush1.msra.mxu0 0.0
  %4466 = vmatprep.subr.mxu0 0.0
  %4467 = vmatpush1.msra.mxu0 0.0
  %4468 = vmatprep.subr.mxu0 0.0
  %4469 = vmatpush1.msra.mxu0 0.0
  %4470 = vmatprep.subr.mxu0 0.0
  %4471 = vmatpush1.msra.mxu0 0.0
  %4472 = vmatprep.subr.mxu0 0.0
  %4473 = vmatpush1.msra.mxu0 0.0
  %4474 = vmatprep.subr.mxu0 0.0
  %4475 = vmatpush1.msra.mxu0 0.0
  %4476 = vmatprep.subr.mxu0 0.0
  %4477 = vmatpush1.msra.mxu0 0.0
  %4478 = vmatprep.subr.mxu0 0.0
  %4479 = vmatpush1.msra.mxu0 0.0
  %4480 = vmatprep.subr.mxu0 0.0
  %4481 = vmatpush1.msra.mxu0 0.0
  %4482 = vmatprep.subr.mxu0 0.0
  %4483 = vmatpush1.msra.mxu0 0.0
  %4484 = vmatprep.subr.mxu0 0.0
  %4485 = vmatpush1.msra.mxu0 0.0
  %4486 = vmatprep.subr.mxu0 0.0
  %4487 = vmatpush1.msra.mxu0 0.0
  %4488 = vmatprep.subr.mxu0 0.0
  %4489 = vmatpush1.msra.mxu0 0.0
  %4490 = vmatprep.subr.mxu0 0.0
  %4491 = vmatpush1.msra.mxu0 0.0
  %4492 = vmatprep.subr.mxu0 0.0
  %4493 = vmatpush1.msra.mxu0 0.0
  %4494 = vmatprep.subr.mxu0 0.0
  %4495 = vmatpush1.msra.mxu0 0.0
  %4496 = vmatprep.mubr.f32.mxu0 0.0
  %4497 = vmatmul.mubr.f32.gmra.mrb[0].mxu0 %v4427
  %v4498 = vpop.f32.mrb[0].mxu0
  %v4499 = vadd.f32 0.0, %v4498
  %v4500 = vpop.f32.mrb[0].mxu0
  %4501 = vmatprep.mubr.f32.mxu0 0.0
  %4502 = vmatmul.mubr.f32.gmra.mrb[0].mxu0 %v4430
  %v4503 = vpop.f32.mrb[0].mxu0
  %v4504 = vadd.f32 0.0, %v4503
  %v4505 = vpop.f32.mrb[0].mxu0
  %4506 = vdwg.mxu0
  %4507 = vrot.lane.b32.xlu0 %v229, 64
  %v4508 = vpop.permute.xlu0 %4507
  %4509 = vrot.lane.b32.xlu0 %v234, 64
  %v4510 = vpop.permute.xlu0 %4509
  %v4514 = vsel %vm3216, %v3933, 0
  %v4517 = vsel %vm3216, %v3934, 0
  %4519 = vmatprep.subr.mxu0 0.0
  %4520 = vmatpush1.msra.mxu0 %v4508
  %4521 = vmatprep.subr.mxu0 0.0
  %4522 = vmatpush1.msra.mxu0 %v4510
  %4523 = vmatprep.subr.mxu0 0.0
  %4524 = vmatpush1.msra.mxu0 0.0
  %4525 = vmatprep.subr.mxu0 0.0
  %4526 = vmatpush1.msra.mxu0 0.0
  %4527 = vmatprep.subr.mxu0 0.0
  %4528 = vmatpush1.msra.mxu0 0.0
  %4529 = vmatprep.subr.mxu0 0.0
  %4530 = vmatpush1.msra.mxu0 0.0
  %4531 = vmatprep.subr.mxu0 0.0
  %4532 = vmatpush1.msra.mxu0 0.0
  %4533 = vmatprep.subr.mxu0 0.0
  %4534 = vmatpush1.msra.mxu0 0.0
  %4535 = vmatprep.subr.mxu0 0.0
  %4536 = vmatpush1.msra.mxu0 0.0
  %4537 = vmatprep.subr.mxu0 0.0
  %4538 = vmatpush1.msra.mxu0 0.0
  %4539 = vmatprep.subr.mxu0 0.0
  %4540 = vmatpush1.msra.mxu0 0.0
  %4541 = vmatprep.subr.mxu0 0.0
  %4542 = vmatpush1.msra.mxu0 0.0
  %4543 = vmatprep.subr.mxu0 0.0
  %4544 = vmatpush1.msra.mxu0 0.0
  %4545 = vmatprep.subr.mxu0 0.0
  %4546 = vmatpush1.msra.mxu0 0.0
  %4547 = vmatprep.subr.mxu0 0.0
  %4548 = vmatpush1.msra.mxu0 0.0
  %4549 = vmatprep.subr.mxu0 0.0
  %4550 = vmatpush1.msra.mxu0 0.0
  %4551 = vmatprep.subr.mxu0 0.0
  %4552 = vmatpush1.msra.mxu0 0.0
  %4553 = vmatprep.subr.mxu0 0.0
  %4554 = vmatpush1.msra.mxu0 0.0
  %4555 = vmatprep.subr.mxu0 0.0
  %4556 = vmatpush1.msra.mxu0 0.0
  %4557 = vmatprep.subr.mxu0 0.0
  %4558 = vmatpush1.msra.mxu0 0.0
  %4559 = vmatprep.subr.mxu0 0.0
  %4560 = vmatpush1.msra.mxu0 0.0
  %4561 = vmatprep.subr.mxu0 0.0
  %4562 = vmatpush1.msra.mxu0 0.0
  %4563 = vmatprep.subr.mxu0 0.0
  %4564 = vmatpush1.msra.mxu0 0.0
  %4565 = vmatprep.subr.mxu0 0.0
  %4566 = vmatpush1.msra.mxu0 0.0
  %4567 = vmatprep.subr.mxu0 0.0
  %4568 = vmatpush1.msra.mxu0 0.0
  %4569 = vmatprep.subr.mxu0 0.0
  %4570 = vmatpush1.msra.mxu0 0.0
  %4571 = vmatprep.subr.mxu0 0.0
  %4572 = vmatpush1.msra.mxu0 0.0
  %4573 = vmatprep.subr.mxu0 0.0
  %4574 = vmatpush1.msra.mxu0 0.0
  %4575 = vmatprep.subr.mxu0 0.0
  %4576 = vmatpush1.msra.mxu0 0.0
  %4577 = vmatprep.subr.mxu0 0.0
  %4578 = vmatpush1.msra.mxu0 0.0
  %4579 = vmatprep.subr.mxu0 0.0
  %4580 = vmatpush1.msra.mxu0 0.0
  %4581 = vmatprep.subr.mxu0 0.0
  %4582 = vmatpush1.msra.mxu0 0.0
  %4583 = vmatprep.mubr.f32.mxu0 0.0
  %4584 = vmatmul.mubr.f32.gmra.mrb[0].mxu0 %v4514
  %v4585 = vpop.f32.mrb[0].mxu0
  %v4586 = vadd.f32 0.0, %v4585
  %v4587 = vpop.f32.mrb[0].mxu0
  %4588 = vmatprep.mubr.f32.mxu0 0.0
  %4589 = vmatmul.mubr.f32.gmra.mrb[0].mxu0 %v4517
  %v4590 = vpop.f32.mrb[0].mxu0
  %v4591 = vadd.f32 0.0, %v4590
  %v4592 = vpop.f32.mrb[0].mxu0
  %4593 = vdwg.mxu0
  %4594 = vrot.lane.b32.xlu0 %v239, 64
  %v4595 = vpop.permute.xlu0 %4594
  %4596 = vrot.lane.b32.xlu0 %v244, 64
  %v4597 = vpop.permute.xlu0 %4596
  %v4601 = vsel %vm3216, %v3935, 0
  %v4604 = vsel %vm3216, %v3936, 0
  %4606 = vmatprep.subr.mxu0 0.0
  %4607 = vmatpush1.msra.mxu0 %v4595
  %4608 = vmatprep.subr.mxu0 0.0
  %4609 = vmatpush1.msra.mxu0 %v4597
  %4610 = vmatprep.subr.mxu0 0.0
  %4611 = vmatpush1.msra.mxu0 0.0
  %4612 = vmatprep.subr.mxu0 0.0
  %4613 = vmatpush1.msra.mxu0 0.0
  %4614 = vmatprep.subr.mxu0 0.0
  %4615 = vmatpush1.msra.mxu0 0.0
  %4616 = vmatprep.subr.mxu0 0.0
  %4617 = vmatpush1.msra.mxu0 0.0
  %4618 = vmatprep.subr.mxu0 0.0
  %4619 = vmatpush1.msra.mxu0 0.0
  %4620 = vmatprep.subr.mxu0 0.0
  %4621 = vmatpush1.msra.mxu0 0.0
  %4622 = vmatprep.subr.mxu0 0.0
  %4623 = vmatpush1.msra.mxu0 0.0
  %4624 = vmatprep.subr.mxu0 0.0
  %4625 = vmatpush1.msra.mxu0 0.0
  %4626 = vmatprep.subr.mxu0 0.0
  %4627 = vmatpush1.msra.mxu0 0.0
  %4628 = vmatprep.subr.mxu0 0.0
  %4629 = vmatpush1.msra.mxu0 0.0
  %4630 = vmatprep.subr.mxu0 0.0
  %4631 = vmatpush1.msra.mxu0 0.0
  %4632 = vmatprep.subr.mxu0 0.0
  %4633 = vmatpush1.msra.mxu0 0.0
  %4634 = vmatprep.subr.mxu0 0.0
  %4635 = vmatpush1.msra.mxu0 0.0
  %4636 = vmatprep.subr.mxu0 0.0
  %4637 = vmatpush1.msra.mxu0 0.0
  %4638 = vmatprep.subr.mxu0 0.0
  %4639 = vmatpush1.msra.mxu0 0.0
  %4640 = vmatprep.subr.mxu0 0.0
  %4641 = vmatpush1.msra.mxu0 0.0
  %4642 = vmatprep.subr.mxu0 0.0
  %4643 = vmatpush1.msra.mxu0 0.0
  %4644 = vmatprep.subr.mxu0 0.0
  %4645 = vmatpush1.msra.mxu0 0.0
  %4646 = vmatprep.subr.mxu0 0.0
  %4647 = vmatpush1.msra.mxu0 0.0
  %4648 = vmatprep.subr.mxu0 0.0
  %4649 = vmatpush1.msra.mxu0 0.0
  %4650 = vmatprep.subr.mxu0 0.0
  %4651 = vmatpush1.msra.mxu0 0.0
  %4652 = vmatprep.subr.mxu0 0.0
  %4653 = vmatpush1.msra.mxu0 0.0
  %4654 = vmatprep.subr.mxu0 0.0
  %4655 = vmatpush1.msra.mxu0 0.0
  %4656 = vmatprep.subr.mxu0 0.0
  %4657 = vmatpush1.msra.mxu0 0.0
  %4658 = vmatprep.subr.mxu0 0.0
  %4659 = vmatpush1.msra.mxu0 0.0
  %4660 = vmatprep.subr.mxu0 0.0
  %4661 = vmatpush1.msra.mxu0 0.0
  %4662 = vmatprep.subr.mxu0 0.0
  %4663 = vmatpush1.msra.mxu0 0.0
  %4664 = vmatprep.subr.mxu0 0.0
  %4665 = vmatpush1.msra.mxu0 0.0
  %4666 = vmatprep.subr.mxu0 0.0
  %4667 = vmatpush1.msra.mxu0 0.0
  %4668 = vmatprep.subr.mxu0 0.0
  %4669 = vmatpush1.msra.mxu0 0.0
  %4670 = vmatprep.mubr.f32.mxu0 0.0
  %4671 = vmatmul.mubr.f32.gmra.mrb[0].mxu0 %v4601
  %v4672 = vpop.f32.mrb[0].mxu0
  %v4673 = vadd.f32 0.0, %v4672
  %v4674 = vpop.f32.mrb[0].mxu0
  %4675 = vmatprep.mubr.f32.mxu0 0.0
  %4676 = vmatmul.mubr.f32.gmra.mrb[0].mxu0 %v4604
  %v4677 = vpop.f32.mrb[0].mxu0
  %v4678 = vadd.f32 0.0, %v4677
  %v4679 = vpop.f32.mrb[0].mxu0
  %4680 = vdwg.mxu0
  %4681 = vrot.lane.b32.xlu0 %v264, 64
  %v4682 = vpop.permute.xlu0 %4681
  %4683 = vrot.lane.b32.xlu0 %v266, 64
  %v4684 = vpop.permute.xlu0 %4683
  %v4688 = vsel %vm3216, %v3937, 0
  %v4691 = vsel %vm3216, %v3938, 0
  %4693 = vmatprep.subr.mxu0 0.0
  %4694 = vmatpush1.msra.mxu0 %v4682
  %4695 = vmatprep.subr.mxu0 0.0
  %4696 = vmatpush1.msra.mxu0 %v4684
  %4697 = vmatprep.subr.mxu0 0.0
  %4698 = vmatpush1.msra.mxu0 0.0
  %4699 = vmatprep.subr.mxu0 0.0
  %4700 = vmatpush1.msra.mxu0 0.0
  %4701 = vmatprep.subr.mxu0 0.0
  %4702 = vmatpush1.msra.mxu0 0.0
  %4703 = vmatprep.subr.mxu0 0.0
  %4704 = vmatpush1.msra.mxu0 0.0
  %4705 = vmatprep.subr.mxu0 0.0
  %4706 = vmatpush1.msra.mxu0 0.0
  %4707 = vmatprep.subr.mxu0 0.0
  %4708 = vmatpush1.msra.mxu0 0.0
  %4709 = vmatprep.subr.mxu0 0.0
  %4710 = vmatpush1.msra.mxu0 0.0
  %4711 = vmatprep.subr.mxu0 0.0
  %4712 = vmatpush1.msra.mxu0 0.0
  %4713 = vmatprep.subr.mxu0 0.0
  %4714 = vmatpush1.msra.mxu0 0.0
  %4715 = vmatprep.subr.mxu0 0.0
  %4716 = vmatpush1.msra.mxu0 0.0
  %4717 = vmatprep.subr.mxu0 0.0
  %4718 = vmatpush1.msra.mxu0 0.0
  %4719 = vmatprep.subr.mxu0 0.0
  %4720 = vmatpush1.msra.mxu0 0.0
  %4721 = vmatprep.subr.mxu0 0.0
  %4722 = vmatpush1.msra.mxu0 0.0
  %4723 = vmatprep.subr.mxu0 0.0
  %4724 = vmatpush1.msra.mxu0 0.0
  %4725 = vmatprep.subr.mxu0 0.0
  %4726 = vmatpush1.msra.mxu0 0.0
  %4727 = vmatprep.subr.mxu0 0.0
  %4728 = vmatpush1.msra.mxu0 0.0
  %4729 = vmatprep.subr.mxu0 0.0
  %4730 = vmatpush1.msra.mxu0 0.0
  %4731 = vmatprep.subr.mxu0 0.0
  %4732 = vmatpush1.msra.mxu0 0.0
  %4733 = vmatprep.subr.mxu0 0.0
  %4734 = vmatpush1.msra.mxu0 0.0
  %4735 = vmatprep.subr.mxu0 0.0
  %4736 = vmatpush1.msra.mxu0 0.0
  %4737 = vmatprep.subr.mxu0 0.0
  %4738 = vmatpush1.msra.mxu0 0.0
  %4739 = vmatprep.subr.mxu0 0.0
  %4740 = vmatpush1.msra.mxu0 0.0
  %4741 = vmatprep.subr.mxu0 0.0
  %4742 = vmatpush1.msra.mxu0 0.0
  %4743 = vmatprep.subr.mxu0 0.0
  %4744 = vmatpush1.msra.mxu0 0.0
  %4745 = vmatprep.subr.mxu0 0.0
  %4746 = vmatpush1.msra.mxu0 0.0
  %4747 = vmatprep.subr.mxu0 0.0
  %4748 = vmatpush1.msra.mxu0 0.0
  %4749 = vmatprep.subr.mxu0 0.0
  %4750 = vmatpush1.msra.mxu0 0.0
  %4751 = vmatprep.subr.mxu0 0.0
  %4752 = vmatpush1.msra.mxu0 0.0
  %4753 = vmatprep.subr.mxu0 0.0
  %4754 = vmatpush1.msra.mxu0 0.0
  %4755 = vmatprep.subr.mxu0 0.0
  %4756 = vmatpush1.msra.mxu0 0.0
  %4757 = vmatprep.mubr.f32.mxu0 0.0
  %4758 = vmatmul.mubr.f32.gmra.mrb[0].mxu0 %v4688
  %v4759 = vpop.f32.mrb[0].mxu0
  %v4760 = vadd.f32 0.0, %v4759
  %v4761 = vpop.f32.mrb[0].mxu0
  %4762 = vmatprep.mubr.f32.mxu0 0.0
  %4763 = vmatmul.mubr.f32.gmra.mrb[0].mxu0 %v4691
  %v4764 = vpop.f32.mrb[0].mxu0
  %v4765 = vadd.f32 0.0, %v4764
  %v4766 = vpop.f32.mrb[0].mxu0
  %4767 = vdwg.mxu0
  %4768 = vrot.lane.b32.xlu0 %v268, 64
  %v4769 = vpop.permute.xlu0 %4768
  %4770 = vrot.lane.b32.xlu0 %v270, 64
  %v4771 = vpop.permute.xlu0 %4770
  %v4775 = vsel %vm3216, %v3939, 0
  %v4778 = vsel %vm3216, %v3940, 0
  %4780 = vmatprep.subr.mxu0 0.0
  %4781 = vmatpush1.msra.mxu0 %v4769
  %4782 = vmatprep.subr.mxu0 0.0
  %4783 = vmatpush1.msra.mxu0 %v4771
  %4784 = vmatprep.subr.mxu0 0.0
  %4785 = vmatpush1.msra.mxu0 0.0
  %4786 = vmatprep.subr.mxu0 0.0
  %4787 = vmatpush1.msra.mxu0 0.0
  %4788 = vmatprep.subr.mxu0 0.0
  %4789 = vmatpush1.msra.mxu0 0.0
  %4790 = vmatprep.subr.mxu0 0.0
  %4791 = vmatpush1.msra.mxu0 0.0
  %4792 = vmatprep.subr.mxu0 0.0
  %4793 = vmatpush1.msra.mxu0 0.0
  %4794 = vmatprep.subr.mxu0 0.0
  %4795 = vmatpush1.msra.mxu0 0.0
  %4796 = vmatprep.subr.mxu0 0.0
  %4797 = vmatpush1.msra.mxu0 0.0
  %4798 = vmatprep.subr.mxu0 0.0
  %4799 = vmatpush1.msra.mxu0 0.0
  %4800 = vmatprep.subr.mxu0 0.0
  %4801 = vmatpush1.msra.mxu0 0.0
  %4802 = vmatprep.subr.mxu0 0.0
  %4803 = vmatpush1.msra.mxu0 0.0
  %4804 = vmatprep.subr.mxu0 0.0
  %4805 = vmatpush1.msra.mxu0 0.0
  %4806 = vmatprep.subr.mxu0 0.0
  %4807 = vmatpush1.msra.mxu0 0.0
  %4808 = vmatprep.subr.mxu0 0.0
  %4809 = vmatpush1.msra.mxu0 0.0
  %4810 = vmatprep.subr.mxu0 0.0
  %4811 = vmatpush1.msra.mxu0 0.0
  %4812 = vmatprep.subr.mxu0 0.0
  %4813 = vmatpush1.msra.mxu0 0.0
  %4814 = vmatprep.subr.mxu0 0.0
  %4815 = vmatpush1.msra.mxu0 0.0
  %4816 = vmatprep.subr.mxu0 0.0
  %4817 = vmatpush1.msra.mxu0 0.0
  %4818 = vmatprep.subr.mxu0 0.0
  %4819 = vmatpush1.msra.mxu0 0.0
  %4820 = vmatprep.subr.mxu0 0.0
  %4821 = vmatpush1.msra.mxu0 0.0
  %4822 = vmatprep.subr.mxu0 0.0
  %4823 = vmatpush1.msra.mxu0 0.0
  %4824 = vmatprep.subr.mxu0 0.0
  %4825 = vmatpush1.msra.mxu0 0.0
  %4826 = vmatprep.subr.mxu0 0.0
  %4827 = vmatpush1.msra.mxu0 0.0
  %4828 = vmatprep.subr.mxu0 0.0
  %4829 = vmatpush1.msra.mxu0 0.0
  %4830 = vmatprep.subr.mxu0 0.0
  %4831 = vmatpush1.msra.mxu0 0.0
  %4832 = vmatprep.subr.mxu0 0.0
  %4833 = vmatpush1.msra.mxu0 0.0
  %4834 = vmatprep.subr.mxu0 0.0
  %4835 = vmatpush1.msra.mxu0 0.0
  %4836 = vmatprep.subr.mxu0 0.0
  %4837 = vmatpush1.msra.mxu0 0.0
  %4838 = vmatprep.subr.mxu0 0.0
  %4839 = vmatpush1.msra.mxu0 0.0
  %4840 = vmatprep.subr.mxu0 0.0
  %4841 = vmatpush1.msra.mxu0 0.0
  %4842 = vmatprep.subr.mxu0 0.0
  %4843 = vmatpush1.msra.mxu0 0.0
  %4844 = vmatprep.mubr.f32.mxu0 0.0
  %4845 = vmatmul.mubr.f32.gmra.mrb[0].mxu0 %v4775
  %v4846 = vpop.f32.mrb[0].mxu0
  %v4847 = vadd.f32 0.0, %v4846
  %v4848 = vpop.f32.mrb[0].mxu0
  %4849 = vmatprep.mubr.f32.mxu0 0.0
  %4850 = vmatmul.mubr.f32.gmra.mrb[0].mxu0 %v4778
  %v4851 = vpop.f32.mrb[0].mxu0
  %v4852 = vadd.f32 0.0, %v4851
  %v4853 = vpop.f32.mrb[0].mxu0
  %4854 = vdwg.mxu0
  %4855 = vrot.lane.b32.xlu0 %v272, 64
  %v4856 = vpop.permute.xlu0 %4855
  %4857 = vrot.lane.b32.xlu0 %v274, 64
  %v4858 = vpop.permute.xlu0 %4857
  %v4862 = vsel %vm3216, %v3941, 0
  %v4865 = vsel %vm3216, %v3942, 0
  %4867 = vmatprep.subr.mxu0 0.0
  %4868 = vmatpush1.msra.mxu0 %v4856
  %4869 = vmatprep.subr.mxu0 0.0
  %4870 = vmatpush1.msra.mxu0 %v4858
  %4871 = vmatprep.subr.mxu0 0.0
  %4872 = vmatpush1.msra.mxu0 0.0
  %4873 = vmatprep.subr.mxu0 0.0
  %4874 = vmatpush1.msra.mxu0 0.0
  %4875 = vmatprep.subr.mxu0 0.0
  %4876 = vmatpush1.msra.mxu0 0.0
  %4877 = vmatprep.subr.mxu0 0.0
  %4878 = vmatpush1.msra.mxu0 0.0
  %4879 = vmatprep.subr.mxu0 0.0
  %4880 = vmatpush1.msra.mxu0 0.0
  %4881 = vmatprep.subr.mxu0 0.0
  %4882 = vmatpush1.msra.mxu0 0.0
  %4883 = vmatprep.subr.mxu0 0.0
  %4884 = vmatpush1.msra.mxu0 0.0
  %4885 = vmatprep.subr.mxu0 0.0
  %4886 = vmatpush1.msra.mxu0 0.0
  %4887 = vmatprep.subr.mxu0 0.0
  %4888 = vmatpush1.msra.mxu0 0.0
  %4889 = vmatprep.subr.mxu0 0.0
  %4890 = vmatpush1.msra.mxu0 0.0
  %4891 = vmatprep.subr.mxu0 0.0
  %4892 = vmatpush1.msra.mxu0 0.0
  %4893 = vmatprep.subr.mxu0 0.0
  %4894 = vmatpush1.msra.mxu0 0.0
  %4895 = vmatprep.subr.mxu0 0.0
  %4896 = vmatpush1.msra.mxu0 0.0
  %4897 = vmatprep.subr.mxu0 0.0
  %4898 = vmatpush1.msra.mxu0 0.0
  %4899 = vmatprep.subr.mxu0 0.0
  %4900 = vmatpush1.msra.mxu0 0.0
  %4901 = vmatprep.subr.mxu0 0.0
  %4902 = vmatpush1.msra.mxu0 0.0
  %4903 = vmatprep.subr.mxu0 0.0
  %4904 = vmatpush1.msra.mxu0 0.0
  %4905 = vmatprep.subr.mxu0 0.0
  %4906 = vmatpush1.msra.mxu0 0.0
  %4907 = vmatprep.subr.mxu0 0.0
  %4908 = vmatpush1.msra.mxu0 0.0
  %4909 = vmatprep.subr.mxu0 0.0
  %4910 = vmatpush1.msra.mxu0 0.0
  %4911 = vmatprep.subr.mxu0 0.0
  %4912 = vmatpush1.msra.mxu0 0.0
  %4913 = vmatprep.subr.mxu0 0.0
  %4914 = vmatpush1.msra.mxu0 0.0
  %4915 = vmatprep.subr.mxu0 0.0
  %4916 = vmatpush1.msra.mxu0 0.0
  %4917 = vmatprep.subr.mxu0 0.0
  %4918 = vmatpush1.msra.mxu0 0.0
  %4919 = vmatprep.subr.mxu0 0.0
  %4920 = vmatpush1.msra.mxu0 0.0
  %4921 = vmatprep.subr.mxu0 0.0
  %4922 = vmatpush1.msra.mxu0 0.0
  %4923 = vmatprep.subr.mxu0 0.0
  %4924 = vmatpush1.msra.mxu0 0.0
  %4925 = vmatprep.subr.mxu0 0.0
  %4926 = vmatpush1.msra.mxu0 0.0
  %4927 = vmatprep.subr.mxu0 0.0
  %4928 = vmatpush1.msra.mxu0 0.0
  %4929 = vmatprep.subr.mxu0 0.0
  %4930 = vmatpush1.msra.mxu0 0.0
  %4931 = vmatprep.mubr.f32.mxu0 0.0
  %4932 = vmatmul.mubr.f32.gmra.mrb[0].mxu0 %v4862
  %v4933 = vpop.f32.mrb[0].mxu0
  %v4934 = vadd.f32 0.0, %v4933
  %v4935 = vpop.f32.mrb[0].mxu0
  %4936 = vmatprep.mubr.f32.mxu0 0.0
  %4937 = vmatmul.mubr.f32.gmra.mrb[0].mxu0 %v4865
  %v4938 = vpop.f32.mrb[0].mxu0
  %v4939 = vadd.f32 0.0, %v4938
  %v4940 = vpop.f32.mrb[0].mxu0
  %4941 = vdwg.mxu0
  %4942 = vrot.lane.b32.xlu0 %v276, 64
  %v4943 = vpop.permute.xlu0 %4942
  %4944 = vrot.lane.b32.xlu0 %v278, 64
  %v4945 = vpop.permute.xlu0 %4944
  %v4949 = vsel %vm3216, %v3943, 0
  %v4952 = vsel %vm3216, %v3944, 0
  %4954 = vmatprep.subr.mxu0 0.0
  %4955 = vmatpush1.msra.mxu0 %v4943
  %4956 = vmatprep.subr.mxu0 0.0
  %4957 = vmatpush1.msra.mxu0 %v4945
  %4958 = vmatprep.subr.mxu0 0.0
  %4959 = vmatpush1.msra.mxu0 0.0
  %4960 = vmatprep.subr.mxu0 0.0
  %4961 = vmatpush1.msra.mxu0 0.0
  %4962 = vmatprep.subr.mxu0 0.0
  %4963 = vmatpush1.msra.mxu0 0.0
  %4964 = vmatprep.subr.mxu0 0.0
  %4965 = vmatpush1.msra.mxu0 0.0
  %4966 = vmatprep.subr.mxu0 0.0
  %4967 = vmatpush1.msra.mxu0 0.0
  %4968 = vmatprep.subr.mxu0 0.0
  %4969 = vmatpush1.msra.mxu0 0.0
  %4970 = vmatprep.subr.mxu0 0.0
  %4971 = vmatpush1.msra.mxu0 0.0
  %4972 = vmatprep.subr.mxu0 0.0
  %4973 = vmatpush1.msra.mxu0 0.0
  %4974 = vmatprep.subr.mxu0 0.0
  %4975 = vmatpush1.msra.mxu0 0.0
  %4976 = vmatprep.subr.mxu0 0.0
  %4977 = vmatpush1.msra.mxu0 0.0
  %4978 = vmatprep.subr.mxu0 0.0
  %4979 = vmatpush1.msra.mxu0 0.0
  %4980 = vmatprep.subr.mxu0 0.0
  %4981 = vmatpush1.msra.mxu0 0.0
  %4982 = vmatprep.subr.mxu0 0.0
  %4983 = vmatpush1.msra.mxu0 0.0
  %4984 = vmatprep.subr.mxu0 0.0
  %4985 = vmatpush1.msra.mxu0 0.0
  %4986 = vmatprep.subr.mxu0 0.0
  %4987 = vmatpush1.msra.mxu0 0.0
  %4988 = vmatprep.subr.mxu0 0.0
  %4989 = vmatpush1.msra.mxu0 0.0
  %4990 = vmatprep.subr.mxu0 0.0
  %4991 = vmatpush1.msra.mxu0 0.0
  %4992 = vmatprep.subr.mxu0 0.0
  %4993 = vmatpush1.msra.mxu0 0.0
  %4994 = vmatprep.subr.mxu0 0.0
  %4995 = vmatpush1.msra.mxu0 0.0
  %4996 = vmatprep.subr.mxu0 0.0
  %4997 = vmatpush1.msra.mxu0 0.0
  %4998 = vmatprep.subr.mxu0 0.0
  %4999 = vmatpush1.msra.mxu0 0.0
  %5000 = vmatprep.subr.mxu0 0.0
  %5001 = vmatpush1.msra.mxu0 0.0
  %5002 = vmatprep.subr.mxu0 0.0
  %5003 = vmatpush1.msra.mxu0 0.0
  %5004 = vmatprep.subr.mxu0 0.0
  %5005 = vmatpush1.msra.mxu0 0.0
  %5006 = vmatprep.subr.mxu0 0.0
  %5007 = vmatpush1.msra.mxu0 0.0
  %5008 = vmatprep.subr.mxu0 0.0
  %5009 = vmatpush1.msra.mxu0 0.0
  %5010 = vmatprep.subr.mxu0 0.0
  %5011 = vmatpush1.msra.mxu0 0.0
  %5012 = vmatprep.subr.mxu0 0.0
  %5013 = vmatpush1.msra.mxu0 0.0
  %5014 = vmatprep.subr.mxu0 0.0
  %5015 = vmatpush1.msra.mxu0 0.0
  %5016 = vmatprep.subr.mxu0 0.0
  %5017 = vmatpush1.msra.mxu0 0.0
  %5018 = vmatprep.mubr.f32.mxu0 0.0
  %5019 = vmatmul.mubr.f32.gmra.mrb[0].mxu0 %v4949
  %v5020 = vpop.f32.mrb[0].mxu0
  %v5021 = vadd.f32 0.0, %v5020
  %v5022 = vpop.f32.mrb[0].mxu0
  %5023 = vmatprep.mubr.f32.mxu0 0.0
  %5024 = vmatmul.mubr.f32.gmra.mrb[0].mxu0 %v4952
  %v5025 = vpop.f32.mrb[0].mxu0
  %v5026 = vadd.f32 0.0, %v5025
  %v5027 = vpop.f32.mrb[0].mxu0
  %5028 = vdwg.mxu0
  %5029 = vrot.lane.b32.xlu0 %v280, 64
  %v5030 = vpop.permute.xlu0 %5029
  %5031 = vrot.lane.b32.xlu0 %v282, 64
  %v5032 = vpop.permute.xlu0 %5031
  %v5036 = vsel %vm3216, %v3945, 0
  %v5039 = vsel %vm3216, %v3946, 0
  %5041 = vmatprep.subr.mxu0 0.0
  %5042 = vmatpush1.msra.mxu0 %v5030
  %5043 = vmatprep.subr.mxu0 0.0
  %5044 = vmatpush1.msra.mxu0 %v5032
  %5045 = vmatprep.subr.mxu0 0.0
  %5046 = vmatpush1.msra.mxu0 0.0
  %5047 = vmatprep.subr.mxu0 0.0
  %5048 = vmatpush1.msra.mxu0 0.0
  %5049 = vmatprep.subr.mxu0 0.0
  %5050 = vmatpush1.msra.mxu0 0.0
  %5051 = vmatprep.subr.mxu0 0.0
  %5052 = vmatpush1.msra.mxu0 0.0
  %5053 = vmatprep.subr.mxu0 0.0
  %5054 = vmatpush1.msra.mxu0 0.0
  %5055 = vmatprep.subr.mxu0 0.0
  %5056 = vmatpush1.msra.mxu0 0.0
  %5057 = vmatprep.subr.mxu0 0.0
  %5058 = vmatpush1.msra.mxu0 0.0
  %5059 = vmatprep.subr.mxu0 0.0
  %5060 = vmatpush1.msra.mxu0 0.0
  %5061 = vmatprep.subr.mxu0 0.0
  %5062 = vmatpush1.msra.mxu0 0.0
  %5063 = vmatprep.subr.mxu0 0.0
  %5064 = vmatpush1.msra.mxu0 0.0
  %5065 = vmatprep.subr.mxu0 0.0
  %5066 = vmatpush1.msra.mxu0 0.0
  %5067 = vmatprep.subr.mxu0 0.0
  %5068 = vmatpush1.msra.mxu0 0.0
  %5069 = vmatprep.subr.mxu0 0.0
  %5070 = vmatpush1.msra.mxu0 0.0
  %5071 = vmatprep.subr.mxu0 0.0
  %5072 = vmatpush1.msra.mxu0 0.0
  %5073 = vmatprep.subr.mxu0 0.0
  %5074 = vmatpush1.msra.mxu0 0.0
  %5075 = vmatprep.subr.mxu0 0.0
  %5076 = vmatpush1.msra.mxu0 0.0
  %5077 = vmatprep.subr.mxu0 0.0
  %5078 = vmatpush1.msra.mxu0 0.0
  %5079 = vmatprep.subr.mxu0 0.0
  %5080 = vmatpush1.msra.mxu0 0.0
  %5081 = vmatprep.subr.mxu0 0.0
  %5082 = vmatpush1.msra.mxu0 0.0
  %5083 = vmatprep.subr.mxu0 0.0
  %5084 = vmatpush1.msra.mxu0 0.0
  %5085 = vmatprep.subr.mxu0 0.0
  %5086 = vmatpush1.msra.mxu0 0.0
  %5087 = vmatprep.subr.mxu0 0.0
  %5088 = vmatpush1.msra.mxu0 0.0
  %5089 = vmatprep.subr.mxu0 0.0
  %5090 = vmatpush1.msra.mxu0 0.0
  %5091 = vmatprep.subr.mxu0 0.0
  %5092 = vmatpush1.msra.mxu0 0.0
  %5093 = vmatprep.subr.mxu0 0.0
  %5094 = vmatpush1.msra.mxu0 0.0
  %5095 = vmatprep.subr.mxu0 0.0
  %5096 = vmatpush1.msra.mxu0 0.0
  %5097 = vmatprep.subr.mxu0 0.0
  %5098 = vmatpush1.msra.mxu0 0.0
  %5099 = vmatprep.subr.mxu0 0.0
  %5100 = vmatpush1.msra.mxu0 0.0
  %5101 = vmatprep.subr.mxu0 0.0
  %5102 = vmatpush1.msra.mxu0 0.0
  %5103 = vmatprep.subr.mxu0 0.0
  %5104 = vmatpush1.msra.mxu0 0.0
  %5105 = vmatprep.mubr.f32.mxu0 0.0
  %5106 = vmatmul.mubr.f32.gmra.mrb[0].mxu0 %v5036
  %v5107 = vpop.f32.mrb[0].mxu0
  %v5108 = vadd.f32 0.0, %v5107
  %v5109 = vpop.f32.mrb[0].mxu0
  %5110 = vmatprep.mubr.f32.mxu0 0.0
  %5111 = vmatmul.mubr.f32.gmra.mrb[0].mxu0 %v5039
  %v5112 = vpop.f32.mrb[0].mxu0
  %v5113 = vadd.f32 0.0, %v5112
  %v5114 = vpop.f32.mrb[0].mxu0
  %5115 = vdwg.mxu0
  %5116 = vrot.lane.b32.xlu0 %v284, 64
  %v5117 = vpop.permute.xlu0 %5116
  %5118 = vrot.lane.b32.xlu0 %v286, 64
  %v5119 = vpop.permute.xlu0 %5118
  %v5123 = vsel %vm3216, %v3947, 0
  %v5126 = vsel %vm3216, %v3948, 0
  %5128 = vmatprep.subr.mxu0 0.0
  %5129 = vmatpush1.msra.mxu0 %v5117
  %5130 = vmatprep.subr.mxu0 0.0
  %5131 = vmatpush1.msra.mxu0 %v5119
  %5132 = vmatprep.subr.mxu0 0.0
  %5133 = vmatpush1.msra.mxu0 0.0
  %5134 = vmatprep.subr.mxu0 0.0
  %5135 = vmatpush1.msra.mxu0 0.0
  %5136 = vmatprep.subr.mxu0 0.0
  %5137 = vmatpush1.msra.mxu0 0.0
  %5138 = vmatprep.subr.mxu0 0.0
  %5139 = vmatpush1.msra.mxu0 0.0
  %5140 = vmatprep.subr.mxu0 0.0
  %5141 = vmatpush1.msra.mxu0 0.0
  %5142 = vmatprep.subr.mxu0 0.0
  %5143 = vmatpush1.msra.mxu0 0.0
  %5144 = vmatprep.subr.mxu0 0.0
  %5145 = vmatpush1.msra.mxu0 0.0
  %5146 = vmatprep.subr.mxu0 0.0
  %5147 = vmatpush1.msra.mxu0 0.0
  %5148 = vmatprep.subr.mxu0 0.0
  %5149 = vmatpush1.msra.mxu0 0.0
  %5150 = vmatprep.subr.mxu0 0.0
  %5151 = vmatpush1.msra.mxu0 0.0
  %5152 = vmatprep.subr.mxu0 0.0
  %5153 = vmatpush1.msra.mxu0 0.0
  %5154 = vmatprep.subr.mxu0 0.0
  %5155 = vmatpush1.msra.mxu0 0.0
  %5156 = vmatprep.subr.mxu0 0.0
  %5157 = vmatpush1.msra.mxu0 0.0
  %5158 = vmatprep.subr.mxu0 0.0
  %5159 = vmatpush1.msra.mxu0 0.0
  %5160 = vmatprep.subr.mxu0 0.0
  %5161 = vmatpush1.msra.mxu0 0.0
  %5162 = vmatprep.subr.mxu0 0.0
  %5163 = vmatpush1.msra.mxu0 0.0
  %5164 = vmatprep.subr.mxu0 0.0
  %5165 = vmatpush1.msra.mxu0 0.0
  %5166 = vmatprep.subr.mxu0 0.0
  %5167 = vmatpush1.msra.mxu0 0.0
  %5168 = vmatprep.subr.mxu0 0.0
  %5169 = vmatpush1.msra.mxu0 0.0
  %5170 = vmatprep.subr.mxu0 0.0
  %5171 = vmatpush1.msra.mxu0 0.0
  %5172 = vmatprep.subr.mxu0 0.0
  %5173 = vmatpush1.msra.mxu0 0.0
  %5174 = vmatprep.subr.mxu0 0.0
  %5175 = vmatpush1.msra.mxu0 0.0
  %5176 = vmatprep.subr.mxu0 0.0
  %5177 = vmatpush1.msra.mxu0 0.0
  %5178 = vmatprep.subr.mxu0 0.0
  %5179 = vmatpush1.msra.mxu0 0.0
  %5180 = vmatprep.subr.mxu0 0.0
  %5181 = vmatpush1.msra.mxu0 0.0
  %5182 = vmatprep.subr.mxu0 0.0
  %5183 = vmatpush1.msra.mxu0 0.0
  %5184 = vmatprep.subr.mxu0 0.0
  %5185 = vmatpush1.msra.mxu0 0.0
  %5186 = vmatprep.subr.mxu0 0.0
  %5187 = vmatpush1.msra.mxu0 0.0
  %5188 = vmatprep.subr.mxu0 0.0
  %5189 = vmatpush1.msra.mxu0 0.0
  %5190 = vmatprep.subr.mxu0 0.0
  %5191 = vmatpush1.msra.mxu0 0.0
  %5192 = vmatprep.mubr.f32.mxu0 0.0
  %5193 = vmatmul.mubr.f32.gmra.mrb[0].mxu0 %v5123
  %v5194 = vpop.f32.mrb[0].mxu0
  %v5195 = vadd.f32 0.0, %v5194
  %v5196 = vpop.f32.mrb[0].mxu0
  %5197 = vmatprep.mubr.f32.mxu0 0.0
  %5198 = vmatmul.mubr.f32.gmra.mrb[0].mxu0 %v5126
  %v5199 = vpop.f32.mrb[0].mxu0
  %v5200 = vadd.f32 0.0, %v5199
  %v5201 = vpop.f32.mrb[0].mxu0
  %5202 = vdwg.mxu0
  %5203 = vrot.lane.b32.xlu0 %v288, 64
  %v5204 = vpop.permute.xlu0 %5203
  %5205 = vrot.lane.b32.xlu0 %v290, 64
  %v5206 = vpop.permute.xlu0 %5205
  %v5210 = vsel %vm3216, %v3949, 0
  %v5213 = vsel %vm3216, %v3950, 0
  %5215 = vmatprep.subr.mxu0 0.0
  %5216 = vmatpush1.msra.mxu0 %v5204
  %5217 = vmatprep.subr.mxu0 0.0
  %5218 = vmatpush1.msra.mxu0 %v5206
  %5219 = vmatprep.subr.mxu0 0.0
  %5220 = vmatpush1.msra.mxu0 0.0
  %5221 = vmatprep.subr.mxu0 0.0
  %5222 = vmatpush1.msra.mxu0 0.0
  %5223 = vmatprep.subr.mxu0 0.0
  %5224 = vmatpush1.msra.mxu0 0.0
  %5225 = vmatprep.subr.mxu0 0.0
  %5226 = vmatpush1.msra.mxu0 0.0
  %5227 = vmatprep.subr.mxu0 0.0
  %5228 = vmatpush1.msra.mxu0 0.0
  %5229 = vmatprep.subr.mxu0 0.0
  %5230 = vmatpush1.msra.mxu0 0.0
  %5231 = vmatprep.subr.mxu0 0.0
  %5232 = vmatpush1.msra.mxu0 0.0
  %5233 = vmatprep.subr.mxu0 0.0
  %5234 = vmatpush1.msra.mxu0 0.0
  %5235 = vmatprep.subr.mxu0 0.0
  %5236 = vmatpush1.msra.mxu0 0.0
  %5237 = vmatprep.subr.mxu0 0.0
  %5238 = vmatpush1.msra.mxu0 0.0
  %5239 = vmatprep.subr.mxu0 0.0
  %5240 = vmatpush1.msra.mxu0 0.0
  %5241 = vmatprep.subr.mxu0 0.0
  %5242 = vmatpush1.msra.mxu0 0.0
  %5243 = vmatprep.subr.mxu0 0.0
  %5244 = vmatpush1.msra.mxu0 0.0
  %5245 = vmatprep.subr.mxu0 0.0
  %5246 = vmatpush1.msra.mxu0 0.0
  %5247 = vmatprep.subr.mxu0 0.0
  %5248 = vmatpush1.msra.mxu0 0.0
  %5249 = vmatprep.subr.mxu0 0.0
  %5250 = vmatpush1.msra.mxu0 0.0
  %5251 = vmatprep.subr.mxu0 0.0
  %5252 = vmatpush1.msra.mxu0 0.0
  %5253 = vmatprep.subr.mxu0 0.0
  %5254 = vmatpush1.msra.mxu0 0.0
  %5255 = vmatprep.subr.mxu0 0.0
  %5256 = vmatpush1.msra.mxu0 0.0
  %5257 = vmatprep.subr.mxu0 0.0
  %5258 = vmatpush1.msra.mxu0 0.0
  %5259 = vmatprep.subr.mxu0 0.0
  %5260 = vmatpush1.msra.mxu0 0.0
  %5261 = vmatprep.subr.mxu0 0.0
  %5262 = vmatpush1.msra.mxu0 0.0
  %5263 = vmatprep.subr.mxu0 0.0
  %5264 = vmatpush1.msra.mxu0 0.0
  %5265 = vmatprep.subr.mxu0 0.0
  %5266 = vmatpush1.msra.mxu0 0.0
  %5267 = vmatprep.subr.mxu0 0.0
  %5268 = vmatpush1.msra.mxu0 0.0
  %5269 = vmatprep.subr.mxu0 0.0
  %5270 = vmatpush1.msra.mxu0 0.0
  %5271 = vmatprep.subr.mxu0 0.0
  %5272 = vmatpush1.msra.mxu0 0.0
  %5273 = vmatprep.subr.mxu0 0.0
  %5274 = vmatpush1.msra.mxu0 0.0
  %5275 = vmatprep.subr.mxu0 0.0
  %5276 = vmatpush1.msra.mxu0 0.0
  %5277 = vmatprep.subr.mxu0 0.0
  %5278 = vmatpush1.msra.mxu0 0.0
  %5279 = vmatprep.mubr.f32.mxu0 0.0
  %5280 = vmatmul.mubr.f32.gmra.mrb[0].mxu0 %v5210
  %v5281 = vpop.f32.mrb[0].mxu0
  %v5282 = vadd.f32 0.0, %v5281
  %v5283 = vpop.f32.mrb[0].mxu0
  %5284 = vmatprep.mubr.f32.mxu0 0.0
  %5285 = vmatmul.mubr.f32.gmra.mrb[0].mxu0 %v5213
  %v5286 = vpop.f32.mrb[0].mxu0
  %v5287 = vadd.f32 0.0, %v5286
  %v5288 = vpop.f32.mrb[0].mxu0
  %5289 = vdwg.mxu0
  %5290 = vrot.lane.b32.xlu0 %v292, 64
  %v5291 = vpop.permute.xlu0 %5290
  %5292 = vrot.lane.b32.xlu0 %v294, 64
  %v5293 = vpop.permute.xlu0 %5292
  %v5297 = vsel %vm3216, %v3951, 0
  %v5300 = vsel %vm3216, %v3952, 0
  %5302 = vmatprep.subr.mxu0 0.0
  %5303 = vmatpush1.msra.mxu0 %v5291
  %5304 = vmatprep.subr.mxu0 0.0
  %5305 = vmatpush1.msra.mxu0 %v5293
  %5306 = vmatprep.subr.mxu0 0.0
  %5307 = vmatpush1.msra.mxu0 0.0
  %5308 = vmatprep.subr.mxu0 0.0
  %5309 = vmatpush1.msra.mxu0 0.0
  %5310 = vmatprep.subr.mxu0 0.0
  %5311 = vmatpush1.msra.mxu0 0.0
  %5312 = vmatprep.subr.mxu0 0.0
  %5313 = vmatpush1.msra.mxu0 0.0
  %5314 = vmatprep.subr.mxu0 0.0
  %5315 = vmatpush1.msra.mxu0 0.0
  %5316 = vmatprep.subr.mxu0 0.0
  %5317 = vmatpush1.msra.mxu0 0.0
  %5318 = vmatprep.subr.mxu0 0.0
  %5319 = vmatpush1.msra.mxu0 0.0
  %5320 = vmatprep.subr.mxu0 0.0
  %5321 = vmatpush1.msra.mxu0 0.0
  %5322 = vmatprep.subr.mxu0 0.0
  %5323 = vmatpush1.msra.mxu0 0.0
  %5324 = vmatprep.subr.mxu0 0.0
  %5325 = vmatpush1.msra.mxu0 0.0
  %5326 = vmatprep.subr.mxu0 0.0
  %5327 = vmatpush1.msra.mxu0 0.0
  %5328 = vmatprep.subr.mxu0 0.0
  %5329 = vmatpush1.msra.mxu0 0.0
  %5330 = vmatprep.subr.mxu0 0.0
  %5331 = vmatpush1.msra.mxu0 0.0
  %5332 = vmatprep.subr.mxu0 0.0
  %5333 = vmatpush1.msra.mxu0 0.0
  %5334 = vmatprep.subr.mxu0 0.0
  %5335 = vmatpush1.msra.mxu0 0.0
  %5336 = vmatprep.subr.mxu0 0.0
  %5337 = vmatpush1.msra.mxu0 0.0
  %5338 = vmatprep.subr.mxu0 0.0
  %5339 = vmatpush1.msra.mxu0 0.0
  %5340 = vmatprep.subr.mxu0 0.0
  %5341 = vmatpush1.msra.mxu0 0.0
  %5342 = vmatprep.subr.mxu0 0.0
  %5343 = vmatpush1.msra.mxu0 0.0
  %5344 = vmatprep.subr.mxu0 0.0
  %5345 = vmatpush1.msra.mxu0 0.0
  %5346 = vmatprep.subr.mxu0 0.0
  %5347 = vmatpush1.msra.mxu0 0.0
  %5348 = vmatprep.subr.mxu0 0.0
  %5349 = vmatpush1.msra.mxu0 0.0
  %5350 = vmatprep.subr.mxu0 0.0
  %5351 = vmatpush1.msra.mxu0 0.0
  %5352 = vmatprep.subr.mxu0 0.0
  %5353 = vmatpush1.msra.mxu0 0.0
  %5354 = vmatprep.subr.mxu0 0.0
  %5355 = vmatpush1.msra.mxu0 0.0
  %5356 = vmatprep.subr.mxu0 0.0
  %5357 = vmatpush1.msra.mxu0 0.0
  %5358 = vmatprep.subr.mxu0 0.0
  %5359 = vmatpush1.msra.mxu0 0.0
  %5360 = vmatprep.subr.mxu0 0.0
  %5361 = vmatpush1.msra.mxu0 0.0
  %5362 = vmatprep.subr.mxu0 0.0
  %5363 = vmatpush1.msra.mxu0 0.0
  %5364 = vmatprep.subr.mxu0 0.0
  %5365 = vmatpush1.msra.mxu0 0.0
  %5366 = vmatprep.mubr.f32.mxu0 0.0
  %5367 = vmatmul.mubr.f32.gmra.mrb[0].mxu0 %v5297
  %v5368 = vpop.f32.mrb[0].mxu0
  %v5369 = vadd.f32 0.0, %v5368
  %v5370 = vpop.f32.mrb[0].mxu0
  %5371 = vmatprep.mubr.f32.mxu0 0.0
  %5372 = vmatmul.mubr.f32.gmra.mrb[0].mxu0 %v5300
  %v5373 = vpop.f32.mrb[0].mxu0
  %v5374 = vadd.f32 0.0, %v5373
  %v5375 = vpop.f32.mrb[0].mxu0
  %5376 = vdwg.mxu0
  %5377 = vrot.lane.b32.xlu0 %v296, 64
  %v5378 = vpop.permute.xlu0 %5377
  %5379 = vrot.lane.b32.xlu0 %v298, 64
  %v5380 = vpop.permute.xlu0 %5379
  %v5384 = vsel %vm3216, %v3953, 0
  %v5387 = vsel %vm3216, %v3954, 0
  %5389 = vmatprep.subr.mxu0 0.0
  %5390 = vmatpush1.msra.mxu0 %v5378
  %5391 = vmatprep.subr.mxu0 0.0
  %5392 = vmatpush1.msra.mxu0 %v5380
  %5393 = vmatprep.subr.mxu0 0.0
  %5394 = vmatpush1.msra.mxu0 0.0
  %5395 = vmatprep.subr.mxu0 0.0
  %5396 = vmatpush1.msra.mxu0 0.0
  %5397 = vmatprep.subr.mxu0 0.0
  %5398 = vmatpush1.msra.mxu0 0.0
  %5399 = vmatprep.subr.mxu0 0.0
  %5400 = vmatpush1.msra.mxu0 0.0
  %5401 = vmatprep.subr.mxu0 0.0
  %5402 = vmatpush1.msra.mxu0 0.0
  %5403 = vmatprep.subr.mxu0 0.0
  %5404 = vmatpush1.msra.mxu0 0.0
  %5405 = vmatprep.subr.mxu0 0.0
  %5406 = vmatpush1.msra.mxu0 0.0
  %5407 = vmatprep.subr.mxu0 0.0
  %5408 = vmatpush1.msra.mxu0 0.0
  %5409 = vmatprep.subr.mxu0 0.0
  %5410 = vmatpush1.msra.mxu0 0.0
  %5411 = vmatprep.subr.mxu0 0.0
  %5412 = vmatpush1.msra.mxu0 0.0
  %5413 = vmatprep.subr.mxu0 0.0
  %5414 = vmatpush1.msra.mxu0 0.0
  %5415 = vmatprep.subr.mxu0 0.0
  %5416 = vmatpush1.msra.mxu0 0.0
  %5417 = vmatprep.subr.mxu0 0.0
  %5418 = vmatpush1.msra.mxu0 0.0
  %5419 = vmatprep.subr.mxu0 0.0
  %5420 = vmatpush1.msra.mxu0 0.0
  %5421 = vmatprep.subr.mxu0 0.0
  %5422 = vmatpush1.msra.mxu0 0.0
  %5423 = vmatprep.subr.mxu0 0.0
  %5424 = vmatpush1.msra.mxu0 0.0
  %5425 = vmatprep.subr.mxu0 0.0
  %5426 = vmatpush1.msra.mxu0 0.0
  %5427 = vmatprep.subr.mxu0 0.0
  %5428 = vmatpush1.msra.mxu0 0.0
  %5429 = vmatprep.subr.mxu0 0.0
  %5430 = vmatpush1.msra.mxu0 0.0
  %5431 = vmatprep.subr.mxu0 0.0
  %5432 = vmatpush1.msra.mxu0 0.0
  %5433 = vmatprep.subr.mxu0 0.0
  %5434 = vmatpush1.msra.mxu0 0.0
  %5435 = vmatprep.subr.mxu0 0.0
  %5436 = vmatpush1.msra.mxu0 0.0
  %5437 = vmatprep.subr.mxu0 0.0
  %5438 = vmatpush1.msra.mxu0 0.0
  %5439 = vmatprep.subr.mxu0 0.0
  %5440 = vmatpush1.msra.mxu0 0.0
  %5441 = vmatprep.subr.mxu0 0.0
  %5442 = vmatpush1.msra.mxu0 0.0
  %5443 = vmatprep.subr.mxu0 0.0
  %5444 = vmatpush1.msra.mxu0 0.0
  %5445 = vmatprep.subr.mxu0 0.0
  %5446 = vmatpush1.msra.mxu0 0.0
  %5447 = vmatprep.subr.mxu0 0.0
  %5448 = vmatpush1.msra.mxu0 0.0
  %5449 = vmatprep.subr.mxu0 0.0
  %5450 = vmatpush1.msra.mxu0 0.0
  %5451 = vmatprep.subr.mxu0 0.0
  %5452 = vmatpush1.msra.mxu0 0.0
  %5453 = vmatprep.mubr.f32.mxu0 0.0
  %5454 = vmatmul.mubr.f32.gmra.mrb[0].mxu0 %v5384
  %v5455 = vpop.f32.mrb[0].mxu0
  %v5456 = vadd.f32 0.0, %v5455
  %v5457 = vpop.f32.mrb[0].mxu0
  %5458 = vmatprep.mubr.f32.mxu0 0.0
  %5459 = vmatmul.mubr.f32.gmra.mrb[0].mxu0 %v5387
  %v5460 = vpop.f32.mrb[0].mxu0
  %v5461 = vadd.f32 0.0, %v5460
  %v5462 = vpop.f32.mrb[0].mxu0
  %5463 = vdwg.mxu0
  %5464 = vrot.lane.b32.xlu0 %v300, 64
  %v5465 = vpop.permute.xlu0 %5464
  %5466 = vrot.lane.b32.xlu0 %v302, 64
  %v5467 = vpop.permute.xlu0 %5466
  %v5471 = vsel %vm3216, %v3955, 0
  %v5474 = vsel %vm3216, %v3956, 0
  %5476 = vmatprep.subr.mxu0 0.0
  %5477 = vmatpush1.msra.mxu0 %v5465
  %5478 = vmatprep.subr.mxu0 0.0
  %5479 = vmatpush1.msra.mxu0 %v5467
  %5480 = vmatprep.subr.mxu0 0.0
  %5481 = vmatpush1.msra.mxu0 0.0
  %5482 = vmatprep.subr.mxu0 0.0
  %5483 = vmatpush1.msra.mxu0 0.0
  %5484 = vmatprep.subr.mxu0 0.0
  %5485 = vmatpush1.msra.mxu0 0.0
  %5486 = vmatprep.subr.mxu0 0.0
  %5487 = vmatpush1.msra.mxu0 0.0
  %5488 = vmatprep.subr.mxu0 0.0
  %5489 = vmatpush1.msra.mxu0 0.0
  %5490 = vmatprep.subr.mxu0 0.0
  %5491 = vmatpush1.msra.mxu0 0.0
  %5492 = vmatprep.subr.mxu0 0.0
  %5493 = vmatpush1.msra.mxu0 0.0
  %5494 = vmatprep.subr.mxu0 0.0
  %5495 = vmatpush1.msra.mxu0 0.0
  %5496 = vmatprep.subr.mxu0 0.0
  %5497 = vmatpush1.msra.mxu0 0.0
  %5498 = vmatprep.subr.mxu0 0.0
  %5499 = vmatpush1.msra.mxu0 0.0
  %5500 = vmatprep.subr.mxu0 0.0
  %5501 = vmatpush1.msra.mxu0 0.0
  %5502 = vmatprep.subr.mxu0 0.0
  %5503 = vmatpush1.msra.mxu0 0.0
  %5504 = vmatprep.subr.mxu0 0.0
  %5505 = vmatpush1.msra.mxu0 0.0
  %5506 = vmatprep.subr.mxu0 0.0
  %5507 = vmatpush1.msra.mxu0 0.0
  %5508 = vmatprep.subr.mxu0 0.0
  %5509 = vmatpush1.msra.mxu0 0.0
  %5510 = vmatprep.subr.mxu0 0.0
  %5511 = vmatpush1.msra.mxu0 0.0
  %5512 = vmatprep.subr.mxu0 0.0
  %5513 = vmatpush1.msra.mxu0 0.0
  %5514 = vmatprep.subr.mxu0 0.0
  %5515 = vmatpush1.msra.mxu0 0.0
  %5516 = vmatprep.subr.mxu0 0.0
  %5517 = vmatpush1.msra.mxu0 0.0
  %5518 = vmatprep.subr.mxu0 0.0
  %5519 = vmatpush1.msra.mxu0 0.0
  %5520 = vmatprep.subr.mxu0 0.0
  %5521 = vmatpush1.msra.mxu0 0.0
  %5522 = vmatprep.subr.mxu0 0.0
  %5523 = vmatpush1.msra.mxu0 0.0
  %5524 = vmatprep.subr.mxu0 0.0
  %5525 = vmatpush1.msra.mxu0 0.0
  %5526 = vmatprep.subr.mxu0 0.0
  %5527 = vmatpush1.msra.mxu0 0.0
  %5528 = vmatprep.subr.mxu0 0.0
  %5529 = vmatpush1.msra.mxu0 0.0
  %5530 = vmatprep.subr.mxu0 0.0
  %5531 = vmatpush1.msra.mxu0 0.0
  %5532 = vmatprep.subr.mxu0 0.0
  %5533 = vmatpush1.msra.mxu0 0.0
  %5534 = vmatprep.subr.mxu0 0.0
  %5535 = vmatpush1.msra.mxu0 0.0
  %5536 = vmatprep.subr.mxu0 0.0
  %5537 = vmatpush1.msra.mxu0 0.0
  %5538 = vmatprep.subr.mxu0 0.0
  %5539 = vmatpush1.msra.mxu0 0.0
  %5540 = vmatprep.mubr.f32.mxu0 0.0
  %5541 = vmatmul.mubr.f32.gmra.mrb[0].mxu0 %v5471
  %v5542 = vpop.f32.mrb[0].mxu0
  %v5543 = vadd.f32 0.0, %v5542
  %v5544 = vpop.f32.mrb[0].mxu0
  %5545 = vmatprep.mubr.f32.mxu0 0.0
  %5546 = vmatmul.mubr.f32.gmra.mrb[0].mxu0 %v5474
  %v5547 = vpop.f32.mrb[0].mxu0
  %v5548 = vadd.f32 0.0, %v5547
  %v5549 = vpop.f32.mrb[0].mxu0
  %5550 = vdwg.mxu0
  %5551 = vrot.lane.b32.xlu0 %v304, 64
  %v5552 = vpop.permute.xlu0 %5551
  %5553 = vrot.lane.b32.xlu0 %v306, 64
  %v5554 = vpop.permute.xlu0 %5553
  %v5558 = vsel %vm3216, %v3957, 0
  %v5561 = vsel %vm3216, %v3958, 0
  %5563 = vmatprep.subr.mxu0 0.0
  %5564 = vmatpush1.msra.mxu0 %v5552
  %5565 = vmatprep.subr.mxu0 0.0
  %5566 = vmatpush1.msra.mxu0 %v5554
  %5567 = vmatprep.subr.mxu0 0.0
  %5568 = vmatpush1.msra.mxu0 0.0
  %5569 = vmatprep.subr.mxu0 0.0
  %5570 = vmatpush1.msra.mxu0 0.0
  %5571 = vmatprep.subr.mxu0 0.0
  %5572 = vmatpush1.msra.mxu0 0.0
  %5573 = vmatprep.subr.mxu0 0.0
  %5574 = vmatpush1.msra.mxu0 0.0
  %5575 = vmatprep.subr.mxu0 0.0
  %5576 = vmatpush1.msra.mxu0 0.0
  %5577 = vmatprep.subr.mxu0 0.0
  %5578 = vmatpush1.msra.mxu0 0.0
  %5579 = vmatprep.subr.mxu0 0.0
  %5580 = vmatpush1.msra.mxu0 0.0
  %5581 = vmatprep.subr.mxu0 0.0
  %5582 = vmatpush1.msra.mxu0 0.0
  %5583 = vmatprep.subr.mxu0 0.0
  %5584 = vmatpush1.msra.mxu0 0.0
  %5585 = vmatprep.subr.mxu0 0.0
  %5586 = vmatpush1.msra.mxu0 0.0
  %5587 = vmatprep.subr.mxu0 0.0
  %5588 = vmatpush1.msra.mxu0 0.0
  %5589 = vmatprep.subr.mxu0 0.0
  %5590 = vmatpush1.msra.mxu0 0.0
  %5591 = vmatprep.subr.mxu0 0.0
  %5592 = vmatpush1.msra.mxu0 0.0
  %5593 = vmatprep.subr.mxu0 0.0
  %5594 = vmatpush1.msra.mxu0 0.0
  %5595 = vmatprep.subr.mxu0 0.0
  %5596 = vmatpush1.msra.mxu0 0.0
  %5597 = vmatprep.subr.mxu0 0.0
  %5598 = vmatpush1.msra.mxu0 0.0
  %5599 = vmatprep.subr.mxu0 0.0
  %5600 = vmatpush1.msra.mxu0 0.0
  %5601 = vmatprep.subr.mxu0 0.0
  %5602 = vmatpush1.msra.mxu0 0.0
  %5603 = vmatprep.subr.mxu0 0.0
  %5604 = vmatpush1.msra.mxu0 0.0
  %5605 = vmatprep.subr.mxu0 0.0
  %5606 = vmatpush1.msra.mxu0 0.0
  %5607 = vmatprep.subr.mxu0 0.0
  %5608 = vmatpush1.msra.mxu0 0.0
  %5609 = vmatprep.subr.mxu0 0.0
  %5610 = vmatpush1.msra.mxu0 0.0
  %5611 = vmatprep.subr.mxu0 0.0
  %5612 = vmatpush1.msra.mxu0 0.0
  %5613 = vmatprep.subr.mxu0 0.0
  %5614 = vmatpush1.msra.mxu0 0.0
  %5615 = vmatprep.subr.mxu0 0.0
  %5616 = vmatpush1.msra.mxu0 0.0
  %5617 = vmatprep.subr.mxu0 0.0
  %5618 = vmatpush1.msra.mxu0 0.0
  %5619 = vmatprep.subr.mxu0 0.0
  %5620 = vmatpush1.msra.mxu0 0.0
  %5621 = vmatprep.subr.mxu0 0.0
  %5622 = vmatpush1.msra.mxu0 0.0
  %5623 = vmatprep.subr.mxu0 0.0
  %5624 = vmatpush1.msra.mxu0 0.0
  %5625 = vmatprep.subr.mxu0 0.0
  %5626 = vmatpush1.msra.mxu0 0.0
  %5627 = vmatprep.mubr.f32.mxu0 0.0
  %5628 = vmatmul.mubr.f32.gmra.mrb[0].mxu0 %v5558
  %v5629 = vpop.f32.mrb[0].mxu0
  %v5630 = vadd.f32 0.0, %v5629
  %v5631 = vpop.f32.mrb[0].mxu0
  %5632 = vmatprep.mubr.f32.mxu0 0.0
  %5633 = vmatmul.mubr.f32.gmra.mrb[0].mxu0 %v5561
  %v5634 = vpop.f32.mrb[0].mxu0
  %v5635 = vadd.f32 0.0, %v5634
  %v5636 = vpop.f32.mrb[0].mxu0
  %5637 = vdwg.mxu0
  %5638 = vrot.lane.b32.xlu0 %v308, 64
  %v5639 = vpop.permute.xlu0 %5638
  %5640 = vrot.lane.b32.xlu0 %v310, 64
  %v5641 = vpop.permute.xlu0 %5640
  %v5645 = vsel %vm3216, %v3959, 0
  %v5648 = vsel %vm3216, %v3960, 0
  %5650 = vmatprep.subr.mxu0 0.0
  %5651 = vmatpush1.msra.mxu0 %v5639
  %5652 = vmatprep.subr.mxu0 0.0
  %5653 = vmatpush1.msra.mxu0 %v5641
  %5654 = vmatprep.subr.mxu0 0.0
  %5655 = vmatpush1.msra.mxu0 0.0
  %5656 = vmatprep.subr.mxu0 0.0
  %5657 = vmatpush1.msra.mxu0 0.0
  %5658 = vmatprep.subr.mxu0 0.0
  %5659 = vmatpush1.msra.mxu0 0.0
  %5660 = vmatprep.subr.mxu0 0.0
  %5661 = vmatpush1.msra.mxu0 0.0
  %5662 = vmatprep.subr.mxu0 0.0
  %5663 = vmatpush1.msra.mxu0 0.0
  %5664 = vmatprep.subr.mxu0 0.0
  %5665 = vmatpush1.msra.mxu0 0.0
  %5666 = vmatprep.subr.mxu0 0.0
  %5667 = vmatpush1.msra.mxu0 0.0
  %5668 = vmatprep.subr.mxu0 0.0
  %5669 = vmatpush1.msra.mxu0 0.0
  %5670 = vmatprep.subr.mxu0 0.0
  %5671 = vmatpush1.msra.mxu0 0.0
  %5672 = vmatprep.subr.mxu0 0.0
  %5673 = vmatpush1.msra.mxu0 0.0
  %5674 = vmatprep.subr.mxu0 0.0
  %5675 = vmatpush1.msra.mxu0 0.0
  %5676 = vmatprep.subr.mxu0 0.0
  %5677 = vmatpush1.msra.mxu0 0.0
  %5678 = vmatprep.subr.mxu0 0.0
  %5679 = vmatpush1.msra.mxu0 0.0
  %5680 = vmatprep.subr.mxu0 0.0
  %5681 = vmatpush1.msra.mxu0 0.0
  %5682 = vmatprep.subr.mxu0 0.0
  %5683 = vmatpush1.msra.mxu0 0.0
  %5684 = vmatprep.subr.mxu0 0.0
  %5685 = vmatpush1.msra.mxu0 0.0
  %5686 = vmatprep.subr.mxu0 0.0
  %5687 = vmatpush1.msra.mxu0 0.0
  %5688 = vmatprep.subr.mxu0 0.0
  %5689 = vmatpush1.msra.mxu0 0.0
  %5690 = vmatprep.subr.mxu0 0.0
  %5691 = vmatpush1.msra.mxu0 0.0
  %5692 = vmatprep.subr.mxu0 0.0
  %5693 = vmatpush1.msra.mxu0 0.0
  %5694 = vmatprep.subr.mxu0 0.0
  %5695 = vmatpush1.msra.mxu0 0.0
  %5696 = vmatprep.subr.mxu0 0.0
  %5697 = vmatpush1.msra.mxu0 0.0
  %5698 = vmatprep.subr.mxu0 0.0
  %5699 = vmatpush1.msra.mxu0 0.0
  %5700 = vmatprep.subr.mxu0 0.0
  %5701 = vmatpush1.msra.mxu0 0.0
  %5702 = vmatprep.subr.mxu0 0.0
  %5703 = vmatpush1.msra.mxu0 0.0
  %5704 = vmatprep.subr.mxu0 0.0
  %5705 = vmatpush1.msra.mxu0 0.0
  %5706 = vmatprep.subr.mxu0 0.0
  %5707 = vmatpush1.msra.mxu0 0.0
  %5708 = vmatprep.subr.mxu0 0.0
  %5709 = vmatpush1.msra.mxu0 0.0
  %5710 = vmatprep.subr.mxu0 0.0
  %5711 = vmatpush1.msra.mxu0 0.0
  %5712 = vmatprep.subr.mxu0 0.0
  %5713 = vmatpush1.msra.mxu0 0.0
  %5714 = vmatprep.mubr.f32.mxu0 0.0
  %5715 = vmatmul.mubr.f32.gmra.mrb[0].mxu0 %v5645
  %v5716 = vpop.f32.mrb[0].mxu0
  %v5717 = vadd.f32 0.0, %v5716
  %v5718 = vpop.f32.mrb[0].mxu0
  %5719 = vmatprep.mubr.f32.mxu0 0.0
  %5720 = vmatmul.mubr.f32.gmra.mrb[0].mxu0 %v5648
  %v5721 = vpop.f32.mrb[0].mxu0
  %v5722 = vadd.f32 0.0, %v5721
  %v5723 = vpop.f32.mrb[0].mxu0
  %5724 = vdwg.mxu0
  %5725 = vrot.lane.b32.xlu0 %v312, 64
  %v5726 = vpop.permute.xlu0 %5725
  %5727 = vrot.lane.b32.xlu0 %v314, 64
  %v5728 = vpop.permute.xlu0 %5727
  %v5732 = vsel %vm3216, %v3961, 0
  %v5735 = vsel %vm3216, %v3962, 0
  %5737 = vmatprep.subr.mxu0 0.0
  %5738 = vmatpush1.msra.mxu0 %v5726
  %5739 = vmatprep.subr.mxu0 0.0
  %5740 = vmatpush1.msra.mxu0 %v5728
  %5741 = vmatprep.subr.mxu0 0.0
  %5742 = vmatpush1.msra.mxu0 0.0
  %5743 = vmatprep.subr.mxu0 0.0
  %5744 = vmatpush1.msra.mxu0 0.0
  %5745 = vmatprep.subr.mxu0 0.0
  %5746 = vmatpush1.msra.mxu0 0.0
  %5747 = vmatprep.subr.mxu0 0.0
  %5748 = vmatpush1.msra.mxu0 0.0
  %5749 = vmatprep.subr.mxu0 0.0
  %5750 = vmatpush1.msra.mxu0 0.0
  %5751 = vmatprep.subr.mxu0 0.0
  %5752 = vmatpush1.msra.mxu0 0.0
  %5753 = vmatprep.subr.mxu0 0.0
  %5754 = vmatpush1.msra.mxu0 0.0
  %5755 = vmatprep.subr.mxu0 0.0
  %5756 = vmatpush1.msra.mxu0 0.0
  %5757 = vmatprep.subr.mxu0 0.0
  %5758 = vmatpush1.msra.mxu0 0.0
  %5759 = vmatprep.subr.mxu0 0.0
  %5760 = vmatpush1.msra.mxu0 0.0
  %5761 = vmatprep.subr.mxu0 0.0
  %5762 = vmatpush1.msra.mxu0 0.0
  %5763 = vmatprep.subr.mxu0 0.0
  %5764 = vmatpush1.msra.mxu0 0.0
  %5765 = vmatprep.subr.mxu0 0.0
  %5766 = vmatpush1.msra.mxu0 0.0
  %5767 = vmatprep.subr.mxu0 0.0
  %5768 = vmatpush1.msra.mxu0 0.0
  %5769 = vmatprep.subr.mxu0 0.0
  %5770 = vmatpush1.msra.mxu0 0.0
  %5771 = vmatprep.subr.mxu0 0.0
  %5772 = vmatpush1.msra.mxu0 0.0
  %5773 = vmatprep.subr.mxu0 0.0
  %5774 = vmatpush1.msra.mxu0 0.0
  %5775 = vmatprep.subr.mxu0 0.0
  %5776 = vmatpush1.msra.mxu0 0.0
  %5777 = vmatprep.subr.mxu0 0.0
  %5778 = vmatpush1.msra.mxu0 0.0
  %5779 = vmatprep.subr.mxu0 0.0
  %5780 = vmatpush1.msra.mxu0 0.0
  %5781 = vmatprep.subr.mxu0 0.0
  %5782 = vmatpush1.msra.mxu0 0.0
  %5783 = vmatprep.subr.mxu0 0.0
  %5784 = vmatpush1.msra.mxu0 0.0
  %5785 = vmatprep.subr.mxu0 0.0
  %5786 = vmatpush1.msra.mxu0 0.0
  %5787 = vmatprep.subr.mxu0 0.0
  %5788 = vmatpush1.msra.mxu0 0.0
  %5789 = vmatprep.subr.mxu0 0.0
  %5790 = vmatpush1.msra.mxu0 0.0
  %5791 = vmatprep.subr.mxu0 0.0
  %5792 = vmatpush1.msra.mxu0 0.0
  %5793 = vmatprep.subr.mxu0 0.0
  %5794 = vmatpush1.msra.mxu0 0.0
  %5795 = vmatprep.subr.mxu0 0.0
  %5796 = vmatpush1.msra.mxu0 0.0
  %5797 = vmatprep.subr.mxu0 0.0
  %5798 = vmatpush1.msra.mxu0 0.0
  %5799 = vmatprep.subr.mxu0 0.0
  %5800 = vmatpush1.msra.mxu0 0.0
  %5801 = vmatprep.mubr.f32.mxu0 0.0
  %5802 = vmatmul.mubr.f32.gmra.mrb[0].mxu0 %v5732
  %v5803 = vpop.f32.mrb[0].mxu0
  %v5804 = vadd.f32 0.0, %v5803
  %v5805 = vpop.f32.mrb[0].mxu0
  %5806 = vmatprep.mubr.f32.mxu0 0.0
  %5807 = vmatmul.mubr.f32.gmra.mrb[0].mxu0 %v5735
  %v5808 = vpop.f32.mrb[0].mxu0
  %v5809 = vadd.f32 0.0, %v5808
  %v5810 = vpop.f32.mrb[0].mxu0
  %5811 = vdwg.mxu0
  %5812 = vrot.lane.b32.xlu0 %v316, 64
  %v5813 = vpop.permute.xlu0 %5812
  %5814 = vrot.lane.b32.xlu0 %v318, 64
  %v5815 = vpop.permute.xlu0 %5814
  %v5819 = vsel %vm3216, %v3963, 0
  %v5822 = vsel %vm3216, %v3964, 0
  %5824 = vmatprep.subr.mxu0 0.0
  %5825 = vmatpush1.msra.mxu0 %v5813
  %5826 = vmatprep.subr.mxu0 0.0
  %5827 = vmatpush1.msra.mxu0 %v5815
  %5828 = vmatprep.subr.mxu0 0.0
  %5829 = vmatpush1.msra.mxu0 0.0
  %5830 = vmatprep.subr.mxu0 0.0
  %5831 = vmatpush1.msra.mxu0 0.0
  %5832 = vmatprep.subr.mxu0 0.0
  %5833 = vmatpush1.msra.mxu0 0.0
  %5834 = vmatprep.subr.mxu0 0.0
  %5835 = vmatpush1.msra.mxu0 0.0
  %5836 = vmatprep.subr.mxu0 0.0
  %5837 = vmatpush1.msra.mxu0 0.0
  %5838 = vmatprep.subr.mxu0 0.0
  %5839 = vmatpush1.msra.mxu0 0.0
  %5840 = vmatprep.subr.mxu0 0.0
  %5841 = vmatpush1.msra.mxu0 0.0
  %5842 = vmatprep.subr.mxu0 0.0
  %5843 = vmatpush1.msra.mxu0 0.0
  %5844 = vmatprep.subr.mxu0 0.0
  %5845 = vmatpush1.msra.mxu0 0.0
  %5846 = vmatprep.subr.mxu0 0.0
  %5847 = vmatpush1.msra.mxu0 0.0
  %5848 = vmatprep.subr.mxu0 0.0
  %5849 = vmatpush1.msra.mxu0 0.0
  %5850 = vmatprep.subr.mxu0 0.0
  %5851 = vmatpush1.msra.mxu0 0.0
  %5852 = vmatprep.subr.mxu0 0.0
  %5853 = vmatpush1.msra.mxu0 0.0
  %5854 = vmatprep.subr.mxu0 0.0
  %5855 = vmatpush1.msra.mxu0 0.0
  %5856 = vmatprep.subr.mxu0 0.0
  %5857 = vmatpush1.msra.mxu0 0.0
  %5858 = vmatprep.subr.mxu0 0.0
  %5859 = vmatpush1.msra.mxu0 0.0
  %5860 = vmatprep.subr.mxu0 0.0
  %5861 = vmatpush1.msra.mxu0 0.0
  %5862 = vmatprep.subr.mxu0 0.0
  %5863 = vmatpush1.msra.mxu0 0.0
  %5864 = vmatprep.subr.mxu0 0.0
  %5865 = vmatpush1.msra.mxu0 0.0
  %5866 = vmatprep.subr.mxu0 0.0
  %5867 = vmatpush1.msra.mxu0 0.0
  %5868 = vmatprep.subr.mxu0 0.0
  %5869 = vmatpush1.msra.mxu0 0.0
  %5870 = vmatprep.subr.mxu0 0.0
  %5871 = vmatpush1.msra.mxu0 0.0
  %5872 = vmatprep.subr.mxu0 0.0
  %5873 = vmatpush1.msra.mxu0 0.0
  %5874 = vmatprep.subr.mxu0 0.0
  %5875 = vmatpush1.msra.mxu0 0.0
  %5876 = vmatprep.subr.mxu0 0.0
  %5877 = vmatpush1.msra.mxu0 0.0
  %5878 = vmatprep.subr.mxu0 0.0
  %5879 = vmatpush1.msra.mxu0 0.0
  %5880 = vmatprep.subr.mxu0 0.0
  %5881 = vmatpush1.msra.mxu0 0.0
  %5882 = vmatprep.subr.mxu0 0.0
  %5883 = vmatpush1.msra.mxu0 0.0
  %5884 = vmatprep.subr.mxu0 0.0
  %5885 = vmatpush1.msra.mxu0 0.0
  %5886 = vmatprep.subr.mxu0 0.0
  %5887 = vmatpush1.msra.mxu0 0.0
  %5888 = vmatprep.mubr.f32.mxu0 0.0
  %5889 = vmatmul.mubr.f32.gmra.mrb[0].mxu0 %v5819
  %v5890 = vpop.f32.mrb[0].mxu0
  %v5891 = vadd.f32 0.0, %v5890
  %v5892 = vpop.f32.mrb[0].mxu0
  %5893 = vmatprep.mubr.f32.mxu0 0.0
  %5894 = vmatmul.mubr.f32.gmra.mrb[0].mxu0 %v5822
  %v5895 = vpop.f32.mrb[0].mxu0
  %v5896 = vadd.f32 0.0, %v5895
  %v5897 = vpop.f32.mrb[0].mxu0
  %5898 = vdwg.mxu0
  %5899 = vrot.lane.b32.xlu0 %v320, 64
  %v5900 = vpop.permute.xlu0 %5899
  %5901 = vrot.lane.b32.xlu0 %v322, 64
  %v5902 = vpop.permute.xlu0 %5901
  %v5906 = vsel %vm3216, %v3965, 0
  %v5909 = vsel %vm3216, %v3966, 0
  %5911 = vmatprep.subr.mxu0 0.0
  %5912 = vmatpush1.msra.mxu0 %v5900
  %5913 = vmatprep.subr.mxu0 0.0
  %5914 = vmatpush1.msra.mxu0 %v5902
  %5915 = vmatprep.subr.mxu0 0.0
  %5916 = vmatpush1.msra.mxu0 0.0
  %5917 = vmatprep.subr.mxu0 0.0
  %5918 = vmatpush1.msra.mxu0 0.0
  %5919 = vmatprep.subr.mxu0 0.0
  %5920 = vmatpush1.msra.mxu0 0.0
  %5921 = vmatprep.subr.mxu0 0.0
  %5922 = vmatpush1.msra.mxu0 0.0
  %5923 = vmatprep.subr.mxu0 0.0
  %5924 = vmatpush1.msra.mxu0 0.0
  %5925 = vmatprep.subr.mxu0 0.0
  %5926 = vmatpush1.msra.mxu0 0.0
  %5927 = vmatprep.subr.mxu0 0.0
  %5928 = vmatpush1.msra.mxu0 0.0
  %5929 = vmatprep.subr.mxu0 0.0
  %5930 = vmatpush1.msra.mxu0 0.0
  %5931 = vmatprep.subr.mxu0 0.0
  %5932 = vmatpush1.msra.mxu0 0.0
  %5933 = vmatprep.subr.mxu0 0.0
  %5934 = vmatpush1.msra.mxu0 0.0
  %5935 = vmatprep.subr.mxu0 0.0
  %5936 = vmatpush1.msra.mxu0 0.0
  %5937 = vmatprep.subr.mxu0 0.0
  %5938 = vmatpush1.msra.mxu0 0.0
  %5939 = vmatprep.subr.mxu0 0.0
  %5940 = vmatpush1.msra.mxu0 0.0
  %5941 = vmatprep.subr.mxu0 0.0
  %5942 = vmatpush1.msra.mxu0 0.0
  %5943 = vmatprep.subr.mxu0 0.0
  %5944 = vmatpush1.msra.mxu0 0.0
  %5945 = vmatprep.subr.mxu0 0.0
  %5946 = vmatpush1.msra.mxu0 0.0
  %5947 = vmatprep.subr.mxu0 0.0
  %5948 = vmatpush1.msra.mxu0 0.0
  %5949 = vmatprep.subr.mxu0 0.0
  %5950 = vmatpush1.msra.mxu0 0.0
  %5951 = vmatprep.subr.mxu0 0.0
  %5952 = vmatpush1.msra.mxu0 0.0
  %5953 = vmatprep.subr.mxu0 0.0
  %5954 = vmatpush1.msra.mxu0 0.0
  %5955 = vmatprep.subr.mxu0 0.0
  %5956 = vmatpush1.msra.mxu0 0.0
  %5957 = vmatprep.subr.mxu0 0.0
  %5958 = vmatpush1.msra.mxu0 0.0
  %5959 = vmatprep.subr.mxu0 0.0
  %5960 = vmatpush1.msra.mxu0 0.0
  %5961 = vmatprep.subr.mxu0 0.0
  %5962 = vmatpush1.msra.mxu0 0.0
  %5963 = vmatprep.subr.mxu0 0.0
  %5964 = vmatpush1.msra.mxu0 0.0
  %5965 = vmatprep.subr.mxu0 0.0
  %5966 = vmatpush1.msra.mxu0 0.0
  %5967 = vmatprep.subr.mxu0 0.0
  %5968 = vmatpush1.msra.mxu0 0.0
  %5969 = vmatprep.subr.mxu0 0.0
  %5970 = vmatpush1.msra.mxu0 0.0
  %5971 = vmatprep.subr.mxu0 0.0
  %5972 = vmatpush1.msra.mxu0 0.0
  %5973 = vmatprep.subr.mxu0 0.0
  %5974 = vmatpush1.msra.mxu0 0.0
  %5975 = vmatprep.mubr.f32.mxu0 0.0
  %5976 = vmatmul.mubr.f32.gmra.mrb[0].mxu0 %v5906
  %v5977 = vpop.f32.mrb[0].mxu0
  %v5978 = vadd.f32 0.0, %v5977
  %v5979 = vpop.f32.mrb[0].mxu0
  %5980 = vmatprep.mubr.f32.mxu0 0.0
  %5981 = vmatmul.mubr.f32.gmra.mrb[0].mxu0 %v5909
  %v5982 = vpop.f32.mrb[0].mxu0
  %v5983 = vadd.f32 0.0, %v5982
  %v5984 = vpop.f32.mrb[0].mxu0
  %5985 = vdwg.mxu0
  %5986 = vrot.lane.b32.xlu0 %v324, 64
  %v5987 = vpop.permute.xlu0 %5986
  %5988 = vrot.lane.b32.xlu0 %v326, 64
  %v5989 = vpop.permute.xlu0 %5988
  %v5993 = vsel %vm3216, %v3967, 0
  %v5996 = vsel %vm3216, %v3968, 0
  %5998 = vmatprep.subr.mxu0 0.0
  %5999 = vmatpush1.msra.mxu0 %v5987
  %6000 = vmatprep.subr.mxu0 0.0
  %6001 = vmatpush1.msra.mxu0 %v5989
  %6002 = vmatprep.subr.mxu0 0.0
  %6003 = vmatpush1.msra.mxu0 0.0
  %6004 = vmatprep.subr.mxu0 0.0
  %6005 = vmatpush1.msra.mxu0 0.0
  %6006 = vmatprep.subr.mxu0 0.0
  %6007 = vmatpush1.msra.mxu0 0.0
  %6008 = vmatprep.subr.mxu0 0.0
  %6009 = vmatpush1.msra.mxu0 0.0
  %6010 = vmatprep.subr.mxu0 0.0
  %6011 = vmatpush1.msra.mxu0 0.0
  %6012 = vmatprep.subr.mxu0 0.0
  %6013 = vmatpush1.msra.mxu0 0.0
  %6014 = vmatprep.subr.mxu0 0.0
  %6015 = vmatpush1.msra.mxu0 0.0
  %6016 = vmatprep.subr.mxu0 0.0
  %6017 = vmatpush1.msra.mxu0 0.0
  %6018 = vmatprep.subr.mxu0 0.0
  %6019 = vmatpush1.msra.mxu0 0.0
  %6020 = vmatprep.subr.mxu0 0.0
  %6021 = vmatpush1.msra.mxu0 0.0
  %6022 = vmatprep.subr.mxu0 0.0
  %6023 = vmatpush1.msra.mxu0 0.0
  %6024 = vmatprep.subr.mxu0 0.0
  %6025 = vmatpush1.msra.mxu0 0.0
  %6026 = vmatprep.subr.mxu0 0.0
  %6027 = vmatpush1.msra.mxu0 0.0
  %6028 = vmatprep.subr.mxu0 0.0
  %6029 = vmatpush1.msra.mxu0 0.0
  %6030 = vmatprep.subr.mxu0 0.0
  %6031 = vmatpush1.msra.mxu0 0.0
  %6032 = vmatprep.subr.mxu0 0.0
  %6033 = vmatpush1.msra.mxu0 0.0
  %6034 = vmatprep.subr.mxu0 0.0
  %6035 = vmatpush1.msra.mxu0 0.0
  %6036 = vmatprep.subr.mxu0 0.0
  %6037 = vmatpush1.msra.mxu0 0.0
  %6038 = vmatprep.subr.mxu0 0.0
  %6039 = vmatpush1.msra.mxu0 0.0
  %6040 = vmatprep.subr.mxu0 0.0
  %6041 = vmatpush1.msra.mxu0 0.0
  %6042 = vmatprep.subr.mxu0 0.0
  %6043 = vmatpush1.msra.mxu0 0.0
  %6044 = vmatprep.subr.mxu0 0.0
  %6045 = vmatpush1.msra.mxu0 0.0
  %6046 = vmatprep.subr.mxu0 0.0
  %6047 = vmatpush1.msra.mxu0 0.0
  %6048 = vmatprep.subr.mxu0 0.0
  %6049 = vmatpush1.msra.mxu0 0.0
  %6050 = vmatprep.subr.mxu0 0.0
  %6051 = vmatpush1.msra.mxu0 0.0
  %6052 = vmatprep.subr.mxu0 0.0
  %6053 = vmatpush1.msra.mxu0 0.0
  %6054 = vmatprep.subr.mxu0 0.0
  %6055 = vmatpush1.msra.mxu0 0.0
  %6056 = vmatprep.subr.mxu0 0.0
  %6057 = vmatpush1.msra.mxu0 0.0
  %6058 = vmatprep.subr.mxu0 0.0
  %6059 = vmatpush1.msra.mxu0 0.0
  %6060 = vmatprep.subr.mxu0 0.0
  %6061 = vmatpush1.msra.mxu0 0.0
  %6062 = vmatprep.mubr.f32.mxu0 0.0
  %6063 = vmatmul.mubr.f32.gmra.mrb[0].mxu0 %v5993
  %v6064 = vpop.f32.mrb[0].mxu0
  %v6065 = vadd.f32 0.0, %v6064
  %v6066 = vpop.f32.mrb[0].mxu0
  %6067 = vmatprep.mubr.f32.mxu0 0.0
  %6068 = vmatmul.mubr.f32.gmra.mrb[0].mxu0 %v5996
  %v6069 = vpop.f32.mrb[0].mxu0
  %v6070 = vadd.f32 0.0, %v6069
  %v6071 = vpop.f32.mrb[0].mxu0
  %6072 = vdwg.mxu0
  %6073 = vrot.lane.b32.xlu0 %v328, 64
  %v6074 = vpop.permute.xlu0 %6073
  %6075 = vrot.lane.b32.xlu0 %v330, 64
  %v6076 = vpop.permute.xlu0 %6075
  %v6080 = vsel %vm3216, %v3969, 0
  %v6083 = vsel %vm3216, %v3970, 0
  %6085 = vmatprep.subr.mxu0 0.0
  %6086 = vmatpush1.msra.mxu0 %v6074
  %6087 = vmatprep.subr.mxu0 0.0
  %6088 = vmatpush1.msra.mxu0 %v6076
  %6089 = vmatprep.subr.mxu0 0.0
  %6090 = vmatpush1.msra.mxu0 0.0
  %6091 = vmatprep.subr.mxu0 0.0
  %6092 = vmatpush1.msra.mxu0 0.0
  %6093 = vmatprep.subr.mxu0 0.0
  %6094 = vmatpush1.msra.mxu0 0.0
  %6095 = vmatprep.subr.mxu0 0.0
  %6096 = vmatpush1.msra.mxu0 0.0
  %6097 = vmatprep.subr.mxu0 0.0
  %6098 = vmatpush1.msra.mxu0 0.0
  %6099 = vmatprep.subr.mxu0 0.0
  %6100 = vmatpush1.msra.mxu0 0.0
  %6101 = vmatprep.subr.mxu0 0.0
  %6102 = vmatpush1.msra.mxu0 0.0
  %6103 = vmatprep.subr.mxu0 0.0
  %6104 = vmatpush1.msra.mxu0 0.0
  %6105 = vmatprep.subr.mxu0 0.0
  %6106 = vmatpush1.msra.mxu0 0.0
  %6107 = vmatprep.subr.mxu0 0.0
  %6108 = vmatpush1.msra.mxu0 0.0
  %6109 = vmatprep.subr.mxu0 0.0
  %6110 = vmatpush1.msra.mxu0 0.0
  %6111 = vmatprep.subr.mxu0 0.0
  %6112 = vmatpush1.msra.mxu0 0.0
  %6113 = vmatprep.subr.mxu0 0.0
  %6114 = vmatpush1.msra.mxu0 0.0
  %6115 = vmatprep.subr.mxu0 0.0
  %6116 = vmatpush1.msra.mxu0 0.0
  %6117 = vmatprep.subr.mxu0 0.0
  %6118 = vmatpush1.msra.mxu0 0.0
  %6119 = vmatprep.subr.mxu0 0.0
  %6120 = vmatpush1.msra.mxu0 0.0
  %6121 = vmatprep.subr.mxu0 0.0
  %6122 = vmatpush1.msra.mxu0 0.0
  %6123 = vmatprep.subr.mxu0 0.0
  %6124 = vmatpush1.msra.mxu0 0.0
  %6125 = vmatprep.subr.mxu0 0.0
  %6126 = vmatpush1.msra.mxu0 0.0
  %6127 = vmatprep.subr.mxu0 0.0
  %6128 = vmatpush1.msra.mxu0 0.0
  %6129 = vmatprep.subr.mxu0 0.0
  %6130 = vmatpush1.msra.mxu0 0.0
  %6131 = vmatprep.subr.mxu0 0.0
  %6132 = vmatpush1.msra.mxu0 0.0
  %6133 = vmatprep.subr.mxu0 0.0
  %6134 = vmatpush1.msra.mxu0 0.0
  %6135 = vmatprep.subr.mxu0 0.0
  %6136 = vmatpush1.msra.mxu0 0.0
  %6137 = vmatprep.subr.mxu0 0.0
  %6138 = vmatpush1.msra.mxu0 0.0
  %6139 = vmatprep.subr.mxu0 0.0
  %6140 = vmatpush1.msra.mxu0 0.0
  %6141 = vmatprep.subr.mxu0 0.0
  %6142 = vmatpush1.msra.mxu0 0.0
  %6143 = vmatprep.subr.mxu0 0.0
  %6144 = vmatpush1.msra.mxu0 0.0
  %6145 = vmatprep.subr.mxu0 0.0
  %6146 = vmatpush1.msra.mxu0 0.0
  %6147 = vmatprep.subr.mxu0 0.0
  %6148 = vmatpush1.msra.mxu0 0.0
  %6149 = vmatprep.mubr.f32.mxu0 0.0
  %6150 = vmatmul.mubr.f32.gmra.mrb[0].mxu0 %v6080
  %v6151 = vpop.f32.mrb[0].mxu0
  %v6152 = vadd.f32 0.0, %v6151
  %v6153 = vpop.f32.mrb[0].mxu0
  %6154 = vmatprep.mubr.f32.mxu0 0.0
  %6155 = vmatmul.mubr.f32.gmra.mrb[0].mxu0 %v6083
  %v6156 = vpop.f32.mrb[0].mxu0
  %v6157 = vadd.f32 0.0, %v6156
  %v6158 = vpop.f32.mrb[0].mxu0
  %6159 = vdwg.mxu0
  %6160 = vrot.lane.b32.xlu0 %v332, 64
  %v6161 = vpop.permute.xlu0 %6160
  %6162 = vrot.lane.b32.xlu0 %v334, 64
  %v6163 = vpop.permute.xlu0 %6162
  %v6167 = vsel %vm3216, %v3971, 0
  %v6170 = vsel %vm3216, %v3972, 0
  %6172 = vmatprep.subr.mxu0 0.0
  %6173 = vmatpush1.msra.mxu0 %v6161
  %6174 = vmatprep.subr.mxu0 0.0
  %6175 = vmatpush1.msra.mxu0 %v6163
  %6176 = vmatprep.subr.mxu0 0.0
  %6177 = vmatpush1.msra.mxu0 0.0
  %6178 = vmatprep.subr.mxu0 0.0
  %6179 = vmatpush1.msra.mxu0 0.0
  %6180 = vmatprep.subr.mxu0 0.0
  %6181 = vmatpush1.msra.mxu0 0.0
  %6182 = vmatprep.subr.mxu0 0.0
  %6183 = vmatpush1.msra.mxu0 0.0
  %6184 = vmatprep.subr.mxu0 0.0
  %6185 = vmatpush1.msra.mxu0 0.0
  %6186 = vmatprep.subr.mxu0 0.0
  %6187 = vmatpush1.msra.mxu0 0.0
  %6188 = vmatprep.subr.mxu0 0.0
  %6189 = vmatpush1.msra.mxu0 0.0
  %6190 = vmatprep.subr.mxu0 0.0
  %6191 = vmatpush1.msra.mxu0 0.0
  %6192 = vmatprep.subr.mxu0 0.0
  %6193 = vmatpush1.msra.mxu0 0.0
  %6194 = vmatprep.subr.mxu0 0.0
  %6195 = vmatpush1.msra.mxu0 0.0
  %6196 = vmatprep.subr.mxu0 0.0
  %6197 = vmatpush1.msra.mxu0 0.0
  %6198 = vmatprep.subr.mxu0 0.0
  %6199 = vmatpush1.msra.mxu0 0.0
  %6200 = vmatprep.subr.mxu0 0.0
  %6201 = vmatpush1.msra.mxu0 0.0
  %6202 = vmatprep.subr.mxu0 0.0
  %6203 = vmatpush1.msra.mxu0 0.0
  %6204 = vmatprep.subr.mxu0 0.0
  %6205 = vmatpush1.msra.mxu0 0.0
  %6206 = vmatprep.subr.mxu0 0.0
  %6207 = vmatpush1.msra.mxu0 0.0
  %6208 = vmatprep.subr.mxu0 0.0
  %6209 = vmatpush1.msra.mxu0 0.0
  %6210 = vmatprep.subr.mxu0 0.0
  %6211 = vmatpush1.msra.mxu0 0.0
  %6212 = vmatprep.subr.mxu0 0.0
  %6213 = vmatpush1.msra.mxu0 0.0
  %6214 = vmatprep.subr.mxu0 0.0
  %6215 = vmatpush1.msra.mxu0 0.0
  %6216 = vmatprep.subr.mxu0 0.0
  %6217 = vmatpush1.msra.mxu0 0.0
  %6218 = vmatprep.subr.mxu0 0.0
  %6219 = vmatpush1.msra.mxu0 0.0
  %6220 = vmatprep.subr.mxu0 0.0
  %6221 = vmatpush1.msra.mxu0 0.0
  %6222 = vmatprep.subr.mxu0 0.0
  %6223 = vmatpush1.msra.mxu0 0.0
  %6224 = vmatprep.subr.mxu0 0.0
  %6225 = vmatpush1.msra.mxu0 0.0
  %6226 = vmatprep.subr.mxu0 0.0
  %6227 = vmatpush1.msra.mxu0 0.0
  %6228 = vmatprep.subr.mxu0 0.0
  %6229 = vmatpush1.msra.mxu0 0.0
  %6230 = vmatprep.subr.mxu0 0.0
  %6231 = vmatpush1.msra.mxu0 0.0
  %6232 = vmatprep.subr.mxu0 0.0
  %6233 = vmatpush1.msra.mxu0 0.0
  %6234 = vmatprep.subr.mxu0 0.0
  %6235 = vmatpush1.msra.mxu0 0.0
  %6236 = vmatprep.mubr.f32.mxu0 0.0
  %6237 = vmatmul.mubr.f32.gmra.mrb[0].mxu0 %v6167
  %v6238 = vpop.f32.mrb[0].mxu0
  %v6239 = vadd.f32 0.0, %v6238
  %v6240 = vpop.f32.mrb[0].mxu0
  %6241 = vmatprep.mubr.f32.mxu0 0.0
  %6242 = vmatmul.mubr.f32.gmra.mrb[0].mxu0 %v6170
  %v6243 = vpop.f32.mrb[0].mxu0
  %v6244 = vadd.f32 0.0, %v6243
  %v6245 = vpop.f32.mrb[0].mxu0
  %6246 = vdwg.mxu0
  %6247 = vrot.lane.b32.xlu0 %v336, 64
  %v6248 = vpop.permute.xlu0 %6247
  %6249 = vrot.lane.b32.xlu0 %v338, 64
  %v6250 = vpop.permute.xlu0 %6249
  %v6254 = vsel %vm3216, %v3973, 0
  %v6257 = vsel %vm3216, %v3974, 0
  %6259 = vmatprep.subr.mxu0 0.0
  %6260 = vmatpush1.msra.mxu0 %v6248
  %6261 = vmatprep.subr.mxu0 0.0
  %6262 = vmatpush1.msra.mxu0 %v6250
  %6263 = vmatprep.subr.mxu0 0.0
  %6264 = vmatpush1.msra.mxu0 0.0
  %6265 = vmatprep.subr.mxu0 0.0
  %6266 = vmatpush1.msra.mxu0 0.0
  %6267 = vmatprep.subr.mxu0 0.0
  %6268 = vmatpush1.msra.mxu0 0.0
  %6269 = vmatprep.subr.mxu0 0.0
  %6270 = vmatpush1.msra.mxu0 0.0
  %6271 = vmatprep.subr.mxu0 0.0
  %6272 = vmatpush1.msra.mxu0 0.0
  %6273 = vmatprep.subr.mxu0 0.0
  %6274 = vmatpush1.msra.mxu0 0.0
  %6275 = vmatprep.subr.mxu0 0.0
  %6276 = vmatpush1.msra.mxu0 0.0
  %6277 = vmatprep.subr.mxu0 0.0
  %6278 = vmatpush1.msra.mxu0 0.0
  %6279 = vmatprep.subr.mxu0 0.0
  %6280 = vmatpush1.msra.mxu0 0.0
  %6281 = vmatprep.subr.mxu0 0.0
  %6282 = vmatpush1.msra.mxu0 0.0
  %6283 = vmatprep.subr.mxu0 0.0
  %6284 = vmatpush1.msra.mxu0 0.0
  %6285 = vmatprep.subr.mxu0 0.0
  %6286 = vmatpush1.msra.mxu0 0.0
  %6287 = vmatprep.subr.mxu0 0.0
  %6288 = vmatpush1.msra.mxu0 0.0
  %6289 = vmatprep.subr.mxu0 0.0
  %6290 = vmatpush1.msra.mxu0 0.0
  %6291 = vmatprep.subr.mxu0 0.0
  %6292 = vmatpush1.msra.mxu0 0.0
  %6293 = vmatprep.subr.mxu0 0.0
  %6294 = vmatpush1.msra.mxu0 0.0
  %6295 = vmatprep.subr.mxu0 0.0
  %6296 = vmatpush1.msra.mxu0 0.0
  %6297 = vmatprep.subr.mxu0 0.0
  %6298 = vmatpush1.msra.mxu0 0.0
  %6299 = vmatprep.subr.mxu0 0.0
  %6300 = vmatpush1.msra.mxu0 0.0
  %6301 = vmatprep.subr.mxu0 0.0
  %6302 = vmatpush1.msra.mxu0 0.0
  %6303 = vmatprep.subr.mxu0 0.0
  %6304 = vmatpush1.msra.mxu0 0.0
  %6305 = vmatprep.subr.mxu0 0.0
  %6306 = vmatpush1.msra.mxu0 0.0
  %6307 = vmatprep.subr.mxu0 0.0
  %6308 = vmatpush1.msra.mxu0 0.0
  %6309 = vmatprep.subr.mxu0 0.0
  %6310 = vmatpush1.msra.mxu0 0.0
  %6311 = vmatprep.subr.mxu0 0.0
  %6312 = vmatpush1.msra.mxu0 0.0
  %6313 = vmatprep.subr.mxu0 0.0
  %6314 = vmatpush1.msra.mxu0 0.0
  %6315 = vmatprep.subr.mxu0 0.0
  %6316 = vmatpush1.msra.mxu0 0.0
  %6317 = vmatprep.subr.mxu0 0.0
  %6318 = vmatpush1.msra.mxu0 0.0
  %6319 = vmatprep.subr.mxu0 0.0
  %6320 = vmatpush1.msra.mxu0 0.0
  %6321 = vmatprep.subr.mxu0 0.0
  %6322 = vmatpush1.msra.mxu0 0.0
  %6323 = vmatprep.mubr.f32.mxu0 0.0
  %6324 = vmatmul.mubr.f32.gmra.mrb[0].mxu0 %v6254
  %v6325 = vpop.f32.mrb[0].mxu0
  %v6326 = vadd.f32 0.0, %v6325
  %v6327 = vpop.f32.mrb[0].mxu0
  %6328 = vmatprep.mubr.f32.mxu0 0.0
  %6329 = vmatmul.mubr.f32.gmra.mrb[0].mxu0 %v6257
  %v6330 = vpop.f32.mrb[0].mxu0
  %v6331 = vadd.f32 0.0, %v6330
  %v6332 = vpop.f32.mrb[0].mxu0
  %6333 = vdwg.mxu0
  %6334 = vrot.lane.b32.xlu0 %v340, 64
  %v6335 = vpop.permute.xlu0 %6334
  %6336 = vrot.lane.b32.xlu0 %v342, 64
  %v6337 = vpop.permute.xlu0 %6336
  %v6341 = vsel %vm3216, %v3975, 0
  %v6344 = vsel %vm3216, %v3976, 0
  %6346 = vmatprep.subr.mxu0 0.0
  %6347 = vmatpush1.msra.mxu0 %v6335
  %6348 = vmatprep.subr.mxu0 0.0
  %6349 = vmatpush1.msra.mxu0 %v6337
  %6350 = vmatprep.subr.mxu0 0.0
  %6351 = vmatpush1.msra.mxu0 0.0
  %6352 = vmatprep.subr.mxu0 0.0
  %6353 = vmatpush1.msra.mxu0 0.0
  %6354 = vmatprep.subr.mxu0 0.0
  %6355 = vmatpush1.msra.mxu0 0.0
  %6356 = vmatprep.subr.mxu0 0.0
  %6357 = vmatpush1.msra.mxu0 0.0
  %6358 = vmatprep.subr.mxu0 0.0
  %6359 = vmatpush1.msra.mxu0 0.0
  %6360 = vmatprep.subr.mxu0 0.0
  %6361 = vmatpush1.msra.mxu0 0.0
  %6362 = vmatprep.subr.mxu0 0.0
  %6363 = vmatpush1.msra.mxu0 0.0
  %6364 = vmatprep.subr.mxu0 0.0
  %6365 = vmatpush1.msra.mxu0 0.0
  %6366 = vmatprep.subr.mxu0 0.0
  %6367 = vmatpush1.msra.mxu0 0.0
  %6368 = vmatprep.subr.mxu0 0.0
  %6369 = vmatpush1.msra.mxu0 0.0
  %6370 = vmatprep.subr.mxu0 0.0
  %6371 = vmatpush1.msra.mxu0 0.0
  %6372 = vmatprep.subr.mxu0 0.0
  %6373 = vmatpush1.msra.mxu0 0.0
  %6374 = vmatprep.subr.mxu0 0.0
  %6375 = vmatpush1.msra.mxu0 0.0
  %6376 = vmatprep.subr.mxu0 0.0
  %6377 = vmatpush1.msra.mxu0 0.0
  %6378 = vmatprep.subr.mxu0 0.0
  %6379 = vmatpush1.msra.mxu0 0.0
  %6380 = vmatprep.subr.mxu0 0.0
  %6381 = vmatpush1.msra.mxu0 0.0
  %6382 = vmatprep.subr.mxu0 0.0
  %6383 = vmatpush1.msra.mxu0 0.0
  %6384 = vmatprep.subr.mxu0 0.0
  %6385 = vmatpush1.msra.mxu0 0.0
  %6386 = vmatprep.subr.mxu0 0.0
  %6387 = vmatpush1.msra.mxu0 0.0
  %6388 = vmatprep.subr.mxu0 0.0
  %6389 = vmatpush1.msra.mxu0 0.0
  %6390 = vmatprep.subr.mxu0 0.0
  %6391 = vmatpush1.msra.mxu0 0.0
  %6392 = vmatprep.subr.mxu0 0.0
  %6393 = vmatpush1.msra.mxu0 0.0
  %6394 = vmatprep.subr.mxu0 0.0
  %6395 = vmatpush1.msra.mxu0 0.0
  %6396 = vmatprep.subr.mxu0 0.0
  %6397 = vmatpush1.msra.mxu0 0.0
  %6398 = vmatprep.subr.mxu0 0.0
  %6399 = vmatpush1.msra.mxu0 0.0
  %6400 = vmatprep.subr.mxu0 0.0
  %6401 = vmatpush1.msra.mxu0 0.0
  %6402 = vmatprep.subr.mxu0 0.0
  %6403 = vmatpush1.msra.mxu0 0.0
  %6404 = vmatprep.subr.mxu0 0.0
  %6405 = vmatpush1.msra.mxu0 0.0
  %6406 = vmatprep.subr.mxu0 0.0
  %6407 = vmatpush1.msra.mxu0 0.0
  %6408 = vmatprep.subr.mxu0 0.0
  %6409 = vmatpush1.msra.mxu0 0.0
  %6410 = vmatprep.mubr.f32.mxu0 0.0
  %6411 = vmatmul.mubr.f32.gmra.mrb[0].mxu0 %v6341
  %v6412 = vpop.f32.mrb[0].mxu0
  %v6413 = vadd.f32 0.0, %v6412
  %v6414 = vpop.f32.mrb[0].mxu0
  %6415 = vmatprep.mubr.f32.mxu0 0.0
  %6416 = vmatmul.mubr.f32.gmra.mrb[0].mxu0 %v6344
  %v6417 = vpop.f32.mrb[0].mxu0
  %v6418 = vadd.f32 0.0, %v6417
  %v6419 = vpop.f32.mrb[0].mxu0
  %6420 = vdwg.mxu0
  %6421 = vrot.lane.b32.xlu0 %v344, 64
  %v6422 = vpop.permute.xlu0 %6421
  %6423 = vrot.lane.b32.xlu0 %v346, 64
  %v6424 = vpop.permute.xlu0 %6423
  %v6428 = vsel %vm3216, %v3977, 0
  %v6431 = vsel %vm3216, %v3978, 0
  %6433 = vmatprep.subr.mxu0 0.0
  %6434 = vmatpush1.msra.mxu0 %v6422
  %6435 = vmatprep.subr.mxu0 0.0
  %6436 = vmatpush1.msra.mxu0 %v6424
  %6437 = vmatprep.subr.mxu0 0.0
  %6438 = vmatpush1.msra.mxu0 0.0
  %6439 = vmatprep.subr.mxu0 0.0
  %6440 = vmatpush1.msra.mxu0 0.0
  %6441 = vmatprep.subr.mxu0 0.0
  %6442 = vmatpush1.msra.mxu0 0.0
  %6443 = vmatprep.subr.mxu0 0.0
  %6444 = vmatpush1.msra.mxu0 0.0
  %6445 = vmatprep.subr.mxu0 0.0
  %6446 = vmatpush1.msra.mxu0 0.0
  %6447 = vmatprep.subr.mxu0 0.0
  %6448 = vmatpush1.msra.mxu0 0.0
  %6449 = vmatprep.subr.mxu0 0.0
  %6450 = vmatpush1.msra.mxu0 0.0
  %6451 = vmatprep.subr.mxu0 0.0
  %6452 = vmatpush1.msra.mxu0 0.0
  %6453 = vmatprep.subr.mxu0 0.0
  %6454 = vmatpush1.msra.mxu0 0.0
  %6455 = vmatprep.subr.mxu0 0.0
  %6456 = vmatpush1.msra.mxu0 0.0
  %6457 = vmatprep.subr.mxu0 0.0
  %6458 = vmatpush1.msra.mxu0 0.0
  %6459 = vmatprep.subr.mxu0 0.0
  %6460 = vmatpush1.msra.mxu0 0.0
  %6461 = vmatprep.subr.mxu0 0.0
  %6462 = vmatpush1.msra.mxu0 0.0
  %6463 = vmatprep.subr.mxu0 0.0
  %6464 = vmatpush1.msra.mxu0 0.0
  %6465 = vmatprep.subr.mxu0 0.0
  %6466 = vmatpush1.msra.mxu0 0.0
  %6467 = vmatprep.subr.mxu0 0.0
  %6468 = vmatpush1.msra.mxu0 0.0
  %6469 = vmatprep.subr.mxu0 0.0
  %6470 = vmatpush1.msra.mxu0 0.0
  %6471 = vmatprep.subr.mxu0 0.0
  %6472 = vmatpush1.msra.mxu0 0.0
  %6473 = vmatprep.subr.mxu0 0.0
  %6474 = vmatpush1.msra.mxu0 0.0
  %6475 = vmatprep.subr.mxu0 0.0
  %6476 = vmatpush1.msra.mxu0 0.0
  %6477 = vmatprep.subr.mxu0 0.0
  %6478 = vmatpush1.msra.mxu0 0.0
  %6479 = vmatprep.subr.mxu0 0.0
  %6480 = vmatpush1.msra.mxu0 0.0
  %6481 = vmatprep.subr.mxu0 0.0
  %6482 = vmatpush1.msra.mxu0 0.0
  %6483 = vmatprep.subr.mxu0 0.0
  %6484 = vmatpush1.msra.mxu0 0.0
  %6485 = vmatprep.subr.mxu0 0.0
  %6486 = vmatpush1.msra.mxu0 0.0
  %6487 = vmatprep.subr.mxu0 0.0
  %6488 = vmatpush1.msra.mxu0 0.0
  %6489 = vmatprep.subr.mxu0 0.0
  %6490 = vmatpush1.msra.mxu0 0.0
  %6491 = vmatprep.subr.mxu0 0.0
  %6492 = vmatpush1.msra.mxu0 0.0
  %6493 = vmatprep.subr.mxu0 0.0
  %6494 = vmatpush1.msra.mxu0 0.0
  %6495 = vmatprep.subr.mxu0 0.0
  %6496 = vmatpush1.msra.mxu0 0.0
  %6497 = vmatprep.mubr.f32.mxu0 0.0
  %6498 = vmatmul.mubr.f32.gmra.mrb[0].mxu0 %v6428
  %v6499 = vpop.f32.mrb[0].mxu0
  %v6500 = vadd.f32 0.0, %v6499
  %v6501 = vpop.f32.mrb[0].mxu0
  %6502 = vmatprep.mubr.f32.mxu0 0.0
  %6503 = vmatmul.mubr.f32.gmra.mrb[0].mxu0 %v6431
  %v6504 = vpop.f32.mrb[0].mxu0
  %v6505 = vadd.f32 0.0, %v6504
  %v6506 = vpop.f32.mrb[0].mxu0
  %6507 = vdwg.mxu0
  %6508 = vrot.lane.b32.xlu0 %v348, 64
  %v6509 = vpop.permute.xlu0 %6508
  %6510 = vrot.lane.b32.xlu0 %v350, 64
  %v6511 = vpop.permute.xlu0 %6510
  %v6515 = vsel %vm3216, %v3979, 0
  %v6518 = vsel %vm3216, %v3980, 0
  %6520 = vmatprep.subr.mxu0 0.0
  %6521 = vmatpush1.msra.mxu0 %v6509
  %6522 = vmatprep.subr.mxu0 0.0
  %6523 = vmatpush1.msra.mxu0 %v6511
  %6524 = vmatprep.subr.mxu0 0.0
  %6525 = vmatpush1.msra.mxu0 0.0
  %6526 = vmatprep.subr.mxu0 0.0
  %6527 = vmatpush1.msra.mxu0 0.0
  %6528 = vmatprep.subr.mxu0 0.0
  %6529 = vmatpush1.msra.mxu0 0.0
  %6530 = vmatprep.subr.mxu0 0.0
  %6531 = vmatpush1.msra.mxu0 0.0
  %6532 = vmatprep.subr.mxu0 0.0
  %6533 = vmatpush1.msra.mxu0 0.0
  %6534 = vmatprep.subr.mxu0 0.0
  %6535 = vmatpush1.msra.mxu0 0.0
  %6536 = vmatprep.subr.mxu0 0.0
  %6537 = vmatpush1.msra.mxu0 0.0
  %6538 = vmatprep.subr.mxu0 0.0
  %6539 = vmatpush1.msra.mxu0 0.0
  %6540 = vmatprep.subr.mxu0 0.0
  %6541 = vmatpush1.msra.mxu0 0.0
  %6542 = vmatprep.subr.mxu0 0.0
  %6543 = vmatpush1.msra.mxu0 0.0
  %6544 = vmatprep.subr.mxu0 0.0
  %6545 = vmatpush1.msra.mxu0 0.0
  %6546 = vmatprep.subr.mxu0 0.0
  %6547 = vmatpush1.msra.mxu0 0.0
  %6548 = vmatprep.subr.mxu0 0.0
  %6549 = vmatpush1.msra.mxu0 0.0
  %6550 = vmatprep.subr.mxu0 0.0
  %6551 = vmatpush1.msra.mxu0 0.0
  %6552 = vmatprep.subr.mxu0 0.0
  %6553 = vmatpush1.msra.mxu0 0.0
  %6554 = vmatprep.subr.mxu0 0.0
  %6555 = vmatpush1.msra.mxu0 0.0
  %6556 = vmatprep.subr.mxu0 0.0
  %6557 = vmatpush1.msra.mxu0 0.0
  %6558 = vmatprep.subr.mxu0 0.0
  %6559 = vmatpush1.msra.mxu0 0.0
  %6560 = vmatprep.subr.mxu0 0.0
  %6561 = vmatpush1.msra.mxu0 0.0
  %6562 = vmatprep.subr.mxu0 0.0
  %6563 = vmatpush1.msra.mxu0 0.0
  %6564 = vmatprep.subr.mxu0 0.0
  %6565 = vmatpush1.msra.mxu0 0.0
  %6566 = vmatprep.subr.mxu0 0.0
  %6567 = vmatpush1.msra.mxu0 0.0
  %6568 = vmatprep.subr.mxu0 0.0
  %6569 = vmatpush1.msra.mxu0 0.0
  %6570 = vmatprep.subr.mxu0 0.0
  %6571 = vmatpush1.msra.mxu0 0.0
  %6572 = vmatprep.subr.mxu0 0.0
  %6573 = vmatpush1.msra.mxu0 0.0
  %6574 = vmatprep.subr.mxu0 0.0
  %6575 = vmatpush1.msra.mxu0 0.0
  %6576 = vmatprep.subr.mxu0 0.0
  %6577 = vmatpush1.msra.mxu0 0.0
  %6578 = vmatprep.subr.mxu0 0.0
  %6579 = vmatpush1.msra.mxu0 0.0
  %6580 = vmatprep.subr.mxu0 0.0
  %6581 = vmatpush1.msra.mxu0 0.0
  %6582 = vmatprep.subr.mxu0 0.0
  %6583 = vmatpush1.msra.mxu0 0.0
  %6584 = vmatprep.mubr.f32.mxu0 0.0
  %6585 = vmatmul.mubr.f32.gmra.mrb[0].mxu0 %v6515
  %v6586 = vpop.f32.mrb[0].mxu0
  %v6587 = vadd.f32 0.0, %v6586
  %v6588 = vpop.f32.mrb[0].mxu0
  %6589 = vmatprep.mubr.f32.mxu0 0.0
  %6590 = vmatmul.mubr.f32.gmra.mrb[0].mxu0 %v6518
  %v6591 = vpop.f32.mrb[0].mxu0
  %v6592 = vadd.f32 0.0, %v6591
  %v6593 = vpop.f32.mrb[0].mxu0
  %6594 = vdwg.mxu0
  %6595 = vrot.lane.b32.xlu0 %v352, 64
  %v6596 = vpop.permute.xlu0 %6595
  %6597 = vrot.lane.b32.xlu0 %v354, 64
  %v6598 = vpop.permute.xlu0 %6597
  %v6602 = vsel %vm3216, %v3981, 0
  %v6605 = vsel %vm3216, %v3982, 0
  %6607 = vmatprep.subr.mxu0 0.0
  %6608 = vmatpush1.msra.mxu0 %v6596
  %6609 = vmatprep.subr.mxu0 0.0
  %6610 = vmatpush1.msra.mxu0 %v6598
  %6611 = vmatprep.subr.mxu0 0.0
  %6612 = vmatpush1.msra.mxu0 0.0
  %6613 = vmatprep.subr.mxu0 0.0
  %6614 = vmatpush1.msra.mxu0 0.0
  %6615 = vmatprep.subr.mxu0 0.0
  %6616 = vmatpush1.msra.mxu0 0.0
  %6617 = vmatprep.subr.mxu0 0.0
  %6618 = vmatpush1.msra.mxu0 0.0
  %6619 = vmatprep.subr.mxu0 0.0
  %6620 = vmatpush1.msra.mxu0 0.0
  %6621 = vmatprep.subr.mxu0 0.0
  %6622 = vmatpush1.msra.mxu0 0.0
  %6623 = vmatprep.subr.mxu0 0.0
  %6624 = vmatpush1.msra.mxu0 0.0
  %6625 = vmatprep.subr.mxu0 0.0
  %6626 = vmatpush1.msra.mxu0 0.0
  %6627 = vmatprep.subr.mxu0 0.0
  %6628 = vmatpush1.msra.mxu0 0.0
  %6629 = vmatprep.subr.mxu0 0.0
  %6630 = vmatpush1.msra.mxu0 0.0
  %6631 = vmatprep.subr.mxu0 0.0
  %6632 = vmatpush1.msra.mxu0 0.0
  %6633 = vmatprep.subr.mxu0 0.0
  %6634 = vmatpush1.msra.mxu0 0.0
  %6635 = vmatprep.subr.mxu0 0.0
  %6636 = vmatpush1.msra.mxu0 0.0
  %6637 = vmatprep.subr.mxu0 0.0
  %6638 = vmatpush1.msra.mxu0 0.0
  %6639 = vmatprep.subr.mxu0 0.0
  %6640 = vmatpush1.msra.mxu0 0.0
  %6641 = vmatprep.subr.mxu0 0.0
  %6642 = vmatpush1.msra.mxu0 0.0
  %6643 = vmatprep.subr.mxu0 0.0
  %6644 = vmatpush1.msra.mxu0 0.0
  %6645 = vmatprep.subr.mxu0 0.0
  %6646 = vmatpush1.msra.mxu0 0.0
  %6647 = vmatprep.subr.mxu0 0.0
  %6648 = vmatpush1.msra.mxu0 0.0
  %6649 = vmatprep.subr.mxu0 0.0
  %6650 = vmatpush1.msra.mxu0 0.0
  %6651 = vmatprep.subr.mxu0 0.0
  %6652 = vmatpush1.msra.mxu0 0.0
  %6653 = vmatprep.subr.mxu0 0.0
  %6654 = vmatpush1.msra.mxu0 0.0
  %6655 = vmatprep.subr.mxu0 0.0
  %6656 = vmatpush1.msra.mxu0 0.0
  %6657 = vmatprep.subr.mxu0 0.0
  %6658 = vmatpush1.msra.mxu0 0.0
  %6659 = vmatprep.subr.mxu0 0.0
  %6660 = vmatpush1.msra.mxu0 0.0
  %6661 = vmatprep.subr.mxu0 0.0
  %6662 = vmatpush1.msra.mxu0 0.0
  %6663 = vmatprep.subr.mxu0 0.0
  %6664 = vmatpush1.msra.mxu0 0.0
  %6665 = vmatprep.subr.mxu0 0.0
  %6666 = vmatpush1.msra.mxu0 0.0
  %6667 = vmatprep.subr.mxu0 0.0
  %6668 = vmatpush1.msra.mxu0 0.0
  %6669 = vmatprep.subr.mxu0 0.0
  %6670 = vmatpush1.msra.mxu0 0.0
  %6671 = vmatprep.mubr.f32.mxu0 0.0
  %6672 = vmatmul.mubr.f32.gmra.mrb[0].mxu0 %v6602
  %v6673 = vpop.f32.mrb[0].mxu0
  %v6674 = vadd.f32 0.0, %v6673
  %v6675 = vpop.f32.mrb[0].mxu0
  %6676 = vmatprep.mubr.f32.mxu0 0.0
  %6677 = vmatmul.mubr.f32.gmra.mrb[0].mxu0 %v6605
  %v6678 = vpop.f32.mrb[0].mxu0
  %v6679 = vadd.f32 0.0, %v6678
  %v6680 = vpop.f32.mrb[0].mxu0
  %6681 = vdwg.mxu0
  %6682 = vrot.lane.b32.xlu0 %v356, 64
  %v6683 = vpop.permute.xlu0 %6682
  %6684 = vrot.lane.b32.xlu0 %v358, 64
  %v6685 = vpop.permute.xlu0 %6684
  %v6689 = vsel %vm3216, %v3983, 0
  %v6692 = vsel %vm3216, %v3984, 0
  %6694 = vmatprep.subr.mxu0 0.0
  %6695 = vmatpush1.msra.mxu0 %v6683
  %6696 = vmatprep.subr.mxu0 0.0
  %6697 = vmatpush1.msra.mxu0 %v6685
  %6698 = vmatprep.subr.mxu0 0.0
  %6699 = vmatpush1.msra.mxu0 0.0
  %6700 = vmatprep.subr.mxu0 0.0
  %6701 = vmatpush1.msra.mxu0 0.0
  %6702 = vmatprep.subr.mxu0 0.0
  %6703 = vmatpush1.msra.mxu0 0.0
  %6704 = vmatprep.subr.mxu0 0.0
  %6705 = vmatpush1.msra.mxu0 0.0
  %6706 = vmatprep.subr.mxu0 0.0
  %6707 = vmatpush1.msra.mxu0 0.0
  %6708 = vmatprep.subr.mxu0 0.0
  %6709 = vmatpush1.msra.mxu0 0.0
  %6710 = vmatprep.subr.mxu0 0.0
  %6711 = vmatpush1.msra.mxu0 0.0
  %6712 = vmatprep.subr.mxu0 0.0
  %6713 = vmatpush1.msra.mxu0 0.0
  %6714 = vmatprep.subr.mxu0 0.0
  %6715 = vmatpush1.msra.mxu0 0.0
  %6716 = vmatprep.subr.mxu0 0.0
  %6717 = vmatpush1.msra.mxu0 0.0
  %6718 = vmatprep.subr.mxu0 0.0
  %6719 = vmatpush1.msra.mxu0 0.0
  %6720 = vmatprep.subr.mxu0 0.0
  %6721 = vmatpush1.msra.mxu0 0.0
  %6722 = vmatprep.subr.mxu0 0.0
  %6723 = vmatpush1.msra.mxu0 0.0
  %6724 = vmatprep.subr.mxu0 0.0
  %6725 = vmatpush1.msra.mxu0 0.0
  %6726 = vmatprep.subr.mxu0 0.0
  %6727 = vmatpush1.msra.mxu0 0.0
  %6728 = vmatprep.subr.mxu0 0.0
  %6729 = vmatpush1.msra.mxu0 0.0
  %6730 = vmatprep.subr.mxu0 0.0
  %6731 = vmatpush1.msra.mxu0 0.0
  %6732 = vmatprep.subr.mxu0 0.0
  %6733 = vmatpush1.msra.mxu0 0.0
  %6734 = vmatprep.subr.mxu0 0.0
  %6735 = vmatpush1.msra.mxu0 0.0
  %6736 = vmatprep.subr.mxu0 0.0
  %6737 = vmatpush1.msra.mxu0 0.0
  %6738 = vmatprep.subr.mxu0 0.0
  %6739 = vmatpush1.msra.mxu0 0.0
  %6740 = vmatprep.subr.mxu0 0.0
  %6741 = vmatpush1.msra.mxu0 0.0
  %6742 = vmatprep.subr.mxu0 0.0
  %6743 = vmatpush1.msra.mxu0 0.0
  %6744 = vmatprep.subr.mxu0 0.0
  %6745 = vmatpush1.msra.mxu0 0.0
  %6746 = vmatprep.subr.mxu0 0.0
  %6747 = vmatpush1.msra.mxu0 0.0
  %6748 = vmatprep.subr.mxu0 0.0
  %6749 = vmatpush1.msra.mxu0 0.0
  %6750 = vmatprep.subr.mxu0 0.0
  %6751 = vmatpush1.msra.mxu0 0.0
  %6752 = vmatprep.subr.mxu0 0.0
  %6753 = vmatpush1.msra.mxu0 0.0
  %6754 = vmatprep.subr.mxu0 0.0
  %6755 = vmatpush1.msra.mxu0 0.0
  %6756 = vmatprep.subr.mxu0 0.0
  %6757 = vmatpush1.msra.mxu0 0.0
  %6758 = vmatprep.mubr.f32.mxu0 0.0
  %6759 = vmatmul.mubr.f32.gmra.mrb[0].mxu0 %v6689
  %v6760 = vpop.f32.mrb[0].mxu0
  %v6761 = vadd.f32 0.0, %v6760
  %v6762 = vpop.f32.mrb[0].mxu0
  %6763 = vmatprep.mubr.f32.mxu0 0.0
  %6764 = vmatmul.mubr.f32.gmra.mrb[0].mxu0 %v6692
  %v6765 = vpop.f32.mrb[0].mxu0
  %v6766 = vadd.f32 0.0, %v6765
  %v6767 = vpop.f32.mrb[0].mxu0
  %6768 = vdwg.mxu0
  %6785 = vrot.lane.b32.xlu0 %v4760, 8
  %v6786 = vpop.permute.xlu0 %6785
  %6787 = vrot.lane.b32.xlu0 %v4765, 8
  %v6788 = vpop.permute.xlu0 %6787
  %6789 = vrot.lane.b32.xlu0 %v4847, 8
  %v6790 = vpop.permute.xlu0 %6789
  %6791 = vrot.lane.b32.xlu0 %v4852, 8
  %v6792 = vpop.permute.xlu0 %6791
  %6793 = vrot.lane.b32.xlu0 %v4934, 8
  %v6794 = vpop.permute.xlu0 %6793
  %6795 = vrot.lane.b32.xlu0 %v4939, 8
  %v6796 = vpop.permute.xlu0 %6795
  %6797 = vrot.lane.b32.xlu0 %v5021, 8
  %v6798 = vpop.permute.xlu0 %6797
  %6799 = vrot.lane.b32.xlu0 %v5026, 8
  %v6800 = vpop.permute.xlu0 %6799
  %6801 = vrot.lane.b32.xlu0 %v5108, 8
  %v6802 = vpop.permute.xlu0 %6801
  %6803 = vrot.lane.b32.xlu0 %v5113, 8
  %v6804 = vpop.permute.xlu0 %6803
  %6805 = vrot.lane.b32.xlu0 %v5195, 8
  %v6806 = vpop.permute.xlu0 %6805
  %6807 = vrot.lane.b32.xlu0 %v5200, 8
  %v6808 = vpop.permute.xlu0 %6807
  %6809 = vrot.lane.b32.xlu0 %v5282, 8
  %v6810 = vpop.permute.xlu0 %6809
  %6811 = vrot.lane.b32.xlu0 %v5287, 8
  %v6812 = vpop.permute.xlu0 %6811
  %6813 = vrot.lane.b32.xlu0 %v5369, 8
  %v6814 = vpop.permute.xlu0 %6813
  %6815 = vrot.lane.b32.xlu0 %v5374, 8
  %v6816 = vpop.permute.xlu0 %6815
  %6849 = vrot.lane.b32.xlu0 %v5456, 16
  %v6850 = vpop.permute.xlu0 %6849
  %6851 = vrot.lane.b32.xlu0 %v5461, 16
  %v6852 = vpop.permute.xlu0 %6851
  %6853 = vrot.lane.b32.xlu0 %v5543, 16
  %v6854 = vpop.permute.xlu0 %6853
  %6855 = vrot.lane.b32.xlu0 %v5548, 16
  %v6856 = vpop.permute.xlu0 %6855
  %6857 = vrot.lane.b32.xlu0 %v5630, 16
  %v6858 = vpop.permute.xlu0 %6857
  %6859 = vrot.lane.b32.xlu0 %v5635, 16
  %v6860 = vpop.permute.xlu0 %6859
  %6861 = vrot.lane.b32.xlu0 %v5717, 16
  %v6862 = vpop.permute.xlu0 %6861
  %6863 = vrot.lane.b32.xlu0 %v5722, 16
  %v6864 = vpop.permute.xlu0 %6863
  %6865 = vrot.lane.b32.xlu0 %v5804, 16
  %v6866 = vpop.permute.xlu0 %6865
  %6867 = vrot.lane.b32.xlu0 %v5809, 16
  %v6868 = vpop.permute.xlu0 %6867
  %6869 = vrot.lane.b32.xlu0 %v5891, 16
  %v6870 = vpop.permute.xlu0 %6869
  %6871 = vrot.lane.b32.xlu0 %v5896, 16
  %v6872 = vpop.permute.xlu0 %6871
  %6873 = vrot.lane.b32.xlu0 %v5978, 16
  %v6874 = vpop.permute.xlu0 %6873
  %6875 = vrot.lane.b32.xlu0 %v5983, 16
  %v6876 = vpop.permute.xlu0 %6875
  %6877 = vrot.lane.b32.xlu0 %v6065, 16
  %v6878 = vpop.permute.xlu0 %6877
  %6879 = vrot.lane.b32.xlu0 %v6070, 16
  %v6880 = vpop.permute.xlu0 %6879
  %6913 = vrot.lane.b32.xlu0 %v6152, 24
  %v6914 = vpop.permute.xlu0 %6913
  %6915 = vrot.lane.b32.xlu0 %v6157, 24
  %v6916 = vpop.permute.xlu0 %6915
  %6917 = vrot.lane.b32.xlu0 %v6239, 24
  %v6918 = vpop.permute.xlu0 %6917
  %6919 = vrot.lane.b32.xlu0 %v6244, 24
  %v6920 = vpop.permute.xlu0 %6919
  %6921 = vrot.lane.b32.xlu0 %v6326, 24
  %v6922 = vpop.permute.xlu0 %6921
  %6923 = vrot.lane.b32.xlu0 %v6331, 24
  %v6924 = vpop.permute.xlu0 %6923
  %6925 = vrot.lane.b32.xlu0 %v6413, 24
  %v6926 = vpop.permute.xlu0 %6925
  %6927 = vrot.lane.b32.xlu0 %v6418, 24
  %v6928 = vpop.permute.xlu0 %6927
  %6929 = vrot.lane.b32.xlu0 %v6500, 24
  %v6930 = vpop.permute.xlu0 %6929
  %6931 = vrot.lane.b32.xlu0 %v6505, 24
  %v6932 = vpop.permute.xlu0 %6931
  %6933 = vrot.lane.b32.xlu0 %v6587, 24
  %v6934 = vpop.permute.xlu0 %6933
  %6935 = vrot.lane.b32.xlu0 %v6592, 24
  %v6936 = vpop.permute.xlu0 %6935
  %6937 = vrot.lane.b32.xlu0 %v6674, 24
  %v6938 = vpop.permute.xlu0 %6937
  %6939 = vrot.lane.b32.xlu0 %v6679, 24
  %v6940 = vpop.permute.xlu0 %6939
  %6941 = vrot.lane.b32.xlu0 %v6761, 24
  %v6942 = vpop.permute.xlu0 %6941
  %6943 = vrot.lane.b32.xlu0 %v6766, 24
  %v6944 = vpop.permute.xlu0 %6943
  %v6961 = vsel %vm363, %v4064, %v6786
  %v6962 = vsel %vm363, %v4069, %v6788
  %v6963 = vsel %vm363, %v4151, %v6790
  %v6964 = vsel %vm363, %v4156, %v6792
  %v6965 = vsel %vm363, %v4238, %v6794
  %v6966 = vsel %vm363, %v4243, %v6796
  %v6967 = vsel %vm363, %v4325, %v6798
  %v6968 = vsel %vm363, %v4330, %v6800
  %v6969 = vsel %vm363, %v4412, %v6802
  %v6970 = vsel %vm363, %v4417, %v6804
  %v6971 = vsel %vm363, %v4499, %v6806
  %v6972 = vsel %vm363, %v4504, %v6808
  %v6973 = vsel %vm363, %v4586, %v6810
  %v6974 = vsel %vm363, %v4591, %v6812
  %v6975 = vsel %vm363, %v4673, %v6814
  %v6976 = vsel %vm363, %v4678, %v6816
  %v6977 = vsel %vm3216, %v6961, %v6850
  %v6978 = vsel %vm3216, %v6962, %v6852
  %v6979 = vsel %vm3216, %v6963, %v6854
  %v6980 = vsel %vm3216, %v6964, %v6856
  %v6981 = vsel %vm3216, %v6965, %v6858
  %v6982 = vsel %vm3216, %v6966, %v6860
  %v6983 = vsel %vm3216, %v6967, %v6862
  %v6984 = vsel %vm3216, %v6968, %v6864
  %v6985 = vsel %vm3216, %v6969, %v6866
  %v6986 = vsel %vm3216, %v6970, %v6868
  %v6987 = vsel %vm3216, %v6971, %v6870
  %v6988 = vsel %vm3216, %v6972, %v6872
  %v6989 = vsel %vm3216, %v6973, %v6874
  %v6990 = vsel %vm3216, %v6974, %v6876
  %v6991 = vsel %vm3216, %v6975, %v6878
  %v6992 = vsel %vm3216, %v6976, %v6880
  %vm6993 = vcmask 195584
  %v6994 = vsel %vm6993, %v6977, %v6914
  %v6995 = vsel %vm6993, %v6978, %v6916
  %v6996 = vsel %vm6993, %v6979, %v6918
  %v6997 = vsel %vm6993, %v6980, %v6920
  %v6998 = vsel %vm6993, %v6981, %v6922
  %v6999 = vsel %vm6993, %v6982, %v6924
  %v7000 = vsel %vm6993, %v6983, %v6926
  %v7001 = vsel %vm6993, %v6984, %v6928
  %v7002 = vsel %vm6993, %v6985, %v6930
  %v7003 = vsel %vm6993, %v6986, %v6932
  %v7004 = vsel %vm6993, %v6987, %v6934
  %v7005 = vsel %vm6993, %v6988, %v6936
  %v7006 = vsel %vm6993, %v6989, %v6938
  %v7007 = vsel %vm6993, %v6990, %v6940
  %v7008 = vsel %vm6993, %v6991, %v6942
  %v7009 = vsel %vm6993, %v6992, %v6944
  %v7010 = vld [vmem:[%s2] sm:$0xff]
  %v7011 = vld [vmem:[%s2 + $0x8] sm:$0xff]
  %v7012 = vld [vmem:[%s2 + $0x10] sm:$0xff]
  %v7013 = vld [vmem:[%s2 + $0x18] sm:$0xff]
  %v7014 = vld [vmem:[%s6 + $0x1] sm:$0x1]
  %v7016 = vlaneseq
  %v7017 = vshrl.u32 %v7016, 7
  %v7018 = vsub.s32 0, %v7017
  %v7019 = vrot.slane %v7014, %v7018
  %v7022 = vsel %vm53, %v6994, 0
  %v7025 = vsel %vm53, %v6995, 0
  %v7028 = vsel %vm53, %v6996, 0
  %v7031 = vsel %vm53, %v6997, 0
  %v7034 = vsel %vm53, %v6998, 0
  %v7037 = vsel %vm53, %v6999, 0
  %v7040 = vsel %vm53, %v7000, 0
  %v7043 = vsel %vm53, %v7001, 0
  %v7046 = vsel %vm53, %v7002, 0
  %v7049 = vsel %vm53, %v7003, 0
  %v7052 = vsel %vm53, %v7004, 0
  %v7055 = vsel %vm53, %v7005, 0
  %v7058 = vsel %vm53, %v7006, 0
  %v7061 = vsel %vm53, %v7007, 0
  %v7064 = vsel %vm53, %v7008, 0
  %v7067 = vsel %vm53, %v7009, 0
  %7069 = vmatprep.subr.mxu0 0.0
  %7070 = vmatpush1.msra.mxu0 %v7010
  %7071 = vmatprep.subr.mxu0 0.0
  %7072 = vmatpush1.msra.mxu0 %v7011
  %7073 = vmatprep.subr.mxu0 0.0
  %7074 = vmatpush1.msra.mxu0 %v7012
  %7075 = vmatprep.subr.mxu0 0.0
  %7076 = vmatpush1.msra.mxu0 %v7013
  %7077 = vmatprep.subr.mxu0 0.0
  %7078 = vmatpush1.msra.mxu0 0.0
  %7079 = vmatprep.subr.mxu0 0.0
  %7080 = vmatpush1.msra.mxu0 0.0
  %7081 = vmatprep.subr.mxu0 0.0
  %7082 = vmatpush1.msra.mxu0 0.0
  %7083 = vmatprep.subr.mxu0 0.0
  %7084 = vmatpush1.msra.mxu0 0.0
  %7085 = vmatprep.subr.mxu0 0.0
  %7086 = vmatpush1.msra.mxu0 0.0
  %7087 = vmatprep.subr.mxu0 0.0
  %7088 = vmatpush1.msra.mxu0 0.0
  %7089 = vmatprep.subr.mxu0 0.0
  %7090 = vmatpush1.msra.mxu0 0.0
  %7091 = vmatprep.subr.mxu0 0.0
  %7092 = vmatpush1.msra.mxu0 0.0
  %7093 = vmatprep.subr.mxu0 0.0
  %7094 = vmatpush1.msra.mxu0 0.0
  %7095 = vmatprep.subr.mxu0 0.0
  %7096 = vmatpush1.msra.mxu0 0.0
  %7097 = vmatprep.subr.mxu0 0.0
  %7098 = vmatpush1.msra.mxu0 0.0
  %7099 = vmatprep.subr.mxu0 0.0
  %7100 = vmatpush1.msra.mxu0 0.0
  %7101 = vmatprep.subr.mxu0 0.0
  %7102 = vmatpush1.msra.mxu0 0.0
  %7103 = vmatprep.subr.mxu0 0.0
  %7104 = vmatpush1.msra.mxu0 0.0
  %7105 = vmatprep.subr.mxu0 0.0
  %7106 = vmatpush1.msra.mxu0 0.0
  %7107 = vmatprep.subr.mxu0 0.0
  %7108 = vmatpush1.msra.mxu0 0.0
  %7109 = vmatprep.subr.mxu0 0.0
  %7110 = vmatpush1.msra.mxu0 0.0
  %7111 = vmatprep.subr.mxu0 0.0
  %7112 = vmatpush1.msra.mxu0 0.0
  %7113 = vmatprep.subr.mxu0 0.0
  %7114 = vmatpush1.msra.mxu0 0.0
  %7115 = vmatprep.subr.mxu0 0.0
  %7116 = vmatpush1.msra.mxu0 0.0
  %7117 = vmatprep.subr.mxu0 0.0
  %7118 = vmatpush1.msra.mxu0 0.0
  %7119 = vmatprep.subr.mxu0 0.0
  %7120 = vmatpush1.msra.mxu0 0.0
  %7121 = vmatprep.subr.mxu0 0.0
  %7122 = vmatpush1.msra.mxu0 0.0
  %7123 = vmatprep.subr.mxu0 0.0
  %7124 = vmatpush1.msra.mxu0 0.0
  %7125 = vmatprep.subr.mxu0 0.0
  %7126 = vmatpush1.msra.mxu0 0.0
  %7127 = vmatprep.subr.mxu0 0.0
  %7128 = vmatpush1.msra.mxu0 0.0
  %7129 = vmatprep.subr.mxu0 0.0
  %7130 = vmatpush1.msra.mxu0 0.0
  %7131 = vmatprep.subr.mxu0 0.0
  %7132 = vmatpush1.msra.mxu0 0.0
  %7133 = vmatprep.mubr.f32.mxu0 0.0
  %7134 = vmatmul.mubr.f32.gmra.mrb[0].mxu0 %v7022
  %v7135 = vpop.f32.mrb[0].mxu0
  %v7136 = vadd.f32 %v7019, %v7135
  %v7137 = vpop.f32.mrb[0].mxu0
  %7138 = vmatprep.mubr.f32.mxu0 0.0
  %7139 = vmatmul.mubr.f32.gmra.mrb[0].mxu0 %v7025
  %v7140 = vpop.f32.mrb[0].mxu0
  %v7141 = vadd.f32 %v7019, %v7140
  %v7142 = vpop.f32.mrb[0].mxu0
  %7143 = vmatprep.mubr.f32.mxu0 0.0
  %7144 = vmatmul.mubr.f32.gmra.mrb[0].mxu0 %v7028
  %v7145 = vpop.f32.mrb[0].mxu0
  %v7146 = vadd.f32 %v7019, %v7145
  %v7147 = vpop.f32.mrb[0].mxu0
  %7148 = vmatprep.mubr.f32.mxu0 0.0
  %7149 = vmatmul.mubr.f32.gmra.mrb[0].mxu0 %v7031
  %v7150 = vpop.f32.mrb[0].mxu0
  %v7151 = vadd.f32 %v7019, %v7150
  %v7152 = vpop.f32.mrb[0].mxu0
  %7153 = vmatprep.mubr.f32.mxu0 0.0
  %7154 = vmatmul.mubr.f32.gmra.mrb[0].mxu0 %v7034
  %v7155 = vpop.f32.mrb[0].mxu0
  %v7156 = vadd.f32 %v7019, %v7155
  %v7157 = vpop.f32.mrb[0].mxu0
  %7158 = vmatprep.mubr.f32.mxu0 0.0
  %7159 = vmatmul.mubr.f32.gmra.mrb[0].mxu0 %v7037
  %v7160 = vpop.f32.mrb[0].mxu0
  %v7161 = vadd.f32 %v7019, %v7160
  %v7162 = vpop.f32.mrb[0].mxu0
  %7163 = vmatprep.mubr.f32.mxu0 0.0
  %7164 = vmatmul.mubr.f32.gmra.mrb[0].mxu0 %v7040
  %v7165 = vpop.f32.mrb[0].mxu0
  %v7166 = vadd.f32 %v7019, %v7165
  %v7167 = vpop.f32.mrb[0].mxu0
  %7168 = vmatprep.mubr.f32.mxu0 0.0
  %7169 = vmatmul.mubr.f32.gmra.mrb[0].mxu0 %v7043
  %v7170 = vpop.f32.mrb[0].mxu0
  %v7171 = vadd.f32 %v7019, %v7170
  %v7172 = vpop.f32.mrb[0].mxu0
  %7173 = vmatprep.mubr.f32.mxu0 0.0
  %7174 = vmatmul.mubr.f32.gmra.mrb[0].mxu0 %v7046
  %v7175 = vpop.f32.mrb[0].mxu0
  %v7176 = vadd.f32 %v7019, %v7175
  %v7177 = vpop.f32.mrb[0].mxu0
  %7178 = vmatprep.mubr.f32.mxu0 0.0
  %7179 = vmatmul.mubr.f32.gmra.mrb[0].mxu0 %v7049
  %v7180 = vpop.f32.mrb[0].mxu0
  %v7181 = vadd.f32 %v7019, %v7180
  %v7182 = vpop.f32.mrb[0].mxu0
  %7183 = vmatprep.mubr.f32.mxu0 0.0
  %7184 = vmatmul.mubr.f32.gmra.mrb[0].mxu0 %v7052
  %v7185 = vpop.f32.mrb[0].mxu0
  %v7186 = vadd.f32 %v7019, %v7185
  %v7187 = vpop.f32.mrb[0].mxu0
  %7188 = vmatprep.mubr.f32.mxu0 0.0
  %7189 = vmatmul.mubr.f32.gmra.mrb[0].mxu0 %v7055
  %v7190 = vpop.f32.mrb[0].mxu0
  %v7191 = vadd.f32 %v7019, %v7190
  %v7192 = vpop.f32.mrb[0].mxu0
  %7193 = vmatprep.mubr.f32.mxu0 0.0
  %7194 = vmatmul.mubr.f32.gmra.mrb[0].mxu0 %v7058
  %v7195 = vpop.f32.mrb[0].mxu0
  %v7196 = vadd.f32 %v7019, %v7195
  %v7197 = vpop.f32.mrb[0].mxu0
  %7198 = vmatprep.mubr.f32.mxu0 0.0
  %7199 = vmatmul.mubr.f32.gmra.mrb[0].mxu0 %v7061
  %v7200 = vpop.f32.mrb[0].mxu0
  %v7201 = vadd.f32 %v7019, %v7200
  %v7202 = vpop.f32.mrb[0].mxu0
  %7203 = vmatprep.mubr.f32.mxu0 0.0
  %7204 = vmatmul.mubr.f32.gmra.mrb[0].mxu0 %v7064
  %v7205 = vpop.f32.mrb[0].mxu0
  %v7206 = vadd.f32 %v7019, %v7205
  %v7207 = vpop.f32.mrb[0].mxu0
  %7208 = vmatprep.mubr.f32.mxu0 0.0
  %7209 = vmatmul.mubr.f32.gmra.mrb[0].mxu0 %v7067
  %v7210 = vpop.f32.mrb[0].mxu0
  %v7211 = vadd.f32 %v7019, %v7210
  %v7212 = vpop.f32.mrb[0].mxu0
  %7213 = vdwg.mxu0
  %v7214 = vadd.f32 %v26, %v7136
  %v7215 = vadd.f32 %v27, %v7141
  %v7216 = vadd.f32 %v28, %v7146
  %v7217 = vadd.f32 %v29, %v7151
  %v7218 = vadd.f32 %v30, %v7156
  %v7219 = vadd.f32 %v31, %v7161
  %v7220 = vadd.f32 %v32, %v7166
  %v7221 = vadd.f32 %v33, %v7171
  %v7222 = vadd.f32 %v34, %v7176
  %v7223 = vadd.f32 %v35, %v7181
  %v7224 = vadd.f32 %v36, %v7186
  %v7225 = vadd.f32 %v37, %v7191
  %v7226 = vadd.f32 %v38, %v7196
  %v7227 = vadd.f32 %v39, %v7201
  %v7228 = vadd.f32 %v40, %v7206
  %v7229 = vadd.f32 %v41, %v7211
  %v7230 = vld [vmem:[%s6 + $0x4] sm:$0x1]
  %v7231 = vld [vmem:[%s6 + $0x5] sm:$0x1]
  %v7232 = vsel %vm53, %v7214, 0.0
  %7233 = vadd.xlane.f32.xlu0 %v7232
  %v7234 = vpop.xlane.xlu0 %7233
  %v7235 = vsel %vm53, %v7215, 0.0
  %7236 = vadd.xlane.f32.xlu0 %v7235
  %v7237 = vpop.xlane.xlu0 %7236
  %v7238 = vsel %vm53, %v7216, 0.0
  %7239 = vadd.xlane.f32.xlu0 %v7238
  %v7240 = vpop.xlane.xlu0 %7239
  %v7241 = vsel %vm53, %v7217, 0.0
  %7242 = vadd.xlane.f32.xlu0 %v7241
  %v7243 = vpop.xlane.xlu0 %7242
  %v7244 = vsel %vm53, %v7218, 0.0
  %7245 = vadd.xlane.f32.xlu0 %v7244
  %v7246 = vpop.xlane.xlu0 %7245
  %v7247 = vsel %vm53, %v7219, 0.0
  %7248 = vadd.xlane.f32.xlu0 %v7247
  %v7249 = vpop.xlane.xlu0 %7248
  %v7250 = vsel %vm53, %v7220, 0.0
  %7251 = vadd.xlane.f32.xlu0 %v7250
  %v7252 = vpop.xlane.xlu0 %7251
  %v7253 = vsel %vm53, %v7221, 0.0
  %7254 = vadd.xlane.f32.xlu0 %v7253
  %v7255 = vpop.xlane.xlu0 %7254
  %v7256 = vsel %vm53, %v7222, 0.0
  %7257 = vadd.xlane.f32.xlu0 %v7256
  %v7258 = vpop.xlane.xlu0 %7257
  %v7259 = vsel %vm53, %v7223, 0.0
  %7260 = vadd.xlane.f32.xlu0 %v7259
  %v7261 = vpop.xlane.xlu0 %7260
  %v7262 = vsel %vm53, %v7224, 0.0
  %7263 = vadd.xlane.f32.xlu0 %v7262
  %v7264 = vpop.xlane.xlu0 %7263
  %v7265 = vsel %vm53, %v7225, 0.0
  %7266 = vadd.xlane.f32.xlu0 %v7265
  %v7267 = vpop.xlane.xlu0 %7266
  %v7268 = vsel %vm53, %v7226, 0.0
  %7269 = vadd.xlane.f32.xlu0 %v7268
  %v7270 = vpop.xlane.xlu0 %7269
  %v7271 = vsel %vm53, %v7227, 0.0
  %7272 = vadd.xlane.f32.xlu0 %v7271
  %v7273 = vpop.xlane.xlu0 %7272
  %v7274 = vsel %vm53, %v7228, 0.0
  %7275 = vadd.xlane.f32.xlu0 %v7274
  %v7276 = vpop.xlane.xlu0 %7275
  %v7277 = vsel %vm53, %v7229, 0.0
  %7278 = vadd.xlane.f32.xlu0 %v7277
  %v7279 = vpop.xlane.xlu0 %7278
  %v7280 = vrcp.pop 32.0
  %v7281 = vmul.f32 %v7234, %v7280
  %v7282 = vmul.f32 %v7237, %v7280
  %v7283 = vmul.f32 %v7240, %v7280
  %v7284 = vmul.f32 %v7243, %v7280
  %v7285 = vmul.f32 %v7246, %v7280
  %v7286 = vmul.f32 %v7249, %v7280
  %v7287 = vmul.f32 %v7252, %v7280
  %v7288 = vmul.f32 %v7255, %v7280
  %v7289 = vmul.f32 %v7258, %v7280
  %v7290 = vmul.f32 %v7261, %v7280
  %v7291 = vmul.f32 %v7264, %v7280
  %v7292 = vmul.f32 %v7267, %v7280
  %v7293 = vmul.f32 %v7270, %v7280
  %v7294 = vmul.f32 %v7273, %v7280
  %v7295 = vmul.f32 %v7276, %v7280
  %v7296 = vmul.f32 %v7279, %v7280
  %v7297 = vsub.f32 %v7214, %v7281
  %v7298 = vsub.f32 %v7215, %v7282
  %v7299 = vsub.f32 %v7216, %v7283
  %v7300 = vsub.f32 %v7217, %v7284
  %v7301 = vsub.f32 %v7218, %v7285
  %v7302 = vsub.f32 %v7219, %v7286
  %v7303 = vsub.f32 %v7220, %v7287
  %v7304 = vsub.f32 %v7221, %v7288
  %v7305 = vsub.f32 %v7222, %v7289
  %v7306 = vsub.f32 %v7223, %v7290
  %v7307 = vsub.f32 %v7224, %v7291
  %v7308 = vsub.f32 %v7225, %v7292
  %v7309 = vsub.f32 %v7226, %v7293
  %v7310 = vsub.f32 %v7227, %v7294
  %v7311 = vsub.f32 %v7228, %v7295
  %v7312 = vsub.f32 %v7229, %v7296
  %v7313 = vmul.f32 %v7297, %v7297
  %v7314 = vmul.f32 %v7298, %v7298
  %v7315 = vmul.f32 %v7299, %v7299
  %v7316 = vmul.f32 %v7300, %v7300
  %v7317 = vmul.f32 %v7301, %v7301
  %v7318 = vmul.f32 %v7302, %v7302
  %v7319 = vmul.f32 %v7303, %v7303
  %v7320 = vmul.f32 %v7304, %v7304
  %v7321 = vmul.f32 %v7305, %v7305
  %v7322 = vmul.f32 %v7306, %v7306
  %v7323 = vmul.f32 %v7307, %v7307
  %v7324 = vmul.f32 %v7308, %v7308
  %v7325 = vmul.f32 %v7309, %v7309
  %v7326 = vmul.f32 %v7310, %v7310
  %v7327 = vmul.f32 %v7311, %v7311
  %v7328 = vmul.f32 %v7312, %v7312
  %v7329 = vsel %vm53, %v7313, 0.0
  %7330 = vadd.xlane.f32.xlu0 %v7329
  %v7331 = vpop.xlane.xlu0 %7330
  %v7332 = vsel %vm53, %v7314, 0.0
  %7333 = vadd.xlane.f32.xlu0 %v7332
  %v7334 = vpop.xlane.xlu0 %7333
  %v7335 = vsel %vm53, %v7315, 0.0
  %7336 = vadd.xlane.f32.xlu0 %v7335
  %v7337 = vpop.xlane.xlu0 %7336
  %v7338 = vsel %vm53, %v7316, 0.0
  %7339 = vadd.xlane.f32.xlu0 %v7338
  %v7340 = vpop.xlane.xlu0 %7339
  %v7341 = vsel %vm53, %v7317, 0.0
  %7342 = vadd.xlane.f32.xlu0 %v7341
  %v7343 = vpop.xlane.xlu0 %7342
  %v7344 = vsel %vm53, %v7318, 0.0
  %7345 = vadd.xlane.f32.xlu0 %v7344
  %v7346 = vpop.xlane.xlu0 %7345
  %v7347 = vsel %vm53, %v7319, 0.0
  %7348 = vadd.xlane.f32.xlu0 %v7347
  %v7349 = vpop.xlane.xlu0 %7348
  %v7350 = vsel %vm53, %v7320, 0.0
  %7351 = vadd.xlane.f32.xlu0 %v7350
  %v7352 = vpop.xlane.xlu0 %7351
  %v7353 = vsel %vm53, %v7321, 0.0
  %7354 = vadd.xlane.f32.xlu0 %v7353
  %v7355 = vpop.xlane.xlu0 %7354
  %v7356 = vsel %vm53, %v7322, 0.0
  %7357 = vadd.xlane.f32.xlu0 %v7356
  %v7358 = vpop.xlane.xlu0 %7357
  %v7359 = vsel %vm53, %v7323, 0.0
  %7360 = vadd.xlane.f32.xlu0 %v7359
  %v7361 = vpop.xlane.xlu0 %7360
  %v7362 = vsel %vm53, %v7324, 0.0
  %7363 = vadd.xlane.f32.xlu0 %v7362
  %v7364 = vpop.xlane.xlu0 %7363
  %v7365 = vsel %vm53, %v7325, 0.0
  %7366 = vadd.xlane.f32.xlu0 %v7365
  %v7367 = vpop.xlane.xlu0 %7366
  %v7368 = vsel %vm53, %v7326, 0.0
  %7369 = vadd.xlane.f32.xlu0 %v7368
  %v7370 = vpop.xlane.xlu0 %7369
  %v7371 = vsel %vm53, %v7327, 0.0
  %7372 = vadd.xlane.f32.xlu0 %v7371
  %v7373 = vpop.xlane.xlu0 %7372
  %v7374 = vsel %vm53, %v7328, 0.0
  %7375 = vadd.xlane.f32.xlu0 %v7374
  %v7376 = vpop.xlane.xlu0 %7375
  %v7377 = vmul.f32 %v7331, %v7280
  %v7378 = vmul.f32 %v7334, %v7280
  %v7379 = vmul.f32 %v7337, %v7280
  %v7380 = vmul.f32 %v7340, %v7280
  %v7381 = vmul.f32 %v7343, %v7280
  %v7382 = vmul.f32 %v7346, %v7280
  %v7383 = vmul.f32 %v7349, %v7280
  %v7384 = vmul.f32 %v7352, %v7280
  %v7385 = vmul.f32 %v7355, %v7280
  %v7386 = vmul.f32 %v7358, %v7280
  %v7387 = vmul.f32 %v7361, %v7280
  %v7388 = vmul.f32 %v7364, %v7280
  %v7389 = vmul.f32 %v7367, %v7280
  %v7390 = vmul.f32 %v7370, %v7280
  %v7391 = vmul.f32 %v7373, %v7280
  %v7392 = vmul.f32 %v7376, %v7280
  %v7393 = vadd.f32 %v7377, 1e-05
  %v7394 = vadd.f32 %v7378, 1e-05
  %v7395 = vadd.f32 %v7379, 1e-05
  %v7396 = vadd.f32 %v7380, 1e-05
  %v7397 = vadd.f32 %v7381, 1e-05
  %v7398 = vadd.f32 %v7382, 1e-05
  %v7399 = vadd.f32 %v7383, 1e-05
  %v7400 = vadd.f32 %v7384, 1e-05
  %v7401 = vadd.f32 %v7385, 1e-05
  %v7402 = vadd.f32 %v7386, 1e-05
  %v7403 = vadd.f32 %v7387, 1e-05
  %v7404 = vadd.f32 %v7388, 1e-05
  %v7405 = vadd.f32 %v7389, 1e-05
  %v7406 = vadd.f32 %v7390, 1e-05
  %v7407 = vadd.f32 %v7391, 1e-05
  %v7408 = vadd.f32 %v7392, 1e-05
  %v7409 = vrsqrt.pop %v7393
  %v7410 = vrsqrt.pop %v7394
  %v7411 = vrsqrt.pop %v7395
  %v7412 = vrsqrt.pop %v7396
  %v7413 = vrsqrt.pop %v7397
  %v7414 = vrsqrt.pop %v7398
  %v7415 = vrsqrt.pop %v7399
  %v7416 = vrsqrt.pop %v7400
  %v7417 = vrsqrt.pop %v7401
  %v7418 = vrsqrt.pop %v7402
  %v7419 = vrsqrt.pop %v7403
  %v7420 = vrsqrt.pop %v7404
  %v7421 = vrsqrt.pop %v7405
  %v7422 = vrsqrt.pop %v7406
  %v7423 = vrsqrt.pop %v7407
  %v7424 = vrsqrt.pop %v7408
  %v7425 = vmul.f32 %v7297, %v7409
  %v7426 = vmul.f32 %v7298, %v7410
  %v7427 = vmul.f32 %v7299, %v7411
  %v7428 = vmul.f32 %v7300, %v7412
  %v7429 = vmul.f32 %v7301, %v7413
  %v7430 = vmul.f32 %v7302, %v7414
  %v7431 = vmul.f32 %v7303, %v7415
  %v7432 = vmul.f32 %v7304, %v7416
  %v7433 = vmul.f32 %v7305, %v7417
  %v7434 = vmul.f32 %v7306, %v7418
  %v7435 = vmul.f32 %v7307, %v7419
  %v7436 = vmul.f32 %v7308, %v7420
  %v7437 = vmul.f32 %v7309, %v7421
  %v7438 = vmul.f32 %v7310, %v7422
  %v7439 = vmul.f32 %v7311, %v7423
  %v7440 = vmul.f32 %v7312, %v7424
  %v7442 = vlaneseq
  %v7443 = vshrl.u32 %v7442, 7
  %v7444 = vsub.s32 0, %v7443
  %v7445 = vrot.slane %v7230, %v7444
  %v7447 = vmul.f32 %v7425, %v7445
  %v7448 = vmul.f32 %v7426, %v7445
  %v7449 = vmul.f32 %v7427, %v7445
  %v7450 = vmul.f32 %v7428, %v7445
  %v7451 = vmul.f32 %v7429, %v7445
  %v7452 = vmul.f32 %v7430, %v7445
  %v7453 = vmul.f32 %v7431, %v7445
  %v7454 = vmul.f32 %v7432, %v7445
  %v7455 = vmul.f32 %v7433, %v7445
  %v7456 = vmul.f32 %v7434, %v7445
  %v7457 = vmul.f32 %v7435, %v7445
  %v7458 = vmul.f32 %v7436, %v7445
  %v7459 = vmul.f32 %v7437, %v7445
  %v7460 = vmul.f32 %v7438, %v7445
  %v7461 = vmul.f32 %v7439, %v7445
  %v7462 = vmul.f32 %v7440, %v7445
  %v7464 = vlaneseq
  %v7465 = vshrl.u32 %v7464, 7
  %v7466 = vsub.s32 0, %v7465
  %v7467 = vrot.slane %v7231, %v7466
  %v7469 = vadd.f32 %v7447, %v7467
  %v7470 = vadd.f32 %v7448, %v7467
  %v7471 = vadd.f32 %v7449, %v7467
  %v7472 = vadd.f32 %v7450, %v7467
  %v7473 = vadd.f32 %v7451, %v7467
  %v7474 = vadd.f32 %v7452, %v7467
  %v7475 = vadd.f32 %v7453, %v7467
  %v7476 = vadd.f32 %v7454, %v7467
  %v7477 = vadd.f32 %v7455, %v7467
  %v7478 = vadd.f32 %v7456, %v7467
  %v7479 = vadd.f32 %v7457, %v7467
  %v7480 = vadd.f32 %v7458, %v7467
  %v7481 = vadd.f32 %v7459, %v7467
  %v7482 = vadd.f32 %v7460, %v7467
  %v7483 = vadd.f32 %v7461, %v7467
  %v7484 = vadd.f32 %v7462, %v7467
  %v7485 = vld [vmem:[%s3] sm:$0xff]
  %v7486 = vld [vmem:[%s3 + $0x8] sm:$0xff]
  %v7487 = vld [vmem:[%s3 + $0x10] sm:$0xff]
  %v7488 = vld [vmem:[%s3 + $0x18] sm:$0xff]
  %v7489 = vld [vmem:[%s6 + $0x2] sm:$0x1]
  %v7491 = vlaneseq
  %v7492 = vshrl.u32 %v7491, 7
  %v7493 = vsub.s32 0, %v7492
  %v7494 = vrot.slane %v7489, %v7493
  %v7497 = vsel %vm53, %v7469, 0
  %v7500 = vsel %vm53, %v7470, 0
  %v7503 = vsel %vm53, %v7471, 0
  %v7506 = vsel %vm53, %v7472, 0
  %v7509 = vsel %vm53, %v7473, 0
  %v7512 = vsel %vm53, %v7474, 0
  %v7515 = vsel %vm53, %v7475, 0
  %v7518 = vsel %vm53, %v7476, 0
  %v7521 = vsel %vm53, %v7477, 0
  %v7524 = vsel %vm53, %v7478, 0
  %v7527 = vsel %vm53, %v7479, 0
  %v7530 = vsel %vm53, %v7480, 0
  %v7533 = vsel %vm53, %v7481, 0
  %v7536 = vsel %vm53, %v7482, 0
  %v7539 = vsel %vm53, %v7483, 0
  %v7542 = vsel %vm53, %v7484, 0
  %7544 = vmatprep.subr.mxu0 0.0
  %7545 = vmatpush1.msra.mxu0 %v7485
  %7546 = vmatprep.subr.mxu0 0.0
  %7547 = vmatpush1.msra.mxu0 %v7486
  %7548 = vmatprep.subr.mxu0 0.0
  %7549 = vmatpush1.msra.mxu0 %v7487
  %7550 = vmatprep.subr.mxu0 0.0
  %7551 = vmatpush1.msra.mxu0 %v7488
  %7552 = vmatprep.subr.mxu0 0.0
  %7553 = vmatpush1.msra.mxu0 0.0
  %7554 = vmatprep.subr.mxu0 0.0
  %7555 = vmatpush1.msra.mxu0 0.0
  %7556 = vmatprep.subr.mxu0 0.0
  %7557 = vmatpush1.msra.mxu0 0.0
  %7558 = vmatprep.subr.mxu0 0.0
  %7559 = vmatpush1.msra.mxu0 0.0
  %7560 = vmatprep.subr.mxu0 0.0
  %7561 = vmatpush1.msra.mxu0 0.0
  %7562 = vmatprep.subr.mxu0 0.0
  %7563 = vmatpush1.msra.mxu0 0.0
  %7564 = vmatprep.subr.mxu0 0.0
  %7565 = vmatpush1.msra.mxu0 0.0
  %7566 = vmatprep.subr.mxu0 0.0
  %7567 = vmatpush1.msra.mxu0 0.0
  %7568 = vmatprep.subr.mxu0 0.0
  %7569 = vmatpush1.msra.mxu0 0.0
  %7570 = vmatprep.subr.mxu0 0.0
  %7571 = vmatpush1.msra.mxu0 0.0
  %7572 = vmatprep.subr.mxu0 0.0
  %7573 = vmatpush1.msra.mxu0 0.0
  %7574 = vmatprep.subr.mxu0 0.0
  %7575 = vmatpush1.msra.mxu0 0.0
  %7576 = vmatprep.subr.mxu0 0.0
  %7577 = vmatpush1.msra.mxu0 0.0
  %7578 = vmatprep.subr.mxu0 0.0
  %7579 = vmatpush1.msra.mxu0 0.0
  %7580 = vmatprep.subr.mxu0 0.0
  %7581 = vmatpush1.msra.mxu0 0.0
  %7582 = vmatprep.subr.mxu0 0.0
  %7583 = vmatpush1.msra.mxu0 0.0
  %7584 = vmatprep.subr.mxu0 0.0
  %7585 = vmatpush1.msra.mxu0 0.0
  %7586 = vmatprep.subr.mxu0 0.0
  %7587 = vmatpush1.msra.mxu0 0.0
  %7588 = vmatprep.subr.mxu0 0.0
  %7589 = vmatpush1.msra.mxu0 0.0
  %7590 = vmatprep.subr.mxu0 0.0
  %7591 = vmatpush1.msra.mxu0 0.0
  %7592 = vmatprep.subr.mxu0 0.0
  %7593 = vmatpush1.msra.mxu0 0.0
  %7594 = vmatprep.subr.mxu0 0.0
  %7595 = vmatpush1.msra.mxu0 0.0
  %7596 = vmatprep.subr.mxu0 0.0
  %7597 = vmatpush1.msra.mxu0 0.0
  %7598 = vmatprep.subr.mxu0 0.0
  %7599 = vmatpush1.msra.mxu0 0.0
  %7600 = vmatprep.subr.mxu0 0.0
  %7601 = vmatpush1.msra.mxu0 0.0
  %7602 = vmatprep.subr.mxu0 0.0
  %7603 = vmatpush1.msra.mxu0 0.0
  %7604 = vmatprep.subr.mxu0 0.0
  %7605 = vmatpush1.msra.mxu0 0.0
  %7606 = vmatprep.subr.mxu0 0.0
  %7607 = vmatpush1.msra.mxu0 0.0
  %7608 = vmatprep.mubr.f32.mxu0 0.0
  %7609 = vmatmul.mubr.f32.gmra.mrb[0].mxu0 %v7497
  %v7610 = vpop.f32.mrb[0].mxu0
  %v7611 = vadd.f32 %v7494, %v7610
  %v7612 = vpop.f32.mrb[0].mxu0
  %7613 = vmatprep.mubr.f32.mxu0 0.0
  %7614 = vmatmul.mubr.f32.gmra.mrb[0].mxu0 %v7500
  %v7615 = vpop.f32.mrb[0].mxu0
  %v7616 = vadd.f32 %v7494, %v7615
  %v7617 = vpop.f32.mrb[0].mxu0
  %7618 = vmatprep.mubr.f32.mxu0 0.0
  %7619 = vmatmul.mubr.f32.gmra.mrb[0].mxu0 %v7503
  %v7620 = vpop.f32.mrb[0].mxu0
  %v7621 = vadd.f32 %v7494, %v7620
  %v7622 = vpop.f32.mrb[0].mxu0
  %7623 = vmatprep.mubr.f32.mxu0 0.0
  %7624 = vmatmul.mubr.f32.gmra.mrb[0].mxu0 %v7506
  %v7625 = vpop.f32.mrb[0].mxu0
  %v7626 = vadd.f32 %v7494, %v7625
  %v7627 = vpop.f32.mrb[0].mxu0
  %7628 = vmatprep.mubr.f32.mxu0 0.0
  %7629 = vmatmul.mubr.f32.gmra.mrb[0].mxu0 %v7509
  %v7630 = vpop.f32.mrb[0].mxu0
  %v7631 = vadd.f32 %v7494, %v7630
  %v7632 = vpop.f32.mrb[0].mxu0
  %7633 = vmatprep.mubr.f32.mxu0 0.0
  %7634 = vmatmul.mubr.f32.gmra.mrb[0].mxu0 %v7512
  %v7635 = vpop.f32.mrb[0].mxu0
  %v7636 = vadd.f32 %v7494, %v7635
  %v7637 = vpop.f32.mrb[0].mxu0
  %7638 = vmatprep.mubr.f32.mxu0 0.0
  %7639 = vmatmul.mubr.f32.gmra.mrb[0].mxu0 %v7515
  %v7640 = vpop.f32.mrb[0].mxu0
  %v7641 = vadd.f32 %v7494, %v7640
  %v7642 = vpop.f32.mrb[0].mxu0
  %7643 = vmatprep.mubr.f32.mxu0 0.0
  %7644 = vmatmul.mubr.f32.gmra.mrb[0].mxu0 %v7518
  %v7645 = vpop.f32.mrb[0].mxu0
  %v7646 = vadd.f32 %v7494, %v7645
  %v7647 = vpop.f32.mrb[0].mxu0
  %7648 = vmatprep.mubr.f32.mxu0 0.0
  %7649 = vmatmul.mubr.f32.gmra.mrb[0].mxu0 %v7521
  %v7650 = vpop.f32.mrb[0].mxu0
  %v7651 = vadd.f32 %v7494, %v7650
  %v7652 = vpop.f32.mrb[0].mxu0
  %7653 = vmatprep.mubr.f32.mxu0 0.0
  %7654 = vmatmul.mubr.f32.gmra.mrb[0].mxu0 %v7524
  %v7655 = vpop.f32.mrb[0].mxu0
  %v7656 = vadd.f32 %v7494, %v7655
  %v7657 = vpop.f32.mrb[0].mxu0
  %7658 = vmatprep.mubr.f32.mxu0 0.0
  %7659 = vmatmul.mubr.f32.gmra.mrb[0].mxu0 %v7527
  %v7660 = vpop.f32.mrb[0].mxu0
  %v7661 = vadd.f32 %v7494, %v7660
  %v7662 = vpop.f32.mrb[0].mxu0
  %7663 = vmatprep.mubr.f32.mxu0 0.0
  %7664 = vmatmul.mubr.f32.gmra.mrb[0].mxu0 %v7530
  %v7665 = vpop.f32.mrb[0].mxu0
  %v7666 = vadd.f32 %v7494, %v7665
  %v7667 = vpop.f32.mrb[0].mxu0
  %7668 = vmatprep.mubr.f32.mxu0 0.0
  %7669 = vmatmul.mubr.f32.gmra.mrb[0].mxu0 %v7533
  %v7670 = vpop.f32.mrb[0].mxu0
  %v7671 = vadd.f32 %v7494, %v7670
  %v7672 = vpop.f32.mrb[0].mxu0
  %7673 = vmatprep.mubr.f32.mxu0 0.0
  %7674 = vmatmul.mubr.f32.gmra.mrb[0].mxu0 %v7536
  %v7675 = vpop.f32.mrb[0].mxu0
  %v7676 = vadd.f32 %v7494, %v7675
  %v7677 = vpop.f32.mrb[0].mxu0
  %7678 = vmatprep.mubr.f32.mxu0 0.0
  %7679 = vmatmul.mubr.f32.gmra.mrb[0].mxu0 %v7539
  %v7680 = vpop.f32.mrb[0].mxu0
  %v7681 = vadd.f32 %v7494, %v7680
  %v7682 = vpop.f32.mrb[0].mxu0
  %7683 = vmatprep.mubr.f32.mxu0 0.0
  %7684 = vmatmul.mubr.f32.gmra.mrb[0].mxu0 %v7542
  %v7685 = vpop.f32.mrb[0].mxu0
  %v7686 = vadd.f32 %v7494, %v7685
  %v7687 = vpop.f32.mrb[0].mxu0
  %7688 = vdwg.mxu0
  %v7689 = vmax.f32 %v7611, 0.0
  %v7690 = vmax.f32 %v7616, 0.0
  %v7691 = vmax.f32 %v7621, 0.0
  %v7692 = vmax.f32 %v7626, 0.0
  %v7693 = vmax.f32 %v7631, 0.0
  %v7694 = vmax.f32 %v7636, 0.0
  %v7695 = vmax.f32 %v7641, 0.0
  %v7696 = vmax.f32 %v7646, 0.0
  %v7697 = vmax.f32 %v7651, 0.0
  %v7698 = vmax.f32 %v7656, 0.0
  %v7699 = vmax.f32 %v7661, 0.0
  %v7700 = vmax.f32 %v7666, 0.0
  %v7701 = vmax.f32 %v7671, 0.0
  %v7702 = vmax.f32 %v7676, 0.0
  %v7703 = vmax.f32 %v7681, 0.0
  %v7704 = vmax.f32 %v7686, 0.0
  %v7705 = vld [vmem:[%s4] sm:$0xff]
  %v7706 = vld [vmem:[%s4 + $0x8] sm:$0xff]
  %v7707 = vld [vmem:[%s4 + $0x10] sm:$0xff]
  %v7708 = vld [vmem:[%s4 + $0x18] sm:$0xff]
  %v7709 = vld [vmem:[%s4 + $0x20] sm:$0xff]
  %v7710 = vld [vmem:[%s4 + $0x28] sm:$0xff]
  %v7711 = vld [vmem:[%s4 + $0x30] sm:$0xff]
  %v7712 = vld [vmem:[%s4 + $0x38] sm:$0xff]
  %v7713 = vld [vmem:[%s6 + $0x3] sm:$0x1]
  %v7715 = vlaneseq
  %v7716 = vshrl.u32 %v7715, 7
  %v7717 = vsub.s32 0, %v7716
  %v7718 = vrot.slane %v7713, %v7717
  %vm7720 = vcmask 523264
  %v7722 = vsel %vm7720, %v7689, 0
  %v7725 = vsel %vm7720, %v7690, 0
  %v7728 = vsel %vm7720, %v7691, 0
  %v7731 = vsel %vm7720, %v7692, 0
  %v7734 = vsel %vm7720, %v7693, 0
  %v7737 = vsel %vm7720, %v7694, 0
  %v7740 = vsel %vm7720, %v7695, 0
  %v7743 = vsel %vm7720, %v7696, 0
  %v7746 = vsel %vm7720, %v7697, 0
  %v7749 = vsel %vm7720, %v7698, 0
  %v7752 = vsel %vm7720, %v7699, 0
  %v7755 = vsel %vm7720, %v7700, 0
  %v7758 = vsel %vm7720, %v7701, 0
  %v7761 = vsel %vm7720, %v7702, 0
  %v7764 = vsel %vm7720, %v7703, 0
  %v7767 = vsel %vm7720, %v7704, 0
  %7769 = vmatprep.subr.mxu0 0.0
  %7770 = vmatpush1.msra.mxu0 %v7705
  %7771 = vmatprep.subr.mxu0 0.0
  %7772 = vmatpush1.msra.mxu0 %v7706
  %7773 = vmatprep.subr.mxu0 0.0
  %7774 = vmatpush1.msra.mxu0 %v7707
  %7775 = vmatprep.subr.mxu0 0.0
  %7776 = vmatpush1.msra.mxu0 %v7708
  %7777 = vmatprep.subr.mxu0 0.0
  %7778 = vmatpush1.msra.mxu0 %v7709
  %7779 = vmatprep.subr.mxu0 0.0
  %7780 = vmatpush1.msra.mxu0 %v7710
  %7781 = vmatprep.subr.mxu0 0.0
  %7782 = vmatpush1.msra.mxu0 %v7711
  %7783 = vmatprep.subr.mxu0 0.0
  %7784 = vmatpush1.msra.mxu0 %v7712
  %7785 = vmatprep.subr.mxu0 0.0
  %7786 = vmatpush1.msra.mxu0 0.0
  %7787 = vmatprep.subr.mxu0 0.0
  %7788 = vmatpush1.msra.mxu0 0.0
  %7789 = vmatprep.subr.mxu0 0.0
  %7790 = vmatpush1.msra.mxu0 0.0
  %7791 = vmatprep.subr.mxu0 0.0
  %7792 = vmatpush1.msra.mxu0 0.0
  %7793 = vmatprep.subr.mxu0 0.0
  %7794 = vmatpush1.msra.mxu0 0.0
  %7795 = vmatprep.subr.mxu0 0.0
  %7796 = vmatpush1.msra.mxu0 0.0
  %7797 = vmatprep.subr.mxu0 0.0
  %7798 = vmatpush1.msra.mxu0 0.0
  %7799 = vmatprep.subr.mxu0 0.0
  %7800 = vmatpush1.msra.mxu0 0.0
  %7801 = vmatprep.subr.mxu0 0.0
  %7802 = vmatpush1.msra.mxu0 0.0
  %7803 = vmatprep.subr.mxu0 0.0
  %7804 = vmatpush1.msra.mxu0 0.0
  %7805 = vmatprep.subr.mxu0 0.0
  %7806 = vmatpush1.msra.mxu0 0.0
  %7807 = vmatprep.subr.mxu0 0.0
  %7808 = vmatpush1.msra.mxu0 0.0
  %7809 = vmatprep.subr.mxu0 0.0
  %7810 = vmatpush1.msra.mxu0 0.0
  %7811 = vmatprep.subr.mxu0 0.0
  %7812 = vmatpush1.msra.mxu0 0.0
  %7813 = vmatprep.subr.mxu0 0.0
  %7814 = vmatpush1.msra.mxu0 0.0
  %7815 = vmatprep.subr.mxu0 0.0
  %7816 = vmatpush1.msra.mxu0 0.0
  %7817 = vmatprep.subr.mxu0 0.0
  %7818 = vmatpush1.msra.mxu0 0.0
  %7819 = vmatprep.subr.mxu0 0.0
  %7820 = vmatpush1.msra.mxu0 0.0
  %7821 = vmatprep.subr.mxu0 0.0
  %7822 = vmatpush1.msra.mxu0 0.0
  %7823 = vmatprep.subr.mxu0 0.0
  %7824 = vmatpush1.msra.mxu0 0.0
  %7825 = vmatprep.subr.mxu0 0.0
  %7826 = vmatpush1.msra.mxu0 0.0
  %7827 = vmatprep.subr.mxu0 0.0
  %7828 = vmatpush1.msra.mxu0 0.0
  %7829 = vmatprep.subr.mxu0 0.0
  %7830 = vmatpush1.msra.mxu0 0.0
  %7831 = vmatprep.subr.mxu0 0.0
  %7832 = vmatpush1.msra.mxu0 0.0
  %7833 = vmatprep.mubr.f32.mxu0 0.0
  %7834 = vmatmul.mubr.f32.gmra.mrb[0].mxu0 %v7722
  %v7835 = vpop.f32.mrb[0].mxu0
  %v7836 = vadd.f32 %v7718, %v7835
  %v7837 = vpop.f32.mrb[0].mxu0
  %7838 = vmatprep.mubr.f32.mxu0 0.0
  %7839 = vmatmul.mubr.f32.gmra.mrb[0].mxu0 %v7725
  %v7840 = vpop.f32.mrb[0].mxu0
  %v7841 = vadd.f32 %v7718, %v7840
  %v7842 = vpop.f32.mrb[0].mxu0
  %7843 = vmatprep.mubr.f32.mxu0 0.0
  %7844 = vmatmul.mubr.f32.gmra.mrb[0].mxu0 %v7728
  %v7845 = vpop.f32.mrb[0].mxu0
  %v7846 = vadd.f32 %v7718, %v7845
  %v7847 = vpop.f32.mrb[0].mxu0
  %7848 = vmatprep.mubr.f32.mxu0 0.0
  %7849 = vmatmul.mubr.f32.gmra.mrb[0].mxu0 %v7731
  %v7850 = vpop.f32.mrb[0].mxu0
  %v7851 = vadd.f32 %v7718, %v7850
  %v7852 = vpop.f32.mrb[0].mxu0
  %7853 = vmatprep.mubr.f32.mxu0 0.0
  %7854 = vmatmul.mubr.f32.gmra.mrb[0].mxu0 %v7734
  %v7855 = vpop.f32.mrb[0].mxu0
  %v7856 = vadd.f32 %v7718, %v7855
  %v7857 = vpop.f32.mrb[0].mxu0
  %7858 = vmatprep.mubr.f32.mxu0 0.0
  %7859 = vmatmul.mubr.f32.gmra.mrb[0].mxu0 %v7737
  %v7860 = vpop.f32.mrb[0].mxu0
  %v7861 = vadd.f32 %v7718, %v7860
  %v7862 = vpop.f32.mrb[0].mxu0
  %7863 = vmatprep.mubr.f32.mxu0 0.0
  %7864 = vmatmul.mubr.f32.gmra.mrb[0].mxu0 %v7740
  %v7865 = vpop.f32.mrb[0].mxu0
  %v7866 = vadd.f32 %v7718, %v7865
  %v7867 = vpop.f32.mrb[0].mxu0
  %7868 = vmatprep.mubr.f32.mxu0 0.0
  %7869 = vmatmul.mubr.f32.gmra.mrb[0].mxu0 %v7743
  %v7870 = vpop.f32.mrb[0].mxu0
  %v7871 = vadd.f32 %v7718, %v7870
  %v7872 = vpop.f32.mrb[0].mxu0
  %7873 = vmatprep.mubr.f32.mxu0 0.0
  %7874 = vmatmul.mubr.f32.gmra.mrb[0].mxu0 %v7746
  %v7875 = vpop.f32.mrb[0].mxu0
  %v7876 = vadd.f32 %v7718, %v7875
  %v7877 = vpop.f32.mrb[0].mxu0
  %7878 = vmatprep.mubr.f32.mxu0 0.0
  %7879 = vmatmul.mubr.f32.gmra.mrb[0].mxu0 %v7749
  %v7880 = vpop.f32.mrb[0].mxu0
  %v7881 = vadd.f32 %v7718, %v7880
  %v7882 = vpop.f32.mrb[0].mxu0
  %7883 = vmatprep.mubr.f32.mxu0 0.0
  %7884 = vmatmul.mubr.f32.gmra.mrb[0].mxu0 %v7752
  %v7885 = vpop.f32.mrb[0].mxu0
  %v7886 = vadd.f32 %v7718, %v7885
  %v7887 = vpop.f32.mrb[0].mxu0
  %7888 = vmatprep.mubr.f32.mxu0 0.0
  %7889 = vmatmul.mubr.f32.gmra.mrb[0].mxu0 %v7755
  %v7890 = vpop.f32.mrb[0].mxu0
  %v7891 = vadd.f32 %v7718, %v7890
  %v7892 = vpop.f32.mrb[0].mxu0
  %7893 = vmatprep.mubr.f32.mxu0 0.0
  %7894 = vmatmul.mubr.f32.gmra.mrb[0].mxu0 %v7758
  %v7895 = vpop.f32.mrb[0].mxu0
  %v7896 = vadd.f32 %v7718, %v7895
  %v7897 = vpop.f32.mrb[0].mxu0
  %7898 = vmatprep.mubr.f32.mxu0 0.0
  %7899 = vmatmul.mubr.f32.gmra.mrb[0].mxu0 %v7761
  %v7900 = vpop.f32.mrb[0].mxu0
  %v7901 = vadd.f32 %v7718, %v7900
  %v7902 = vpop.f32.mrb[0].mxu0
  %7903 = vmatprep.mubr.f32.mxu0 0.0
  %7904 = vmatmul.mubr.f32.gmra.mrb[0].mxu0 %v7764
  %v7905 = vpop.f32.mrb[0].mxu0
  %v7906 = vadd.f32 %v7718, %v7905
  %v7907 = vpop.f32.mrb[0].mxu0
  %7908 = vmatprep.mubr.f32.mxu0 0.0
  %7909 = vmatmul.mubr.f32.gmra.mrb[0].mxu0 %v7767
  %v7910 = vpop.f32.mrb[0].mxu0
  %v7911 = vadd.f32 %v7718, %v7910
  %v7912 = vpop.f32.mrb[0].mxu0
  %7913 = vdwg.mxu0
  %v7914 = vadd.f32 %v7469, %v7836
  %v7915 = vadd.f32 %v7470, %v7841
  %v7916 = vadd.f32 %v7471, %v7846
  %v7917 = vadd.f32 %v7472, %v7851
  %v7918 = vadd.f32 %v7473, %v7856
  %v7919 = vadd.f32 %v7474, %v7861
  %v7920 = vadd.f32 %v7475, %v7866
  %v7921 = vadd.f32 %v7476, %v7871
  %v7922 = vadd.f32 %v7477, %v7876
  %v7923 = vadd.f32 %v7478, %v7881
  %v7924 = vadd.f32 %v7479, %v7886
  %v7925 = vadd.f32 %v7480, %v7891
  %v7926 = vadd.f32 %v7481, %v7896
  %v7927 = vadd.f32 %v7482, %v7901
  %v7928 = vadd.f32 %v7483, %v7906
  %v7929 = vadd.f32 %v7484, %v7911
  %v7930 = vld [vmem:[%s6 + $0x6] sm:$0x1]
  %v7931 = vld [vmem:[%s6 + $0x7] sm:$0x1]
  %v7932 = vsel %vm53, %v7914, 0.0
  %7933 = vadd.xlane.f32.xlu0 %v7932
  %v7934 = vpop.xlane.xlu0 %7933
  %v7935 = vsel %vm53, %v7915, 0.0
  %7936 = vadd.xlane.f32.xlu0 %v7935
  %v7937 = vpop.xlane.xlu0 %7936
  %v7938 = vsel %vm53, %v7916, 0.0
  %7939 = vadd.xlane.f32.xlu0 %v7938
  %v7940 = vpop.xlane.xlu0 %7939
  %v7941 = vsel %vm53, %v7917, 0.0
  %7942 = vadd.xlane.f32.xlu0 %v7941
  %v7943 = vpop.xlane.xlu0 %7942
  %v7944 = vsel %vm53, %v7918, 0.0
  %7945 = vadd.xlane.f32.xlu0 %v7944
  %v7946 = vpop.xlane.xlu0 %7945
  %v7947 = vsel %vm53, %v7919, 0.0
  %7948 = vadd.xlane.f32.xlu0 %v7947
  %v7949 = vpop.xlane.xlu0 %7948
  %v7950 = vsel %vm53, %v7920, 0.0
  %7951 = vadd.xlane.f32.xlu0 %v7950
  %v7952 = vpop.xlane.xlu0 %7951
  %v7953 = vsel %vm53, %v7921, 0.0
  %7954 = vadd.xlane.f32.xlu0 %v7953
  %v7955 = vpop.xlane.xlu0 %7954
  %v7956 = vsel %vm53, %v7922, 0.0
  %7957 = vadd.xlane.f32.xlu0 %v7956
  %v7958 = vpop.xlane.xlu0 %7957
  %v7959 = vsel %vm53, %v7923, 0.0
  %7960 = vadd.xlane.f32.xlu0 %v7959
  %v7961 = vpop.xlane.xlu0 %7960
  %v7962 = vsel %vm53, %v7924, 0.0
  %7963 = vadd.xlane.f32.xlu0 %v7962
  %v7964 = vpop.xlane.xlu0 %7963
  %v7965 = vsel %vm53, %v7925, 0.0
  %7966 = vadd.xlane.f32.xlu0 %v7965
  %v7967 = vpop.xlane.xlu0 %7966
  %v7968 = vsel %vm53, %v7926, 0.0
  %7969 = vadd.xlane.f32.xlu0 %v7968
  %v7970 = vpop.xlane.xlu0 %7969
  %v7971 = vsel %vm53, %v7927, 0.0
  %7972 = vadd.xlane.f32.xlu0 %v7971
  %v7973 = vpop.xlane.xlu0 %7972
  %v7974 = vsel %vm53, %v7928, 0.0
  %7975 = vadd.xlane.f32.xlu0 %v7974
  %v7976 = vpop.xlane.xlu0 %7975
  %v7977 = vsel %vm53, %v7929, 0.0
  %7978 = vadd.xlane.f32.xlu0 %v7977
  %v7979 = vpop.xlane.xlu0 %7978
  %v7980 = vmul.f32 %v7934, %v7280
  %v7981 = vmul.f32 %v7937, %v7280
  %v7982 = vmul.f32 %v7940, %v7280
  %v7983 = vmul.f32 %v7943, %v7280
  %v7984 = vmul.f32 %v7946, %v7280
  %v7985 = vmul.f32 %v7949, %v7280
  %v7986 = vmul.f32 %v7952, %v7280
  %v7987 = vmul.f32 %v7955, %v7280
  %v7988 = vmul.f32 %v7958, %v7280
  %v7989 = vmul.f32 %v7961, %v7280
  %v7990 = vmul.f32 %v7964, %v7280
  %v7991 = vmul.f32 %v7967, %v7280
  %v7992 = vmul.f32 %v7970, %v7280
  %v7993 = vmul.f32 %v7973, %v7280
  %v7994 = vmul.f32 %v7976, %v7280
  %v7995 = vmul.f32 %v7979, %v7280
  %v7996 = vsub.f32 %v7914, %v7980
  %v7997 = vsub.f32 %v7915, %v7981
  %v7998 = vsub.f32 %v7916, %v7982
  %v7999 = vsub.f32 %v7917, %v7983
  %v8000 = vsub.f32 %v7918, %v7984
  %v8001 = vsub.f32 %v7919, %v7985
  %v8002 = vsub.f32 %v7920, %v7986
  %v8003 = vsub.f32 %v7921, %v7987
  %v8004 = vsub.f32 %v7922, %v7988
  %v8005 = vsub.f32 %v7923, %v7989
  %v8006 = vsub.f32 %v7924, %v7990
  %v8007 = vsub.f32 %v7925, %v7991
  %v8008 = vsub.f32 %v7926, %v7992
  %v8009 = vsub.f32 %v7927, %v7993
  %v8010 = vsub.f32 %v7928, %v7994
  %v8011 = vsub.f32 %v7929, %v7995
  %v8012 = vmul.f32 %v7996, %v7996
  %v8013 = vmul.f32 %v7997, %v7997
  %v8014 = vmul.f32 %v7998, %v7998
  %v8015 = vmul.f32 %v7999, %v7999
  %v8016 = vmul.f32 %v8000, %v8000
  %v8017 = vmul.f32 %v8001, %v8001
  %v8018 = vmul.f32 %v8002, %v8002
  %v8019 = vmul.f32 %v8003, %v8003
  %v8020 = vmul.f32 %v8004, %v8004
  %v8021 = vmul.f32 %v8005, %v8005
  %v8022 = vmul.f32 %v8006, %v8006
  %v8023 = vmul.f32 %v8007, %v8007
  %v8024 = vmul.f32 %v8008, %v8008
  %v8025 = vmul.f32 %v8009, %v8009
  %v8026 = vmul.f32 %v8010, %v8010
  %v8027 = vmul.f32 %v8011, %v8011
  %v8028 = vsel %vm53, %v8012, 0.0
  %8029 = vadd.xlane.f32.xlu0 %v8028
  %v8030 = vpop.xlane.xlu0 %8029
  %v8031 = vsel %vm53, %v8013, 0.0
  %8032 = vadd.xlane.f32.xlu0 %v8031
  %v8033 = vpop.xlane.xlu0 %8032
  %v8034 = vsel %vm53, %v8014, 0.0
  %8035 = vadd.xlane.f32.xlu0 %v8034
  %v8036 = vpop.xlane.xlu0 %8035
  %v8037 = vsel %vm53, %v8015, 0.0
  %8038 = vadd.xlane.f32.xlu0 %v8037
  %v8039 = vpop.xlane.xlu0 %8038
  %v8040 = vsel %vm53, %v8016, 0.0
  %8041 = vadd.xlane.f32.xlu0 %v8040
  %v8042 = vpop.xlane.xlu0 %8041
  %v8043 = vsel %vm53, %v8017, 0.0
  %8044 = vadd.xlane.f32.xlu0 %v8043
  %v8045 = vpop.xlane.xlu0 %8044
  %v8046 = vsel %vm53, %v8018, 0.0
  %8047 = vadd.xlane.f32.xlu0 %v8046
  %v8048 = vpop.xlane.xlu0 %8047
  %v8049 = vsel %vm53, %v8019, 0.0
  %8050 = vadd.xlane.f32.xlu0 %v8049
  %v8051 = vpop.xlane.xlu0 %8050
  %v8052 = vsel %vm53, %v8020, 0.0
  %8053 = vadd.xlane.f32.xlu0 %v8052
  %v8054 = vpop.xlane.xlu0 %8053
  %v8055 = vsel %vm53, %v8021, 0.0
  %8056 = vadd.xlane.f32.xlu0 %v8055
  %v8057 = vpop.xlane.xlu0 %8056
  %v8058 = vsel %vm53, %v8022, 0.0
  %8059 = vadd.xlane.f32.xlu0 %v8058
  %v8060 = vpop.xlane.xlu0 %8059
  %v8061 = vsel %vm53, %v8023, 0.0
  %8062 = vadd.xlane.f32.xlu0 %v8061
  %v8063 = vpop.xlane.xlu0 %8062
  %v8064 = vsel %vm53, %v8024, 0.0
  %8065 = vadd.xlane.f32.xlu0 %v8064
  %v8066 = vpop.xlane.xlu0 %8065
  %v8067 = vsel %vm53, %v8025, 0.0
  %8068 = vadd.xlane.f32.xlu0 %v8067
  %v8069 = vpop.xlane.xlu0 %8068
  %v8070 = vsel %vm53, %v8026, 0.0
  %8071 = vadd.xlane.f32.xlu0 %v8070
  %v8072 = vpop.xlane.xlu0 %8071
  %v8073 = vsel %vm53, %v8027, 0.0
  %8074 = vadd.xlane.f32.xlu0 %v8073
  %v8075 = vpop.xlane.xlu0 %8074
  %v8076 = vmul.f32 %v8030, %v7280
  %v8077 = vmul.f32 %v8033, %v7280
  %v8078 = vmul.f32 %v8036, %v7280
  %v8079 = vmul.f32 %v8039, %v7280
  %v8080 = vmul.f32 %v8042, %v7280
  %v8081 = vmul.f32 %v8045, %v7280
  %v8082 = vmul.f32 %v8048, %v7280
  %v8083 = vmul.f32 %v8051, %v7280
  %v8084 = vmul.f32 %v8054, %v7280
  %v8085 = vmul.f32 %v8057, %v7280
  %v8086 = vmul.f32 %v8060, %v7280
  %v8087 = vmul.f32 %v8063, %v7280
  %v8088 = vmul.f32 %v8066, %v7280
  %v8089 = vmul.f32 %v8069, %v7280
  %v8090 = vmul.f32 %v8072, %v7280
  %v8091 = vmul.f32 %v8075, %v7280
  %v8092 = vadd.f32 %v8076, 1e-05
  %v8093 = vadd.f32 %v8077, 1e-05
  %v8094 = vadd.f32 %v8078, 1e-05
  %v8095 = vadd.f32 %v8079, 1e-05
  %v8096 = vadd.f32 %v8080, 1e-05
  %v8097 = vadd.f32 %v8081, 1e-05
  %v8098 = vadd.f32 %v8082, 1e-05
  %v8099 = vadd.f32 %v8083, 1e-05
  %v8100 = vadd.f32 %v8084, 1e-05
  %v8101 = vadd.f32 %v8085, 1e-05
  %v8102 = vadd.f32 %v8086, 1e-05
  %v8103 = vadd.f32 %v8087, 1e-05
  %v8104 = vadd.f32 %v8088, 1e-05
  %v8105 = vadd.f32 %v8089, 1e-05
  %v8106 = vadd.f32 %v8090, 1e-05
  %v8107 = vadd.f32 %v8091, 1e-05
  %v8108 = vrsqrt.pop %v8092
  %v8109 = vrsqrt.pop %v8093
  %v8110 = vrsqrt.pop %v8094
  %v8111 = vrsqrt.pop %v8095
  %v8112 = vrsqrt.pop %v8096
  %v8113 = vrsqrt.pop %v8097
  %v8114 = vrsqrt.pop %v8098
  %v8115 = vrsqrt.pop %v8099
  %v8116 = vrsqrt.pop %v8100
  %v8117 = vrsqrt.pop %v8101
  %v8118 = vrsqrt.pop %v8102
  %v8119 = vrsqrt.pop %v8103
  %v8120 = vrsqrt.pop %v8104
  %v8121 = vrsqrt.pop %v8105
  %v8122 = vrsqrt.pop %v8106
  %v8123 = vrsqrt.pop %v8107
  %v8124 = vmul.f32 %v7996, %v8108
  %v8125 = vmul.f32 %v7997, %v8109
  %v8126 = vmul.f32 %v7998, %v8110
  %v8127 = vmul.f32 %v7999, %v8111
  %v8128 = vmul.f32 %v8000, %v8112
  %v8129 = vmul.f32 %v8001, %v8113
  %v8130 = vmul.f32 %v8002, %v8114
  %v8131 = vmul.f32 %v8003, %v8115
  %v8132 = vmul.f32 %v8004, %v8116
  %v8133 = vmul.f32 %v8005, %v8117
  %v8134 = vmul.f32 %v8006, %v8118
  %v8135 = vmul.f32 %v8007, %v8119
  %v8136 = vmul.f32 %v8008, %v8120
  %v8137 = vmul.f32 %v8009, %v8121
  %v8138 = vmul.f32 %v8010, %v8122
  %v8139 = vmul.f32 %v8011, %v8123
  %v8141 = vlaneseq
  %v8142 = vshrl.u32 %v8141, 7
  %v8143 = vsub.s32 0, %v8142
  %v8144 = vrot.slane %v7930, %v8143
  %v8146 = vmul.f32 %v8124, %v8144
  %v8147 = vmul.f32 %v8125, %v8144
  %v8148 = vmul.f32 %v8126, %v8144
  %v8149 = vmul.f32 %v8127, %v8144
  %v8150 = vmul.f32 %v8128, %v8144
  %v8151 = vmul.f32 %v8129, %v8144
  %v8152 = vmul.f32 %v8130, %v8144
  %v8153 = vmul.f32 %v8131, %v8144
  %v8154 = vmul.f32 %v8132, %v8144
  %v8155 = vmul.f32 %v8133, %v8144
  %v8156 = vmul.f32 %v8134, %v8144
  %v8157 = vmul.f32 %v8135, %v8144
  %v8158 = vmul.f32 %v8136, %v8144
  %v8159 = vmul.f32 %v8137, %v8144
  %v8160 = vmul.f32 %v8138, %v8144
  %v8161 = vmul.f32 %v8139, %v8144
  %v8163 = vlaneseq
  %v8164 = vshrl.u32 %v8163, 7
  %v8165 = vsub.s32 0, %v8164
  %v8166 = vrot.slane %v7931, %v8165
  %v8168 = vadd.f32 %v8146, %v8166
  %v8169 = vadd.f32 %v8147, %v8166
  %v8170 = vadd.f32 %v8148, %v8166
  %v8171 = vadd.f32 %v8149, %v8166
  %v8172 = vadd.f32 %v8150, %v8166
  %v8173 = vadd.f32 %v8151, %v8166
  %v8174 = vadd.f32 %v8152, %v8166
  %v8175 = vadd.f32 %v8153, %v8166
  %v8176 = vadd.f32 %v8154, %v8166
  %v8177 = vadd.f32 %v8155, %v8166
  %v8178 = vadd.f32 %v8156, %v8166
  %v8179 = vadd.f32 %v8157, %v8166
  %v8180 = vadd.f32 %v8158, %v8166
  %v8181 = vadd.f32 %v8159, %v8166
  %v8182 = vadd.f32 %v8160, %v8166
  %v8183 = vadd.f32 %v8161, %v8166
  %8184 = vst.msk [vmem:[%s7] sm:$0xff] %vm53, %v8168
  %8185 = vst.msk [vmem:[%s7 + $0x8] sm:$0xff] %vm53, %v8169
  %8186 = vst.msk [vmem:[%s7 + $0x10] sm:$0xff] %vm53, %v8170
  %8187 = vst.msk [vmem:[%s7 + $0x18] sm:$0xff] %vm53, %v8171
  %8188 = vst.msk [vmem:[%s7 + $0x20] sm:$0xff] %vm53, %v8172
  %8189 = vst.msk [vmem:[%s7 + $0x28] sm:$0xff] %vm53, %v8173
  %8190 = vst.msk [vmem:[%s7 + $0x30] sm:$0xff] %vm53, %v8174
  %8191 = vst.msk [vmem:[%s7 + $0x38] sm:$0xff] %vm53, %v8175
  %8192 = vst.msk [vmem:[%s7 + $0x40] sm:$0xff] %vm53, %v8176
  %8193 = vst.msk [vmem:[%s7 + $0x48] sm:$0xff] %vm53, %v8177
  %8194 = vst.msk [vmem:[%s7 + $0x50] sm:$0xff] %vm53, %v8178
  %8195 = vst.msk [vmem:[%s7 + $0x58] sm:$0xff] %vm53, %v8179
  %8196 = vst.msk [vmem:[%s7 + $0x60] sm:$0xff] %vm53, %v8180
  %8197 = vst.msk [vmem:[%s7 + $0x68] sm:$0xff] %vm53, %v8181
  %8198 = vst.msk [vmem:[%s7 + $0x70] sm:$0xff] %vm53, %v8182
  %8199 = vst.msk [vmem:[%s7 + $0x78] sm:$0xff] %vm53, %v8183
  // Predicated region
  $region30: #{tpu_custom_call.1} parent=0 // pred_check
    _
  $region31: #{tpu_custom_call.1} parent=0 // pred_check_branch
    %8201 = sbr.rel (0) target = $region33
  $region32: #{tpu_custom_call.1} parent=0 // pred_region
    _
  $region33: #{tpu_custom_call.1} parent=0 // pred_fallthru
    _
  // Predicated region
  $region34: #{tpu_custom_call.1} parent=0 // pred_check
    _
  $region35: #{tpu_custom_call.1} parent=0 // pred_check_branch
    %8203 = sbr.rel (0) target = $region37
  $region36: #{tpu_custom_call.1} parent=0 // pred_region
    _
  $region37: #{tpu_custom_call.1} parent=0 // pred_fallthru
    _

</llo_original>
